<compile_context>
chip_gen: v6e
topology: v6e:2x2x1
jax: 0.10.0
libtpu: 0.0.40
codegen_flags: <defaults>
</compile_context>

<pallas_src>
import jax
import jax.numpy as jnp
from jax import lax
from jax.experimental import pallas as pl
from jax.experimental.pallas import tpu as pltpu

H = 768                          # hidden size (fixed by module)
V = 49411                        # vocab size (fixed by module)
TN = 2048                        # vocab tile (lane-dense, multiple of 128)
NV = (V + TN - 1) // TN          # 25 vocab tiles
V_PAD = NV * TN                  # 51200 (weights / bias padded; output is V)


def _round_up(x, m):
    return ((x + m - 1) // m) * m


# ---------------------------------------------------------------------------
# Kernel 1: BertPredictionHeadTransform  (dense -> exact GELU -> LayerNorm)
# bf16 matmul operands, f32 accumulation / epilogue; emits bf16 activations.
# ---------------------------------------------------------------------------
def _transform_kernel(x_ref, w_ref, b_ref, g_ref, beta_ref, o_ref):
    x = x_ref[...].astype(jnp.bfloat16)                            # (tm, H)
    h = jnp.dot(x, w_ref[...], preferred_element_type=jnp.float32)
    h = h + b_ref[...]                                             # (1, H) bcast
    # exact (erf-based) GELU, matching torch.nn.GELU() default
    inv_sqrt2 = jnp.float32(0.7071067811865476)
    h = 0.5 * h * (1.0 + lax.erf(h * inv_sqrt2))
    # LayerNorm over last dim, eps = 1e-12
    mean = jnp.mean(h, axis=-1, keepdims=True)
    var = jnp.mean(jnp.square(h - mean), axis=-1, keepdims=True)
    h = (h - mean) * lax.rsqrt(var + jnp.float32(1e-12))
    o_ref[...] = (h * g_ref[...] + beta_ref[...]).astype(o_ref.dtype)


def transform(x2d, w_dense, b_dense, ln_gamma, ln_beta):
    M = x2d.shape[0]
    tm = min(1024, _round_up(M, 16))           # bf16 sublane packing
    n_m = pl.cdiv(M, tm)
    return pl.pallas_call(
        _transform_kernel,
        out_shape=jax.ShapeDtypeStruct((M, H), jnp.bfloat16),
        grid_spec=pl.GridSpec(
            grid=(n_m,),
            in_specs=[
                pl.BlockSpec((tm, H), lambda i: (i, 0)),
                pl.BlockSpec((H, H), lambda i: (0, 0)),   # resident across grid
                pl.BlockSpec((1, H), lambda i: (0, 0)),
                pl.BlockSpec((1, H), lambda i: (0, 0)),
                pl.BlockSpec((1, H), lambda i: (0, 0)),
            ],
            out_specs=pl.BlockSpec((tm, H), lambda i: (i, 0)),
        ),
        compiler_params=pltpu.CompilerParams(
            dimension_semantics=("parallel",),
            vmem_limit_bytes=32 << 20),
        cost_estimate=pl.CostEstimate(
            flops=2 * M * H * H + 10 * M * H,
            transcendentals=M * H,
            bytes_accessed=M * H * 4 + H * H * 2 + 4 * H * 4 + M * H * 2),
    )(x2d, w_dense, b_dense, ln_gamma, ln_beta)


# ---------------------------------------------------------------------------
# Kernel 2: decoder projection  (h_bf16 @ W_dec_bf16 + bias), f32 accumulation.
# Grid = (vocab tiles, row tiles): a W_dec tile stays resident across the row
# sweep so the ~75 MiB bf16 weight is streamed from HBM exactly once.
# Row axis is "arbitrary" so a v7x megacore split shards the vocab axis
# (each core streams only its half of W_dec).
# ---------------------------------------------------------------------------
def _decoder_kernel(x_ref, w_ref, b_ref, o_ref):
    acc = jnp.dot(x_ref[...], w_ref[...], preferred_element_type=jnp.float32)
    o_ref[...] = acc + b_ref[...]


def decoder(h2d, w_dec, bias):
    M = h2d.shape[0]
    tm = min(1024, _round_up(M, 16))           # bf16 sublane packing
    n_m = pl.cdiv(M, tm)
    return pl.pallas_call(
        _decoder_kernel,
        out_shape=jax.ShapeDtypeStruct((M, V), jnp.float32),
        grid_spec=pl.GridSpec(
            grid=(NV, n_m),                    # vocab outer, rows inner
            in_specs=[
                pl.BlockSpec((tm, H), lambda vj, mi: (mi, 0)),
                pl.BlockSpec((H, TN), lambda vj, mi: (0, vj)),
                pl.BlockSpec((1, TN), lambda vj, mi: (0, vj)),
            ],
            # ragged final vocab block (V = 49411 < 25*2048): Pallas masks the
            # out-of-bounds column stores, so no [:, :V] slice is needed.
            out_specs=pl.BlockSpec((tm, TN), lambda vj, mi: (mi, vj)),
        ),
        compiler_params=pltpu.CompilerParams(
            dimension_semantics=("parallel", "arbitrary"),
            # ~25 MiB working set at tm=1024: above v5e's 16 MiB default
            # scoped limit, under v7x's 64 MiB physical VMEM.
            vmem_limit_bytes=48 << 20),
        cost_estimate=pl.CostEstimate(
            flops=2 * M * H * V,
            transcendentals=0,
            bytes_accessed=H * V_PAD * 2 + NV * M * H * 2
                           + M * V * 4 + V_PAD * 4),
    )(h2d, w_dec, bias)


# ---------------------------------------------------------------------------
# MLMHead wrapper
# ---------------------------------------------------------------------------
@jax.jit
def mlm_head(x, params):
    B, S, _ = x.shape
    x2d = x.reshape(B * S, H)
    h = transform(x2d, params["w_dense"], params["b_dense"],
                  params["ln_gamma"], params["ln_beta"])
    logits = decoder(h, params["w_dec"], params["bias"])
    return logits.reshape(B, S, V)


def init_params(key):
    k1, k2 = jax.random.split(key, 2)
    # deterministic synthetic init (shapes match the PyTorch module)
    # dense.weight^T, stored bf16 for native-rate MXU in the transform kernel
    w_dense = (jax.random.normal(k1, (H, H), jnp.float32) * 0.02
               ).astype(jnp.bfloat16)
    b_dense = jnp.zeros((1, H), jnp.float32)                        # dense.bias
    ln_gamma = jnp.ones((1, H), jnp.float32)                        # LayerNorm.weight
    ln_beta = jnp.zeros((1, H), jnp.float32)                        # LayerNorm.bias
    # decoder.weight is (V, H) in torch; store transposed (H, V), bf16,
    # zero-padded to V_PAD so every weight block read is in-bounds.
    w_dec = jax.random.normal(k2, (H, V), jnp.float32) * 0.02
    w_dec = jnp.pad(w_dec, ((0, 0), (0, V_PAD - V))).astype(jnp.bfloat16)
    bias = jnp.zeros((1, V_PAD), jnp.float32)                       # self.bias (zeros)
    return dict(w_dense=w_dense, b_dense=b_dense, ln_gamma=ln_gamma,
                ln_beta=ln_beta, w_dec=w_dec, bias=bias)


def _reference(x, params):
    """Pure-JAX reference using the same bf16-quantized operands."""
    x2d = x.reshape(-1, H).astype(jnp.bfloat16).astype(jnp.float32)
    w_dense = params["w_dense"].astype(jnp.float32)
    h = x2d @ w_dense + params["b_dense"]
    h = 0.5 * h * (1.0 + lax.erf(h * jnp.float32(0.7071067811865476)))
    mean = jnp.mean(h, axis=-1, keepdims=True)
    var = jnp.mean(jnp.square(h - mean), axis=-1, keepdims=True)
    h = (h - mean) * lax.rsqrt(var + 1e-12)
    h = h * params["ln_gamma"] + params["ln_beta"]
    h = h.astype(jnp.bfloat16).astype(jnp.float32)
    w = params["w_dec"].astype(jnp.float32)[:, :V]
    logits = h @ w + params["bias"][:, :V]
    return logits.reshape(x.shape[0], x.shape[1], V)


if __name__ == "__main__":
    key = jax.random.PRNGKey(0)
    kx, kp = jax.random.split(key)
    B, S = 2, 8
    x = jax.random.normal(kx, (B, S, H), jnp.float32)
    params = init_params(kp)

    out = mlm_head(x, params)
    jax.block_until_ready(out)
    assert out.shape == (B, S, V), out.shape

    ref = _reference(x, params)
    err = float(jnp.max(jnp.abs(out - ref)))
    assert err < 2e-2, f"max abs err vs bf16-aware reference: {err}"
    print("KERNEL_OK")
</pallas_src>

<mosaic_0001>
module attributes {stable_mosaic.version = 11 : i64} {
  func.func @_decoder_kernel(%arg0: i32, %arg1: i32, %arg2: memref<16x768xbf16, #tpu.memory_space<vmem>>, %arg3: memref<768x2048xbf16, #tpu.memory_space<vmem>>, %arg4: memref<1x2048xf32, #tpu.memory_space<vmem>>, %arg5: memref<16x2048xf32, #tpu.memory_space<vmem>>) attributes {dimension_semantics = [#tpu.dimension_semantics<parallel>, #tpu.dimension_semantics<arbitrary>], iteration_bounds = array<i64: 25, 1>, scalar_prefetch = 0 : i64, scratch_operands = 0 : i64, tpu.core_type = #tpu.core_type<tc>, window_params = [{transform_indices = @transform_0, window_bounds = array<i64: 16, 768>}, {transform_indices = @transform_1, window_bounds = array<i64: 768, 2048>}, {transform_indices = @transform_2, window_bounds = array<i64: 1, 2048>}, {transform_indices = @transform_3, window_bounds = array<i64: 16, 2048>}]} {
    %c0 = arith.constant 0 : index
    %c0_0 = arith.constant 0 : index
    %0 = vector.load %arg2[%c0, %c0_0] : memref<16x768xbf16, #tpu.memory_space<vmem>>, vector<16x768xbf16>
    %c0_1 = arith.constant 0 : index
    %c0_2 = arith.constant 0 : index
    %1 = vector.load %arg3[%c0_1, %c0_2] : memref<768x2048xbf16, #tpu.memory_space<vmem>>, vector<768x2048xbf16>
    %cst = arith.constant dense<0.000000e+00> : vector<16x2048xf32>
    %2 = tpu.matmul %0, %1, %cst {dimension_numbers = #tpu.dot_dimension_numbers<[1], [0], [0], [1], [0, 0, 1, 1], [], []>} : vector<16x768xbf16>, vector<768x2048xbf16>, vector<16x2048xf32> -> vector<16x2048xf32>
    %c0_3 = arith.constant 0 : index
    %c0_4 = arith.constant 0 : index
    %3 = vector.load %arg4[%c0_3, %c0_4] : memref<1x2048xf32, #tpu.memory_space<vmem>>, vector<1x2048xf32>
    %4 = vector.broadcast %3 : vector<1x2048xf32> to vector<16x2048xf32>
    %5 = arith.addf %2, %4 : vector<16x2048xf32>
    %c0_5 = arith.constant 0 : index
    %c0_6 = arith.constant 0 : index
    %6 = vector.load %arg5[%c0_5, %c0_6] : memref<16x2048xf32, #tpu.memory_space<vmem>>, vector<16x2048xf32>
    tpu.vector_store %arg5[%c0_5, %c0_6], %5 {strides = array<i32>} : memref<16x2048xf32, #tpu.memory_space<vmem>>, vector<16x2048xf32>,
    return
  }
  func.func @transform_0(%arg0: i32, %arg1: i32) -> (i32, i32) {
    %c0_i32 = arith.constant 0 : i32
    %c0_i32_0 = arith.constant 0 : i32
    return %arg1, %c0_i32 : i32, i32
  }
  func.func @transform_1(%arg0: i32, %arg1: i32) -> (i32, i32) {
    %c0_i32 = arith.constant 0 : i32
    %c0_i32_0 = arith.constant 0 : i32
    return %c0_i32, %arg0 : i32, i32
  }
  func.func @transform_2(%arg0: i32, %arg1: i32) -> (i32, i32) {
    %c0_i32 = arith.constant 0 : i32
    %c0_i32_0 = arith.constant 0 : i32
    return %c0_i32, %arg0 : i32, i32
  }
  func.func @transform_3(%arg0: i32, %arg1: i32) -> (i32, i32) {
    %c0_i32 = arith.constant 0 : i32
    return %arg1, %arg0 : i32, i32
  }
}

module attributes {stable_mosaic.version = 11 : i64} {
  func.func @_transform_kernel(%arg0: i32, %arg1: memref<16x768xf32, #tpu.memory_space<vmem>>, %arg2: memref<768x768xbf16, #tpu.memory_space<vmem>>, %arg3: memref<1x768xf32, #tpu.memory_space<vmem>>, %arg4: memref<1x768xf32, #tpu.memory_space<vmem>>, %arg5: memref<1x768xf32, #tpu.memory_space<vmem>>, %arg6: memref<16x768xbf16, #tpu.memory_space<vmem>>) attributes {dimension_semantics = [#tpu.dimension_semantics<parallel>], iteration_bounds = array<i64: 1>, scalar_prefetch = 0 : i64, scratch_operands = 0 : i64, tpu.core_type = #tpu.core_type<tc>, window_params = [{transform_indices = @transform_0, window_bounds = array<i64: 16, 768>}, {pipeline_mode = #tpu.pipeline_mode<synchronous>, transform_indices = @transform_1, window_bounds = array<i64: 768, 768>}, {pipeline_mode = #tpu.pipeline_mode<synchronous>, transform_indices = @transform_2, window_bounds = array<i64: 1, 768>}, {pipeline_mode = #tpu.pipeline_mode<synchronous>, transform_indices = @transform_3, window_bounds = array<i64: 1, 768>}, {pipeline_mode = #tpu.pipeline_mode<synchronous>, transform_indices = @transform_4, window_bounds = array<i64: 1, 768>}, {transform_indices = @transform_5, window_bounds = array<i64: 16, 768>}]} {
    %c0 = arith.constant 0 : index
    %c0_0 = arith.constant 0 : index
    %0 = vector.load %arg1[%c0, %c0_0] : memref<16x768xf32, #tpu.memory_space<vmem>>, vector<16x768xf32>
    %1 = arith.truncf %0 : vector<16x768xf32> to vector<16x768xbf16>
    %c0_1 = arith.constant 0 : index
    %c0_2 = arith.constant 0 : index
    %2 = vector.load %arg2[%c0_1, %c0_2] : memref<768x768xbf16, #tpu.memory_space<vmem>>, vector<768x768xbf16>
    %cst = arith.constant dense<0.000000e+00> : vector<16x768xf32>
    %3 = tpu.matmul %1, %2, %cst {dimension_numbers = #tpu.dot_dimension_numbers<[1], [0], [0], [1], [0, 0, 1, 1], [], []>} : vector<16x768xbf16>, vector<768x768xbf16>, vector<16x768xf32> -> vector<16x768xf32>
    %c0_3 = arith.constant 0 : index
    %c0_4 = arith.constant 0 : index
    %4 = vector.load %arg3[%c0_3, %c0_4] : memref<1x768xf32, #tpu.memory_space<vmem>>, vector<1x768xf32>
    %5 = vector.broadcast %4 : vector<1x768xf32> to vector<16x768xf32>
    %6 = arith.addf %3, %5 : vector<16x768xf32>
    %cst_5 = arith.constant 5.000000e-01 : f32
    %7 = vector.broadcast %cst_5 : f32 to vector<16x768xf32>
    %8 = arith.mulf %7, %6 : vector<16x768xf32>
    %cst_6 = arith.constant 0.707106769 : f32
    %9 = vector.broadcast %cst_6 : f32 to vector<16x768xf32>
    %10 = arith.mulf %6, %9 : vector<16x768xf32>
    %11 = math.erf %10 : vector<16x768xf32>
    %cst_7 = arith.constant 1.000000e+00 : f32
    %12 = vector.broadcast %cst_7 : f32 to vector<16x768xf32>
    %13 = arith.addf %12, %11 : vector<16x768xf32>
    %14 = arith.mulf %8, %13 : vector<16x768xf32>
    %cst_8 = arith.constant dense<0.000000e+00> : vector<16xf32>
    %15 = vector.multi_reduction <add>, %14, %cst_8 [1] : vector<16x768xf32> to vector<16xf32>
    %16 = vector.shape_cast %15 : vector<16xf32> to vector<16x1xf32>
    %cst_9 = arith.constant 7.680000e+02 : f32
    %17 = vector.broadcast %cst_9 : f32 to vector<16x1xf32>
    %18 = arith.divf %16, %17 : vector<16x1xf32>
    %19 = vector.broadcast %18 : vector<16x1xf32> to vector<16x768xf32>
    %20 = arith.subf %14, %19 : vector<16x768xf32>
    %21 = arith.mulf %20, %20 : vector<16x768xf32>
    %cst_10 = arith.constant dense<0.000000e+00> : vector<16xf32>
    %22 = vector.multi_reduction <add>, %21, %cst_10 [1] : vector<16x768xf32> to vector<16xf32>
    %23 = vector.shape_cast %22 : vector<16xf32> to vector<16x1xf32>
    %cst_11 = arith.constant 7.680000e+02 : f32
    %24 = vector.broadcast %cst_11 : f32 to vector<16x1xf32>
    %25 = arith.divf %23, %24 : vector<16x1xf32>
    %26 = vector.broadcast %18 : vector<16x1xf32> to vector<16x768xf32>
    %27 = arith.subf %14, %26 : vector<16x768xf32>
    %cst_12 = arith.constant 9.99999996E-13 : f32
    %28 = vector.broadcast %cst_12 : f32 to vector<16x1xf32>
    %29 = arith.addf %25, %28 : vector<16x1xf32>
    %30 = math.rsqrt %29 : vector<16x1xf32>
    %31 = vector.broadcast %30 : vector<16x1xf32> to vector<16x768xf32>
    %32 = arith.mulf %27, %31 : vector<16x768xf32>
    %c0_13 = arith.constant 0 : index
    %c0_14 = arith.constant 0 : index
    %33 = vector.load %arg4[%c0_13, %c0_14] : memref<1x768xf32, #tpu.memory_space<vmem>>, vector<1x768xf32>
    %34 = vector.broadcast %33 : vector<1x768xf32> to vector<16x768xf32>
    %35 = arith.mulf %32, %34 : vector<16x768xf32>
    %c0_15 = arith.constant 0 : index
    %c0_16 = arith.constant 0 : index
    %36 = vector.load %arg5[%c0_15, %c0_16] : memref<1x768xf32, #tpu.memory_space<vmem>>, vector<1x768xf32>
    %37 = vector.broadcast %36 : vector<1x768xf32> to vector<16x768xf32>
    %38 = arith.addf %35, %37 : vector<16x768xf32>
    %39 = arith.truncf %38 : vector<16x768xf32> to vector<16x768xbf16>
    %c0_17 = arith.constant 0 : index
    %c0_18 = arith.constant 0 : index
    %40 = vector.load %arg6[%c0_17, %c0_18] : memref<16x768xbf16, #tpu.memory_space<vmem>>, vector<16x768xbf16>
    tpu.vector_store %arg6[%c0_17, %c0_18], %39 {strides = array<i32>} : memref<16x768xbf16, #tpu.memory_space<vmem>>, vector<16x768xbf16>,
    return
  }
  func.func @transform_0(%arg0: i32) -> (i32, i32) {
    %c0_i32 = arith.constant 0 : i32
    %c0_i32_0 = arith.constant 0 : i32
    return %arg0, %c0_i32 : i32, i32
  }
  func.func @transform_1(%arg0: i32) -> (i32, i32) {
    %c0_i32 = arith.constant 0 : i32
    %c0_i32_0 = arith.constant 0 : i32
    %c0_i32_1 = arith.constant 0 : i32
    return %c0_i32, %c0_i32_0 : i32, i32
  }
  func.func @transform_2(%arg0: i32) -> (i32, i32) {
    %c0_i32 = arith.constant 0 : i32
    %c0_i32_0 = arith.constant 0 : i32
    %c0_i32_1 = arith.constant 0 : i32
    return %c0_i32, %c0_i32_0 : i32, i32
  }
  func.func @transform_3(%arg0: i32) -> (i32, i32) {
    %c0_i32 = arith.constant 0 : i32
    %c0_i32_0 = arith.constant 0 : i32
    %c0_i32_1 = arith.constant 0 : i32
    return %c0_i32, %c0_i32_0 : i32, i32
  }
  func.func @transform_4(%arg0: i32) -> (i32, i32) {
    %c0_i32 = arith.constant 0 : i32
    %c0_i32_0 = arith.constant 0 : i32
    %c0_i32_1 = arith.constant 0 : i32
    return %c0_i32, %c0_i32_0 : i32, i32
  }
  func.func @transform_5(%arg0: i32) -> (i32, i32) {
    %c0_i32 = arith.constant 0 : i32
    %c0_i32_0 = arith.constant 0 : i32
    return %arg0, %c0_i32 : i32, i32
  }
}

</mosaic_0001>

<llo_original>
// kernel: mlm_head.2
$region0: #{mlm_head.2}
  #allocation0 [shape = 'u32[]', space=smem, size = 0x4, offset = 0x4, fixed_abs, tag = 'smem constant byte address 0x4 - core index']
  #allocation1 [shape = 'u32[144,128]{1,0:T(1,128)}', space=vmem, size = 0x12000, scoped, tag = 'internal scratch']
  %s0 = inlined_call_operand.hbm [shape: f32[16,768], index: 0, kind: input, shape index: {}]
  %s1 = inlined_call_operand.hbm [shape: bf16[768,768], index: 1, kind: input, shape index: {}]
  %s2 = inlined_call_operand.hbm [shape: f32[1,768], index: 2, kind: input, shape index: {}]
  %s3 = inlined_call_operand.hbm [shape: f32[1,768], index: 3, kind: input, shape index: {}]
  %s4 = inlined_call_operand.hbm [shape: f32[1,768], index: 4, kind: input, shape index: {}]
  %s5 = inlined_call_operand.vmem [shape: bf16[16,768], index: 5, kind: output, shape index: {}]
  %s6 = sld [smem:[#allocation0]]
  $region50: #{mlm_head.2} parent=0
    _
  %s8 = ssub.s32 1, %s6
  %s9 = scalar_select 0, %s8, %s6
  $region1: #{mlm_head.2} parent=0
    #allocation2 [shape = 'u8[49152]{0}', space=vmem, size = 0xc000, scoped, tag = 'input window, operand 0, single buffered']
    #allocation3 [shape = 's32[1]{0}', space=sflag, size = 0x4, scoped, tag = 'scoped memory for mlm_head.2']
    #allocation4 [shape = 'u8[1179648]{0}', space=vmem, size = 0x120000, scoped, tag = 'input window, operand 1, single buffered']
    #allocation5 [shape = 's32[1]{0}', space=sflag, size = 0x4, scoped, tag = 'scoped memory for mlm_head.2']
    #allocation6 [shape = 'u8[3072]{0}', space=vmem, size = 0xc00, scoped, tag = 'input window, operand 2, single buffered']
    #allocation7 [shape = 'u8[3072]{0}', space=vmem, size = 0xc00, scoped, tag = 'input window, operand 3, single buffered']
    #allocation8 [shape = 's32[1]{0}', space=sflag, size = 0x4, scoped, tag = 'scoped memory for mlm_head.2']
    #allocation9 [shape = 'u8[3072]{0}', space=vmem, size = 0xc00, scoped, tag = 'input window, operand 4, single buffered']
    %10 = vsyncpa [#allocation3], 0
    %11 = vsyncpa [#allocation5], 0
    %12 = vsyncpa [#allocation8], 0
    // Predicated region
    $region2: #{mlm_head.2} parent=1 // pred_check
      _
    $region3: #{mlm_head.2} parent=1 // pred_check_branch
      %14 = sbr.rel (0) target = $region5
    $region4: #{mlm_head.2} parent=1 // pred_region
      %s16 = ssub.s32 1536, 1536
      %17 = vsyncadd [#allocation3], %s16
      %s18 = sshll.u32 [#allocation2], 4
      %s19 = int_to_ptr.vmem [resolvable:$true] %s18
      %24 = dma.hbm_to_vmem [thread:$0]  %s0, 1536, %s19, [#allocation3], 768, 768, 48
    $region5: #{mlm_head.2} parent=1 // pred_fallthru
      _
    // Predicated region
    $region6: #{mlm_head.2} parent=1 // pred_check
      _
    $region7: #{mlm_head.2} parent=1 // pred_check_branch
      %26 = sbr.rel (0) target = $region9
    $region8: #{mlm_head.2} parent=1 // pred_region
      %s28 = ssub.s32 36864, 36864
      %29 = vsyncadd [#allocation5], %s28
      %s30 = sshll.u32 [#allocation4], 4
      %s31 = int_to_ptr.vmem [resolvable:$true] %s30
      %36 = dma.hbm_to_vmem [thread:$0]  %s1, 36864, %s31, [#allocation5], 384, 384, 24
    $region9: #{mlm_head.2} parent=1 // pred_fallthru
      _
    // Predicated region
    $region10: #{mlm_head.2} parent=1 // pred_check
      _
    $region11: #{mlm_head.2} parent=1 // pred_check_branch
      %38 = sbr.rel (0) target = $region13
    $region12: #{mlm_head.2} parent=1 // pred_region
      %s40 = ssub.s32 96, 96
      %41 = vsyncadd [#allocation5], %s40
      %s43 = sshll.u32 [#allocation6], 4
      %s44 = int_to_ptr.vmem [resolvable:$true] %s43
      %46 = dma.hbm_to_vmem [thread:$0]  %s2, 96, %s44, [#allocation5]
    $region13: #{mlm_head.2} parent=1 // pred_fallthru
      _
    // Predicated region
    $region14: #{mlm_head.2} parent=1 // pred_check
      _
    $region15: #{mlm_head.2} parent=1 // pred_check_branch
      %48 = sbr.rel (0) target = $region17
    $region16: #{mlm_head.2} parent=1 // pred_region
      %s50 = ssub.s32 96, 96
      %51 = vsyncadd [#allocation8], %s50
      %s53 = sshll.u32 [#allocation7], 4
      %s54 = int_to_ptr.vmem [resolvable:$true] %s53
      %56 = dma.hbm_to_vmem [thread:$0]  %s3, 96, %s54, [#allocation8]
    $region17: #{mlm_head.2} parent=1 // pred_fallthru
      _
    // Predicated region
    $region18: #{mlm_head.2} parent=1 // pred_check
      _
    $region19: #{mlm_head.2} parent=1 // pred_check_branch
      %58 = sbr.rel (0) target = $region21
    $region20: #{mlm_head.2} parent=1 // pred_region
      %s60 = ssub.s32 96, 96
      %61 = vsyncadd [#allocation8], %s60
      %s63 = sshll.u32 [#allocation9], 4
      %s64 = int_to_ptr.vmem [resolvable:$true] %s63
      %66 = dma.hbm_to_vmem [thread:$0]  %s4, 96, %s64, [#allocation8]
    $region21: #{mlm_head.2} parent=1 // pred_fallthru
      _
    // Predicated region
    $region22: #{mlm_head.2} parent=1 // pred_check
      _
    $region23: #{mlm_head.2} parent=1 // pred_check_branch
      %68 = sbr.rel (0) target = $region25
    $region24: #{mlm_head.2} parent=1 // pred_region
      %69 = dma.done [#allocation3], 1536
    $region25: #{mlm_head.2} parent=1 // pred_fallthru
      _
    // Predicated region
    $region26: #{mlm_head.2} parent=1 // pred_check
      _
    $region27: #{mlm_head.2} parent=1 // pred_check_branch
      %71 = sbr.rel (0) target = $region29
    $region28: #{mlm_head.2} parent=1 // pred_region
      %72 = dma.done [#allocation5], 36864
    $region29: #{mlm_head.2} parent=1 // pred_fallthru
      _
    // Predicated region
    $region30: #{mlm_head.2} parent=1 // pred_check
      _
    $region31: #{mlm_head.2} parent=1 // pred_check_branch
      %74 = sbr.rel (0) target = $region33
    $region32: #{mlm_head.2} parent=1 // pred_region
      %75 = dma.done [#allocation5], 96
    $region33: #{mlm_head.2} parent=1 // pred_fallthru
      _
    // Predicated region
    $region34: #{mlm_head.2} parent=1 // pred_check
      _
    $region35: #{mlm_head.2} parent=1 // pred_check_branch
      %77 = sbr.rel (0) target = $region37
    $region36: #{mlm_head.2} parent=1 // pred_region
      %78 = dma.done [#allocation8], 96
    $region37: #{mlm_head.2} parent=1 // pred_fallthru
      _
    // Predicated region
    $region38: #{mlm_head.2} parent=1 // pred_check
      _
    $region39: #{mlm_head.2} parent=1 // pred_check_branch
      %80 = sbr.rel (0) target = $region41
    $region40: #{mlm_head.2} parent=1 // pred_region
      %81 = dma.done [#allocation8], 96
    $region41: #{mlm_head.2} parent=1 // pred_fallthru
      _
    %v82 = vld [vmem:[#allocation2] sm:$0xff]
    %v83 = vld [vmem:[#allocation2 + $0x8] sm:$0xff]
    %v84 = vld [vmem:[#allocation2 + $0x10] sm:$0xff]
    %v85 = vld [vmem:[#allocation2 + $0x18] sm:$0xff]
    %v86 = vld [vmem:[#allocation2 + $0x20] sm:$0xff]
    %v87 = vld [vmem:[#allocation2 + $0x28] sm:$0xff]
    %v88 = vld [vmem:[#allocation2 + $0x30] sm:$0xff]
    %v89 = vld [vmem:[#allocation2 + $0x38] sm:$0xff]
    %v90 = vld [vmem:[#allocation2 + $0x40] sm:$0xff]
    %v91 = vld [vmem:[#allocation2 + $0x48] sm:$0xff]
    %v92 = vld [vmem:[#allocation2 + $0x50] sm:$0xff]
    %v93 = vld [vmem:[#allocation2 + $0x58] sm:$0xff]
    %v94 = vpack.c.bf16 %v88, %v82
    %v95 = vpack.c.bf16 %v89, %v83
    %v96 = vpack.c.bf16 %v90, %v84
    %v97 = vpack.c.bf16 %v91, %v85
    %v98 = vpack.c.bf16 %v92, %v86
    %v99 = vpack.c.bf16 %v93, %v87
    %v100 = vld [vmem:[#allocation4] sm:$0xff]
    %v101 = vld [vmem:[#allocation4 + $0x8] sm:$0xff]
    %v102 = vld [vmem:[#allocation4 + $0x10] sm:$0xff]
    %v103 = vld [vmem:[#allocation4 + $0x18] sm:$0xff]
    %v104 = vld [vmem:[#allocation4 + $0x20] sm:$0xff]
    %v105 = vld [vmem:[#allocation4 + $0x28] sm:$0xff]
    %v106 = vld [vmem:[#allocation4 + $0x30] sm:$0xff]
    %v107 = vld [vmem:[#allocation4 + $0x38] sm:$0xff]
    %v108 = vld [vmem:[#allocation4 + $0x40] sm:$0xff]
    %v109 = vld [vmem:[#allocation4 + $0x48] sm:$0xff]
    %v110 = vld [vmem:[#allocation4 + $0x50] sm:$0xff]
    %v111 = vld [vmem:[#allocation4 + $0x58] sm:$0xff]
    %v112 = vld [vmem:[#allocation4 + $0x60] sm:$0xff]
    %v113 = vld [vmem:[#allocation4 + $0x68] sm:$0xff]
    %v114 = vld [vmem:[#allocation4 + $0x70] sm:$0xff]
    %v115 = vld [vmem:[#allocation4 + $0x78] sm:$0xff]
    %v116 = vld [vmem:[#allocation4 + $0x80] sm:$0xff]
    %v117 = vld [vmem:[#allocation4 + $0x88] sm:$0xff]
    %v118 = vld [vmem:[#allocation4 + $0x90] sm:$0xff]
    %v119 = vld [vmem:[#allocation4 + $0x98] sm:$0xff]
    %v120 = vld [vmem:[#allocation4 + $0xa0] sm:$0xff]
    %v121 = vld [vmem:[#allocation4 + $0xa8] sm:$0xff]
    %v122 = vld [vmem:[#allocation4 + $0xb0] sm:$0xff]
    %v123 = vld [vmem:[#allocation4 + $0xb8] sm:$0xff]
    %v124 = vld [vmem:[#allocation4 + $0xc0] sm:$0xff]
    %v125 = vld [vmem:[#allocation4 + $0xc8] sm:$0xff]
    %v126 = vld [vmem:[#allocation4 + $0xd0] sm:$0xff]
    %v127 = vld [vmem:[#allocation4 + $0xd8] sm:$0xff]
    %v128 = vld [vmem:[#allocation4 + $0xe0] sm:$0xff]
    %v129 = vld [vmem:[#allocation4 + $0xe8] sm:$0xff]
    %v130 = vld [vmem:[#allocation4 + $0xf0] sm:$0xff]
    %v131 = vld [vmem:[#allocation4 + $0xf8] sm:$0xff]
    %v132 = vld [vmem:[#allocation4 + $0x100] sm:$0xff]
    %v133 = vld [vmem:[#allocation4 + $0x108] sm:$0xff]
    %v134 = vld [vmem:[#allocation4 + $0x110] sm:$0xff]
    %v135 = vld [vmem:[#allocation4 + $0x118] sm:$0xff]
    %v136 = vld [vmem:[#allocation4 + $0x120] sm:$0xff]
    %v137 = vld [vmem:[#allocation4 + $0x128] sm:$0xff]
    %v138 = vld [vmem:[#allocation4 + $0x130] sm:$0xff]
    %v139 = vld [vmem:[#allocation4 + $0x138] sm:$0xff]
    %v140 = vld [vmem:[#allocation4 + $0x140] sm:$0xff]
    %v141 = vld [vmem:[#allocation4 + $0x148] sm:$0xff]
    %v142 = vld [vmem:[#allocation4 + $0x150] sm:$0xff]
    %v143 = vld [vmem:[#allocation4 + $0x158] sm:$0xff]
    %v144 = vld [vmem:[#allocation4 + $0x160] sm:$0xff]
    %v145 = vld [vmem:[#allocation4 + $0x168] sm:$0xff]
    %v146 = vld [vmem:[#allocation4 + $0x170] sm:$0xff]
    %v147 = vld [vmem:[#allocation4 + $0x178] sm:$0xff]
    %v148 = vld [vmem:[#allocation4 + $0x180] sm:$0xff]
    %v149 = vld [vmem:[#allocation4 + $0x188] sm:$0xff]
    %v150 = vld [vmem:[#allocation4 + $0x190] sm:$0xff]
    %v151 = vld [vmem:[#allocation4 + $0x198] sm:$0xff]
    %v152 = vld [vmem:[#allocation4 + $0x1a0] sm:$0xff]
    %v153 = vld [vmem:[#allocation4 + $0x1a8] sm:$0xff]
    %v154 = vld [vmem:[#allocation4 + $0x1b0] sm:$0xff]
    %v155 = vld [vmem:[#allocation4 + $0x1b8] sm:$0xff]
    %v156 = vld [vmem:[#allocation4 + $0x1c0] sm:$0xff]
    %v157 = vld [vmem:[#allocation4 + $0x1c8] sm:$0xff]
    %v158 = vld [vmem:[#allocation4 + $0x1d0] sm:$0xff]
    %v159 = vld [vmem:[#allocation4 + $0x1d8] sm:$0xff]
    %v160 = vld [vmem:[#allocation4 + $0x1e0] sm:$0xff]
    %v161 = vld [vmem:[#allocation4 + $0x1e8] sm:$0xff]
    %v162 = vld [vmem:[#allocation4 + $0x1f0] sm:$0xff]
    %v163 = vld [vmem:[#allocation4 + $0x1f8] sm:$0xff]
    %v164 = vld [vmem:[#allocation4 + $0x200] sm:$0xff]
    %v165 = vld [vmem:[#allocation4 + $0x208] sm:$0xff]
    %v166 = vld [vmem:[#allocation4 + $0x210] sm:$0xff]
    %v167 = vld [vmem:[#allocation4 + $0x218] sm:$0xff]
    %v168 = vld [vmem:[#allocation4 + $0x220] sm:$0xff]
    %v169 = vld [vmem:[#allocation4 + $0x228] sm:$0xff]
    %v170 = vld [vmem:[#allocation4 + $0x230] sm:$0xff]
    %v171 = vld [vmem:[#allocation4 + $0x238] sm:$0xff]
    %v172 = vld [vmem:[#allocation4 + $0x240] sm:$0xff]
    %v173 = vld [vmem:[#allocation4 + $0x248] sm:$0xff]
    %v174 = vld [vmem:[#allocation4 + $0x250] sm:$0xff]
    %v175 = vld [vmem:[#allocation4 + $0x258] sm:$0xff]
    %v176 = vld [vmem:[#allocation4 + $0x260] sm:$0xff]
    %v177 = vld [vmem:[#allocation4 + $0x268] sm:$0xff]
    %v178 = vld [vmem:[#allocation4 + $0x270] sm:$0xff]
    %v179 = vld [vmem:[#allocation4 + $0x278] sm:$0xff]
    %v180 = vld [vmem:[#allocation4 + $0x280] sm:$0xff]
    %v181 = vld [vmem:[#allocation4 + $0x288] sm:$0xff]
    %v182 = vld [vmem:[#allocation4 + $0x290] sm:$0xff]
    %v183 = vld [vmem:[#allocation4 + $0x298] sm:$0xff]
    %v184 = vld [vmem:[#allocation4 + $0x2a0] sm:$0xff]
    %v185 = vld [vmem:[#allocation4 + $0x2a8] sm:$0xff]
    %v186 = vld [vmem:[#allocation4 + $0x2b0] sm:$0xff]
    %v187 = vld [vmem:[#allocation4 + $0x2b8] sm:$0xff]
    %v188 = vld [vmem:[#allocation4 + $0x2c0] sm:$0xff]
    %v189 = vld [vmem:[#allocation4 + $0x2c8] sm:$0xff]
    %v190 = vld [vmem:[#allocation4 + $0x2d0] sm:$0xff]
    %v191 = vld [vmem:[#allocation4 + $0x2d8] sm:$0xff]
    %v192 = vld [vmem:[#allocation4 + $0x2e0] sm:$0xff]
    %v193 = vld [vmem:[#allocation4 + $0x2e8] sm:$0xff]
    %v194 = vld [vmem:[#allocation4 + $0x2f0] sm:$0xff]
    %v195 = vld [vmem:[#allocation4 + $0x2f8] sm:$0xff]
    %v196 = vld [vmem:[#allocation4 + $0x300] sm:$0xff]
    %v197 = vld [vmem:[#allocation4 + $0x308] sm:$0xff]
    %v198 = vld [vmem:[#allocation4 + $0x310] sm:$0xff]
    %v199 = vld [vmem:[#allocation4 + $0x318] sm:$0xff]
    %v200 = vld [vmem:[#allocation4 + $0x320] sm:$0xff]
    %v201 = vld [vmem:[#allocation4 + $0x328] sm:$0xff]
    %v202 = vld [vmem:[#allocation4 + $0x330] sm:$0xff]
    %v203 = vld [vmem:[#allocation4 + $0x338] sm:$0xff]
    %v204 = vld [vmem:[#allocation4 + $0x340] sm:$0xff]
    %v205 = vld [vmem:[#allocation4 + $0x348] sm:$0xff]
    %v206 = vld [vmem:[#allocation4 + $0x350] sm:$0xff]
    %v207 = vld [vmem:[#allocation4 + $0x358] sm:$0xff]
    %v208 = vld [vmem:[#allocation4 + $0x360] sm:$0xff]
    %v209 = vld [vmem:[#allocation4 + $0x368] sm:$0xff]
    %v210 = vld [vmem:[#allocation4 + $0x370] sm:$0xff]
    %v211 = vld [vmem:[#allocation4 + $0x378] sm:$0xff]
    %v212 = vld [vmem:[#allocation4 + $0x380] sm:$0xff]
    %v213 = vld [vmem:[#allocation4 + $0x388] sm:$0xff]
    %v214 = vld [vmem:[#allocation4 + $0x390] sm:$0xff]
    %v215 = vld [vmem:[#allocation4 + $0x398] sm:$0xff]
    %v216 = vld [vmem:[#allocation4 + $0x3a0] sm:$0xff]
    %v217 = vld [vmem:[#allocation4 + $0x3a8] sm:$0xff]
    %v218 = vld [vmem:[#allocation4 + $0x3b0] sm:$0xff]
    %v219 = vld [vmem:[#allocation4 + $0x3b8] sm:$0xff]
    %v220 = vld [vmem:[#allocation4 + $0x3c0] sm:$0xff]
    %v221 = vld [vmem:[#allocation4 + $0x3c8] sm:$0xff]
    %v222 = vld [vmem:[#allocation4 + $0x3d0] sm:$0xff]
    %v223 = vld [vmem:[#allocation4 + $0x3d8] sm:$0xff]
    %v224 = vld [vmem:[#allocation4 + $0x3e0] sm:$0xff]
    %v225 = vld [vmem:[#allocation4 + $0x3e8] sm:$0xff]
    %v226 = vld [vmem:[#allocation4 + $0x3f0] sm:$0xff]
    %v227 = vld [vmem:[#allocation4 + $0x3f8] sm:$0xff]
    %v228 = vld [vmem:[#allocation4 + $0x400] sm:$0xff]
    %v229 = vld [vmem:[#allocation4 + $0x408] sm:$0xff]
    %v230 = vld [vmem:[#allocation4 + $0x410] sm:$0xff]
    %v231 = vld [vmem:[#allocation4 + $0x418] sm:$0xff]
    %v232 = vld [vmem:[#allocation4 + $0x420] sm:$0xff]
    %v233 = vld [vmem:[#allocation4 + $0x428] sm:$0xff]
    %v234 = vld [vmem:[#allocation4 + $0x430] sm:$0xff]
    %v235 = vld [vmem:[#allocation4 + $0x438] sm:$0xff]
    %v236 = vld [vmem:[#allocation4 + $0x440] sm:$0xff]
    %v237 = vld [vmem:[#allocation4 + $0x448] sm:$0xff]
    %v238 = vld [vmem:[#allocation4 + $0x450] sm:$0xff]
    %v239 = vld [vmem:[#allocation4 + $0x458] sm:$0xff]
    %v240 = vld [vmem:[#allocation4 + $0x460] sm:$0xff]
    %v241 = vld [vmem:[#allocation4 + $0x468] sm:$0xff]
    %v242 = vld [vmem:[#allocation4 + $0x470] sm:$0xff]
    %v243 = vld [vmem:[#allocation4 + $0x478] sm:$0xff]
    %v244 = vld [vmem:[#allocation4 + $0x480] sm:$0xff]
    %v245 = vld [vmem:[#allocation4 + $0x488] sm:$0xff]
    %v246 = vld [vmem:[#allocation4 + $0x490] sm:$0xff]
    %v247 = vld [vmem:[#allocation4 + $0x498] sm:$0xff]
    %v248 = vld [vmem:[#allocation4 + $0x4a0] sm:$0xff]
    %v249 = vld [vmem:[#allocation4 + $0x4a8] sm:$0xff]
    %v250 = vld [vmem:[#allocation4 + $0x4b0] sm:$0xff]
    %v251 = vld [vmem:[#allocation4 + $0x4b8] sm:$0xff]
    %v252 = vld [vmem:[#allocation4 + $0x4c0] sm:$0xff]
    %v253 = vld [vmem:[#allocation4 + $0x4c8] sm:$0xff]
    %v254 = vld [vmem:[#allocation4 + $0x4d0] sm:$0xff]
    %v255 = vld [vmem:[#allocation4 + $0x4d8] sm:$0xff]
    %v256 = vld [vmem:[#allocation4 + $0x4e0] sm:$0xff]
    %v257 = vld [vmem:[#allocation4 + $0x4e8] sm:$0xff]
    %v258 = vld [vmem:[#allocation4 + $0x4f0] sm:$0xff]
    %v259 = vld [vmem:[#allocation4 + $0x4f8] sm:$0xff]
    %v260 = vld [vmem:[#allocation4 + $0x500] sm:$0xff]
    %v261 = vld [vmem:[#allocation4 + $0x508] sm:$0xff]
    %v262 = vld [vmem:[#allocation4 + $0x510] sm:$0xff]
    %v263 = vld [vmem:[#allocation4 + $0x518] sm:$0xff]
    %v264 = vld [vmem:[#allocation4 + $0x520] sm:$0xff]
    %v265 = vld [vmem:[#allocation4 + $0x528] sm:$0xff]
    %v266 = vld [vmem:[#allocation4 + $0x530] sm:$0xff]
    %v267 = vld [vmem:[#allocation4 + $0x538] sm:$0xff]
    %v268 = vld [vmem:[#allocation4 + $0x540] sm:$0xff]
    %v269 = vld [vmem:[#allocation4 + $0x548] sm:$0xff]
    %v270 = vld [vmem:[#allocation4 + $0x550] sm:$0xff]
    %v271 = vld [vmem:[#allocation4 + $0x558] sm:$0xff]
    %v272 = vld [vmem:[#allocation4 + $0x560] sm:$0xff]
    %v273 = vld [vmem:[#allocation4 + $0x568] sm:$0xff]
    %v274 = vld [vmem:[#allocation4 + $0x570] sm:$0xff]
    %v275 = vld [vmem:[#allocation4 + $0x578] sm:$0xff]
    %v276 = vld [vmem:[#allocation4 + $0x580] sm:$0xff]
    %v277 = vld [vmem:[#allocation4 + $0x588] sm:$0xff]
    %v278 = vld [vmem:[#allocation4 + $0x590] sm:$0xff]
    %v279 = vld [vmem:[#allocation4 + $0x598] sm:$0xff]
    %v280 = vld [vmem:[#allocation4 + $0x5a0] sm:$0xff]
    %v281 = vld [vmem:[#allocation4 + $0x5a8] sm:$0xff]
    %v282 = vld [vmem:[#allocation4 + $0x5b0] sm:$0xff]
    %v283 = vld [vmem:[#allocation4 + $0x5b8] sm:$0xff]
    %v284 = vld [vmem:[#allocation4 + $0x5c0] sm:$0xff]
    %v285 = vld [vmem:[#allocation4 + $0x5c8] sm:$0xff]
    %v286 = vld [vmem:[#allocation4 + $0x5d0] sm:$0xff]
    %v287 = vld [vmem:[#allocation4 + $0x5d8] sm:$0xff]
    %v288 = vld [vmem:[#allocation4 + $0x5e0] sm:$0xff]
    %v289 = vld [vmem:[#allocation4 + $0x5e8] sm:$0xff]
    %v290 = vld [vmem:[#allocation4 + $0x5f0] sm:$0xff]
    %v291 = vld [vmem:[#allocation4 + $0x5f8] sm:$0xff]
    %v292 = vld [vmem:[#allocation4 + $0x600] sm:$0xff]
    %v293 = vld [vmem:[#allocation4 + $0x608] sm:$0xff]
    %v294 = vld [vmem:[#allocation4 + $0x610] sm:$0xff]
    %v295 = vld [vmem:[#allocation4 + $0x618] sm:$0xff]
    %v296 = vld [vmem:[#allocation4 + $0x620] sm:$0xff]
    %v297 = vld [vmem:[#allocation4 + $0x628] sm:$0xff]
    %v298 = vld [vmem:[#allocation4 + $0x630] sm:$0xff]
    %v299 = vld [vmem:[#allocation4 + $0x638] sm:$0xff]
    %v300 = vld [vmem:[#allocation4 + $0x640] sm:$0xff]
    %v301 = vld [vmem:[#allocation4 + $0x648] sm:$0xff]
    %v302 = vld [vmem:[#allocation4 + $0x650] sm:$0xff]
    %v303 = vld [vmem:[#allocation4 + $0x658] sm:$0xff]
    %v304 = vld [vmem:[#allocation4 + $0x660] sm:$0xff]
    %v305 = vld [vmem:[#allocation4 + $0x668] sm:$0xff]
    %v306 = vld [vmem:[#allocation4 + $0x670] sm:$0xff]
    %v307 = vld [vmem:[#allocation4 + $0x678] sm:$0xff]
    %v308 = vld [vmem:[#allocation4 + $0x680] sm:$0xff]
    %v309 = vld [vmem:[#allocation4 + $0x688] sm:$0xff]
    %v310 = vld [vmem:[#allocation4 + $0x690] sm:$0xff]
    %v311 = vld [vmem:[#allocation4 + $0x698] sm:$0xff]
    %v312 = vld [vmem:[#allocation4 + $0x6a0] sm:$0xff]
    %v313 = vld [vmem:[#allocation4 + $0x6a8] sm:$0xff]
    %v314 = vld [vmem:[#allocation4 + $0x6b0] sm:$0xff]
    %v315 = vld [vmem:[#allocation4 + $0x6b8] sm:$0xff]
    %v316 = vld [vmem:[#allocation4 + $0x6c0] sm:$0xff]
    %v317 = vld [vmem:[#allocation4 + $0x6c8] sm:$0xff]
    %v318 = vld [vmem:[#allocation4 + $0x6d0] sm:$0xff]
    %v319 = vld [vmem:[#allocation4 + $0x6d8] sm:$0xff]
    %v320 = vld [vmem:[#allocation4 + $0x6e0] sm:$0xff]
    %v321 = vld [vmem:[#allocation4 + $0x6e8] sm:$0xff]
    %v322 = vld [vmem:[#allocation4 + $0x6f0] sm:$0xff]
    %v323 = vld [vmem:[#allocation4 + $0x6f8] sm:$0xff]
    %v324 = vld [vmem:[#allocation4 + $0x700] sm:$0xff]
    %v325 = vld [vmem:[#allocation4 + $0x708] sm:$0xff]
    %v326 = vld [vmem:[#allocation4 + $0x710] sm:$0xff]
    %v327 = vld [vmem:[#allocation4 + $0x718] sm:$0xff]
    %v328 = vld [vmem:[#allocation4 + $0x720] sm:$0xff]
    %v329 = vld [vmem:[#allocation4 + $0x728] sm:$0xff]
    %v330 = vld [vmem:[#allocation4 + $0x730] sm:$0xff]
    %v331 = vld [vmem:[#allocation4 + $0x738] sm:$0xff]
    %v332 = vld [vmem:[#allocation4 + $0x740] sm:$0xff]
    %v333 = vld [vmem:[#allocation4 + $0x748] sm:$0xff]
    %v334 = vld [vmem:[#allocation4 + $0x750] sm:$0xff]
    %v335 = vld [vmem:[#allocation4 + $0x758] sm:$0xff]
    %v336 = vld [vmem:[#allocation4 + $0x760] sm:$0xff]
    %v337 = vld [vmem:[#allocation4 + $0x768] sm:$0xff]
    %v338 = vld [vmem:[#allocation4 + $0x770] sm:$0xff]
    %v339 = vld [vmem:[#allocation4 + $0x778] sm:$0xff]
    %v340 = vld [vmem:[#allocation4 + $0x780] sm:$0xff]
    %v341 = vld [vmem:[#allocation4 + $0x788] sm:$0xff]
    %v342 = vld [vmem:[#allocation4 + $0x790] sm:$0xff]
    %v343 = vld [vmem:[#allocation4 + $0x798] sm:$0xff]
    %v344 = vld [vmem:[#allocation4 + $0x7a0] sm:$0xff]
    %v345 = vld [vmem:[#allocation4 + $0x7a8] sm:$0xff]
    %v346 = vld [vmem:[#allocation4 + $0x7b0] sm:$0xff]
    %v347 = vld [vmem:[#allocation4 + $0x7b8] sm:$0xff]
    %v348 = vld [vmem:[#allocation4 + $0x7c0] sm:$0xff]
    %v349 = vld [vmem:[#allocation4 + $0x7c8] sm:$0xff]
    %v350 = vld [vmem:[#allocation4 + $0x7d0] sm:$0xff]
    %v351 = vld [vmem:[#allocation4 + $0x7d8] sm:$0xff]
    %v352 = vld [vmem:[#allocation4 + $0x7e0] sm:$0xff]
    %v353 = vld [vmem:[#allocation4 + $0x7e8] sm:$0xff]
    %v354 = vld [vmem:[#allocation4 + $0x7f0] sm:$0xff]
    %v355 = vld [vmem:[#allocation4 + $0x7f8] sm:$0xff]
    %v356 = vld [vmem:[#allocation4 + $0x800] sm:$0xff]
    %v357 = vld [vmem:[#allocation4 + $0x808] sm:$0xff]
    %v358 = vld [vmem:[#allocation4 + $0x810] sm:$0xff]
    %v359 = vld [vmem:[#allocation4 + $0x818] sm:$0xff]
    %v360 = vld [vmem:[#allocation4 + $0x820] sm:$0xff]
    %v361 = vld [vmem:[#allocation4 + $0x828] sm:$0xff]
    %v362 = vld [vmem:[#allocation4 + $0x830] sm:$0xff]
    %v363 = vld [vmem:[#allocation4 + $0x838] sm:$0xff]
    %v364 = vld [vmem:[#allocation4 + $0x840] sm:$0xff]
    %v365 = vld [vmem:[#allocation4 + $0x848] sm:$0xff]
    %v366 = vld [vmem:[#allocation4 + $0x850] sm:$0xff]
    %v367 = vld [vmem:[#allocation4 + $0x858] sm:$0xff]
    %v368 = vld [vmem:[#allocation4 + $0x860] sm:$0xff]
    %v369 = vld [vmem:[#allocation4 + $0x868] sm:$0xff]
    %v370 = vld [vmem:[#allocation4 + $0x870] sm:$0xff]
    %v371 = vld [vmem:[#allocation4 + $0x878] sm:$0xff]
    %v372 = vld [vmem:[#allocation4 + $0x880] sm:$0xff]
    %v373 = vld [vmem:[#allocation4 + $0x888] sm:$0xff]
    %v374 = vld [vmem:[#allocation4 + $0x890] sm:$0xff]
    %v375 = vld [vmem:[#allocation4 + $0x898] sm:$0xff]
    %v376 = vld [vmem:[#allocation4 + $0x8a0] sm:$0xff]
    %v377 = vld [vmem:[#allocation4 + $0x8a8] sm:$0xff]
    %v378 = vld [vmem:[#allocation4 + $0x8b0] sm:$0xff]
    %v379 = vld [vmem:[#allocation4 + $0x8b8] sm:$0xff]
    %v380 = vld [vmem:[#allocation4 + $0x8c0] sm:$0xff]
    %v381 = vld [vmem:[#allocation4 + $0x8c8] sm:$0xff]
    %v382 = vld [vmem:[#allocation4 + $0x8d0] sm:$0xff]
    %v383 = vld [vmem:[#allocation4 + $0x8d8] sm:$0xff]
    %v384 = vld [vmem:[#allocation4 + $0x8e0] sm:$0xff]
    %v385 = vld [vmem:[#allocation4 + $0x8e8] sm:$0xff]
    %v386 = vld [vmem:[#allocation4 + $0x8f0] sm:$0xff]
    %v387 = vld [vmem:[#allocation4 + $0x8f8] sm:$0xff]
    %v388 = vld [vmem:[#allocation6] sm:$0x3f]
    %v390 = vlaneseq
    %v391 = vshrl.u32 %v390, 7
    %v392 = vsub.s32 0, %v391
    %v393 = vrot.slane %v388, %v392
    %v394 = vlaneseq
    %v395 = vshrl.u32 %v394, 7
    %v396 = vsub.s32 1, %v395
    %v397 = vrot.slane %v388, %v396
    %v398 = vlaneseq
    %v399 = vshrl.u32 %v398, 7
    %v400 = vsub.s32 2, %v399
    %v401 = vrot.slane %v388, %v400
    %v402 = vlaneseq
    %v403 = vshrl.u32 %v402, 7
    %v404 = vsub.s32 3, %v403
    %v405 = vrot.slane %v388, %v404
    %v406 = vlaneseq
    %v407 = vshrl.u32 %v406, 7
    %v408 = vsub.s32 4, %v407
    %v409 = vrot.slane %v388, %v408
    %v410 = vlaneseq
    %v411 = vshrl.u32 %v410, 7
    %v412 = vsub.s32 5, %v411
    %v413 = vrot.slane %v388, %v412
    %v708 = vunpack.c.l.b16 %v100
    %v709 = vunpack.c.h.b16 %v100
    %v710 = vunpack.c.l.b16 %v101
    %v711 = vunpack.c.h.b16 %v101
    %v712 = vunpack.c.l.b16 %v102
    %v713 = vunpack.c.h.b16 %v102
    %v714 = vunpack.c.l.b16 %v103
    %v715 = vunpack.c.h.b16 %v103
    %v716 = vunpack.c.l.b16 %v104
    %v717 = vunpack.c.h.b16 %v104
    %v718 = vunpack.c.l.b16 %v105
    %v719 = vunpack.c.h.b16 %v105
    %v720 = vunpack.c.l.b16 %v106
    %v721 = vunpack.c.h.b16 %v106
    %v722 = vunpack.c.l.b16 %v107
    %v723 = vunpack.c.h.b16 %v107
    %v724 = vunpack.c.l.b16 %v108
    %v725 = vunpack.c.h.b16 %v108
    %v726 = vunpack.c.l.b16 %v109
    %v727 = vunpack.c.h.b16 %v109
    %v728 = vunpack.c.l.b16 %v110
    %v729 = vunpack.c.h.b16 %v110
    %v730 = vunpack.c.l.b16 %v111
    %v731 = vunpack.c.h.b16 %v111
    %v732 = vunpack.c.l.b16 %v112
    %v733 = vunpack.c.h.b16 %v112
    %v734 = vunpack.c.l.b16 %v113
    %v735 = vunpack.c.h.b16 %v113
    %v736 = vunpack.c.l.b16 %v114
    %v737 = vunpack.c.h.b16 %v114
    %v738 = vunpack.c.l.b16 %v115
    %v739 = vunpack.c.h.b16 %v115
    %v740 = vunpack.c.l.b16 %v116
    %v741 = vunpack.c.h.b16 %v116
    %v742 = vunpack.c.l.b16 %v117
    %v743 = vunpack.c.h.b16 %v117
    %v744 = vunpack.c.l.b16 %v118
    %v745 = vunpack.c.h.b16 %v118
    %v746 = vunpack.c.l.b16 %v119
    %v747 = vunpack.c.h.b16 %v119
    %v748 = vunpack.c.l.b16 %v120
    %v749 = vunpack.c.h.b16 %v120
    %v750 = vunpack.c.l.b16 %v121
    %v751 = vunpack.c.h.b16 %v121
    %v752 = vunpack.c.l.b16 %v122
    %v753 = vunpack.c.h.b16 %v122
    %v754 = vunpack.c.l.b16 %v123
    %v755 = vunpack.c.h.b16 %v123
    %v756 = vunpack.c.l.b16 %v124
    %v757 = vunpack.c.h.b16 %v124
    %v758 = vunpack.c.l.b16 %v125
    %v759 = vunpack.c.h.b16 %v125
    %v760 = vunpack.c.l.b16 %v126
    %v761 = vunpack.c.h.b16 %v126
    %v762 = vunpack.c.l.b16 %v127
    %v763 = vunpack.c.h.b16 %v127
    %v764 = vunpack.c.l.b16 %v128
    %v765 = vunpack.c.h.b16 %v128
    %v766 = vunpack.c.l.b16 %v129
    %v767 = vunpack.c.h.b16 %v129
    %v768 = vunpack.c.l.b16 %v130
    %v769 = vunpack.c.h.b16 %v130
    %v770 = vunpack.c.l.b16 %v131
    %v771 = vunpack.c.h.b16 %v131
    %v772 = vunpack.c.l.b16 %v132
    %v773 = vunpack.c.h.b16 %v132
    %v774 = vunpack.c.l.b16 %v133
    %v775 = vunpack.c.h.b16 %v133
    %v776 = vunpack.c.l.b16 %v134
    %v777 = vunpack.c.h.b16 %v134
    %v778 = vunpack.c.l.b16 %v135
    %v779 = vunpack.c.h.b16 %v135
    %v780 = vunpack.c.l.b16 %v136
    %v781 = vunpack.c.h.b16 %v136
    %v782 = vunpack.c.l.b16 %v137
    %v783 = vunpack.c.h.b16 %v137
    %v784 = vunpack.c.l.b16 %v138
    %v785 = vunpack.c.h.b16 %v138
    %v786 = vunpack.c.l.b16 %v139
    %v787 = vunpack.c.h.b16 %v139
    %v788 = vunpack.c.l.b16 %v140
    %v789 = vunpack.c.h.b16 %v140
    %v790 = vunpack.c.l.b16 %v141
    %v791 = vunpack.c.h.b16 %v141
    %v792 = vunpack.c.l.b16 %v142
    %v793 = vunpack.c.h.b16 %v142
    %v794 = vunpack.c.l.b16 %v143
    %v795 = vunpack.c.h.b16 %v143
    %v796 = vunpack.c.l.b16 %v144
    %v797 = vunpack.c.h.b16 %v144
    %v798 = vunpack.c.l.b16 %v145
    %v799 = vunpack.c.h.b16 %v145
    %v800 = vunpack.c.l.b16 %v146
    %v801 = vunpack.c.h.b16 %v146
    %v802 = vunpack.c.l.b16 %v147
    %v803 = vunpack.c.h.b16 %v147
    %v804 = vunpack.c.l.b16 %v148
    %v805 = vunpack.c.h.b16 %v148
    %v806 = vunpack.c.l.b16 %v149
    %v807 = vunpack.c.h.b16 %v149
    %v808 = vunpack.c.l.b16 %v150
    %v809 = vunpack.c.h.b16 %v150
    %v810 = vunpack.c.l.b16 %v151
    %v811 = vunpack.c.h.b16 %v151
    %v812 = vunpack.c.l.b16 %v152
    %v813 = vunpack.c.h.b16 %v152
    %v814 = vunpack.c.l.b16 %v153
    %v815 = vunpack.c.h.b16 %v153
    %v816 = vunpack.c.l.b16 %v154
    %v817 = vunpack.c.h.b16 %v154
    %v818 = vunpack.c.l.b16 %v155
    %v819 = vunpack.c.h.b16 %v155
    %v820 = vunpack.c.l.b16 %v156
    %v821 = vunpack.c.h.b16 %v156
    %v822 = vunpack.c.l.b16 %v157
    %v823 = vunpack.c.h.b16 %v157
    %v824 = vunpack.c.l.b16 %v158
    %v825 = vunpack.c.h.b16 %v158
    %v826 = vunpack.c.l.b16 %v159
    %v827 = vunpack.c.h.b16 %v159
    %v828 = vunpack.c.l.b16 %v160
    %v829 = vunpack.c.h.b16 %v160
    %v830 = vunpack.c.l.b16 %v161
    %v831 = vunpack.c.h.b16 %v161
    %v832 = vunpack.c.l.b16 %v162
    %v833 = vunpack.c.h.b16 %v162
    %v834 = vunpack.c.l.b16 %v163
    %v835 = vunpack.c.h.b16 %v163
    %v836 = vunpack.c.l.b16 %v164
    %v837 = vunpack.c.h.b16 %v164
    %v838 = vunpack.c.l.b16 %v165
    %v839 = vunpack.c.h.b16 %v165
    %v840 = vunpack.c.l.b16 %v166
    %v841 = vunpack.c.h.b16 %v166
    %v842 = vunpack.c.l.b16 %v167
    %v843 = vunpack.c.h.b16 %v167
    %v844 = vunpack.c.l.b16 %v168
    %v845 = vunpack.c.h.b16 %v168
    %v846 = vunpack.c.l.b16 %v169
    %v847 = vunpack.c.h.b16 %v169
    %v848 = vunpack.c.l.b16 %v170
    %v849 = vunpack.c.h.b16 %v170
    %v850 = vunpack.c.l.b16 %v171
    %v851 = vunpack.c.h.b16 %v171
    %v852 = vunpack.c.l.b16 %v172
    %v853 = vunpack.c.h.b16 %v172
    %v854 = vunpack.c.l.b16 %v173
    %v855 = vunpack.c.h.b16 %v173
    %v856 = vunpack.c.l.b16 %v174
    %v857 = vunpack.c.h.b16 %v174
    %v858 = vunpack.c.l.b16 %v175
    %v859 = vunpack.c.h.b16 %v175
    %v860 = vunpack.c.l.b16 %v176
    %v861 = vunpack.c.h.b16 %v176
    %v862 = vunpack.c.l.b16 %v177
    %v863 = vunpack.c.h.b16 %v177
    %v864 = vunpack.c.l.b16 %v178
    %v865 = vunpack.c.h.b16 %v178
    %v866 = vunpack.c.l.b16 %v179
    %v867 = vunpack.c.h.b16 %v179
    %v868 = vunpack.c.l.b16 %v180
    %v869 = vunpack.c.h.b16 %v180
    %v870 = vunpack.c.l.b16 %v181
    %v871 = vunpack.c.h.b16 %v181
    %v872 = vunpack.c.l.b16 %v182
    %v873 = vunpack.c.h.b16 %v182
    %v874 = vunpack.c.l.b16 %v183
    %v875 = vunpack.c.h.b16 %v183
    %v876 = vunpack.c.l.b16 %v184
    %v877 = vunpack.c.h.b16 %v184
    %v878 = vunpack.c.l.b16 %v185
    %v879 = vunpack.c.h.b16 %v185
    %v880 = vunpack.c.l.b16 %v186
    %v881 = vunpack.c.h.b16 %v186
    %v882 = vunpack.c.l.b16 %v187
    %v883 = vunpack.c.h.b16 %v187
    %v884 = vunpack.c.l.b16 %v188
    %v885 = vunpack.c.h.b16 %v188
    %v886 = vunpack.c.l.b16 %v189
    %v887 = vunpack.c.h.b16 %v189
    %v888 = vunpack.c.l.b16 %v190
    %v889 = vunpack.c.h.b16 %v190
    %v890 = vunpack.c.l.b16 %v191
    %v891 = vunpack.c.h.b16 %v191
    %v892 = vunpack.c.l.b16 %v192
    %v893 = vunpack.c.h.b16 %v192
    %v894 = vunpack.c.l.b16 %v193
    %v895 = vunpack.c.h.b16 %v193
    %v896 = vunpack.c.l.b16 %v194
    %v897 = vunpack.c.h.b16 %v194
    %v898 = vunpack.c.l.b16 %v195
    %v899 = vunpack.c.h.b16 %v195
    %v900 = vunpack.c.l.b16 %v196
    %v901 = vunpack.c.h.b16 %v196
    %v902 = vunpack.c.l.b16 %v197
    %v903 = vunpack.c.h.b16 %v197
    %v904 = vunpack.c.l.b16 %v198
    %v905 = vunpack.c.h.b16 %v198
    %v906 = vunpack.c.l.b16 %v199
    %v907 = vunpack.c.h.b16 %v199
    %v908 = vunpack.c.l.b16 %v200
    %v909 = vunpack.c.h.b16 %v200
    %v910 = vunpack.c.l.b16 %v201
    %v911 = vunpack.c.h.b16 %v201
    %v912 = vunpack.c.l.b16 %v202
    %v913 = vunpack.c.h.b16 %v202
    %v914 = vunpack.c.l.b16 %v203
    %v915 = vunpack.c.h.b16 %v203
    %v916 = vunpack.c.l.b16 %v204
    %v917 = vunpack.c.h.b16 %v204
    %v918 = vunpack.c.l.b16 %v205
    %v919 = vunpack.c.h.b16 %v205
    %v920 = vunpack.c.l.b16 %v206
    %v921 = vunpack.c.h.b16 %v206
    %v922 = vunpack.c.l.b16 %v207
    %v923 = vunpack.c.h.b16 %v207
    %v924 = vunpack.c.l.b16 %v208
    %v925 = vunpack.c.h.b16 %v208
    %v926 = vunpack.c.l.b16 %v209
    %v927 = vunpack.c.h.b16 %v209
    %v928 = vunpack.c.l.b16 %v210
    %v929 = vunpack.c.h.b16 %v210
    %v930 = vunpack.c.l.b16 %v211
    %v931 = vunpack.c.h.b16 %v211
    %v932 = vunpack.c.l.b16 %v212
    %v933 = vunpack.c.h.b16 %v212
    %v934 = vunpack.c.l.b16 %v213
    %v935 = vunpack.c.h.b16 %v213
    %v936 = vunpack.c.l.b16 %v214
    %v937 = vunpack.c.h.b16 %v214
    %v938 = vunpack.c.l.b16 %v215
    %v939 = vunpack.c.h.b16 %v215
    %v940 = vunpack.c.l.b16 %v216
    %v941 = vunpack.c.h.b16 %v216
    %v942 = vunpack.c.l.b16 %v217
    %v943 = vunpack.c.h.b16 %v217
    %v944 = vunpack.c.l.b16 %v218
    %v945 = vunpack.c.h.b16 %v218
    %v946 = vunpack.c.l.b16 %v219
    %v947 = vunpack.c.h.b16 %v219
    %v948 = vunpack.c.l.b16 %v220
    %v949 = vunpack.c.h.b16 %v220
    %v950 = vunpack.c.l.b16 %v221
    %v951 = vunpack.c.h.b16 %v221
    %v952 = vunpack.c.l.b16 %v222
    %v953 = vunpack.c.h.b16 %v222
    %v954 = vunpack.c.l.b16 %v223
    %v955 = vunpack.c.h.b16 %v223
    %v956 = vunpack.c.l.b16 %v224
    %v957 = vunpack.c.h.b16 %v224
    %v958 = vunpack.c.l.b16 %v225
    %v959 = vunpack.c.h.b16 %v225
    %v960 = vunpack.c.l.b16 %v226
    %v961 = vunpack.c.h.b16 %v226
    %v962 = vunpack.c.l.b16 %v227
    %v963 = vunpack.c.h.b16 %v227
    %v964 = vunpack.c.l.b16 %v228
    %v965 = vunpack.c.h.b16 %v228
    %v966 = vunpack.c.l.b16 %v229
    %v967 = vunpack.c.h.b16 %v229
    %v968 = vunpack.c.l.b16 %v230
    %v969 = vunpack.c.h.b16 %v230
    %v970 = vunpack.c.l.b16 %v231
    %v971 = vunpack.c.h.b16 %v231
    %v972 = vunpack.c.l.b16 %v232
    %v973 = vunpack.c.h.b16 %v232
    %v974 = vunpack.c.l.b16 %v233
    %v975 = vunpack.c.h.b16 %v233
    %v976 = vunpack.c.l.b16 %v234
    %v977 = vunpack.c.h.b16 %v234
    %v978 = vunpack.c.l.b16 %v235
    %v979 = vunpack.c.h.b16 %v235
    %v980 = vunpack.c.l.b16 %v236
    %v981 = vunpack.c.h.b16 %v236
    %v982 = vunpack.c.l.b16 %v237
    %v983 = vunpack.c.h.b16 %v237
    %v984 = vunpack.c.l.b16 %v238
    %v985 = vunpack.c.h.b16 %v238
    %v986 = vunpack.c.l.b16 %v239
    %v987 = vunpack.c.h.b16 %v239
    %v988 = vunpack.c.l.b16 %v240
    %v989 = vunpack.c.h.b16 %v240
    %v990 = vunpack.c.l.b16 %v241
    %v991 = vunpack.c.h.b16 %v241
    %v992 = vunpack.c.l.b16 %v242
    %v993 = vunpack.c.h.b16 %v242
    %v994 = vunpack.c.l.b16 %v243
    %v995 = vunpack.c.h.b16 %v243
    %v996 = vunpack.c.l.b16 %v244
    %v997 = vunpack.c.h.b16 %v244
    %v998 = vunpack.c.l.b16 %v245
    %v999 = vunpack.c.h.b16 %v245
    %v1000 = vunpack.c.l.b16 %v246
    %v1001 = vunpack.c.h.b16 %v246
    %v1002 = vunpack.c.l.b16 %v247
    %v1003 = vunpack.c.h.b16 %v247
    %v1004 = vunpack.c.l.b16 %v248
    %v1005 = vunpack.c.h.b16 %v248
    %v1006 = vunpack.c.l.b16 %v249
    %v1007 = vunpack.c.h.b16 %v249
    %v1008 = vunpack.c.l.b16 %v250
    %v1009 = vunpack.c.h.b16 %v250
    %v1010 = vunpack.c.l.b16 %v251
    %v1011 = vunpack.c.h.b16 %v251
    %v1012 = vunpack.c.l.b16 %v252
    %v1013 = vunpack.c.h.b16 %v252
    %v1014 = vunpack.c.l.b16 %v253
    %v1015 = vunpack.c.h.b16 %v253
    %v1016 = vunpack.c.l.b16 %v254
    %v1017 = vunpack.c.h.b16 %v254
    %v1018 = vunpack.c.l.b16 %v255
    %v1019 = vunpack.c.h.b16 %v255
    %v1020 = vunpack.c.l.b16 %v256
    %v1021 = vunpack.c.h.b16 %v256
    %v1022 = vunpack.c.l.b16 %v257
    %v1023 = vunpack.c.h.b16 %v257
    %v1024 = vunpack.c.l.b16 %v258
    %v1025 = vunpack.c.h.b16 %v258
    %v1026 = vunpack.c.l.b16 %v259
    %v1027 = vunpack.c.h.b16 %v259
    %v1028 = vunpack.c.l.b16 %v260
    %v1029 = vunpack.c.h.b16 %v260
    %v1030 = vunpack.c.l.b16 %v261
    %v1031 = vunpack.c.h.b16 %v261
    %v1032 = vunpack.c.l.b16 %v262
    %v1033 = vunpack.c.h.b16 %v262
    %v1034 = vunpack.c.l.b16 %v263
    %v1035 = vunpack.c.h.b16 %v263
    %v1036 = vunpack.c.l.b16 %v264
    %v1037 = vunpack.c.h.b16 %v264
    %v1038 = vunpack.c.l.b16 %v265
    %v1039 = vunpack.c.h.b16 %v265
    %v1040 = vunpack.c.l.b16 %v266
    %v1041 = vunpack.c.h.b16 %v266
    %v1042 = vunpack.c.l.b16 %v267
    %v1043 = vunpack.c.h.b16 %v267
    %v1044 = vunpack.c.l.b16 %v268
    %v1045 = vunpack.c.h.b16 %v268
    %v1046 = vunpack.c.l.b16 %v269
    %v1047 = vunpack.c.h.b16 %v269
    %v1048 = vunpack.c.l.b16 %v270
    %v1049 = vunpack.c.h.b16 %v270
    %v1050 = vunpack.c.l.b16 %v271
    %v1051 = vunpack.c.h.b16 %v271
    %v1052 = vunpack.c.l.b16 %v272
    %v1053 = vunpack.c.h.b16 %v272
    %v1054 = vunpack.c.l.b16 %v273
    %v1055 = vunpack.c.h.b16 %v273
    %v1056 = vunpack.c.l.b16 %v274
    %v1057 = vunpack.c.h.b16 %v274
    %v1058 = vunpack.c.l.b16 %v275
    %v1059 = vunpack.c.h.b16 %v275
    %v1060 = vunpack.c.l.b16 %v276
    %v1061 = vunpack.c.h.b16 %v276
    %v1062 = vunpack.c.l.b16 %v277
    %v1063 = vunpack.c.h.b16 %v277
    %v1064 = vunpack.c.l.b16 %v278
    %v1065 = vunpack.c.h.b16 %v278
    %v1066 = vunpack.c.l.b16 %v279
    %v1067 = vunpack.c.h.b16 %v279
    %v1068 = vunpack.c.l.b16 %v280
    %v1069 = vunpack.c.h.b16 %v280
    %v1070 = vunpack.c.l.b16 %v281
    %v1071 = vunpack.c.h.b16 %v281
    %v1072 = vunpack.c.l.b16 %v282
    %v1073 = vunpack.c.h.b16 %v282
    %v1074 = vunpack.c.l.b16 %v283
    %v1075 = vunpack.c.h.b16 %v283
    %v1076 = vunpack.c.l.b16 %v284
    %v1077 = vunpack.c.h.b16 %v284
    %v1078 = vunpack.c.l.b16 %v285
    %v1079 = vunpack.c.h.b16 %v285
    %v1080 = vunpack.c.l.b16 %v286
    %v1081 = vunpack.c.h.b16 %v286
    %v1082 = vunpack.c.l.b16 %v287
    %v1083 = vunpack.c.h.b16 %v287
    %v1084 = vunpack.c.l.b16 %v288
    %v1085 = vunpack.c.h.b16 %v288
    %v1086 = vunpack.c.l.b16 %v289
    %v1087 = vunpack.c.h.b16 %v289
    %v1088 = vunpack.c.l.b16 %v290
    %v1089 = vunpack.c.h.b16 %v290
    %v1090 = vunpack.c.l.b16 %v291
    %v1091 = vunpack.c.h.b16 %v291
    %v1092 = vunpack.c.l.b16 %v292
    %v1093 = vunpack.c.h.b16 %v292
    %v1094 = vunpack.c.l.b16 %v293
    %v1095 = vunpack.c.h.b16 %v293
    %v1096 = vunpack.c.l.b16 %v294
    %v1097 = vunpack.c.h.b16 %v294
    %v1098 = vunpack.c.l.b16 %v295
    %v1099 = vunpack.c.h.b16 %v295
    %v1100 = vunpack.c.l.b16 %v296
    %v1101 = vunpack.c.h.b16 %v296
    %v1102 = vunpack.c.l.b16 %v297
    %v1103 = vunpack.c.h.b16 %v297
    %v1104 = vunpack.c.l.b16 %v298
    %v1105 = vunpack.c.h.b16 %v298
    %v1106 = vunpack.c.l.b16 %v299
    %v1107 = vunpack.c.h.b16 %v299
    %v1108 = vunpack.c.l.b16 %v300
    %v1109 = vunpack.c.h.b16 %v300
    %v1110 = vunpack.c.l.b16 %v301
    %v1111 = vunpack.c.h.b16 %v301
    %v1112 = vunpack.c.l.b16 %v302
    %v1113 = vunpack.c.h.b16 %v302
    %v1114 = vunpack.c.l.b16 %v303
    %v1115 = vunpack.c.h.b16 %v303
    %v1116 = vunpack.c.l.b16 %v304
    %v1117 = vunpack.c.h.b16 %v304
    %v1118 = vunpack.c.l.b16 %v305
    %v1119 = vunpack.c.h.b16 %v305
    %v1120 = vunpack.c.l.b16 %v306
    %v1121 = vunpack.c.h.b16 %v306
    %v1122 = vunpack.c.l.b16 %v307
    %v1123 = vunpack.c.h.b16 %v307
    %v1124 = vunpack.c.l.b16 %v308
    %v1125 = vunpack.c.h.b16 %v308
    %v1126 = vunpack.c.l.b16 %v309
    %v1127 = vunpack.c.h.b16 %v309
    %v1128 = vunpack.c.l.b16 %v310
    %v1129 = vunpack.c.h.b16 %v310
    %v1130 = vunpack.c.l.b16 %v311
    %v1131 = vunpack.c.h.b16 %v311
    %v1132 = vunpack.c.l.b16 %v312
    %v1133 = vunpack.c.h.b16 %v312
    %v1134 = vunpack.c.l.b16 %v313
    %v1135 = vunpack.c.h.b16 %v313
    %v1136 = vunpack.c.l.b16 %v314
    %v1137 = vunpack.c.h.b16 %v314
    %v1138 = vunpack.c.l.b16 %v315
    %v1139 = vunpack.c.h.b16 %v315
    %v1140 = vunpack.c.l.b16 %v316
    %v1141 = vunpack.c.h.b16 %v316
    %v1142 = vunpack.c.l.b16 %v317
    %v1143 = vunpack.c.h.b16 %v317
    %v1144 = vunpack.c.l.b16 %v318
    %v1145 = vunpack.c.h.b16 %v318
    %v1146 = vunpack.c.l.b16 %v319
    %v1147 = vunpack.c.h.b16 %v319
    %v1148 = vunpack.c.l.b16 %v320
    %v1149 = vunpack.c.h.b16 %v320
    %v1150 = vunpack.c.l.b16 %v321
    %v1151 = vunpack.c.h.b16 %v321
    %v1152 = vunpack.c.l.b16 %v322
    %v1153 = vunpack.c.h.b16 %v322
    %v1154 = vunpack.c.l.b16 %v323
    %v1155 = vunpack.c.h.b16 %v323
    %v1156 = vunpack.c.l.b16 %v324
    %v1157 = vunpack.c.h.b16 %v324
    %v1158 = vunpack.c.l.b16 %v325
    %v1159 = vunpack.c.h.b16 %v325
    %v1160 = vunpack.c.l.b16 %v326
    %v1161 = vunpack.c.h.b16 %v326
    %v1162 = vunpack.c.l.b16 %v327
    %v1163 = vunpack.c.h.b16 %v327
    %v1164 = vunpack.c.l.b16 %v328
    %v1165 = vunpack.c.h.b16 %v328
    %v1166 = vunpack.c.l.b16 %v329
    %v1167 = vunpack.c.h.b16 %v329
    %v1168 = vunpack.c.l.b16 %v330
    %v1169 = vunpack.c.h.b16 %v330
    %v1170 = vunpack.c.l.b16 %v331
    %v1171 = vunpack.c.h.b16 %v331
    %v1172 = vunpack.c.l.b16 %v332
    %v1173 = vunpack.c.h.b16 %v332
    %v1174 = vunpack.c.l.b16 %v333
    %v1175 = vunpack.c.h.b16 %v333
    %v1176 = vunpack.c.l.b16 %v334
    %v1177 = vunpack.c.h.b16 %v334
    %v1178 = vunpack.c.l.b16 %v335
    %v1179 = vunpack.c.h.b16 %v335
    %v1180 = vunpack.c.l.b16 %v336
    %v1181 = vunpack.c.h.b16 %v336
    %v1182 = vunpack.c.l.b16 %v337
    %v1183 = vunpack.c.h.b16 %v337
    %v1184 = vunpack.c.l.b16 %v338
    %v1185 = vunpack.c.h.b16 %v338
    %v1186 = vunpack.c.l.b16 %v339
    %v1187 = vunpack.c.h.b16 %v339
    %v1188 = vunpack.c.l.b16 %v340
    %v1189 = vunpack.c.h.b16 %v340
    %v1190 = vunpack.c.l.b16 %v341
    %v1191 = vunpack.c.h.b16 %v341
    %v1192 = vunpack.c.l.b16 %v342
    %v1193 = vunpack.c.h.b16 %v342
    %v1194 = vunpack.c.l.b16 %v343
    %v1195 = vunpack.c.h.b16 %v343
    %v1196 = vunpack.c.l.b16 %v344
    %v1197 = vunpack.c.h.b16 %v344
    %v1198 = vunpack.c.l.b16 %v345
    %v1199 = vunpack.c.h.b16 %v345
    %v1200 = vunpack.c.l.b16 %v346
    %v1201 = vunpack.c.h.b16 %v346
    %v1202 = vunpack.c.l.b16 %v347
    %v1203 = vunpack.c.h.b16 %v347
    %v1204 = vunpack.c.l.b16 %v348
    %v1205 = vunpack.c.h.b16 %v348
    %v1206 = vunpack.c.l.b16 %v349
    %v1207 = vunpack.c.h.b16 %v349
    %v1208 = vunpack.c.l.b16 %v350
    %v1209 = vunpack.c.h.b16 %v350
    %v1210 = vunpack.c.l.b16 %v351
    %v1211 = vunpack.c.h.b16 %v351
    %v1212 = vunpack.c.l.b16 %v352
    %v1213 = vunpack.c.h.b16 %v352
    %v1214 = vunpack.c.l.b16 %v353
    %v1215 = vunpack.c.h.b16 %v353
    %v1216 = vunpack.c.l.b16 %v354
    %v1217 = vunpack.c.h.b16 %v354
    %v1218 = vunpack.c.l.b16 %v355
    %v1219 = vunpack.c.h.b16 %v355
    %v1220 = vunpack.c.l.b16 %v356
    %v1221 = vunpack.c.h.b16 %v356
    %v1222 = vunpack.c.l.b16 %v357
    %v1223 = vunpack.c.h.b16 %v357
    %v1224 = vunpack.c.l.b16 %v358
    %v1225 = vunpack.c.h.b16 %v358
    %v1226 = vunpack.c.l.b16 %v359
    %v1227 = vunpack.c.h.b16 %v359
    %v1228 = vunpack.c.l.b16 %v360
    %v1229 = vunpack.c.h.b16 %v360
    %v1230 = vunpack.c.l.b16 %v361
    %v1231 = vunpack.c.h.b16 %v361
    %v1232 = vunpack.c.l.b16 %v362
    %v1233 = vunpack.c.h.b16 %v362
    %v1234 = vunpack.c.l.b16 %v363
    %v1235 = vunpack.c.h.b16 %v363
    %v1236 = vunpack.c.l.b16 %v364
    %v1237 = vunpack.c.h.b16 %v364
    %v1238 = vunpack.c.l.b16 %v365
    %v1239 = vunpack.c.h.b16 %v365
    %v1240 = vunpack.c.l.b16 %v366
    %v1241 = vunpack.c.h.b16 %v366
    %v1242 = vunpack.c.l.b16 %v367
    %v1243 = vunpack.c.h.b16 %v367
    %v1244 = vunpack.c.l.b16 %v368
    %v1245 = vunpack.c.h.b16 %v368
    %v1246 = vunpack.c.l.b16 %v369
    %v1247 = vunpack.c.h.b16 %v369
    %v1248 = vunpack.c.l.b16 %v370
    %v1249 = vunpack.c.h.b16 %v370
    %v1250 = vunpack.c.l.b16 %v371
    %v1251 = vunpack.c.h.b16 %v371
    %v1252 = vunpack.c.l.b16 %v372
    %v1253 = vunpack.c.h.b16 %v372
    %v1254 = vunpack.c.l.b16 %v373
    %v1255 = vunpack.c.h.b16 %v373
    %v1256 = vunpack.c.l.b16 %v374
    %v1257 = vunpack.c.h.b16 %v374
    %v1258 = vunpack.c.l.b16 %v375
    %v1259 = vunpack.c.h.b16 %v375
    %v1260 = vunpack.c.l.b16 %v376
    %v1261 = vunpack.c.h.b16 %v376
    %v1262 = vunpack.c.l.b16 %v377
    %v1263 = vunpack.c.h.b16 %v377
    %v1264 = vunpack.c.l.b16 %v378
    %v1265 = vunpack.c.h.b16 %v378
    %v1266 = vunpack.c.l.b16 %v379
    %v1267 = vunpack.c.h.b16 %v379
    %v1268 = vunpack.c.l.b16 %v380
    %v1269 = vunpack.c.h.b16 %v380
    %v1270 = vunpack.c.l.b16 %v381
    %v1271 = vunpack.c.h.b16 %v381
    %v1272 = vunpack.c.l.b16 %v382
    %v1273 = vunpack.c.h.b16 %v382
    %v1274 = vunpack.c.l.b16 %v383
    %v1275 = vunpack.c.h.b16 %v383
    %v1276 = vunpack.c.l.b16 %v384
    %v1277 = vunpack.c.h.b16 %v384
    %v1278 = vunpack.c.l.b16 %v385
    %v1279 = vunpack.c.h.b16 %v385
    %v1280 = vunpack.c.l.b16 %v386
    %v1281 = vunpack.c.h.b16 %v386
    %v1282 = vunpack.c.l.b16 %v387
    %v1283 = vunpack.c.h.b16 %v387
    %v1284 = vpack.c.b16 %v714, %v708
    %v1285 = vpack.c.b16 %v715, %v709
    %v1286 = vpack.c.b16 %v716, %v710
    %v1287 = vpack.c.b16 %v717, %v711
    %v1288 = vpack.c.b16 %v718, %v712
    %v1289 = vpack.c.b16 %v719, %v713
    %v1290 = vpack.c.b16 %v726, %v720
    %v1291 = vpack.c.b16 %v727, %v721
    %v1292 = vpack.c.b16 %v728, %v722
    %v1293 = vpack.c.b16 %v729, %v723
    %v1294 = vpack.c.b16 %v730, %v724
    %v1295 = vpack.c.b16 %v731, %v725
    %v1296 = vpack.c.b16 %v738, %v732
    %v1297 = vpack.c.b16 %v739, %v733
    %v1298 = vpack.c.b16 %v740, %v734
    %v1299 = vpack.c.b16 %v741, %v735
    %v1300 = vpack.c.b16 %v742, %v736
    %v1301 = vpack.c.b16 %v743, %v737
    %v1302 = vpack.c.b16 %v750, %v744
    %v1303 = vpack.c.b16 %v751, %v745
    %v1304 = vpack.c.b16 %v752, %v746
    %v1305 = vpack.c.b16 %v753, %v747
    %v1306 = vpack.c.b16 %v754, %v748
    %v1307 = vpack.c.b16 %v755, %v749
    %v1308 = vpack.c.b16 %v762, %v756
    %v1309 = vpack.c.b16 %v763, %v757
    %v1310 = vpack.c.b16 %v764, %v758
    %v1311 = vpack.c.b16 %v765, %v759
    %v1312 = vpack.c.b16 %v766, %v760
    %v1313 = vpack.c.b16 %v767, %v761
    %v1314 = vpack.c.b16 %v774, %v768
    %v1315 = vpack.c.b16 %v775, %v769
    %v1316 = vpack.c.b16 %v776, %v770
    %v1317 = vpack.c.b16 %v777, %v771
    %v1318 = vpack.c.b16 %v778, %v772
    %v1319 = vpack.c.b16 %v779, %v773
    %v1320 = vpack.c.b16 %v786, %v780
    %v1321 = vpack.c.b16 %v787, %v781
    %v1322 = vpack.c.b16 %v788, %v782
    %v1323 = vpack.c.b16 %v789, %v783
    %v1324 = vpack.c.b16 %v790, %v784
    %v1325 = vpack.c.b16 %v791, %v785
    %v1326 = vpack.c.b16 %v798, %v792
    %v1327 = vpack.c.b16 %v799, %v793
    %v1328 = vpack.c.b16 %v800, %v794
    %v1329 = vpack.c.b16 %v801, %v795
    %v1330 = vpack.c.b16 %v802, %v796
    %v1331 = vpack.c.b16 %v803, %v797
    %v1332 = vpack.c.b16 %v810, %v804
    %v1333 = vpack.c.b16 %v811, %v805
    %v1334 = vpack.c.b16 %v812, %v806
    %v1335 = vpack.c.b16 %v813, %v807
    %v1336 = vpack.c.b16 %v814, %v808
    %v1337 = vpack.c.b16 %v815, %v809
    %v1338 = vpack.c.b16 %v822, %v816
    %v1339 = vpack.c.b16 %v823, %v817
    %v1340 = vpack.c.b16 %v824, %v818
    %v1341 = vpack.c.b16 %v825, %v819
    %v1342 = vpack.c.b16 %v826, %v820
    %v1343 = vpack.c.b16 %v827, %v821
    %v1344 = vpack.c.b16 %v834, %v828
    %v1345 = vpack.c.b16 %v835, %v829
    %v1346 = vpack.c.b16 %v836, %v830
    %v1347 = vpack.c.b16 %v837, %v831
    %v1348 = vpack.c.b16 %v838, %v832
    %v1349 = vpack.c.b16 %v839, %v833
    %v1350 = vpack.c.b16 %v846, %v840
    %v1351 = vpack.c.b16 %v847, %v841
    %v1352 = vpack.c.b16 %v848, %v842
    %v1353 = vpack.c.b16 %v849, %v843
    %v1354 = vpack.c.b16 %v850, %v844
    %v1355 = vpack.c.b16 %v851, %v845
    %v1356 = vpack.c.b16 %v858, %v852
    %v1357 = vpack.c.b16 %v859, %v853
    %v1358 = vpack.c.b16 %v860, %v854
    %v1359 = vpack.c.b16 %v861, %v855
    %v1360 = vpack.c.b16 %v862, %v856
    %v1361 = vpack.c.b16 %v863, %v857
    %v1362 = vpack.c.b16 %v870, %v864
    %v1363 = vpack.c.b16 %v871, %v865
    %v1364 = vpack.c.b16 %v872, %v866
    %v1365 = vpack.c.b16 %v873, %v867
    %v1366 = vpack.c.b16 %v874, %v868
    %v1367 = vpack.c.b16 %v875, %v869
    %v1368 = vpack.c.b16 %v882, %v876
    %v1369 = vpack.c.b16 %v883, %v877
    %v1370 = vpack.c.b16 %v884, %v878
    %v1371 = vpack.c.b16 %v885, %v879
    %v1372 = vpack.c.b16 %v886, %v880
    %v1373 = vpack.c.b16 %v887, %v881
    %v1374 = vpack.c.b16 %v894, %v888
    %v1375 = vpack.c.b16 %v895, %v889
    %v1376 = vpack.c.b16 %v896, %v890
    %v1377 = vpack.c.b16 %v897, %v891
    %v1378 = vpack.c.b16 %v898, %v892
    %v1379 = vpack.c.b16 %v899, %v893
    %v1380 = vpack.c.b16 %v906, %v900
    %v1381 = vpack.c.b16 %v907, %v901
    %v1382 = vpack.c.b16 %v908, %v902
    %v1383 = vpack.c.b16 %v909, %v903
    %v1384 = vpack.c.b16 %v910, %v904
    %v1385 = vpack.c.b16 %v911, %v905
    %v1386 = vpack.c.b16 %v918, %v912
    %v1387 = vpack.c.b16 %v919, %v913
    %v1388 = vpack.c.b16 %v920, %v914
    %v1389 = vpack.c.b16 %v921, %v915
    %v1390 = vpack.c.b16 %v922, %v916
    %v1391 = vpack.c.b16 %v923, %v917
    %v1392 = vpack.c.b16 %v930, %v924
    %v1393 = vpack.c.b16 %v931, %v925
    %v1394 = vpack.c.b16 %v932, %v926
    %v1395 = vpack.c.b16 %v933, %v927
    %v1396 = vpack.c.b16 %v934, %v928
    %v1397 = vpack.c.b16 %v935, %v929
    %v1398 = vpack.c.b16 %v942, %v936
    %v1399 = vpack.c.b16 %v943, %v937
    %v1400 = vpack.c.b16 %v944, %v938
    %v1401 = vpack.c.b16 %v945, %v939
    %v1402 = vpack.c.b16 %v946, %v940
    %v1403 = vpack.c.b16 %v947, %v941
    %v1404 = vpack.c.b16 %v954, %v948
    %v1405 = vpack.c.b16 %v955, %v949
    %v1406 = vpack.c.b16 %v956, %v950
    %v1407 = vpack.c.b16 %v957, %v951
    %v1408 = vpack.c.b16 %v958, %v952
    %v1409 = vpack.c.b16 %v959, %v953
    %v1410 = vpack.c.b16 %v966, %v960
    %v1411 = vpack.c.b16 %v967, %v961
    %v1412 = vpack.c.b16 %v968, %v962
    %v1413 = vpack.c.b16 %v969, %v963
    %v1414 = vpack.c.b16 %v970, %v964
    %v1415 = vpack.c.b16 %v971, %v965
    %v1416 = vpack.c.b16 %v978, %v972
    %v1417 = vpack.c.b16 %v979, %v973
    %v1418 = vpack.c.b16 %v980, %v974
    %v1419 = vpack.c.b16 %v981, %v975
    %v1420 = vpack.c.b16 %v982, %v976
    %v1421 = vpack.c.b16 %v983, %v977
    %v1422 = vpack.c.b16 %v990, %v984
    %v1423 = vpack.c.b16 %v991, %v985
    %v1424 = vpack.c.b16 %v992, %v986
    %v1425 = vpack.c.b16 %v993, %v987
    %v1426 = vpack.c.b16 %v994, %v988
    %v1427 = vpack.c.b16 %v995, %v989
    %v1428 = vpack.c.b16 %v1002, %v996
    %v1429 = vpack.c.b16 %v1003, %v997
    %v1430 = vpack.c.b16 %v1004, %v998
    %v1431 = vpack.c.b16 %v1005, %v999
    %v1432 = vpack.c.b16 %v1006, %v1000
    %v1433 = vpack.c.b16 %v1007, %v1001
    %v1434 = vpack.c.b16 %v1014, %v1008
    %v1435 = vpack.c.b16 %v1015, %v1009
    %v1436 = vpack.c.b16 %v1016, %v1010
    %v1437 = vpack.c.b16 %v1017, %v1011
    %v1438 = vpack.c.b16 %v1018, %v1012
    %v1439 = vpack.c.b16 %v1019, %v1013
    %v1440 = vpack.c.b16 %v1026, %v1020
    %v1441 = vpack.c.b16 %v1027, %v1021
    %v1442 = vpack.c.b16 %v1028, %v1022
    %v1443 = vpack.c.b16 %v1029, %v1023
    %v1444 = vpack.c.b16 %v1030, %v1024
    %v1445 = vpack.c.b16 %v1031, %v1025
    %v1446 = vpack.c.b16 %v1038, %v1032
    %v1447 = vpack.c.b16 %v1039, %v1033
    %v1448 = vpack.c.b16 %v1040, %v1034
    %v1449 = vpack.c.b16 %v1041, %v1035
    %v1450 = vpack.c.b16 %v1042, %v1036
    %v1451 = vpack.c.b16 %v1043, %v1037
    %v1452 = vpack.c.b16 %v1050, %v1044
    %v1453 = vpack.c.b16 %v1051, %v1045
    %v1454 = vpack.c.b16 %v1052, %v1046
    %v1455 = vpack.c.b16 %v1053, %v1047
    %v1456 = vpack.c.b16 %v1054, %v1048
    %v1457 = vpack.c.b16 %v1055, %v1049
    %v1458 = vpack.c.b16 %v1062, %v1056
    %v1459 = vpack.c.b16 %v1063, %v1057
    %v1460 = vpack.c.b16 %v1064, %v1058
    %v1461 = vpack.c.b16 %v1065, %v1059
    %v1462 = vpack.c.b16 %v1066, %v1060
    %v1463 = vpack.c.b16 %v1067, %v1061
    %v1464 = vpack.c.b16 %v1074, %v1068
    %v1465 = vpack.c.b16 %v1075, %v1069
    %v1466 = vpack.c.b16 %v1076, %v1070
    %v1467 = vpack.c.b16 %v1077, %v1071
    %v1468 = vpack.c.b16 %v1078, %v1072
    %v1469 = vpack.c.b16 %v1079, %v1073
    %v1470 = vpack.c.b16 %v1086, %v1080
    %v1471 = vpack.c.b16 %v1087, %v1081
    %v1472 = vpack.c.b16 %v1088, %v1082
    %v1473 = vpack.c.b16 %v1089, %v1083
    %v1474 = vpack.c.b16 %v1090, %v1084
    %v1475 = vpack.c.b16 %v1091, %v1085
    %v1476 = vpack.c.b16 %v1098, %v1092
    %v1477 = vpack.c.b16 %v1099, %v1093
    %v1478 = vpack.c.b16 %v1100, %v1094
    %v1479 = vpack.c.b16 %v1101, %v1095
    %v1480 = vpack.c.b16 %v1102, %v1096
    %v1481 = vpack.c.b16 %v1103, %v1097
    %v1482 = vpack.c.b16 %v1110, %v1104
    %v1483 = vpack.c.b16 %v1111, %v1105
    %v1484 = vpack.c.b16 %v1112, %v1106
    %v1485 = vpack.c.b16 %v1113, %v1107
    %v1486 = vpack.c.b16 %v1114, %v1108
    %v1487 = vpack.c.b16 %v1115, %v1109
    %v1488 = vpack.c.b16 %v1122, %v1116
    %v1489 = vpack.c.b16 %v1123, %v1117
    %v1490 = vpack.c.b16 %v1124, %v1118
    %v1491 = vpack.c.b16 %v1125, %v1119
    %v1492 = vpack.c.b16 %v1126, %v1120
    %v1493 = vpack.c.b16 %v1127, %v1121
    %v1494 = vpack.c.b16 %v1134, %v1128
    %v1495 = vpack.c.b16 %v1135, %v1129
    %v1496 = vpack.c.b16 %v1136, %v1130
    %v1497 = vpack.c.b16 %v1137, %v1131
    %v1498 = vpack.c.b16 %v1138, %v1132
    %v1499 = vpack.c.b16 %v1139, %v1133
    %v1500 = vpack.c.b16 %v1146, %v1140
    %v1501 = vpack.c.b16 %v1147, %v1141
    %v1502 = vpack.c.b16 %v1148, %v1142
    %v1503 = vpack.c.b16 %v1149, %v1143
    %v1504 = vpack.c.b16 %v1150, %v1144
    %v1505 = vpack.c.b16 %v1151, %v1145
    %v1506 = vpack.c.b16 %v1158, %v1152
    %v1507 = vpack.c.b16 %v1159, %v1153
    %v1508 = vpack.c.b16 %v1160, %v1154
    %v1509 = vpack.c.b16 %v1161, %v1155
    %v1510 = vpack.c.b16 %v1162, %v1156
    %v1511 = vpack.c.b16 %v1163, %v1157
    %v1512 = vpack.c.b16 %v1170, %v1164
    %v1513 = vpack.c.b16 %v1171, %v1165
    %v1514 = vpack.c.b16 %v1172, %v1166
    %v1515 = vpack.c.b16 %v1173, %v1167
    %v1516 = vpack.c.b16 %v1174, %v1168
    %v1517 = vpack.c.b16 %v1175, %v1169
    %v1518 = vpack.c.b16 %v1182, %v1176
    %v1519 = vpack.c.b16 %v1183, %v1177
    %v1520 = vpack.c.b16 %v1184, %v1178
    %v1521 = vpack.c.b16 %v1185, %v1179
    %v1522 = vpack.c.b16 %v1186, %v1180
    %v1523 = vpack.c.b16 %v1187, %v1181
    %v1524 = vpack.c.b16 %v1194, %v1188
    %v1525 = vpack.c.b16 %v1195, %v1189
    %v1526 = vpack.c.b16 %v1196, %v1190
    %v1527 = vpack.c.b16 %v1197, %v1191
    %v1528 = vpack.c.b16 %v1198, %v1192
    %v1529 = vpack.c.b16 %v1199, %v1193
    %v1530 = vpack.c.b16 %v1206, %v1200
    %v1531 = vpack.c.b16 %v1207, %v1201
    %v1532 = vpack.c.b16 %v1208, %v1202
    %v1533 = vpack.c.b16 %v1209, %v1203
    %v1534 = vpack.c.b16 %v1210, %v1204
    %v1535 = vpack.c.b16 %v1211, %v1205
    %v1536 = vpack.c.b16 %v1218, %v1212
    %v1537 = vpack.c.b16 %v1219, %v1213
    %v1538 = vpack.c.b16 %v1220, %v1214
    %v1539 = vpack.c.b16 %v1221, %v1215
    %v1540 = vpack.c.b16 %v1222, %v1216
    %v1541 = vpack.c.b16 %v1223, %v1217
    %v1542 = vpack.c.b16 %v1230, %v1224
    %v1543 = vpack.c.b16 %v1231, %v1225
    %v1544 = vpack.c.b16 %v1232, %v1226
    %v1545 = vpack.c.b16 %v1233, %v1227
    %v1546 = vpack.c.b16 %v1234, %v1228
    %v1547 = vpack.c.b16 %v1235, %v1229
    %v1548 = vpack.c.b16 %v1242, %v1236
    %v1549 = vpack.c.b16 %v1243, %v1237
    %v1550 = vpack.c.b16 %v1244, %v1238
    %v1551 = vpack.c.b16 %v1245, %v1239
    %v1552 = vpack.c.b16 %v1246, %v1240
    %v1553 = vpack.c.b16 %v1247, %v1241
    %v1554 = vpack.c.b16 %v1254, %v1248
    %v1555 = vpack.c.b16 %v1255, %v1249
    %v1556 = vpack.c.b16 %v1256, %v1250
    %v1557 = vpack.c.b16 %v1257, %v1251
    %v1558 = vpack.c.b16 %v1258, %v1252
    %v1559 = vpack.c.b16 %v1259, %v1253
    %v1560 = vpack.c.b16 %v1266, %v1260
    %v1561 = vpack.c.b16 %v1267, %v1261
    %v1562 = vpack.c.b16 %v1268, %v1262
    %v1563 = vpack.c.b16 %v1269, %v1263
    %v1564 = vpack.c.b16 %v1270, %v1264
    %v1565 = vpack.c.b16 %v1271, %v1265
    %v1566 = vpack.c.b16 %v1278, %v1272
    %v1567 = vpack.c.b16 %v1279, %v1273
    %v1568 = vpack.c.b16 %v1280, %v1274
    %v1569 = vpack.c.b16 %v1281, %v1275
    %v1570 = vpack.c.b16 %v1282, %v1276
    %v1571 = vpack.c.b16 %v1283, %v1277
    %1860 = vmatprep.subr.bf16.mxu0 %v1327
    %1861 = vmatpush1.bf16.msra.mxu0 %v1326
    %1862 = vmatprep.subr.bf16.mxu0 %v1321
    %1863 = vmatpush1.bf16.msra.mxu0 %v1320
    %1864 = vmatprep.subr.bf16.mxu0 %v1315
    %1865 = vmatpush1.bf16.msra.mxu0 %v1314
    %1866 = vmatprep.subr.bf16.mxu0 %v1309
    %1867 = vmatpush1.bf16.msra.mxu0 %v1308
    %1868 = vmatprep.subr.bf16.mxu0 %v1303
    %1869 = vmatpush1.bf16.msra.mxu0 %v1302
    %1870 = vmatprep.subr.bf16.mxu0 %v1297
    %1871 = vmatpush1.bf16.msra.mxu0 %v1296
    %1872 = vmatprep.subr.bf16.mxu0 %v1291
    %1873 = vmatpush1.bf16.msra.mxu0 %v1290
    %1874 = vmatprep.subr.bf16.mxu0 %v1285
    %1875 = vmatpush1.bf16.msra.mxu0 %v1284
    %1876 = vmatprep.subr.bf16.mxu0 %v1375
    %1877 = vmatpush2.bf16.msra.mxu0 %v1374
    %1878 = vmatprep.subr.bf16.mxu0 %v1369
    %1879 = vmatpush2.bf16.msra.mxu0 %v1368
    %1880 = vmatprep.subr.bf16.mxu0 %v1363
    %1881 = vmatpush2.bf16.msra.mxu0 %v1362
    %1882 = vmatprep.subr.bf16.mxu0 %v1357
    %1883 = vmatpush2.bf16.msra.mxu0 %v1356
    %1884 = vmatprep.subr.bf16.mxu0 %v1351
    %1885 = vmatpush2.bf16.msra.mxu0 %v1350
    %1886 = vmatprep.subr.bf16.mxu0 %v1345
    %1887 = vmatpush2.bf16.msra.mxu0 %v1344
    %1888 = vmatprep.subr.bf16.mxu0 %v1339
    %1889 = vmatpush2.bf16.msra.mxu0 %v1338
    %1890 = vmatprep.subr.bf16.mxu0 %v1333
    %1891 = vmatpush2.bf16.msra.mxu0 %v1332
    %1892 = vmatprep.mubr.bf16.mxu0 %v95
    %1893 = vmatmul.mubr.bf16.gmra.mxu0 %v94
    %v1894 = vpop.f32.mrf.mxu0
    %v1895 = vadd.f32 %v393, %v1894
    %v1896 = vpop.f32.mrf.mxu0
    %v1897 = vadd.f32 %v397, %v1896
    %v1898 = vpop.f32.mrf.mxu0
    %v1899 = vadd.f32 %v393, %v1898
    %v1900 = vpop.f32.mrf.mxu0
    %v1901 = vadd.f32 %v397, %v1900
    %1902 = vdwg.mxu0
    %1903 = vmatprep.subr.bf16.mxu0 %v1423
    %1904 = vmatpush1.bf16.msra.mxu0 %v1422
    %1905 = vmatprep.subr.bf16.mxu0 %v1417
    %1906 = vmatpush1.bf16.msra.mxu0 %v1416
    %1907 = vmatprep.subr.bf16.mxu0 %v1411
    %1908 = vmatpush1.bf16.msra.mxu0 %v1410
    %1909 = vmatprep.subr.bf16.mxu0 %v1405
    %1910 = vmatpush1.bf16.msra.mxu0 %v1404
    %1911 = vmatprep.subr.bf16.mxu0 %v1399
    %1912 = vmatpush1.bf16.msra.mxu0 %v1398
    %1913 = vmatprep.subr.bf16.mxu0 %v1393
    %1914 = vmatpush1.bf16.msra.mxu0 %v1392
    %1915 = vmatprep.subr.bf16.mxu0 %v1387
    %1916 = vmatpush1.bf16.msra.mxu0 %v1386
    %1917 = vmatprep.subr.bf16.mxu0 %v1381
    %1918 = vmatpush1.bf16.msra.mxu0 %v1380
    %1919 = vmatprep.subr.bf16.mxu0 %v1471
    %1920 = vmatpush2.bf16.msra.mxu0 %v1470
    %1921 = vmatprep.subr.bf16.mxu0 %v1465
    %1922 = vmatpush2.bf16.msra.mxu0 %v1464
    %1923 = vmatprep.subr.bf16.mxu0 %v1459
    %1924 = vmatpush2.bf16.msra.mxu0 %v1458
    %1925 = vmatprep.subr.bf16.mxu0 %v1453
    %1926 = vmatpush2.bf16.msra.mxu0 %v1452
    %1927 = vmatprep.subr.bf16.mxu0 %v1447
    %1928 = vmatpush2.bf16.msra.mxu0 %v1446
    %1929 = vmatprep.subr.bf16.mxu0 %v1441
    %1930 = vmatpush2.bf16.msra.mxu0 %v1440
    %1931 = vmatprep.subr.bf16.mxu0 %v1435
    %1932 = vmatpush2.bf16.msra.mxu0 %v1434
    %1933 = vmatprep.subr.bf16.mxu0 %v1429
    %1934 = vmatpush2.bf16.msra.mxu0 %v1428
    %1935 = vmatprep.mubr.bf16.mxu0 %v97
    %1936 = vmatmul.mubr.bf16.gmra.mxu0 %v96
    %v1937 = vpop.f32.mrf.mxu0
    %v1938 = vadd.f32 %v1895, %v1937
    %v1939 = vpop.f32.mrf.mxu0
    %v1940 = vadd.f32 %v1897, %v1939
    %v1941 = vpop.f32.mrf.mxu0
    %v1942 = vadd.f32 %v1899, %v1941
    %v1943 = vpop.f32.mrf.mxu0
    %v1944 = vadd.f32 %v1901, %v1943
    %1945 = vdwg.mxu0
    %1946 = vmatprep.subr.bf16.mxu0 %v1519
    %1947 = vmatpush1.bf16.msra.mxu0 %v1518
    %1948 = vmatprep.subr.bf16.mxu0 %v1513
    %1949 = vmatpush1.bf16.msra.mxu0 %v1512
    %1950 = vmatprep.subr.bf16.mxu0 %v1507
    %1951 = vmatpush1.bf16.msra.mxu0 %v1506
    %1952 = vmatprep.subr.bf16.mxu0 %v1501
    %1953 = vmatpush1.bf16.msra.mxu0 %v1500
    %1954 = vmatprep.subr.bf16.mxu0 %v1495
    %1955 = vmatpush1.bf16.msra.mxu0 %v1494
    %1956 = vmatprep.subr.bf16.mxu0 %v1489
    %1957 = vmatpush1.bf16.msra.mxu0 %v1488
    %1958 = vmatprep.subr.bf16.mxu0 %v1483
    %1959 = vmatpush1.bf16.msra.mxu0 %v1482
    %1960 = vmatprep.subr.bf16.mxu0 %v1477
    %1961 = vmatpush1.bf16.msra.mxu0 %v1476
    %1962 = vmatprep.subr.bf16.mxu0 %v1567
    %1963 = vmatpush2.bf16.msra.mxu0 %v1566
    %1964 = vmatprep.subr.bf16.mxu0 %v1561
    %1965 = vmatpush2.bf16.msra.mxu0 %v1560
    %1966 = vmatprep.subr.bf16.mxu0 %v1555
    %1967 = vmatpush2.bf16.msra.mxu0 %v1554
    %1968 = vmatprep.subr.bf16.mxu0 %v1549
    %1969 = vmatpush2.bf16.msra.mxu0 %v1548
    %1970 = vmatprep.subr.bf16.mxu0 %v1543
    %1971 = vmatpush2.bf16.msra.mxu0 %v1542
    %1972 = vmatprep.subr.bf16.mxu0 %v1537
    %1973 = vmatpush2.bf16.msra.mxu0 %v1536
    %1974 = vmatprep.subr.bf16.mxu0 %v1531
    %1975 = vmatpush2.bf16.msra.mxu0 %v1530
    %1976 = vmatprep.subr.bf16.mxu0 %v1525
    %1977 = vmatpush2.bf16.msra.mxu0 %v1524
    %1978 = vmatprep.mubr.bf16.mxu0 %v99
    %1979 = vmatmul.mubr.bf16.gmra.mxu0 %v98
    %v1980 = vpop.f32.mrf.mxu0
    %v1981 = vadd.f32 %v1938, %v1980
    %v1982 = vpop.f32.mrf.mxu0
    %v1983 = vadd.f32 %v1940, %v1982
    %v1984 = vpop.f32.mrf.mxu0
    %v1985 = vadd.f32 %v1942, %v1984
    %v1986 = vpop.f32.mrf.mxu0
    %v1987 = vadd.f32 %v1944, %v1986
    %1988 = vdwg.mxu0
    %1989 = vmatprep.subr.bf16.mxu0 %v1329
    %1990 = vmatpush1.bf16.msra.mxu0 %v1328
    %1991 = vmatprep.subr.bf16.mxu0 %v1323
    %1992 = vmatpush1.bf16.msra.mxu0 %v1322
    %1993 = vmatprep.subr.bf16.mxu0 %v1317
    %1994 = vmatpush1.bf16.msra.mxu0 %v1316
    %1995 = vmatprep.subr.bf16.mxu0 %v1311
    %1996 = vmatpush1.bf16.msra.mxu0 %v1310
    %1997 = vmatprep.subr.bf16.mxu0 %v1305
    %1998 = vmatpush1.bf16.msra.mxu0 %v1304
    %1999 = vmatprep.subr.bf16.mxu0 %v1299
    %2000 = vmatpush1.bf16.msra.mxu0 %v1298
    %2001 = vmatprep.subr.bf16.mxu0 %v1293
    %2002 = vmatpush1.bf16.msra.mxu0 %v1292
    %2003 = vmatprep.subr.bf16.mxu0 %v1287
    %2004 = vmatpush1.bf16.msra.mxu0 %v1286
    %2005 = vmatprep.subr.bf16.mxu0 %v1377
    %2006 = vmatpush2.bf16.msra.mxu0 %v1376
    %2007 = vmatprep.subr.bf16.mxu0 %v1371
    %2008 = vmatpush2.bf16.msra.mxu0 %v1370
    %2009 = vmatprep.subr.bf16.mxu0 %v1365
    %2010 = vmatpush2.bf16.msra.mxu0 %v1364
    %2011 = vmatprep.subr.bf16.mxu0 %v1359
    %2012 = vmatpush2.bf16.msra.mxu0 %v1358
    %2013 = vmatprep.subr.bf16.mxu0 %v1353
    %2014 = vmatpush2.bf16.msra.mxu0 %v1352
    %2015 = vmatprep.subr.bf16.mxu0 %v1347
    %2016 = vmatpush2.bf16.msra.mxu0 %v1346
    %2017 = vmatprep.subr.bf16.mxu0 %v1341
    %2018 = vmatpush2.bf16.msra.mxu0 %v1340
    %2019 = vmatprep.subr.bf16.mxu0 %v1335
    %2020 = vmatpush2.bf16.msra.mxu0 %v1334
    %2021 = vmatprep.mubr.bf16.mxu0 %v95
    %2022 = vmatmul.mubr.bf16.gmra.mxu0 %v94
    %v2023 = vpop.f32.mrf.mxu0
    %v2024 = vadd.f32 %v401, %v2023
    %v2025 = vpop.f32.mrf.mxu0
    %v2026 = vadd.f32 %v405, %v2025
    %v2027 = vpop.f32.mrf.mxu0
    %v2028 = vadd.f32 %v401, %v2027
    %v2029 = vpop.f32.mrf.mxu0
    %v2030 = vadd.f32 %v405, %v2029
    %2031 = vdwg.mxu0
    %2032 = vmatprep.subr.bf16.mxu0 %v1425
    %2033 = vmatpush1.bf16.msra.mxu0 %v1424
    %2034 = vmatprep.subr.bf16.mxu0 %v1419
    %2035 = vmatpush1.bf16.msra.mxu0 %v1418
    %2036 = vmatprep.subr.bf16.mxu0 %v1413
    %2037 = vmatpush1.bf16.msra.mxu0 %v1412
    %2038 = vmatprep.subr.bf16.mxu0 %v1407
    %2039 = vmatpush1.bf16.msra.mxu0 %v1406
    %2040 = vmatprep.subr.bf16.mxu0 %v1401
    %2041 = vmatpush1.bf16.msra.mxu0 %v1400
    %2042 = vmatprep.subr.bf16.mxu0 %v1395
    %2043 = vmatpush1.bf16.msra.mxu0 %v1394
    %2044 = vmatprep.subr.bf16.mxu0 %v1389
    %2045 = vmatpush1.bf16.msra.mxu0 %v1388
    %2046 = vmatprep.subr.bf16.mxu0 %v1383
    %2047 = vmatpush1.bf16.msra.mxu0 %v1382
    %2048 = vmatprep.subr.bf16.mxu0 %v1473
    %2049 = vmatpush2.bf16.msra.mxu0 %v1472
    %2050 = vmatprep.subr.bf16.mxu0 %v1467
    %2051 = vmatpush2.bf16.msra.mxu0 %v1466
    %2052 = vmatprep.subr.bf16.mxu0 %v1461
    %2053 = vmatpush2.bf16.msra.mxu0 %v1460
    %2054 = vmatprep.subr.bf16.mxu0 %v1455
    %2055 = vmatpush2.bf16.msra.mxu0 %v1454
    %2056 = vmatprep.subr.bf16.mxu0 %v1449
    %2057 = vmatpush2.bf16.msra.mxu0 %v1448
    %2058 = vmatprep.subr.bf16.mxu0 %v1443
    %2059 = vmatpush2.bf16.msra.mxu0 %v1442
    %2060 = vmatprep.subr.bf16.mxu0 %v1437
    %2061 = vmatpush2.bf16.msra.mxu0 %v1436
    %2062 = vmatprep.subr.bf16.mxu0 %v1431
    %2063 = vmatpush2.bf16.msra.mxu0 %v1430
    %2064 = vmatprep.mubr.bf16.mxu0 %v97
    %2065 = vmatmul.mubr.bf16.gmra.mxu0 %v96
    %v2066 = vpop.f32.mrf.mxu0
    %v2067 = vadd.f32 %v2024, %v2066
    %v2068 = vpop.f32.mrf.mxu0
    %v2069 = vadd.f32 %v2026, %v2068
    %v2070 = vpop.f32.mrf.mxu0
    %v2071 = vadd.f32 %v2028, %v2070
    %v2072 = vpop.f32.mrf.mxu0
    %v2073 = vadd.f32 %v2030, %v2072
    %2074 = vdwg.mxu0
    %2075 = vmatprep.subr.bf16.mxu0 %v1521
    %2076 = vmatpush1.bf16.msra.mxu0 %v1520
    %2077 = vmatprep.subr.bf16.mxu0 %v1515
    %2078 = vmatpush1.bf16.msra.mxu0 %v1514
    %2079 = vmatprep.subr.bf16.mxu0 %v1509
    %2080 = vmatpush1.bf16.msra.mxu0 %v1508
    %2081 = vmatprep.subr.bf16.mxu0 %v1503
    %2082 = vmatpush1.bf16.msra.mxu0 %v1502
    %2083 = vmatprep.subr.bf16.mxu0 %v1497
    %2084 = vmatpush1.bf16.msra.mxu0 %v1496
    %2085 = vmatprep.subr.bf16.mxu0 %v1491
    %2086 = vmatpush1.bf16.msra.mxu0 %v1490
    %2087 = vmatprep.subr.bf16.mxu0 %v1485
    %2088 = vmatpush1.bf16.msra.mxu0 %v1484
    %2089 = vmatprep.subr.bf16.mxu0 %v1479
    %2090 = vmatpush1.bf16.msra.mxu0 %v1478
    %2091 = vmatprep.subr.bf16.mxu0 %v1569
    %2092 = vmatpush2.bf16.msra.mxu0 %v1568
    %2093 = vmatprep.subr.bf16.mxu0 %v1563
    %2094 = vmatpush2.bf16.msra.mxu0 %v1562
    %2095 = vmatprep.subr.bf16.mxu0 %v1557
    %2096 = vmatpush2.bf16.msra.mxu0 %v1556
    %2097 = vmatprep.subr.bf16.mxu0 %v1551
    %2098 = vmatpush2.bf16.msra.mxu0 %v1550
    %2099 = vmatprep.subr.bf16.mxu0 %v1545
    %2100 = vmatpush2.bf16.msra.mxu0 %v1544
    %2101 = vmatprep.subr.bf16.mxu0 %v1539
    %2102 = vmatpush2.bf16.msra.mxu0 %v1538
    %2103 = vmatprep.subr.bf16.mxu0 %v1533
    %2104 = vmatpush2.bf16.msra.mxu0 %v1532
    %2105 = vmatprep.subr.bf16.mxu0 %v1527
    %2106 = vmatpush2.bf16.msra.mxu0 %v1526
    %2107 = vmatprep.mubr.bf16.mxu0 %v99
    %2108 = vmatmul.mubr.bf16.gmra.mxu0 %v98
    %v2109 = vpop.f32.mrf.mxu0
    %v2110 = vadd.f32 %v2067, %v2109
    %v2111 = vpop.f32.mrf.mxu0
    %v2112 = vadd.f32 %v2069, %v2111
    %v2113 = vpop.f32.mrf.mxu0
    %v2114 = vadd.f32 %v2071, %v2113
    %v2115 = vpop.f32.mrf.mxu0
    %v2116 = vadd.f32 %v2073, %v2115
    %2117 = vdwg.mxu0
    %2118 = vmatprep.subr.bf16.mxu0 %v1331
    %2119 = vmatpush1.bf16.msra.mxu0 %v1330
    %2120 = vmatprep.subr.bf16.mxu0 %v1325
    %2121 = vmatpush1.bf16.msra.mxu0 %v1324
    %2122 = vmatprep.subr.bf16.mxu0 %v1319
    %2123 = vmatpush1.bf16.msra.mxu0 %v1318
    %2124 = vmatprep.subr.bf16.mxu0 %v1313
    %2125 = vmatpush1.bf16.msra.mxu0 %v1312
    %2126 = vmatprep.subr.bf16.mxu0 %v1307
    %2127 = vmatpush1.bf16.msra.mxu0 %v1306
    %2128 = vmatprep.subr.bf16.mxu0 %v1301
    %2129 = vmatpush1.bf16.msra.mxu0 %v1300
    %2130 = vmatprep.subr.bf16.mxu0 %v1295
    %2131 = vmatpush1.bf16.msra.mxu0 %v1294
    %2132 = vmatprep.subr.bf16.mxu0 %v1289
    %2133 = vmatpush1.bf16.msra.mxu0 %v1288
    %2134 = vmatprep.subr.bf16.mxu0 %v1379
    %2135 = vmatpush2.bf16.msra.mxu0 %v1378
    %2136 = vmatprep.subr.bf16.mxu0 %v1373
    %2137 = vmatpush2.bf16.msra.mxu0 %v1372
    %2138 = vmatprep.subr.bf16.mxu0 %v1367
    %2139 = vmatpush2.bf16.msra.mxu0 %v1366
    %2140 = vmatprep.subr.bf16.mxu0 %v1361
    %2141 = vmatpush2.bf16.msra.mxu0 %v1360
    %2142 = vmatprep.subr.bf16.mxu0 %v1355
    %2143 = vmatpush2.bf16.msra.mxu0 %v1354
    %2144 = vmatprep.subr.bf16.mxu0 %v1349
    %2145 = vmatpush2.bf16.msra.mxu0 %v1348
    %2146 = vmatprep.subr.bf16.mxu0 %v1343
    %2147 = vmatpush2.bf16.msra.mxu0 %v1342
    %2148 = vmatprep.subr.bf16.mxu0 %v1337
    %2149 = vmatpush2.bf16.msra.mxu0 %v1336
    %2150 = vmatprep.mubr.bf16.mxu0 %v95
    %2151 = vmatmul.mubr.bf16.gmra.mxu0 %v94
    %v2152 = vpop.f32.mrf.mxu0
    %v2153 = vadd.f32 %v409, %v2152
    %v2154 = vpop.f32.mrf.mxu0
    %v2155 = vadd.f32 %v413, %v2154
    %v2156 = vpop.f32.mrf.mxu0
    %v2157 = vadd.f32 %v409, %v2156
    %v2158 = vpop.f32.mrf.mxu0
    %v2159 = vadd.f32 %v413, %v2158
    %2160 = vdwg.mxu0
    %2161 = vmatprep.subr.bf16.mxu0 %v1427
    %2162 = vmatpush1.bf16.msra.mxu0 %v1426
    %2163 = vmatprep.subr.bf16.mxu0 %v1421
    %2164 = vmatpush1.bf16.msra.mxu0 %v1420
    %2165 = vmatprep.subr.bf16.mxu0 %v1415
    %2166 = vmatpush1.bf16.msra.mxu0 %v1414
    %2167 = vmatprep.subr.bf16.mxu0 %v1409
    %2168 = vmatpush1.bf16.msra.mxu0 %v1408
    %2169 = vmatprep.subr.bf16.mxu0 %v1403
    %2170 = vmatpush1.bf16.msra.mxu0 %v1402
    %2171 = vmatprep.subr.bf16.mxu0 %v1397
    %2172 = vmatpush1.bf16.msra.mxu0 %v1396
    %2173 = vmatprep.subr.bf16.mxu0 %v1391
    %2174 = vmatpush1.bf16.msra.mxu0 %v1390
    %2175 = vmatprep.subr.bf16.mxu0 %v1385
    %2176 = vmatpush1.bf16.msra.mxu0 %v1384
    %2177 = vmatprep.subr.bf16.mxu0 %v1475
    %2178 = vmatpush2.bf16.msra.mxu0 %v1474
    %2179 = vmatprep.subr.bf16.mxu0 %v1469
    %2180 = vmatpush2.bf16.msra.mxu0 %v1468
    %2181 = vmatprep.subr.bf16.mxu0 %v1463
    %2182 = vmatpush2.bf16.msra.mxu0 %v1462
    %2183 = vmatprep.subr.bf16.mxu0 %v1457
    %2184 = vmatpush2.bf16.msra.mxu0 %v1456
    %2185 = vmatprep.subr.bf16.mxu0 %v1451
    %2186 = vmatpush2.bf16.msra.mxu0 %v1450
    %2187 = vmatprep.subr.bf16.mxu0 %v1445
    %2188 = vmatpush2.bf16.msra.mxu0 %v1444
    %2189 = vmatprep.subr.bf16.mxu0 %v1439
    %2190 = vmatpush2.bf16.msra.mxu0 %v1438
    %2191 = vmatprep.subr.bf16.mxu0 %v1433
    %2192 = vmatpush2.bf16.msra.mxu0 %v1432
    %2193 = vmatprep.mubr.bf16.mxu0 %v97
    %2194 = vmatmul.mubr.bf16.gmra.mxu0 %v96
    %v2195 = vpop.f32.mrf.mxu0
    %v2196 = vadd.f32 %v2153, %v2195
    %v2197 = vpop.f32.mrf.mxu0
    %v2198 = vadd.f32 %v2155, %v2197
    %v2199 = vpop.f32.mrf.mxu0
    %v2200 = vadd.f32 %v2157, %v2199
    %v2201 = vpop.f32.mrf.mxu0
    %v2202 = vadd.f32 %v2159, %v2201
    %2203 = vdwg.mxu0
    %2204 = vmatprep.subr.bf16.mxu0 %v1523
    %2205 = vmatpush1.bf16.msra.mxu0 %v1522
    %2206 = vmatprep.subr.bf16.mxu0 %v1517
    %2207 = vmatpush1.bf16.msra.mxu0 %v1516
    %2208 = vmatprep.subr.bf16.mxu0 %v1511
    %2209 = vmatpush1.bf16.msra.mxu0 %v1510
    %2210 = vmatprep.subr.bf16.mxu0 %v1505
    %2211 = vmatpush1.bf16.msra.mxu0 %v1504
    %2212 = vmatprep.subr.bf16.mxu0 %v1499
    %2213 = vmatpush1.bf16.msra.mxu0 %v1498
    %2214 = vmatprep.subr.bf16.mxu0 %v1493
    %2215 = vmatpush1.bf16.msra.mxu0 %v1492
    %2216 = vmatprep.subr.bf16.mxu0 %v1487
    %2217 = vmatpush1.bf16.msra.mxu0 %v1486
    %2218 = vmatprep.subr.bf16.mxu0 %v1481
    %2219 = vmatpush1.bf16.msra.mxu0 %v1480
    %2220 = vmatprep.subr.bf16.mxu0 %v1571
    %2221 = vmatpush2.bf16.msra.mxu0 %v1570
    %2222 = vmatprep.subr.bf16.mxu0 %v1565
    %2223 = vmatpush2.bf16.msra.mxu0 %v1564
    %2224 = vmatprep.subr.bf16.mxu0 %v1559
    %2225 = vmatpush2.bf16.msra.mxu0 %v1558
    %2226 = vmatprep.subr.bf16.mxu0 %v1553
    %2227 = vmatpush2.bf16.msra.mxu0 %v1552
    %2228 = vmatprep.subr.bf16.mxu0 %v1547
    %2229 = vmatpush2.bf16.msra.mxu0 %v1546
    %2230 = vmatprep.subr.bf16.mxu0 %v1541
    %2231 = vmatpush2.bf16.msra.mxu0 %v1540
    %2232 = vmatprep.subr.bf16.mxu0 %v1535
    %2233 = vmatpush2.bf16.msra.mxu0 %v1534
    %2234 = vmatprep.subr.bf16.mxu0 %v1529
    %2235 = vmatpush2.bf16.msra.mxu0 %v1528
    %2236 = vmatprep.mubr.bf16.mxu0 %v99
    %2237 = vmatmul.mubr.bf16.gmra.mxu0 %v98
    %v2238 = vpop.f32.mrf.mxu0
    %v2239 = vadd.f32 %v2196, %v2238
    %v2240 = vpop.f32.mrf.mxu0
    %v2241 = vadd.f32 %v2198, %v2240
    %v2242 = vpop.f32.mrf.mxu0
    %v2243 = vadd.f32 %v2200, %v2242
    %v2244 = vpop.f32.mrf.mxu0
    %v2245 = vadd.f32 %v2202, %v2244
    %2246 = vdwg.mxu0
    %v2247 = vmul.f32 %v1981, 0.5
    %v2248 = vmul.f32 %v1983, 0.5
    %v2249 = vmul.f32 %v2110, 0.5
    %v2250 = vmul.f32 %v2112, 0.5
    %v2251 = vmul.f32 %v2239, 0.5
    %v2252 = vmul.f32 %v2241, 0.5
    %v2253 = vmul.f32 %v1985, 0.5
    %v2254 = vmul.f32 %v1987, 0.5
    %v2255 = vmul.f32 %v2114, 0.5
    %v2256 = vmul.f32 %v2116, 0.5
    %v2257 = vmul.f32 %v2243, 0.5
    %v2258 = vmul.f32 %v2245, 0.5
    %v2259 = vmul.f32 %v1981, 0.70710677
    %v2260 = vmul.f32 %v1983, 0.70710677
    %v2261 = vmul.f32 %v2110, 0.70710677
    %v2262 = vmul.f32 %v2112, 0.70710677
    %v2263 = vmul.f32 %v2239, 0.70710677
    %v2264 = vmul.f32 %v2241, 0.70710677
    %v2265 = vmul.f32 %v1985, 0.70710677
    %v2266 = vmul.f32 %v1987, 0.70710677
    %v2267 = vmul.f32 %v2114, 0.70710677
    %v2268 = vmul.f32 %v2116, 0.70710677
    %v2269 = vmul.f32 %v2243, 0.70710677
    %v2270 = vmul.f32 %v2245, 0.70710677
    %v2271 = verf.f32.pop %v2259
    %v2272 = verf.f32.pop %v2260
    %v2273 = verf.f32.pop %v2261
    %v2274 = verf.f32.pop %v2262
    %v2275 = verf.f32.pop %v2263
    %v2276 = verf.f32.pop %v2264
    %v2277 = verf.f32.pop %v2265
    %v2278 = verf.f32.pop %v2266
    %v2279 = verf.f32.pop %v2267
    %v2280 = verf.f32.pop %v2268
    %v2281 = verf.f32.pop %v2269
    %v2282 = verf.f32.pop %v2270
    %v2283 = vadd.f32 %v2271, 1.0
    %v2284 = vadd.f32 %v2272, 1.0
    %v2285 = vadd.f32 %v2273, 1.0
    %v2286 = vadd.f32 %v2274, 1.0
    %v2287 = vadd.f32 %v2275, 1.0
    %v2288 = vadd.f32 %v2276, 1.0
    %v2289 = vadd.f32 %v2277, 1.0
    %v2290 = vadd.f32 %v2278, 1.0
    %v2291 = vadd.f32 %v2279, 1.0
    %v2292 = vadd.f32 %v2280, 1.0
    %v2293 = vadd.f32 %v2281, 1.0
    %v2294 = vadd.f32 %v2282, 1.0
    %v2295 = vmul.f32 %v2247, %v2283
    %v2296 = vmul.f32 %v2248, %v2284
    %v2297 = vmul.f32 %v2249, %v2285
    %v2298 = vmul.f32 %v2250, %v2286
    %v2299 = vmul.f32 %v2251, %v2287
    %v2300 = vmul.f32 %v2252, %v2288
    %v2301 = vmul.f32 %v2253, %v2289
    %v2302 = vmul.f32 %v2254, %v2290
    %v2303 = vmul.f32 %v2255, %v2291
    %v2304 = vmul.f32 %v2256, %v2292
    %v2305 = vmul.f32 %v2257, %v2293
    %v2306 = vmul.f32 %v2258, %v2294
    %v2307 = vadd.f32 %v2295, %v2296
    %v2308 = vadd.f32 %v2307, %v2297
    %v2309 = vadd.f32 %v2308, %v2298
    %v2310 = vadd.f32 %v2309, %v2299
    %v2311 = vadd.f32 %v2310, %v2300
    %2312 = vadd.xlane.f32.xlu0 %v2311
    %v2313 = vpop.xlane.xlu0 %2312
    %v2314 = vadd.f32 %v2301, %v2302
    %v2315 = vadd.f32 %v2314, %v2303
    %v2316 = vadd.f32 %v2315, %v2304
    %v2317 = vadd.f32 %v2316, %v2305
    %v2318 = vadd.f32 %v2317, %v2306
    %2319 = vadd.xlane.f32.xlu0 %v2318
    %v2320 = vpop.xlane.xlu0 %2319
    %v2321 = vrcp.pop 768.0
    %v2322 = vmul.f32 %v2313, %v2321
    %v2323 = vmul.f32 %v2320, %v2321
    %v2324 = vsub.f32 %v2295, %v2322
    %v2325 = vsub.f32 %v2296, %v2322
    %v2326 = vsub.f32 %v2297, %v2322
    %v2327 = vsub.f32 %v2298, %v2322
    %v2328 = vsub.f32 %v2299, %v2322
    %v2329 = vsub.f32 %v2300, %v2322
    %v2330 = vsub.f32 %v2301, %v2323
    %v2331 = vsub.f32 %v2302, %v2323
    %v2332 = vsub.f32 %v2303, %v2323
    %v2333 = vsub.f32 %v2304, %v2323
    %v2334 = vsub.f32 %v2305, %v2323
    %v2335 = vsub.f32 %v2306, %v2323
    %v2336 = vmul.f32 %v2324, %v2324
    %v2337 = vmul.f32 %v2325, %v2325
    %v2338 = vmul.f32 %v2326, %v2326
    %v2339 = vmul.f32 %v2327, %v2327
    %v2340 = vmul.f32 %v2328, %v2328
    %v2341 = vmul.f32 %v2329, %v2329
    %v2342 = vmul.f32 %v2330, %v2330
    %v2343 = vmul.f32 %v2331, %v2331
    %v2344 = vmul.f32 %v2332, %v2332
    %v2345 = vmul.f32 %v2333, %v2333
    %v2346 = vmul.f32 %v2334, %v2334
    %v2347 = vmul.f32 %v2335, %v2335
    %v2348 = vadd.f32 %v2336, %v2337
    %v2349 = vadd.f32 %v2348, %v2338
    %v2350 = vadd.f32 %v2349, %v2339
    %v2351 = vadd.f32 %v2350, %v2340
    %v2352 = vadd.f32 %v2351, %v2341
    %2353 = vadd.xlane.f32.xlu0 %v2352
    %v2354 = vpop.xlane.xlu0 %2353
    %v2355 = vadd.f32 %v2342, %v2343
    %v2356 = vadd.f32 %v2355, %v2344
    %v2357 = vadd.f32 %v2356, %v2345
    %v2358 = vadd.f32 %v2357, %v2346
    %v2359 = vadd.f32 %v2358, %v2347
    %2360 = vadd.xlane.f32.xlu0 %v2359
    %v2361 = vpop.xlane.xlu0 %2360
    %v2362 = vmul.f32 %v2354, %v2321
    %v2363 = vmul.f32 %v2361, %v2321
    %v2364 = vadd.f32 %v2362, 1e-12
    %v2365 = vadd.f32 %v2363, 1e-12
    %v2366 = vrsqrt.pop %v2364
    %v2367 = vrsqrt.pop %v2365
    %v2368 = vmul.f32 %v2324, %v2366
    %v2369 = vmul.f32 %v2325, %v2366
    %v2370 = vmul.f32 %v2326, %v2366
    %v2371 = vmul.f32 %v2327, %v2366
    %v2372 = vmul.f32 %v2328, %v2366
    %v2373 = vmul.f32 %v2329, %v2366
    %v2374 = vmul.f32 %v2330, %v2367
    %v2375 = vmul.f32 %v2331, %v2367
    %v2376 = vmul.f32 %v2332, %v2367
    %v2377 = vmul.f32 %v2333, %v2367
    %v2378 = vmul.f32 %v2334, %v2367
    %v2379 = vmul.f32 %v2335, %v2367
    %v2380 = vld [vmem:[#allocation7] sm:$0x3f]
    %v2382 = vlaneseq
    %v2383 = vshrl.u32 %v2382, 7
    %v2384 = vsub.s32 0, %v2383
    %v2385 = vrot.slane %v2380, %v2384
    %v2386 = vlaneseq
    %v2387 = vshrl.u32 %v2386, 7
    %v2388 = vsub.s32 1, %v2387
    %v2389 = vrot.slane %v2380, %v2388
    %v2390 = vlaneseq
    %v2391 = vshrl.u32 %v2390, 7
    %v2392 = vsub.s32 2, %v2391
    %v2393 = vrot.slane %v2380, %v2392
    %v2394 = vlaneseq
    %v2395 = vshrl.u32 %v2394, 7
    %v2396 = vsub.s32 3, %v2395
    %v2397 = vrot.slane %v2380, %v2396
    %v2398 = vlaneseq
    %v2399 = vshrl.u32 %v2398, 7
    %v2400 = vsub.s32 4, %v2399
    %v2401 = vrot.slane %v2380, %v2400
    %v2402 = vlaneseq
    %v2403 = vshrl.u32 %v2402, 7
    %v2404 = vsub.s32 5, %v2403
    %v2405 = vrot.slane %v2380, %v2404
    %v2412 = vmul.f32 %v2368, %v2385
    %v2413 = vmul.f32 %v2369, %v2389
    %v2414 = vmul.f32 %v2370, %v2393
    %v2415 = vmul.f32 %v2371, %v2397
    %v2416 = vmul.f32 %v2372, %v2401
    %v2417 = vmul.f32 %v2373, %v2405
    %v2418 = vmul.f32 %v2374, %v2385
    %v2419 = vmul.f32 %v2375, %v2389
    %v2420 = vmul.f32 %v2376, %v2393
    %v2421 = vmul.f32 %v2377, %v2397
    %v2422 = vmul.f32 %v2378, %v2401
    %v2423 = vmul.f32 %v2379, %v2405
    %v2424 = vld [vmem:[#allocation9] sm:$0x3f]
    %v2426 = vlaneseq
    %v2427 = vshrl.u32 %v2426, 7
    %v2428 = vsub.s32 0, %v2427
    %v2429 = vrot.slane %v2424, %v2428
    %v2430 = vlaneseq
    %v2431 = vshrl.u32 %v2430, 7
    %v2432 = vsub.s32 1, %v2431
    %v2433 = vrot.slane %v2424, %v2432
    %v2434 = vlaneseq
    %v2435 = vshrl.u32 %v2434, 7
    %v2436 = vsub.s32 2, %v2435
    %v2437 = vrot.slane %v2424, %v2436
    %v2438 = vlaneseq
    %v2439 = vshrl.u32 %v2438, 7
    %v2440 = vsub.s32 3, %v2439
    %v2441 = vrot.slane %v2424, %v2440
    %v2442 = vlaneseq
    %v2443 = vshrl.u32 %v2442, 7
    %v2444 = vsub.s32 4, %v2443
    %v2445 = vrot.slane %v2424, %v2444
    %v2446 = vlaneseq
    %v2447 = vshrl.u32 %v2446, 7
    %v2448 = vsub.s32 5, %v2447
    %v2449 = vrot.slane %v2424, %v2448
    %v2456 = vadd.f32 %v2412, %v2429
    %v2457 = vadd.f32 %v2413, %v2433
    %v2458 = vadd.f32 %v2414, %v2437
    %v2459 = vadd.f32 %v2415, %v2441
    %v2460 = vadd.f32 %v2416, %v2445
    %v2461 = vadd.f32 %v2417, %v2449
    %v2462 = vadd.f32 %v2418, %v2429
    %v2463 = vadd.f32 %v2419, %v2433
    %v2464 = vadd.f32 %v2420, %v2437
    %v2465 = vadd.f32 %v2421, %v2441
    %v2466 = vadd.f32 %v2422, %v2445
    %v2467 = vadd.f32 %v2423, %v2449
    %v2468 = vpack.c.bf16 %v2462, %v2456
    %v2469 = vpack.c.bf16 %v2463, %v2457
    %v2470 = vpack.c.bf16 %v2464, %v2458
    %v2471 = vpack.c.bf16 %v2465, %v2459
    %v2472 = vpack.c.bf16 %v2466, %v2460
    %v2473 = vpack.c.bf16 %v2467, %v2461
    %v2480 = vunpack.c.l.b16 %v2468
    %v2481 = vunpack.c.l.b16 %v2469
    %v2482 = vunpack.c.l.b16 %v2470
    %v2483 = vunpack.c.l.b16 %v2471
    %v2484 = vunpack.c.l.b16 %v2472
    %v2485 = vunpack.c.l.b16 %v2473
    %v2486 = vunpack.c.h.b16 %v2468
    %v2487 = vunpack.c.h.b16 %v2469
    %v2488 = vunpack.c.h.b16 %v2470
    %v2489 = vunpack.c.h.b16 %v2471
    %v2490 = vunpack.c.h.b16 %v2472
    %v2491 = vunpack.c.h.b16 %v2473
    %v2492 = vpack.c.b16 %v2481, %v2480
    %v2493 = vpack.c.b16 %v2483, %v2482
    %v2494 = vpack.c.b16 %v2485, %v2484
    %v2495 = vpack.c.b16 %v2487, %v2486
    %v2496 = vpack.c.b16 %v2489, %v2488
    %v2497 = vpack.c.b16 %v2491, %v2490
    %2504 = vst [vmem:[%s5] sm:$0xff] %v2492
    %2505 = vst [vmem:[%s5 + $0x8] sm:$0xff] %v2493
    %2506 = vst [vmem:[%s5 + $0x10] sm:$0xff] %v2494
    %2507 = vst [vmem:[%s5 + $0x18] sm:$0xff] %v2495
    %2508 = vst [vmem:[%s5 + $0x20] sm:$0xff] %v2496
    %2509 = vst [vmem:[%s5 + $0x28] sm:$0xff] %v2497
    // Predicated region
    $region42: #{mlm_head.2} parent=1 // pred_check
      _
    $region43: #{mlm_head.2} parent=1 // pred_check_branch
      %2511 = sbr.rel (0) target = $region45
    $region44: #{mlm_head.2} parent=1 // pred_region
      _
    $region45: #{mlm_head.2} parent=1 // pred_fallthru
      _
    // Predicated region
    $region46: #{mlm_head.2} parent=1 // pred_check
      _
    $region47: #{mlm_head.2} parent=1 // pred_check_branch
      %2513 = sbr.rel (0) target = $region49
    $region48: #{mlm_head.2} parent=1 // pred_region
      _
    $region49: #{mlm_head.2} parent=1 // pred_fallthru
      _
    %2514 = vsyncpa [#allocation3], 1
    %2515 = vsyncpa [#allocation5], 1
    %2516 = vsyncpa [#allocation8], 1

// kernel: mlm_head.3
$region0: #{mlm_head.3}
  #allocation0 [shape = 'u32[]', space=smem, size = 0x4, offset = 0x4, fixed_abs, tag = 'smem constant byte address 0x4 - core index']
  #allocation1 [shape = 'u32[144,128]{1,0:T(1,128)}', space=vmem, size = 0x12000, scoped, tag = 'internal scratch']
  %s0 = inlined_call_operand.vmem [shape: bf16[16,768], index: 0, kind: input, shape index: {}]
  %s1 = inlined_call_operand.hbm [shape: bf16[768,51200], index: 1, kind: input, shape index: {}]
  %s2 = inlined_call_operand.hbm [shape: f32[1,51200], index: 2, kind: input, shape index: {}]
  %s3 = inlined_call_operand.hbm [shape: f32[16,49411], index: 3, kind: output, shape index: {}]
  %s4 = sld [smem:[#allocation0]]
  $region53: #{mlm_head.3} parent=0
    _
  %s6 = ssub.s32 1, %s4
  %s7 = scalar_select 0, %s6, %s4
  $region1: #{mlm_head.3} parent=0
    #allocation2 [shape = 'u8[6291456]{0}', space=vmem, size = 0x600000, scoped, tag = 'input window, operand 1']
    #allocation3 [shape = 's32[2]{0}', space=sflag, size = 0x8, scoped, tag = 'scoped memory for mlm_head.3']
    #allocation4 [shape = 's32[2]{0}', space=sflag, size = 0x8, scoped, tag = 'scoped memory for mlm_head.3']
    #allocation5 [shape = 'u8[16384]{0}', space=vmem, size = 0x4000, scoped, tag = 'input window, operand 2']
    #allocation6 [shape = 's32[2]{0}', space=sflag, size = 0x8, scoped, tag = 'scoped memory for mlm_head.3']
    #allocation7 [shape = 'u8[262144]{0}', space=vmem, size = 0x40000, scoped, tag = 'output window, operand 0']
    %8 = vsyncpa [#allocation3], 0
    %s9 = scalar_lea.sflag [#allocation3], 1
    %10 = vsyncpa %s9, 0
    %11 = vsyncpa [#allocation6], 0
    %s12 = scalar_lea.sflag [#allocation6], 1
    %13 = vsyncpa %s12, 0
    %14 = vsyncpa [#allocation4], 0
    %s15 = scalar_lea.sflag [#allocation4], 1
    %16 = vsyncpa %s15, 0
    loop: start=0, step=1, limit=27
    $region2: #{mlm_head.3} parent=1 // loop_pre_header
      _
    $region3: #{mlm_head.3} parent=1 // loop_header
      %s18 = sphi 0, %s22
      %p19 = scmp.ge.s32.totalorder %s18, 27
      %s25 = sphi 0, %s37
      %s26 = sphi 0, %s33
      %s27 = sphi 0, %s25
      %s28 = sphi 0, %s26
      %s29 = sphi 0, %s27
      %s30 = sphi 0, %s28
      %s40 = sphi 0, %s42
      %s43 = sphi 0, %s40
      %s44 = sphi 0, %s43
      %s60 = sphi 0, %s44
      %s66 = sphi 0, %s68
      %s69 = sphi 0, %s66
      %s70 = sphi 0, %s69
      %s86 = sphi 0, %s70
      %s92 = sphi 0, %s94
      %s95 = sphi 0, %s92
      %s96 = sphi 0, %s95
      %s112 = sphi 0, %s96
      %s120 = sphi 0, %s122
      %s123 = sphi 0, %s120
      %s124 = sphi 0, %s123
      %s140 = sphi 0, %s124
    $region4: #{mlm_head.3} parent=1 // loop_header_branch
      %21 = sbr.rel (%p19) target = $region8
    $region5: #{mlm_head.3} parent=1 // loop_body
      %s23 = ssub.s32 %s18, 1
      %s24 = ssub.s32 %s18, 2
      %s31 = sadd.s32 1, %s26
      %p32 = scmp.ge.s32.totalorder %s31, 1
      %s33 = scalar_select %p32, 0, %s31
      %s34 = sadd.s32 1, %s25
      %s35 = scalar_select %p32, %s34, %s25
      %p36 = scmp.ge.s32.totalorder %s35, 25
      %s37 = scalar_select %p36, 0, %s35
      %s38 = ssub.s32 %s26, %s33
      %p39 = scmp.eq.s32.totalorder %s38, 0
      %s41 = sadd.s32 %s40, 1
      %s42 = scalar_select %p39, %s40, %s41
      %p45 = pneg %p39
      %p46 = scmp.eq.s32.totalorder %s18, 24
      %p47 = por %p45, %p46
      %p48 = scmp.ne.s32.totalorder %s40, %s43
      %p49 = scmp.eq.s32.totalorder %s18, 0
      %p50 = por %p48, %p49
      %p51 = scmp.ne.s32.totalorder %s40, %s43
      %p52 = scmp.eq.s32.totalorder %s23, 24
      %p53 = por %p51, %p52
      %p54 = scmp.ne.s32.totalorder %s43, %s44
      %p55 = scmp.eq.s32.totalorder %s23, 0
      %p56 = por %p54, %p55
      %p57 = scmp.ne.s32.totalorder %s43, %s44
      %p58 = scmp.eq.s32.totalorder %s24, 24
      %p59 = por %p57, %p58
      %p61 = scmp.ne.s32.totalorder %s44, %s60
      %p62 = scmp.eq.s32.totalorder %s24, 0
      %p63 = por %p61, %p62
      %s64 = ssub.s32 %s25, %s37
      %p65 = scmp.eq.s32.totalorder %s64, 0
      %s67 = sadd.s32 %s66, 1
      %s68 = scalar_select %p65, %s66, %s67
      %p71 = pneg %p65
      %p72 = scmp.eq.s32.totalorder %s18, 24
      %p73 = por %p71, %p72
      %p74 = scmp.ne.s32.totalorder %s66, %s69
      %p75 = scmp.eq.s32.totalorder %s18, 0
      %p76 = por %p74, %p75
      %p77 = scmp.ne.s32.totalorder %s66, %s69
      %p78 = scmp.eq.s32.totalorder %s23, 24
      %p79 = por %p77, %p78
      %p80 = scmp.ne.s32.totalorder %s69, %s70
      %p81 = scmp.eq.s32.totalorder %s23, 0
      %p82 = por %p80, %p81
      %p83 = scmp.ne.s32.totalorder %s69, %s70
      %p84 = scmp.eq.s32.totalorder %s24, 24
      %p85 = por %p83, %p84
      %p87 = scmp.ne.s32.totalorder %s70, %s86
      %p88 = scmp.eq.s32.totalorder %s24, 0
      %p89 = por %p87, %p88
      %s90 = ssub.s32 %s25, %s37
      %p91 = scmp.eq.s32.totalorder %s90, 0
      %s93 = sadd.s32 %s92, 1
      %s94 = scalar_select %p91, %s92, %s93
      %p97 = pneg %p91
      %p98 = scmp.eq.s32.totalorder %s18, 24
      %p99 = por %p97, %p98
      %p100 = scmp.ne.s32.totalorder %s92, %s95
      %p101 = scmp.eq.s32.totalorder %s18, 0
      %p102 = por %p100, %p101
      %p103 = scmp.ne.s32.totalorder %s92, %s95
      %p104 = scmp.eq.s32.totalorder %s23, 24
      %p105 = por %p103, %p104
      %p106 = scmp.ne.s32.totalorder %s95, %s96
      %p107 = scmp.eq.s32.totalorder %s23, 0
      %p108 = por %p106, %p107
      %p109 = scmp.ne.s32.totalorder %s95, %s96
      %p110 = scmp.eq.s32.totalorder %s24, 24
      %p111 = por %p109, %p110
      %p113 = scmp.ne.s32.totalorder %s96, %s112
      %p114 = scmp.eq.s32.totalorder %s24, 0
      %p115 = por %p113, %p114
      %s116 = ssub.s32 %s26, %s33
      %s117 = ssub.s32 %s25, %s37
      %s118 = sor.u32 %s116, %s117
      %p119 = scmp.eq.s32.totalorder %s118, 0
      %s121 = sadd.s32 %s120, 1
      %s122 = scalar_select %p119, %s120, %s121
      %p125 = pneg %p119
      %p126 = scmp.eq.s32.totalorder %s18, 24
      %p127 = por %p125, %p126
      %p128 = scmp.ne.s32.totalorder %s120, %s123
      %p129 = scmp.eq.s32.totalorder %s18, 0
      %p130 = por %p128, %p129
      %p131 = scmp.ne.s32.totalorder %s120, %s123
      %p132 = scmp.eq.s32.totalorder %s23, 24
      %p133 = por %p131, %p132
      %p134 = scmp.ne.s32.totalorder %s123, %s124
      %p135 = scmp.eq.s32.totalorder %s23, 0
      %p136 = por %p134, %p135
      %p137 = scmp.ne.s32.totalorder %s123, %s124
      %p138 = scmp.eq.s32.totalorder %s24, 24
      %p139 = por %p137, %p138
      %p141 = scmp.ne.s32.totalorder %s124, %s140
      %p142 = scmp.eq.s32.totalorder %s24, 0
      %p143 = por %p141, %p142
      %p144 = scmp.le.s32.totalorder 1, %s18
      %p145 = scmp.lt.s32.totalorder %s18, 26
      %p146 = pnand %p144, %p145
      %p147 = pneg %p146
      // Predicated region
      $region9: #{mlm_head.3} parent=5 // pred_check
        _
      $region10: #{mlm_head.3} parent=5 // pred_check_branch
        %149 = sbr.rel (%p146) target = $region12
      $region11: #{mlm_head.3} parent=5 // pred_region
        %s150 = ssub.s32 %s18, 1
        // Predicated region
        $region13: #{mlm_head.3} parent=11 // pred_check
          %p151 = pneg %p56
        $region14: #{mlm_head.3} parent=11 // pred_check_branch
          %153 = sbr.rel (%p151) target = $region16
        $region15: #{mlm_head.3} parent=11 // pred_region
          %s154 = smul.u32 2, %s28
          %p155 = scmp.lt.s32.totalorder %s154, 1
          %s156 = scalar_select %p155, %s154, 1
          %s157 = smul.addr %s156, 6
          %s158 = smul.addr %s157, 4
          %s159 = scalar_lea.vmem %s0, %s158
          %s160 = smul.u32 2, %s28
        $region16: #{mlm_head.3} parent=11 // pred_fallthru
          _
      $region12: #{mlm_head.3} parent=5 // pred_fallthru
        _
      %p161 = scmp.lt.s32.totalorder %s18, 25
      // Predicated region
      $region17: #{mlm_head.3} parent=5 // pred_check
        %p162 = pneg %p161
      $region18: #{mlm_head.3} parent=5 // pred_check_branch
        %164 = sbr.rel (%p162) target = $region20
      $region19: #{mlm_head.3} parent=5 // pred_region
        // Predicated region
        $region21: #{mlm_head.3} parent=19 // pred_check
          %p165 = pneg %p76
        $region22: #{mlm_head.3} parent=19 // pred_check_branch
          %167 = sbr.rel (%p165) target = $region24
        $region23: #{mlm_head.3} parent=19 // pred_region
          %s168 = sand.u32 %s66, 1
          %s169 = scalar_lea.sflag [#allocation3], %s168
          %s170 = sand.u32 %s66, 1
          %s171 = smul.addr %s170, 6144
          %s172 = scalar_lea.vmem [#allocation2], %s171
          %s173 = smul.u32 16, %s25
          %s175 = ssub.s32 98304, 98304
          %176 = vsyncadd %s169, %s175
          %s177 = smul.addr %s173, 64
          %s178 = scalar_lea.hbm %s1, %s177
          %s179 = sshll.u32 %s172, 4
          %s180 = int_to_ptr.vmem [resolvable:$true] %s179
          %185 = dma.hbm_to_vmem [thread:$0]  %s178, 98304, %s180, %s169, 25600, 1024, 64
        $region24: #{mlm_head.3} parent=19 // pred_fallthru
          _
        // Predicated region
        $region25: #{mlm_head.3} parent=19 // pred_check
          %p186 = pneg %p102
        $region26: #{mlm_head.3} parent=19 // pred_check_branch
          %188 = sbr.rel (%p186) target = $region28
        $region27: #{mlm_head.3} parent=19 // pred_region
          %s189 = sand.u32 %s92, 1
          %s190 = scalar_lea.sflag [#allocation6], %s189
          %s191 = sand.u32 %s92, 1
          %s192 = smul.addr %s191, 16
          %s193 = scalar_lea.vmem [#allocation5], %s192
          %s194 = smul.u32 16, %s25
          %s196 = ssub.s32 256, 256
          %197 = vsyncadd %s190, %s196
          %s198 = smul.addr %s194, 16
          %s199 = scalar_lea.hbm %s2, %s198
          %s201 = sshll.u32 %s193, 4
          %s202 = int_to_ptr.vmem [resolvable:$true] %s201
          %204 = dma.hbm_to_vmem [thread:$0]  %s199, 256, %s202, %s190
        $region28: #{mlm_head.3} parent=19 // pred_fallthru
          _
      $region20: #{mlm_head.3} parent=5 // pred_fallthru
        _
      %p205 = scmp.le.s32.totalorder 1, %s18
      %p206 = scmp.lt.s32.totalorder %s18, 26
      %p207 = pnand %p205, %p206
      %p208 = pneg %p207
      // Predicated region
      $region29: #{mlm_head.3} parent=5 // pred_check
        _
      $region30: #{mlm_head.3} parent=5 // pred_check_branch
        %210 = sbr.rel (%p207) target = $region32
      $region31: #{mlm_head.3} parent=5 // pred_region
        %s211 = ssub.s32 %s18, 1
        %s212 = sand.u32 %s69, 1
        %s213 = scalar_lea.sflag [#allocation3], %s212
        %s214 = sand.u32 %s69, 1
        %s215 = smul.addr %s214, 6144
        %s216 = scalar_lea.vmem [#allocation2], %s215
        // Predicated region
        $region33: #{mlm_head.3} parent=31 // pred_check
          %p217 = pneg %p82
        $region34: #{mlm_head.3} parent=31 // pred_check_branch
          %219 = sbr.rel (%p217) target = $region36
        $region35: #{mlm_head.3} parent=31 // pred_region
          %220 = dma.done %s213, 98304
        $region36: #{mlm_head.3} parent=31 // pred_fallthru
          _
        %s221 = sand.u32 %s95, 1
        %s222 = scalar_lea.sflag [#allocation6], %s221
        %s223 = sand.u32 %s95, 1
        %s224 = smul.addr %s223, 16
        %s225 = scalar_lea.vmem [#allocation5], %s224
        // Predicated region
        $region37: #{mlm_head.3} parent=31 // pred_check
          %p226 = pneg %p108
        $region38: #{mlm_head.3} parent=31 // pred_check_branch
          %228 = sbr.rel (%p226) target = $region40
        $region39: #{mlm_head.3} parent=31 // pred_region
          %229 = dma.done %s222, 256
        $region40: #{mlm_head.3} parent=31 // pred_fallthru
          _
        %s230 = smul.u32 2, %s28
        %p231 = scmp.lt.s32.totalorder %s230, 1
        %s232 = scalar_select %p231, %s230, 1
        %s233 = smul.addr %s232, 6
        %s234 = smul.addr %s233, 4
        %s235 = scalar_lea.vmem %s0, %s234
        %p236 = pneg %p56
        %p237 = pneg %p53
        %s238 = sand.u32 %s69, 1
        %s239 = scalar_lea.sflag [#allocation3], %s238
        %s240 = sand.u32 %s69, 1
        %s241 = smul.addr %s240, 6144
        %s242 = scalar_lea.vmem [#allocation2], %s241
        %p243 = pneg %p82
        %p244 = pneg %p79
        %s245 = sand.u32 %s95, 1
        %s246 = scalar_lea.sflag [#allocation6], %s245
        %s247 = sand.u32 %s95, 1
        %s248 = smul.addr %s247, 16
        %s249 = scalar_lea.vmem [#allocation5], %s248
        %p250 = pneg %p108
        %p251 = pneg %p105
        %p252 = pneg %p136
        %p253 = pneg %p133
        %s254 = sand.u32 %s123, 1
        %s255 = scalar_lea.sflag [#allocation4], %s254
        %s256 = sand.u32 %s123, 1
        %s257 = smul.addr %s256, 256
        %s258 = scalar_lea.vmem [#allocation7], %s257
        %s259 = smul.u32 2, %s28
        %p260 = scmp.lt.s32.totalorder %s259, 1
        %s261 = scalar_select %p260, %s259, 1
        %s262 = smul.addr %s261, 6
        %s263 = smul.addr %s262, 4
        %s264 = scalar_lea.vmem %s0, %s263
        %s265 = smul.u32 2, %s28
        %s266 = smul.u32 16, %s27
        %s267 = smul.u32 16, %s27
        %s268 = smul.u32 2, %s28
        %s269 = smul.u32 16, %s27
        %s270 = ssub.s32 387, %s269
        %p271 = scmp.lt.s32.totalorder %s270, 16
        %s272 = scalar_select %p271, %s270, 16
        %s273 = smul.u32 256, %s272
        %v274 = vld [vmem:[%s264] sm:$0xff]
        %v275 = vld [vmem:[%s264 + $0x8] sm:$0xff]
        %v276 = vld [vmem:[%s264 + $0x10] sm:$0xff]
        %v277 = vld [vmem:[%s264 + $0x18] sm:$0xff]
        %v278 = vld [vmem:[%s264 + $0x20] sm:$0xff]
        %v279 = vld [vmem:[%s264 + $0x28] sm:$0xff]
        %v280 = vld [vmem:[%s216] sm:$0xff]
        %v281 = vld [vmem:[%s216 + $0x8] sm:$0xff]
        %v282 = vld [vmem:[%s216 + $0x10] sm:$0xff]
        %v283 = vld [vmem:[%s216 + $0x18] sm:$0xff]
        %v284 = vld [vmem:[%s216 + $0x20] sm:$0xff]
        %v285 = vld [vmem:[%s216 + $0x28] sm:$0xff]
        %v286 = vld [vmem:[%s216 + $0x30] sm:$0xff]
        %v287 = vld [vmem:[%s216 + $0x38] sm:$0xff]
        %v288 = vld [vmem:[%s216 + $0x40] sm:$0xff]
        %v289 = vld [vmem:[%s216 + $0x48] sm:$0xff]
        %v290 = vld [vmem:[%s216 + $0x50] sm:$0xff]
        %v291 = vld [vmem:[%s216 + $0x58] sm:$0xff]
        %v292 = vld [vmem:[%s216 + $0x60] sm:$0xff]
        %v293 = vld [vmem:[%s216 + $0x68] sm:$0xff]
        %v294 = vld [vmem:[%s216 + $0x70] sm:$0xff]
        %v295 = vld [vmem:[%s216 + $0x78] sm:$0xff]
        %v296 = vld [vmem:[%s216 + $0x80] sm:$0xff]
        %v297 = vld [vmem:[%s216 + $0x88] sm:$0xff]
        %v298 = vld [vmem:[%s216 + $0x90] sm:$0xff]
        %v299 = vld [vmem:[%s216 + $0x98] sm:$0xff]
        %v300 = vld [vmem:[%s216 + $0xa0] sm:$0xff]
        %v301 = vld [vmem:[%s216 + $0xa8] sm:$0xff]
        %v302 = vld [vmem:[%s216 + $0xb0] sm:$0xff]
        %v303 = vld [vmem:[%s216 + $0xb8] sm:$0xff]
        %v304 = vld [vmem:[%s216 + $0xc0] sm:$0xff]
        %v305 = vld [vmem:[%s216 + $0xc8] sm:$0xff]
        %v306 = vld [vmem:[%s216 + $0xd0] sm:$0xff]
        %v307 = vld [vmem:[%s216 + $0xd8] sm:$0xff]
        %v308 = vld [vmem:[%s216 + $0xe0] sm:$0xff]
        %v309 = vld [vmem:[%s216 + $0xe8] sm:$0xff]
        %v310 = vld [vmem:[%s216 + $0xf0] sm:$0xff]
        %v311 = vld [vmem:[%s216 + $0xf8] sm:$0xff]
        %v312 = vld [vmem:[%s216 + $0x100] sm:$0xff]
        %v313 = vld [vmem:[%s216 + $0x108] sm:$0xff]
        %v314 = vld [vmem:[%s216 + $0x110] sm:$0xff]
        %v315 = vld [vmem:[%s216 + $0x118] sm:$0xff]
        %v316 = vld [vmem:[%s216 + $0x120] sm:$0xff]
        %v317 = vld [vmem:[%s216 + $0x128] sm:$0xff]
        %v318 = vld [vmem:[%s216 + $0x130] sm:$0xff]
        %v319 = vld [vmem:[%s216 + $0x138] sm:$0xff]
        %v320 = vld [vmem:[%s216 + $0x140] sm:$0xff]
        %v321 = vld [vmem:[%s216 + $0x148] sm:$0xff]
        %v322 = vld [vmem:[%s216 + $0x150] sm:$0xff]
        %v323 = vld [vmem:[%s216 + $0x158] sm:$0xff]
        %v324 = vld [vmem:[%s216 + $0x160] sm:$0xff]
        %v325 = vld [vmem:[%s216 + $0x168] sm:$0xff]
        %v326 = vld [vmem:[%s216 + $0x170] sm:$0xff]
        %v327 = vld [vmem:[%s216 + $0x178] sm:$0xff]
        %v328 = vld [vmem:[%s216 + $0x180] sm:$0xff]
        %v329 = vld [vmem:[%s216 + $0x188] sm:$0xff]
        %v330 = vld [vmem:[%s216 + $0x190] sm:$0xff]
        %v331 = vld [vmem:[%s216 + $0x198] sm:$0xff]
        %v332 = vld [vmem:[%s216 + $0x1a0] sm:$0xff]
        %v333 = vld [vmem:[%s216 + $0x1a8] sm:$0xff]
        %v334 = vld [vmem:[%s216 + $0x1b0] sm:$0xff]
        %v335 = vld [vmem:[%s216 + $0x1b8] sm:$0xff]
        %v336 = vld [vmem:[%s216 + $0x1c0] sm:$0xff]
        %v337 = vld [vmem:[%s216 + $0x1c8] sm:$0xff]
        %v338 = vld [vmem:[%s216 + $0x1d0] sm:$0xff]
        %v339 = vld [vmem:[%s216 + $0x1d8] sm:$0xff]
        %v340 = vld [vmem:[%s216 + $0x1e0] sm:$0xff]
        %v341 = vld [vmem:[%s216 + $0x1e8] sm:$0xff]
        %v342 = vld [vmem:[%s216 + $0x1f0] sm:$0xff]
        %v343 = vld [vmem:[%s216 + $0x1f8] sm:$0xff]
        %v344 = vld [vmem:[%s216 + $0x200] sm:$0xff]
        %v345 = vld [vmem:[%s216 + $0x208] sm:$0xff]
        %v346 = vld [vmem:[%s216 + $0x210] sm:$0xff]
        %v347 = vld [vmem:[%s216 + $0x218] sm:$0xff]
        %v348 = vld [vmem:[%s216 + $0x220] sm:$0xff]
        %v349 = vld [vmem:[%s216 + $0x228] sm:$0xff]
        %v350 = vld [vmem:[%s216 + $0x230] sm:$0xff]
        %v351 = vld [vmem:[%s216 + $0x238] sm:$0xff]
        %v352 = vld [vmem:[%s216 + $0x240] sm:$0xff]
        %v353 = vld [vmem:[%s216 + $0x248] sm:$0xff]
        %v354 = vld [vmem:[%s216 + $0x250] sm:$0xff]
        %v355 = vld [vmem:[%s216 + $0x258] sm:$0xff]
        %v356 = vld [vmem:[%s216 + $0x260] sm:$0xff]
        %v357 = vld [vmem:[%s216 + $0x268] sm:$0xff]
        %v358 = vld [vmem:[%s216 + $0x270] sm:$0xff]
        %v359 = vld [vmem:[%s216 + $0x278] sm:$0xff]
        %v360 = vld [vmem:[%s216 + $0x280] sm:$0xff]
        %v361 = vld [vmem:[%s216 + $0x288] sm:$0xff]
        %v362 = vld [vmem:[%s216 + $0x290] sm:$0xff]
        %v363 = vld [vmem:[%s216 + $0x298] sm:$0xff]
        %v364 = vld [vmem:[%s216 + $0x2a0] sm:$0xff]
        %v365 = vld [vmem:[%s216 + $0x2a8] sm:$0xff]
        %v366 = vld [vmem:[%s216 + $0x2b0] sm:$0xff]
        %v367 = vld [vmem:[%s216 + $0x2b8] sm:$0xff]
        %v368 = vld [vmem:[%s216 + $0x2c0] sm:$0xff]
        %v369 = vld [vmem:[%s216 + $0x2c8] sm:$0xff]
        %v370 = vld [vmem:[%s216 + $0x2d0] sm:$0xff]
        %v371 = vld [vmem:[%s216 + $0x2d8] sm:$0xff]
        %v372 = vld [vmem:[%s216 + $0x2e0] sm:$0xff]
        %v373 = vld [vmem:[%s216 + $0x2e8] sm:$0xff]
        %v374 = vld [vmem:[%s216 + $0x2f0] sm:$0xff]
        %v375 = vld [vmem:[%s216 + $0x2f8] sm:$0xff]
        %v376 = vld [vmem:[%s216 + $0x300] sm:$0xff]
        %v377 = vld [vmem:[%s216 + $0x308] sm:$0xff]
        %v378 = vld [vmem:[%s216 + $0x310] sm:$0xff]
        %v379 = vld [vmem:[%s216 + $0x318] sm:$0xff]
        %v380 = vld [vmem:[%s216 + $0x320] sm:$0xff]
        %v381 = vld [vmem:[%s216 + $0x328] sm:$0xff]
        %v382 = vld [vmem:[%s216 + $0x330] sm:$0xff]
        %v383 = vld [vmem:[%s216 + $0x338] sm:$0xff]
        %v384 = vld [vmem:[%s216 + $0x340] sm:$0xff]
        %v385 = vld [vmem:[%s216 + $0x348] sm:$0xff]
        %v386 = vld [vmem:[%s216 + $0x350] sm:$0xff]
        %v387 = vld [vmem:[%s216 + $0x358] sm:$0xff]
        %v388 = vld [vmem:[%s216 + $0x360] sm:$0xff]
        %v389 = vld [vmem:[%s216 + $0x368] sm:$0xff]
        %v390 = vld [vmem:[%s216 + $0x370] sm:$0xff]
        %v391 = vld [vmem:[%s216 + $0x378] sm:$0xff]
        %v392 = vld [vmem:[%s216 + $0x380] sm:$0xff]
        %v393 = vld [vmem:[%s216 + $0x388] sm:$0xff]
        %v394 = vld [vmem:[%s216 + $0x390] sm:$0xff]
        %v395 = vld [vmem:[%s216 + $0x398] sm:$0xff]
        %v396 = vld [vmem:[%s216 + $0x3a0] sm:$0xff]
        %v397 = vld [vmem:[%s216 + $0x3a8] sm:$0xff]
        %v398 = vld [vmem:[%s216 + $0x3b0] sm:$0xff]
        %v399 = vld [vmem:[%s216 + $0x3b8] sm:$0xff]
        %v400 = vld [vmem:[%s216 + $0x3c0] sm:$0xff]
        %v401 = vld [vmem:[%s216 + $0x3c8] sm:$0xff]
        %v402 = vld [vmem:[%s216 + $0x3d0] sm:$0xff]
        %v403 = vld [vmem:[%s216 + $0x3d8] sm:$0xff]
        %v404 = vld [vmem:[%s216 + $0x3e0] sm:$0xff]
        %v405 = vld [vmem:[%s216 + $0x3e8] sm:$0xff]
        %v406 = vld [vmem:[%s216 + $0x3f0] sm:$0xff]
        %v407 = vld [vmem:[%s216 + $0x3f8] sm:$0xff]
        %v408 = vld [vmem:[%s216 + $0x400] sm:$0xff]
        %v409 = vld [vmem:[%s216 + $0x408] sm:$0xff]
        %v410 = vld [vmem:[%s216 + $0x410] sm:$0xff]
        %v411 = vld [vmem:[%s216 + $0x418] sm:$0xff]
        %v412 = vld [vmem:[%s216 + $0x420] sm:$0xff]
        %v413 = vld [vmem:[%s216 + $0x428] sm:$0xff]
        %v414 = vld [vmem:[%s216 + $0x430] sm:$0xff]
        %v415 = vld [vmem:[%s216 + $0x438] sm:$0xff]
        %v416 = vld [vmem:[%s216 + $0x440] sm:$0xff]
        %v417 = vld [vmem:[%s216 + $0x448] sm:$0xff]
        %v418 = vld [vmem:[%s216 + $0x450] sm:$0xff]
        %v419 = vld [vmem:[%s216 + $0x458] sm:$0xff]
        %v420 = vld [vmem:[%s216 + $0x460] sm:$0xff]
        %v421 = vld [vmem:[%s216 + $0x468] sm:$0xff]
        %v422 = vld [vmem:[%s216 + $0x470] sm:$0xff]
        %v423 = vld [vmem:[%s216 + $0x478] sm:$0xff]
        %v424 = vld [vmem:[%s216 + $0x480] sm:$0xff]
        %v425 = vld [vmem:[%s216 + $0x488] sm:$0xff]
        %v426 = vld [vmem:[%s216 + $0x490] sm:$0xff]
        %v427 = vld [vmem:[%s216 + $0x498] sm:$0xff]
        %v428 = vld [vmem:[%s216 + $0x4a0] sm:$0xff]
        %v429 = vld [vmem:[%s216 + $0x4a8] sm:$0xff]
        %v430 = vld [vmem:[%s216 + $0x4b0] sm:$0xff]
        %v431 = vld [vmem:[%s216 + $0x4b8] sm:$0xff]
        %v432 = vld [vmem:[%s216 + $0x4c0] sm:$0xff]
        %v433 = vld [vmem:[%s216 + $0x4c8] sm:$0xff]
        %v434 = vld [vmem:[%s216 + $0x4d0] sm:$0xff]
        %v435 = vld [vmem:[%s216 + $0x4d8] sm:$0xff]
        %v436 = vld [vmem:[%s216 + $0x4e0] sm:$0xff]
        %v437 = vld [vmem:[%s216 + $0x4e8] sm:$0xff]
        %v438 = vld [vmem:[%s216 + $0x4f0] sm:$0xff]
        %v439 = vld [vmem:[%s216 + $0x4f8] sm:$0xff]
        %v440 = vld [vmem:[%s216 + $0x500] sm:$0xff]
        %v441 = vld [vmem:[%s216 + $0x508] sm:$0xff]
        %v442 = vld [vmem:[%s216 + $0x510] sm:$0xff]
        %v443 = vld [vmem:[%s216 + $0x518] sm:$0xff]
        %v444 = vld [vmem:[%s216 + $0x520] sm:$0xff]
        %v445 = vld [vmem:[%s216 + $0x528] sm:$0xff]
        %v446 = vld [vmem:[%s216 + $0x530] sm:$0xff]
        %v447 = vld [vmem:[%s216 + $0x538] sm:$0xff]
        %v448 = vld [vmem:[%s216 + $0x540] sm:$0xff]
        %v449 = vld [vmem:[%s216 + $0x548] sm:$0xff]
        %v450 = vld [vmem:[%s216 + $0x550] sm:$0xff]
        %v451 = vld [vmem:[%s216 + $0x558] sm:$0xff]
        %v452 = vld [vmem:[%s216 + $0x560] sm:$0xff]
        %v453 = vld [vmem:[%s216 + $0x568] sm:$0xff]
        %v454 = vld [vmem:[%s216 + $0x570] sm:$0xff]
        %v455 = vld [vmem:[%s216 + $0x578] sm:$0xff]
        %v456 = vld [vmem:[%s216 + $0x580] sm:$0xff]
        %v457 = vld [vmem:[%s216 + $0x588] sm:$0xff]
        %v458 = vld [vmem:[%s216 + $0x590] sm:$0xff]
        %v459 = vld [vmem:[%s216 + $0x598] sm:$0xff]
        %v460 = vld [vmem:[%s216 + $0x5a0] sm:$0xff]
        %v461 = vld [vmem:[%s216 + $0x5a8] sm:$0xff]
        %v462 = vld [vmem:[%s216 + $0x5b0] sm:$0xff]
        %v463 = vld [vmem:[%s216 + $0x5b8] sm:$0xff]
        %v464 = vld [vmem:[%s216 + $0x5c0] sm:$0xff]
        %v465 = vld [vmem:[%s216 + $0x5c8] sm:$0xff]
        %v466 = vld [vmem:[%s216 + $0x5d0] sm:$0xff]
        %v467 = vld [vmem:[%s216 + $0x5d8] sm:$0xff]
        %v468 = vld [vmem:[%s216 + $0x5e0] sm:$0xff]
        %v469 = vld [vmem:[%s216 + $0x5e8] sm:$0xff]
        %v470 = vld [vmem:[%s216 + $0x5f0] sm:$0xff]
        %v471 = vld [vmem:[%s216 + $0x5f8] sm:$0xff]
        %v472 = vld [vmem:[%s216 + $0x600] sm:$0xff]
        %v473 = vld [vmem:[%s216 + $0x608] sm:$0xff]
        %v474 = vld [vmem:[%s216 + $0x610] sm:$0xff]
        %v475 = vld [vmem:[%s216 + $0x618] sm:$0xff]
        %v476 = vld [vmem:[%s216 + $0x620] sm:$0xff]
        %v477 = vld [vmem:[%s216 + $0x628] sm:$0xff]
        %v478 = vld [vmem:[%s216 + $0x630] sm:$0xff]
        %v479 = vld [vmem:[%s216 + $0x638] sm:$0xff]
        %v480 = vld [vmem:[%s216 + $0x640] sm:$0xff]
        %v481 = vld [vmem:[%s216 + $0x648] sm:$0xff]
        %v482 = vld [vmem:[%s216 + $0x650] sm:$0xff]
        %v483 = vld [vmem:[%s216 + $0x658] sm:$0xff]
        %v484 = vld [vmem:[%s216 + $0x660] sm:$0xff]
        %v485 = vld [vmem:[%s216 + $0x668] sm:$0xff]
        %v486 = vld [vmem:[%s216 + $0x670] sm:$0xff]
        %v487 = vld [vmem:[%s216 + $0x678] sm:$0xff]
        %v488 = vld [vmem:[%s216 + $0x680] sm:$0xff]
        %v489 = vld [vmem:[%s216 + $0x688] sm:$0xff]
        %v490 = vld [vmem:[%s216 + $0x690] sm:$0xff]
        %v491 = vld [vmem:[%s216 + $0x698] sm:$0xff]
        %v492 = vld [vmem:[%s216 + $0x6a0] sm:$0xff]
        %v493 = vld [vmem:[%s216 + $0x6a8] sm:$0xff]
        %v494 = vld [vmem:[%s216 + $0x6b0] sm:$0xff]
        %v495 = vld [vmem:[%s216 + $0x6b8] sm:$0xff]
        %v496 = vld [vmem:[%s216 + $0x6c0] sm:$0xff]
        %v497 = vld [vmem:[%s216 + $0x6c8] sm:$0xff]
        %v498 = vld [vmem:[%s216 + $0x6d0] sm:$0xff]
        %v499 = vld [vmem:[%s216 + $0x6d8] sm:$0xff]
        %v500 = vld [vmem:[%s216 + $0x6e0] sm:$0xff]
        %v501 = vld [vmem:[%s216 + $0x6e8] sm:$0xff]
        %v502 = vld [vmem:[%s216 + $0x6f0] sm:$0xff]
        %v503 = vld [vmem:[%s216 + $0x6f8] sm:$0xff]
        %v504 = vld [vmem:[%s216 + $0x700] sm:$0xff]
        %v505 = vld [vmem:[%s216 + $0x708] sm:$0xff]
        %v506 = vld [vmem:[%s216 + $0x710] sm:$0xff]
        %v507 = vld [vmem:[%s216 + $0x718] sm:$0xff]
        %v508 = vld [vmem:[%s216 + $0x720] sm:$0xff]
        %v509 = vld [vmem:[%s216 + $0x728] sm:$0xff]
        %v510 = vld [vmem:[%s216 + $0x730] sm:$0xff]
        %v511 = vld [vmem:[%s216 + $0x738] sm:$0xff]
        %v512 = vld [vmem:[%s216 + $0x740] sm:$0xff]
        %v513 = vld [vmem:[%s216 + $0x748] sm:$0xff]
        %v514 = vld [vmem:[%s216 + $0x750] sm:$0xff]
        %v515 = vld [vmem:[%s216 + $0x758] sm:$0xff]
        %v516 = vld [vmem:[%s216 + $0x760] sm:$0xff]
        %v517 = vld [vmem:[%s216 + $0x768] sm:$0xff]
        %v518 = vld [vmem:[%s216 + $0x770] sm:$0xff]
        %v519 = vld [vmem:[%s216 + $0x778] sm:$0xff]
        %v520 = vld [vmem:[%s216 + $0x780] sm:$0xff]
        %v521 = vld [vmem:[%s216 + $0x788] sm:$0xff]
        %v522 = vld [vmem:[%s216 + $0x790] sm:$0xff]
        %v523 = vld [vmem:[%s216 + $0x798] sm:$0xff]
        %v524 = vld [vmem:[%s216 + $0x7a0] sm:$0xff]
        %v525 = vld [vmem:[%s216 + $0x7a8] sm:$0xff]
        %v526 = vld [vmem:[%s216 + $0x7b0] sm:$0xff]
        %v527 = vld [vmem:[%s216 + $0x7b8] sm:$0xff]
        %v528 = vld [vmem:[%s216 + $0x7c0] sm:$0xff]
        %v529 = vld [vmem:[%s216 + $0x7c8] sm:$0xff]
        %v530 = vld [vmem:[%s216 + $0x7d0] sm:$0xff]
        %v531 = vld [vmem:[%s216 + $0x7d8] sm:$0xff]
        %v532 = vld [vmem:[%s216 + $0x7e0] sm:$0xff]
        %v533 = vld [vmem:[%s216 + $0x7e8] sm:$0xff]
        %v534 = vld [vmem:[%s216 + $0x7f0] sm:$0xff]
        %v535 = vld [vmem:[%s216 + $0x7f8] sm:$0xff]
        %v536 = vld [vmem:[%s216 + $0x800] sm:$0xff]
        %v537 = vld [vmem:[%s216 + $0x808] sm:$0xff]
        %v538 = vld [vmem:[%s216 + $0x810] sm:$0xff]
        %v539 = vld [vmem:[%s216 + $0x818] sm:$0xff]
        %v540 = vld [vmem:[%s216 + $0x820] sm:$0xff]
        %v541 = vld [vmem:[%s216 + $0x828] sm:$0xff]
        %v542 = vld [vmem:[%s216 + $0x830] sm:$0xff]
        %v543 = vld [vmem:[%s216 + $0x838] sm:$0xff]
        %v544 = vld [vmem:[%s216 + $0x840] sm:$0xff]
        %v545 = vld [vmem:[%s216 + $0x848] sm:$0xff]
        %v546 = vld [vmem:[%s216 + $0x850] sm:$0xff]
        %v547 = vld [vmem:[%s216 + $0x858] sm:$0xff]
        %v548 = vld [vmem:[%s216 + $0x860] sm:$0xff]
        %v549 = vld [vmem:[%s216 + $0x868] sm:$0xff]
        %v550 = vld [vmem:[%s216 + $0x870] sm:$0xff]
        %v551 = vld [vmem:[%s216 + $0x878] sm:$0xff]
        %v552 = vld [vmem:[%s216 + $0x880] sm:$0xff]
        %v553 = vld [vmem:[%s216 + $0x888] sm:$0xff]
        %v554 = vld [vmem:[%s216 + $0x890] sm:$0xff]
        %v555 = vld [vmem:[%s216 + $0x898] sm:$0xff]
        %v556 = vld [vmem:[%s216 + $0x8a0] sm:$0xff]
        %v557 = vld [vmem:[%s216 + $0x8a8] sm:$0xff]
        %v558 = vld [vmem:[%s216 + $0x8b0] sm:$0xff]
        %v559 = vld [vmem:[%s216 + $0x8b8] sm:$0xff]
        %v560 = vld [vmem:[%s216 + $0x8c0] sm:$0xff]
        %v561 = vld [vmem:[%s216 + $0x8c8] sm:$0xff]
        %v562 = vld [vmem:[%s216 + $0x8d0] sm:$0xff]
        %v563 = vld [vmem:[%s216 + $0x8d8] sm:$0xff]
        %v564 = vld [vmem:[%s216 + $0x8e0] sm:$0xff]
        %v565 = vld [vmem:[%s216 + $0x8e8] sm:$0xff]
        %v566 = vld [vmem:[%s216 + $0x8f0] sm:$0xff]
        %v567 = vld [vmem:[%s216 + $0x8f8] sm:$0xff]
        %v568 = vld [vmem:[%s216 + $0x900] sm:$0xff]
        %v569 = vld [vmem:[%s216 + $0x908] sm:$0xff]
        %v570 = vld [vmem:[%s216 + $0x910] sm:$0xff]
        %v571 = vld [vmem:[%s216 + $0x918] sm:$0xff]
        %v572 = vld [vmem:[%s216 + $0x920] sm:$0xff]
        %v573 = vld [vmem:[%s216 + $0x928] sm:$0xff]
        %v574 = vld [vmem:[%s216 + $0x930] sm:$0xff]
        %v575 = vld [vmem:[%s216 + $0x938] sm:$0xff]
        %v576 = vld [vmem:[%s216 + $0x940] sm:$0xff]
        %v577 = vld [vmem:[%s216 + $0x948] sm:$0xff]
        %v578 = vld [vmem:[%s216 + $0x950] sm:$0xff]
        %v579 = vld [vmem:[%s216 + $0x958] sm:$0xff]
        %v580 = vld [vmem:[%s216 + $0x960] sm:$0xff]
        %v581 = vld [vmem:[%s216 + $0x968] sm:$0xff]
        %v582 = vld [vmem:[%s216 + $0x970] sm:$0xff]
        %v583 = vld [vmem:[%s216 + $0x978] sm:$0xff]
        %v584 = vld [vmem:[%s216 + $0x980] sm:$0xff]
        %v585 = vld [vmem:[%s216 + $0x988] sm:$0xff]
        %v586 = vld [vmem:[%s216 + $0x990] sm:$0xff]
        %v587 = vld [vmem:[%s216 + $0x998] sm:$0xff]
        %v588 = vld [vmem:[%s216 + $0x9a0] sm:$0xff]
        %v589 = vld [vmem:[%s216 + $0x9a8] sm:$0xff]
        %v590 = vld [vmem:[%s216 + $0x9b0] sm:$0xff]
        %v591 = vld [vmem:[%s216 + $0x9b8] sm:$0xff]
        %v592 = vld [vmem:[%s216 + $0x9c0] sm:$0xff]
        %v593 = vld [vmem:[%s216 + $0x9c8] sm:$0xff]
        %v594 = vld [vmem:[%s216 + $0x9d0] sm:$0xff]
        %v595 = vld [vmem:[%s216 + $0x9d8] sm:$0xff]
        %v596 = vld [vmem:[%s216 + $0x9e0] sm:$0xff]
        %v597 = vld [vmem:[%s216 + $0x9e8] sm:$0xff]
        %v598 = vld [vmem:[%s216 + $0x9f0] sm:$0xff]
        %v599 = vld [vmem:[%s216 + $0x9f8] sm:$0xff]
        %v600 = vld [vmem:[%s216 + $0xa00] sm:$0xff]
        %v601 = vld [vmem:[%s216 + $0xa08] sm:$0xff]
        %v602 = vld [vmem:[%s216 + $0xa10] sm:$0xff]
        %v603 = vld [vmem:[%s216 + $0xa18] sm:$0xff]
        %v604 = vld [vmem:[%s216 + $0xa20] sm:$0xff]
        %v605 = vld [vmem:[%s216 + $0xa28] sm:$0xff]
        %v606 = vld [vmem:[%s216 + $0xa30] sm:$0xff]
        %v607 = vld [vmem:[%s216 + $0xa38] sm:$0xff]
        %v608 = vld [vmem:[%s216 + $0xa40] sm:$0xff]
        %v609 = vld [vmem:[%s216 + $0xa48] sm:$0xff]
        %v610 = vld [vmem:[%s216 + $0xa50] sm:$0xff]
        %v611 = vld [vmem:[%s216 + $0xa58] sm:$0xff]
        %v612 = vld [vmem:[%s216 + $0xa60] sm:$0xff]
        %v613 = vld [vmem:[%s216 + $0xa68] sm:$0xff]
        %v614 = vld [vmem:[%s216 + $0xa70] sm:$0xff]
        %v615 = vld [vmem:[%s216 + $0xa78] sm:$0xff]
        %v616 = vld [vmem:[%s216 + $0xa80] sm:$0xff]
        %v617 = vld [vmem:[%s216 + $0xa88] sm:$0xff]
        %v618 = vld [vmem:[%s216 + $0xa90] sm:$0xff]
        %v619 = vld [vmem:[%s216 + $0xa98] sm:$0xff]
        %v620 = vld [vmem:[%s216 + $0xaa0] sm:$0xff]
        %v621 = vld [vmem:[%s216 + $0xaa8] sm:$0xff]
        %v622 = vld [vmem:[%s216 + $0xab0] sm:$0xff]
        %v623 = vld [vmem:[%s216 + $0xab8] sm:$0xff]
        %v624 = vld [vmem:[%s216 + $0xac0] sm:$0xff]
        %v625 = vld [vmem:[%s216 + $0xac8] sm:$0xff]
        %v626 = vld [vmem:[%s216 + $0xad0] sm:$0xff]
        %v627 = vld [vmem:[%s216 + $0xad8] sm:$0xff]
        %v628 = vld [vmem:[%s216 + $0xae0] sm:$0xff]
        %v629 = vld [vmem:[%s216 + $0xae8] sm:$0xff]
        %v630 = vld [vmem:[%s216 + $0xaf0] sm:$0xff]
        %v631 = vld [vmem:[%s216 + $0xaf8] sm:$0xff]
        %v632 = vld [vmem:[%s216 + $0xb00] sm:$0xff]
        %v633 = vld [vmem:[%s216 + $0xb08] sm:$0xff]
        %v634 = vld [vmem:[%s216 + $0xb10] sm:$0xff]
        %v635 = vld [vmem:[%s216 + $0xb18] sm:$0xff]
        %v636 = vld [vmem:[%s216 + $0xb20] sm:$0xff]
        %v637 = vld [vmem:[%s216 + $0xb28] sm:$0xff]
        %v638 = vld [vmem:[%s216 + $0xb30] sm:$0xff]
        %v639 = vld [vmem:[%s216 + $0xb38] sm:$0xff]
        %v640 = vld [vmem:[%s216 + $0xb40] sm:$0xff]
        %v641 = vld [vmem:[%s216 + $0xb48] sm:$0xff]
        %v642 = vld [vmem:[%s216 + $0xb50] sm:$0xff]
        %v643 = vld [vmem:[%s216 + $0xb58] sm:$0xff]
        %v644 = vld [vmem:[%s216 + $0xb60] sm:$0xff]
        %v645 = vld [vmem:[%s216 + $0xb68] sm:$0xff]
        %v646 = vld [vmem:[%s216 + $0xb70] sm:$0xff]
        %v647 = vld [vmem:[%s216 + $0xb78] sm:$0xff]
        %v648 = vld [vmem:[%s216 + $0xb80] sm:$0xff]
        %v649 = vld [vmem:[%s216 + $0xb88] sm:$0xff]
        %v650 = vld [vmem:[%s216 + $0xb90] sm:$0xff]
        %v651 = vld [vmem:[%s216 + $0xb98] sm:$0xff]
        %v652 = vld [vmem:[%s216 + $0xba0] sm:$0xff]
        %v653 = vld [vmem:[%s216 + $0xba8] sm:$0xff]
        %v654 = vld [vmem:[%s216 + $0xbb0] sm:$0xff]
        %v655 = vld [vmem:[%s216 + $0xbb8] sm:$0xff]
        %v656 = vld [vmem:[%s216 + $0xbc0] sm:$0xff]
        %v657 = vld [vmem:[%s216 + $0xbc8] sm:$0xff]
        %v658 = vld [vmem:[%s216 + $0xbd0] sm:$0xff]
        %v659 = vld [vmem:[%s216 + $0xbd8] sm:$0xff]
        %v660 = vld [vmem:[%s216 + $0xbe0] sm:$0xff]
        %v661 = vld [vmem:[%s216 + $0xbe8] sm:$0xff]
        %v662 = vld [vmem:[%s216 + $0xbf0] sm:$0xff]
        %v663 = vld [vmem:[%s216 + $0xbf8] sm:$0xff]
        %v664 = vld [vmem:[%s216 + $0xc00] sm:$0xff]
        %v665 = vld [vmem:[%s216 + $0xc08] sm:$0xff]
        %v666 = vld [vmem:[%s216 + $0xc10] sm:$0xff]
        %v667 = vld [vmem:[%s216 + $0xc18] sm:$0xff]
        %v668 = vld [vmem:[%s216 + $0xc20] sm:$0xff]
        %v669 = vld [vmem:[%s216 + $0xc28] sm:$0xff]
        %v670 = vld [vmem:[%s216 + $0xc30] sm:$0xff]
        %v671 = vld [vmem:[%s216 + $0xc38] sm:$0xff]
        %v672 = vld [vmem:[%s216 + $0xc40] sm:$0xff]
        %v673 = vld [vmem:[%s216 + $0xc48] sm:$0xff]
        %v674 = vld [vmem:[%s216 + $0xc50] sm:$0xff]
        %v675 = vld [vmem:[%s216 + $0xc58] sm:$0xff]
        %v676 = vld [vmem:[%s216 + $0xc60] sm:$0xff]
        %v677 = vld [vmem:[%s216 + $0xc68] sm:$0xff]
        %v678 = vld [vmem:[%s216 + $0xc70] sm:$0xff]
        %v679 = vld [vmem:[%s216 + $0xc78] sm:$0xff]
        %v680 = vld [vmem:[%s216 + $0xc80] sm:$0xff]
        %v681 = vld [vmem:[%s216 + $0xc88] sm:$0xff]
        %v682 = vld [vmem:[%s216 + $0xc90] sm:$0xff]
        %v683 = vld [vmem:[%s216 + $0xc98] sm:$0xff]
        %v684 = vld [vmem:[%s216 + $0xca0] sm:$0xff]
        %v685 = vld [vmem:[%s216 + $0xca8] sm:$0xff]
        %v686 = vld [vmem:[%s216 + $0xcb0] sm:$0xff]
        %v687 = vld [vmem:[%s216 + $0xcb8] sm:$0xff]
        %v688 = vld [vmem:[%s216 + $0xcc0] sm:$0xff]
        %v689 = vld [vmem:[%s216 + $0xcc8] sm:$0xff]
        %v690 = vld [vmem:[%s216 + $0xcd0] sm:$0xff]
        %v691 = vld [vmem:[%s216 + $0xcd8] sm:$0xff]
        %v692 = vld [vmem:[%s216 + $0xce0] sm:$0xff]
        %v693 = vld [vmem:[%s216 + $0xce8] sm:$0xff]
        %v694 = vld [vmem:[%s216 + $0xcf0] sm:$0xff]
        %v695 = vld [vmem:[%s216 + $0xcf8] sm:$0xff]
        %v696 = vld [vmem:[%s216 + $0xd00] sm:$0xff]
        %v697 = vld [vmem:[%s216 + $0xd08] sm:$0xff]
        %v698 = vld [vmem:[%s216 + $0xd10] sm:$0xff]
        %v699 = vld [vmem:[%s216 + $0xd18] sm:$0xff]
        %v700 = vld [vmem:[%s216 + $0xd20] sm:$0xff]
        %v701 = vld [vmem:[%s216 + $0xd28] sm:$0xff]
        %v702 = vld [vmem:[%s216 + $0xd30] sm:$0xff]
        %v703 = vld [vmem:[%s216 + $0xd38] sm:$0xff]
        %v704 = vld [vmem:[%s216 + $0xd40] sm:$0xff]
        %v705 = vld [vmem:[%s216 + $0xd48] sm:$0xff]
        %v706 = vld [vmem:[%s216 + $0xd50] sm:$0xff]
        %v707 = vld [vmem:[%s216 + $0xd58] sm:$0xff]
        %v708 = vld [vmem:[%s216 + $0xd60] sm:$0xff]
        %v709 = vld [vmem:[%s216 + $0xd68] sm:$0xff]
        %v710 = vld [vmem:[%s216 + $0xd70] sm:$0xff]
        %v711 = vld [vmem:[%s216 + $0xd78] sm:$0xff]
        %v712 = vld [vmem:[%s216 + $0xd80] sm:$0xff]
        %v713 = vld [vmem:[%s216 + $0xd88] sm:$0xff]
        %v714 = vld [vmem:[%s216 + $0xd90] sm:$0xff]
        %v715 = vld [vmem:[%s216 + $0xd98] sm:$0xff]
        %v716 = vld [vmem:[%s216 + $0xda0] sm:$0xff]
        %v717 = vld [vmem:[%s216 + $0xda8] sm:$0xff]
        %v718 = vld [vmem:[%s216 + $0xdb0] sm:$0xff]
        %v719 = vld [vmem:[%s216 + $0xdb8] sm:$0xff]
        %v720 = vld [vmem:[%s216 + $0xdc0] sm:$0xff]
        %v721 = vld [vmem:[%s216 + $0xdc8] sm:$0xff]
        %v722 = vld [vmem:[%s216 + $0xdd0] sm:$0xff]
        %v723 = vld [vmem:[%s216 + $0xdd8] sm:$0xff]
        %v724 = vld [vmem:[%s216 + $0xde0] sm:$0xff]
        %v725 = vld [vmem:[%s216 + $0xde8] sm:$0xff]
        %v726 = vld [vmem:[%s216 + $0xdf0] sm:$0xff]
        %v727 = vld [vmem:[%s216 + $0xdf8] sm:$0xff]
        %v728 = vld [vmem:[%s216 + $0xe00] sm:$0xff]
        %v729 = vld [vmem:[%s216 + $0xe08] sm:$0xff]
        %v730 = vld [vmem:[%s216 + $0xe10] sm:$0xff]
        %v731 = vld [vmem:[%s216 + $0xe18] sm:$0xff]
        %v732 = vld [vmem:[%s216 + $0xe20] sm:$0xff]
        %v733 = vld [vmem:[%s216 + $0xe28] sm:$0xff]
        %v734 = vld [vmem:[%s216 + $0xe30] sm:$0xff]
        %v735 = vld [vmem:[%s216 + $0xe38] sm:$0xff]
        %v736 = vld [vmem:[%s216 + $0xe40] sm:$0xff]
        %v737 = vld [vmem:[%s216 + $0xe48] sm:$0xff]
        %v738 = vld [vmem:[%s216 + $0xe50] sm:$0xff]
        %v739 = vld [vmem:[%s216 + $0xe58] sm:$0xff]
        %v740 = vld [vmem:[%s216 + $0xe60] sm:$0xff]
        %v741 = vld [vmem:[%s216 + $0xe68] sm:$0xff]
        %v742 = vld [vmem:[%s216 + $0xe70] sm:$0xff]
        %v743 = vld [vmem:[%s216 + $0xe78] sm:$0xff]
        %v744 = vld [vmem:[%s216 + $0xe80] sm:$0xff]
        %v745 = vld [vmem:[%s216 + $0xe88] sm:$0xff]
        %v746 = vld [vmem:[%s216 + $0xe90] sm:$0xff]
        %v747 = vld [vmem:[%s216 + $0xe98] sm:$0xff]
        %v748 = vld [vmem:[%s216 + $0xea0] sm:$0xff]
        %v749 = vld [vmem:[%s216 + $0xea8] sm:$0xff]
        %v750 = vld [vmem:[%s216 + $0xeb0] sm:$0xff]
        %v751 = vld [vmem:[%s216 + $0xeb8] sm:$0xff]
        %v752 = vld [vmem:[%s216 + $0xec0] sm:$0xff]
        %v753 = vld [vmem:[%s216 + $0xec8] sm:$0xff]
        %v754 = vld [vmem:[%s216 + $0xed0] sm:$0xff]
        %v755 = vld [vmem:[%s216 + $0xed8] sm:$0xff]
        %v756 = vld [vmem:[%s216 + $0xee0] sm:$0xff]
        %v757 = vld [vmem:[%s216 + $0xee8] sm:$0xff]
        %v758 = vld [vmem:[%s216 + $0xef0] sm:$0xff]
        %v759 = vld [vmem:[%s216 + $0xef8] sm:$0xff]
        %v760 = vld [vmem:[%s216 + $0xf00] sm:$0xff]
        %v761 = vld [vmem:[%s216 + $0xf08] sm:$0xff]
        %v762 = vld [vmem:[%s216 + $0xf10] sm:$0xff]
        %v763 = vld [vmem:[%s216 + $0xf18] sm:$0xff]
        %v764 = vld [vmem:[%s216 + $0xf20] sm:$0xff]
        %v765 = vld [vmem:[%s216 + $0xf28] sm:$0xff]
        %v766 = vld [vmem:[%s216 + $0xf30] sm:$0xff]
        %v767 = vld [vmem:[%s216 + $0xf38] sm:$0xff]
        %v768 = vld [vmem:[%s216 + $0xf40] sm:$0xff]
        %v769 = vld [vmem:[%s216 + $0xf48] sm:$0xff]
        %v770 = vld [vmem:[%s216 + $0xf50] sm:$0xff]
        %v771 = vld [vmem:[%s216 + $0xf58] sm:$0xff]
        %v772 = vld [vmem:[%s216 + $0xf60] sm:$0xff]
        %v773 = vld [vmem:[%s216 + $0xf68] sm:$0xff]
        %v774 = vld [vmem:[%s216 + $0xf70] sm:$0xff]
        %v775 = vld [vmem:[%s216 + $0xf78] sm:$0xff]
        %v776 = vld [vmem:[%s216 + $0xf80] sm:$0xff]
        %v777 = vld [vmem:[%s216 + $0xf88] sm:$0xff]
        %v778 = vld [vmem:[%s216 + $0xf90] sm:$0xff]
        %v779 = vld [vmem:[%s216 + $0xf98] sm:$0xff]
        %v780 = vld [vmem:[%s216 + $0xfa0] sm:$0xff]
        %v781 = vld [vmem:[%s216 + $0xfa8] sm:$0xff]
        %v782 = vld [vmem:[%s216 + $0xfb0] sm:$0xff]
        %v783 = vld [vmem:[%s216 + $0xfb8] sm:$0xff]
        %v784 = vld [vmem:[%s216 + $0xfc0] sm:$0xff]
        %v785 = vld [vmem:[%s216 + $0xfc8] sm:$0xff]
        %v786 = vld [vmem:[%s216 + $0xfd0] sm:$0xff]
        %v787 = vld [vmem:[%s216 + $0xfd8] sm:$0xff]
        %v788 = vld [vmem:[%s216 + $0xfe0] sm:$0xff]
        %v789 = vld [vmem:[%s216 + $0xfe8] sm:$0xff]
        %v790 = vld [vmem:[%s216 + $0xff0] sm:$0xff]
        %v791 = vld [vmem:[%s216 + $0xff8] sm:$0xff]
        %v792 = vld [vmem:[%s216 + $0x1000] sm:$0xff]
        %v793 = vld [vmem:[%s216 + $0x1008] sm:$0xff]
        %v794 = vld [vmem:[%s216 + $0x1010] sm:$0xff]
        %v795 = vld [vmem:[%s216 + $0x1018] sm:$0xff]
        %v796 = vld [vmem:[%s216 + $0x1020] sm:$0xff]
        %v797 = vld [vmem:[%s216 + $0x1028] sm:$0xff]
        %v798 = vld [vmem:[%s216 + $0x1030] sm:$0xff]
        %v799 = vld [vmem:[%s216 + $0x1038] sm:$0xff]
        %v800 = vld [vmem:[%s216 + $0x1040] sm:$0xff]
        %v801 = vld [vmem:[%s216 + $0x1048] sm:$0xff]
        %v802 = vld [vmem:[%s216 + $0x1050] sm:$0xff]
        %v803 = vld [vmem:[%s216 + $0x1058] sm:$0xff]
        %v804 = vld [vmem:[%s216 + $0x1060] sm:$0xff]
        %v805 = vld [vmem:[%s216 + $0x1068] sm:$0xff]
        %v806 = vld [vmem:[%s216 + $0x1070] sm:$0xff]
        %v807 = vld [vmem:[%s216 + $0x1078] sm:$0xff]
        %v808 = vld [vmem:[%s216 + $0x1080] sm:$0xff]
        %v809 = vld [vmem:[%s216 + $0x1088] sm:$0xff]
        %v810 = vld [vmem:[%s216 + $0x1090] sm:$0xff]
        %v811 = vld [vmem:[%s216 + $0x1098] sm:$0xff]
        %v812 = vld [vmem:[%s216 + $0x10a0] sm:$0xff]
        %v813 = vld [vmem:[%s216 + $0x10a8] sm:$0xff]
        %v814 = vld [vmem:[%s216 + $0x10b0] sm:$0xff]
        %v815 = vld [vmem:[%s216 + $0x10b8] sm:$0xff]
        %v816 = vld [vmem:[%s216 + $0x10c0] sm:$0xff]
        %v817 = vld [vmem:[%s216 + $0x10c8] sm:$0xff]
        %v818 = vld [vmem:[%s216 + $0x10d0] sm:$0xff]
        %v819 = vld [vmem:[%s216 + $0x10d8] sm:$0xff]
        %v820 = vld [vmem:[%s216 + $0x10e0] sm:$0xff]
        %v821 = vld [vmem:[%s216 + $0x10e8] sm:$0xff]
        %v822 = vld [vmem:[%s216 + $0x10f0] sm:$0xff]
        %v823 = vld [vmem:[%s216 + $0x10f8] sm:$0xff]
        %v824 = vld [vmem:[%s216 + $0x1100] sm:$0xff]
        %v825 = vld [vmem:[%s216 + $0x1108] sm:$0xff]
        %v826 = vld [vmem:[%s216 + $0x1110] sm:$0xff]
        %v827 = vld [vmem:[%s216 + $0x1118] sm:$0xff]
        %v828 = vld [vmem:[%s216 + $0x1120] sm:$0xff]
        %v829 = vld [vmem:[%s216 + $0x1128] sm:$0xff]
        %v830 = vld [vmem:[%s216 + $0x1130] sm:$0xff]
        %v831 = vld [vmem:[%s216 + $0x1138] sm:$0xff]
        %v832 = vld [vmem:[%s216 + $0x1140] sm:$0xff]
        %v833 = vld [vmem:[%s216 + $0x1148] sm:$0xff]
        %v834 = vld [vmem:[%s216 + $0x1150] sm:$0xff]
        %v835 = vld [vmem:[%s216 + $0x1158] sm:$0xff]
        %v836 = vld [vmem:[%s216 + $0x1160] sm:$0xff]
        %v837 = vld [vmem:[%s216 + $0x1168] sm:$0xff]
        %v838 = vld [vmem:[%s216 + $0x1170] sm:$0xff]
        %v839 = vld [vmem:[%s216 + $0x1178] sm:$0xff]
        %v840 = vld [vmem:[%s216 + $0x1180] sm:$0xff]
        %v841 = vld [vmem:[%s216 + $0x1188] sm:$0xff]
        %v842 = vld [vmem:[%s216 + $0x1190] sm:$0xff]
        %v843 = vld [vmem:[%s216 + $0x1198] sm:$0xff]
        %v844 = vld [vmem:[%s216 + $0x11a0] sm:$0xff]
        %v845 = vld [vmem:[%s216 + $0x11a8] sm:$0xff]
        %v846 = vld [vmem:[%s216 + $0x11b0] sm:$0xff]
        %v847 = vld [vmem:[%s216 + $0x11b8] sm:$0xff]
        %v848 = vld [vmem:[%s216 + $0x11c0] sm:$0xff]
        %v849 = vld [vmem:[%s216 + $0x11c8] sm:$0xff]
        %v850 = vld [vmem:[%s216 + $0x11d0] sm:$0xff]
        %v851 = vld [vmem:[%s216 + $0x11d8] sm:$0xff]
        %v852 = vld [vmem:[%s216 + $0x11e0] sm:$0xff]
        %v853 = vld [vmem:[%s216 + $0x11e8] sm:$0xff]
        %v854 = vld [vmem:[%s216 + $0x11f0] sm:$0xff]
        %v855 = vld [vmem:[%s216 + $0x11f8] sm:$0xff]
        %v856 = vld [vmem:[%s216 + $0x1200] sm:$0xff]
        %v857 = vld [vmem:[%s216 + $0x1208] sm:$0xff]
        %v858 = vld [vmem:[%s216 + $0x1210] sm:$0xff]
        %v859 = vld [vmem:[%s216 + $0x1218] sm:$0xff]
        %v860 = vld [vmem:[%s216 + $0x1220] sm:$0xff]
        %v861 = vld [vmem:[%s216 + $0x1228] sm:$0xff]
        %v862 = vld [vmem:[%s216 + $0x1230] sm:$0xff]
        %v863 = vld [vmem:[%s216 + $0x1238] sm:$0xff]
        %v864 = vld [vmem:[%s216 + $0x1240] sm:$0xff]
        %v865 = vld [vmem:[%s216 + $0x1248] sm:$0xff]
        %v866 = vld [vmem:[%s216 + $0x1250] sm:$0xff]
        %v867 = vld [vmem:[%s216 + $0x1258] sm:$0xff]
        %v868 = vld [vmem:[%s216 + $0x1260] sm:$0xff]
        %v869 = vld [vmem:[%s216 + $0x1268] sm:$0xff]
        %v870 = vld [vmem:[%s216 + $0x1270] sm:$0xff]
        %v871 = vld [vmem:[%s216 + $0x1278] sm:$0xff]
        %v872 = vld [vmem:[%s216 + $0x1280] sm:$0xff]
        %v873 = vld [vmem:[%s216 + $0x1288] sm:$0xff]
        %v874 = vld [vmem:[%s216 + $0x1290] sm:$0xff]
        %v875 = vld [vmem:[%s216 + $0x1298] sm:$0xff]
        %v876 = vld [vmem:[%s216 + $0x12a0] sm:$0xff]
        %v877 = vld [vmem:[%s216 + $0x12a8] sm:$0xff]
        %v878 = vld [vmem:[%s216 + $0x12b0] sm:$0xff]
        %v879 = vld [vmem:[%s216 + $0x12b8] sm:$0xff]
        %v880 = vld [vmem:[%s216 + $0x12c0] sm:$0xff]
        %v881 = vld [vmem:[%s216 + $0x12c8] sm:$0xff]
        %v882 = vld [vmem:[%s216 + $0x12d0] sm:$0xff]
        %v883 = vld [vmem:[%s216 + $0x12d8] sm:$0xff]
        %v884 = vld [vmem:[%s216 + $0x12e0] sm:$0xff]
        %v885 = vld [vmem:[%s216 + $0x12e8] sm:$0xff]
        %v886 = vld [vmem:[%s216 + $0x12f0] sm:$0xff]
        %v887 = vld [vmem:[%s216 + $0x12f8] sm:$0xff]
        %v888 = vld [vmem:[%s216 + $0x1300] sm:$0xff]
        %v889 = vld [vmem:[%s216 + $0x1308] sm:$0xff]
        %v890 = vld [vmem:[%s216 + $0x1310] sm:$0xff]
        %v891 = vld [vmem:[%s216 + $0x1318] sm:$0xff]
        %v892 = vld [vmem:[%s216 + $0x1320] sm:$0xff]
        %v893 = vld [vmem:[%s216 + $0x1328] sm:$0xff]
        %v894 = vld [vmem:[%s216 + $0x1330] sm:$0xff]
        %v895 = vld [vmem:[%s216 + $0x1338] sm:$0xff]
        %v896 = vld [vmem:[%s216 + $0x1340] sm:$0xff]
        %v897 = vld [vmem:[%s216 + $0x1348] sm:$0xff]
        %v898 = vld [vmem:[%s216 + $0x1350] sm:$0xff]
        %v899 = vld [vmem:[%s216 + $0x1358] sm:$0xff]
        %v900 = vld [vmem:[%s216 + $0x1360] sm:$0xff]
        %v901 = vld [vmem:[%s216 + $0x1368] sm:$0xff]
        %v902 = vld [vmem:[%s216 + $0x1370] sm:$0xff]
        %v903 = vld [vmem:[%s216 + $0x1378] sm:$0xff]
        %v904 = vld [vmem:[%s216 + $0x1380] sm:$0xff]
        %v905 = vld [vmem:[%s216 + $0x1388] sm:$0xff]
        %v906 = vld [vmem:[%s216 + $0x1390] sm:$0xff]
        %v907 = vld [vmem:[%s216 + $0x1398] sm:$0xff]
        %v908 = vld [vmem:[%s216 + $0x13a0] sm:$0xff]
        %v909 = vld [vmem:[%s216 + $0x13a8] sm:$0xff]
        %v910 = vld [vmem:[%s216 + $0x13b0] sm:$0xff]
        %v911 = vld [vmem:[%s216 + $0x13b8] sm:$0xff]
        %v912 = vld [vmem:[%s216 + $0x13c0] sm:$0xff]
        %v913 = vld [vmem:[%s216 + $0x13c8] sm:$0xff]
        %v914 = vld [vmem:[%s216 + $0x13d0] sm:$0xff]
        %v915 = vld [vmem:[%s216 + $0x13d8] sm:$0xff]
        %v916 = vld [vmem:[%s216 + $0x13e0] sm:$0xff]
        %v917 = vld [vmem:[%s216 + $0x13e8] sm:$0xff]
        %v918 = vld [vmem:[%s216 + $0x13f0] sm:$0xff]
        %v919 = vld [vmem:[%s216 + $0x13f8] sm:$0xff]
        %v920 = vld [vmem:[%s216 + $0x1400] sm:$0xff]
        %v921 = vld [vmem:[%s216 + $0x1408] sm:$0xff]
        %v922 = vld [vmem:[%s216 + $0x1410] sm:$0xff]
        %v923 = vld [vmem:[%s216 + $0x1418] sm:$0xff]
        %v924 = vld [vmem:[%s216 + $0x1420] sm:$0xff]
        %v925 = vld [vmem:[%s216 + $0x1428] sm:$0xff]
        %v926 = vld [vmem:[%s216 + $0x1430] sm:$0xff]
        %v927 = vld [vmem:[%s216 + $0x1438] sm:$0xff]
        %v928 = vld [vmem:[%s216 + $0x1440] sm:$0xff]
        %v929 = vld [vmem:[%s216 + $0x1448] sm:$0xff]
        %v930 = vld [vmem:[%s216 + $0x1450] sm:$0xff]
        %v931 = vld [vmem:[%s216 + $0x1458] sm:$0xff]
        %v932 = vld [vmem:[%s216 + $0x1460] sm:$0xff]
        %v933 = vld [vmem:[%s216 + $0x1468] sm:$0xff]
        %v934 = vld [vmem:[%s216 + $0x1470] sm:$0xff]
        %v935 = vld [vmem:[%s216 + $0x1478] sm:$0xff]
        %v936 = vld [vmem:[%s216 + $0x1480] sm:$0xff]
        %v937 = vld [vmem:[%s216 + $0x1488] sm:$0xff]
        %v938 = vld [vmem:[%s216 + $0x1490] sm:$0xff]
        %v939 = vld [vmem:[%s216 + $0x1498] sm:$0xff]
        %v940 = vld [vmem:[%s216 + $0x14a0] sm:$0xff]
        %v941 = vld [vmem:[%s216 + $0x14a8] sm:$0xff]
        %v942 = vld [vmem:[%s216 + $0x14b0] sm:$0xff]
        %v943 = vld [vmem:[%s216 + $0x14b8] sm:$0xff]
        %v944 = vld [vmem:[%s216 + $0x14c0] sm:$0xff]
        %v945 = vld [vmem:[%s216 + $0x14c8] sm:$0xff]
        %v946 = vld [vmem:[%s216 + $0x14d0] sm:$0xff]
        %v947 = vld [vmem:[%s216 + $0x14d8] sm:$0xff]
        %v948 = vld [vmem:[%s216 + $0x14e0] sm:$0xff]
        %v949 = vld [vmem:[%s216 + $0x14e8] sm:$0xff]
        %v950 = vld [vmem:[%s216 + $0x14f0] sm:$0xff]
        %v951 = vld [vmem:[%s216 + $0x14f8] sm:$0xff]
        %v952 = vld [vmem:[%s216 + $0x1500] sm:$0xff]
        %v953 = vld [vmem:[%s216 + $0x1508] sm:$0xff]
        %v954 = vld [vmem:[%s216 + $0x1510] sm:$0xff]
        %v955 = vld [vmem:[%s216 + $0x1518] sm:$0xff]
        %v956 = vld [vmem:[%s216 + $0x1520] sm:$0xff]
        %v957 = vld [vmem:[%s216 + $0x1528] sm:$0xff]
        %v958 = vld [vmem:[%s216 + $0x1530] sm:$0xff]
        %v959 = vld [vmem:[%s216 + $0x1538] sm:$0xff]
        %v960 = vld [vmem:[%s216 + $0x1540] sm:$0xff]
        %v961 = vld [vmem:[%s216 + $0x1548] sm:$0xff]
        %v962 = vld [vmem:[%s216 + $0x1550] sm:$0xff]
        %v963 = vld [vmem:[%s216 + $0x1558] sm:$0xff]
        %v964 = vld [vmem:[%s216 + $0x1560] sm:$0xff]
        %v965 = vld [vmem:[%s216 + $0x1568] sm:$0xff]
        %v966 = vld [vmem:[%s216 + $0x1570] sm:$0xff]
        %v967 = vld [vmem:[%s216 + $0x1578] sm:$0xff]
        %v968 = vld [vmem:[%s216 + $0x1580] sm:$0xff]
        %v969 = vld [vmem:[%s216 + $0x1588] sm:$0xff]
        %v970 = vld [vmem:[%s216 + $0x1590] sm:$0xff]
        %v971 = vld [vmem:[%s216 + $0x1598] sm:$0xff]
        %v972 = vld [vmem:[%s216 + $0x15a0] sm:$0xff]
        %v973 = vld [vmem:[%s216 + $0x15a8] sm:$0xff]
        %v974 = vld [vmem:[%s216 + $0x15b0] sm:$0xff]
        %v975 = vld [vmem:[%s216 + $0x15b8] sm:$0xff]
        %v976 = vld [vmem:[%s216 + $0x15c0] sm:$0xff]
        %v977 = vld [vmem:[%s216 + $0x15c8] sm:$0xff]
        %v978 = vld [vmem:[%s216 + $0x15d0] sm:$0xff]
        %v979 = vld [vmem:[%s216 + $0x15d8] sm:$0xff]
        %v980 = vld [vmem:[%s216 + $0x15e0] sm:$0xff]
        %v981 = vld [vmem:[%s216 + $0x15e8] sm:$0xff]
        %v982 = vld [vmem:[%s216 + $0x15f0] sm:$0xff]
        %v983 = vld [vmem:[%s216 + $0x15f8] sm:$0xff]
        %v984 = vld [vmem:[%s216 + $0x1600] sm:$0xff]
        %v985 = vld [vmem:[%s216 + $0x1608] sm:$0xff]
        %v986 = vld [vmem:[%s216 + $0x1610] sm:$0xff]
        %v987 = vld [vmem:[%s216 + $0x1618] sm:$0xff]
        %v988 = vld [vmem:[%s216 + $0x1620] sm:$0xff]
        %v989 = vld [vmem:[%s216 + $0x1628] sm:$0xff]
        %v990 = vld [vmem:[%s216 + $0x1630] sm:$0xff]
        %v991 = vld [vmem:[%s216 + $0x1638] sm:$0xff]
        %v992 = vld [vmem:[%s216 + $0x1640] sm:$0xff]
        %v993 = vld [vmem:[%s216 + $0x1648] sm:$0xff]
        %v994 = vld [vmem:[%s216 + $0x1650] sm:$0xff]
        %v995 = vld [vmem:[%s216 + $0x1658] sm:$0xff]
        %v996 = vld [vmem:[%s216 + $0x1660] sm:$0xff]
        %v997 = vld [vmem:[%s216 + $0x1668] sm:$0xff]
        %v998 = vld [vmem:[%s216 + $0x1670] sm:$0xff]
        %v999 = vld [vmem:[%s216 + $0x1678] sm:$0xff]
        %v1000 = vld [vmem:[%s216 + $0x1680] sm:$0xff]
        %v1001 = vld [vmem:[%s216 + $0x1688] sm:$0xff]
        %v1002 = vld [vmem:[%s216 + $0x1690] sm:$0xff]
        %v1003 = vld [vmem:[%s216 + $0x1698] sm:$0xff]
        %v1004 = vld [vmem:[%s216 + $0x16a0] sm:$0xff]
        %v1005 = vld [vmem:[%s216 + $0x16a8] sm:$0xff]
        %v1006 = vld [vmem:[%s216 + $0x16b0] sm:$0xff]
        %v1007 = vld [vmem:[%s216 + $0x16b8] sm:$0xff]
        %v1008 = vld [vmem:[%s216 + $0x16c0] sm:$0xff]
        %v1009 = vld [vmem:[%s216 + $0x16c8] sm:$0xff]
        %v1010 = vld [vmem:[%s216 + $0x16d0] sm:$0xff]
        %v1011 = vld [vmem:[%s216 + $0x16d8] sm:$0xff]
        %v1012 = vld [vmem:[%s216 + $0x16e0] sm:$0xff]
        %v1013 = vld [vmem:[%s216 + $0x16e8] sm:$0xff]
        %v1014 = vld [vmem:[%s216 + $0x16f0] sm:$0xff]
        %v1015 = vld [vmem:[%s216 + $0x16f8] sm:$0xff]
        %v1016 = vld [vmem:[%s216 + $0x1700] sm:$0xff]
        %v1017 = vld [vmem:[%s216 + $0x1708] sm:$0xff]
        %v1018 = vld [vmem:[%s216 + $0x1710] sm:$0xff]
        %v1019 = vld [vmem:[%s216 + $0x1718] sm:$0xff]
        %v1020 = vld [vmem:[%s216 + $0x1720] sm:$0xff]
        %v1021 = vld [vmem:[%s216 + $0x1728] sm:$0xff]
        %v1022 = vld [vmem:[%s216 + $0x1730] sm:$0xff]
        %v1023 = vld [vmem:[%s216 + $0x1738] sm:$0xff]
        %v1024 = vld [vmem:[%s216 + $0x1740] sm:$0xff]
        %v1025 = vld [vmem:[%s216 + $0x1748] sm:$0xff]
        %v1026 = vld [vmem:[%s216 + $0x1750] sm:$0xff]
        %v1027 = vld [vmem:[%s216 + $0x1758] sm:$0xff]
        %v1028 = vld [vmem:[%s216 + $0x1760] sm:$0xff]
        %v1029 = vld [vmem:[%s216 + $0x1768] sm:$0xff]
        %v1030 = vld [vmem:[%s216 + $0x1770] sm:$0xff]
        %v1031 = vld [vmem:[%s216 + $0x1778] sm:$0xff]
        %v1032 = vld [vmem:[%s216 + $0x1780] sm:$0xff]
        %v1033 = vld [vmem:[%s216 + $0x1788] sm:$0xff]
        %v1034 = vld [vmem:[%s216 + $0x1790] sm:$0xff]
        %v1035 = vld [vmem:[%s216 + $0x1798] sm:$0xff]
        %v1036 = vld [vmem:[%s216 + $0x17a0] sm:$0xff]
        %v1037 = vld [vmem:[%s216 + $0x17a8] sm:$0xff]
        %v1038 = vld [vmem:[%s216 + $0x17b0] sm:$0xff]
        %v1039 = vld [vmem:[%s216 + $0x17b8] sm:$0xff]
        %v1040 = vld [vmem:[%s216 + $0x17c0] sm:$0xff]
        %v1041 = vld [vmem:[%s216 + $0x17c8] sm:$0xff]
        %v1042 = vld [vmem:[%s216 + $0x17d0] sm:$0xff]
        %v1043 = vld [vmem:[%s216 + $0x17d8] sm:$0xff]
        %v1044 = vld [vmem:[%s216 + $0x17e0] sm:$0xff]
        %v1045 = vld [vmem:[%s216 + $0x17e8] sm:$0xff]
        %v1046 = vld [vmem:[%s216 + $0x17f0] sm:$0xff]
        %v1047 = vld [vmem:[%s216 + $0x17f8] sm:$0xff]
        %v1048 = vld [vmem:[%s225] sm:$0xff]
        %v1049 = vld [vmem:[%s225 + $0x8] sm:$0xff]
        %v1052 = vlaneseq
        %v1053 = vshrl.u32 %v1052, 7
        %v1054 = vsub.s32 0, %v1053
        %v1055 = vrot.slane %v1048, %v1054
        %v1056 = vlaneseq
        %v1057 = vshrl.u32 %v1056, 7
        %v1058 = vsub.s32 1, %v1057
        %v1059 = vrot.slane %v1048, %v1058
        %v1060 = vlaneseq
        %v1061 = vshrl.u32 %v1060, 7
        %v1062 = vsub.s32 2, %v1061
        %v1063 = vrot.slane %v1048, %v1062
        %v1064 = vlaneseq
        %v1065 = vshrl.u32 %v1064, 7
        %v1066 = vsub.s32 3, %v1065
        %v1067 = vrot.slane %v1048, %v1066
        %v1068 = vlaneseq
        %v1069 = vshrl.u32 %v1068, 7
        %v1070 = vsub.s32 4, %v1069
        %v1071 = vrot.slane %v1048, %v1070
        %v1072 = vlaneseq
        %v1073 = vshrl.u32 %v1072, 7
        %v1074 = vsub.s32 5, %v1073
        %v1075 = vrot.slane %v1048, %v1074
        %v1076 = vlaneseq
        %v1077 = vshrl.u32 %v1076, 7
        %v1078 = vsub.s32 6, %v1077
        %v1079 = vrot.slane %v1048, %v1078
        %v1080 = vlaneseq
        %v1081 = vshrl.u32 %v1080, 7
        %v1082 = vsub.s32 7, %v1081
        %v1083 = vrot.slane %v1048, %v1082
        %v1084 = vlaneseq
        %v1085 = vshrl.u32 %v1084, 7
        %v1086 = vsub.s32 0, %v1085
        %v1087 = vrot.slane %v1049, %v1086
        %v1088 = vlaneseq
        %v1089 = vshrl.u32 %v1088, 7
        %v1090 = vsub.s32 1, %v1089
        %v1091 = vrot.slane %v1049, %v1090
        %v1092 = vlaneseq
        %v1093 = vshrl.u32 %v1092, 7
        %v1094 = vsub.s32 2, %v1093
        %v1095 = vrot.slane %v1049, %v1094
        %v1096 = vlaneseq
        %v1097 = vshrl.u32 %v1096, 7
        %v1098 = vsub.s32 3, %v1097
        %v1099 = vrot.slane %v1049, %v1098
        %v1100 = vlaneseq
        %v1101 = vshrl.u32 %v1100, 7
        %v1102 = vsub.s32 4, %v1101
        %v1103 = vrot.slane %v1049, %v1102
        %v1104 = vlaneseq
        %v1105 = vshrl.u32 %v1104, 7
        %v1106 = vsub.s32 5, %v1105
        %v1107 = vrot.slane %v1049, %v1106
        %v1108 = vlaneseq
        %v1109 = vshrl.u32 %v1108, 7
        %v1110 = vsub.s32 6, %v1109
        %v1111 = vrot.slane %v1049, %v1110
        %v1112 = vlaneseq
        %v1113 = vshrl.u32 %v1112, 7
        %v1114 = vsub.s32 7, %v1113
        %v1115 = vrot.slane %v1049, %v1114
        %v1138 = vunpack.c.l.b16 %v274
        %v1139 = vunpack.c.h.b16 %v274
        %v1140 = vunpack.c.l.b16 %v275
        %v1141 = vunpack.c.h.b16 %v275
        %v1142 = vunpack.c.l.b16 %v276
        %v1143 = vunpack.c.h.b16 %v276
        %v1144 = vunpack.c.l.b16 %v277
        %v1145 = vunpack.c.h.b16 %v277
        %v1146 = vunpack.c.l.b16 %v278
        %v1147 = vunpack.c.h.b16 %v278
        %v1148 = vunpack.c.l.b16 %v279
        %v1149 = vunpack.c.h.b16 %v279
        %v1150 = vpack.c.b16 %v1144, %v1138
        %v1151 = vpack.c.b16 %v1145, %v1139
        %v1152 = vpack.c.b16 %v1146, %v1140
        %v1153 = vpack.c.b16 %v1147, %v1141
        %v1154 = vpack.c.b16 %v1148, %v1142
        %v1155 = vpack.c.b16 %v1149, %v1143
        %v1930 = vunpack.c.l.b16 %v280
        %v1931 = vunpack.c.h.b16 %v280
        %v1932 = vunpack.c.l.b16 %v281
        %v1933 = vunpack.c.h.b16 %v281
        %v1934 = vunpack.c.l.b16 %v282
        %v1935 = vunpack.c.h.b16 %v282
        %v1936 = vunpack.c.l.b16 %v283
        %v1937 = vunpack.c.h.b16 %v283
        %v1938 = vunpack.c.l.b16 %v284
        %v1939 = vunpack.c.h.b16 %v284
        %v1940 = vunpack.c.l.b16 %v285
        %v1941 = vunpack.c.h.b16 %v285
        %v1942 = vunpack.c.l.b16 %v286
        %v1943 = vunpack.c.h.b16 %v286
        %v1944 = vunpack.c.l.b16 %v287
        %v1945 = vunpack.c.h.b16 %v287
        %v1946 = vunpack.c.l.b16 %v288
        %v1947 = vunpack.c.h.b16 %v288
        %v1948 = vunpack.c.l.b16 %v289
        %v1949 = vunpack.c.h.b16 %v289
        %v1950 = vunpack.c.l.b16 %v290
        %v1951 = vunpack.c.h.b16 %v290
        %v1952 = vunpack.c.l.b16 %v291
        %v1953 = vunpack.c.h.b16 %v291
        %v1954 = vunpack.c.l.b16 %v292
        %v1955 = vunpack.c.h.b16 %v292
        %v1956 = vunpack.c.l.b16 %v293
        %v1957 = vunpack.c.h.b16 %v293
        %v1958 = vunpack.c.l.b16 %v294
        %v1959 = vunpack.c.h.b16 %v294
        %v1960 = vunpack.c.l.b16 %v295
        %v1961 = vunpack.c.h.b16 %v295
        %v1962 = vunpack.c.l.b16 %v296
        %v1963 = vunpack.c.h.b16 %v296
        %v1964 = vunpack.c.l.b16 %v297
        %v1965 = vunpack.c.h.b16 %v297
        %v1966 = vunpack.c.l.b16 %v298
        %v1967 = vunpack.c.h.b16 %v298
        %v1968 = vunpack.c.l.b16 %v299
        %v1969 = vunpack.c.h.b16 %v299
        %v1970 = vunpack.c.l.b16 %v300
        %v1971 = vunpack.c.h.b16 %v300
        %v1972 = vunpack.c.l.b16 %v301
        %v1973 = vunpack.c.h.b16 %v301
        %v1974 = vunpack.c.l.b16 %v302
        %v1975 = vunpack.c.h.b16 %v302
        %v1976 = vunpack.c.l.b16 %v303
        %v1977 = vunpack.c.h.b16 %v303
        %v1978 = vunpack.c.l.b16 %v304
        %v1979 = vunpack.c.h.b16 %v304
        %v1980 = vunpack.c.l.b16 %v305
        %v1981 = vunpack.c.h.b16 %v305
        %v1982 = vunpack.c.l.b16 %v306
        %v1983 = vunpack.c.h.b16 %v306
        %v1984 = vunpack.c.l.b16 %v307
        %v1985 = vunpack.c.h.b16 %v307
        %v1986 = vunpack.c.l.b16 %v308
        %v1987 = vunpack.c.h.b16 %v308
        %v1988 = vunpack.c.l.b16 %v309
        %v1989 = vunpack.c.h.b16 %v309
        %v1990 = vunpack.c.l.b16 %v310
        %v1991 = vunpack.c.h.b16 %v310
        %v1992 = vunpack.c.l.b16 %v311
        %v1993 = vunpack.c.h.b16 %v311
        %v1994 = vunpack.c.l.b16 %v312
        %v1995 = vunpack.c.h.b16 %v312
        %v1996 = vunpack.c.l.b16 %v313
        %v1997 = vunpack.c.h.b16 %v313
        %v1998 = vunpack.c.l.b16 %v314
        %v1999 = vunpack.c.h.b16 %v314
        %v2000 = vunpack.c.l.b16 %v315
        %v2001 = vunpack.c.h.b16 %v315
        %v2002 = vunpack.c.l.b16 %v316
        %v2003 = vunpack.c.h.b16 %v316
        %v2004 = vunpack.c.l.b16 %v317
        %v2005 = vunpack.c.h.b16 %v317
        %v2006 = vunpack.c.l.b16 %v318
        %v2007 = vunpack.c.h.b16 %v318
        %v2008 = vunpack.c.l.b16 %v319
        %v2009 = vunpack.c.h.b16 %v319
        %v2010 = vunpack.c.l.b16 %v320
        %v2011 = vunpack.c.h.b16 %v320
        %v2012 = vunpack.c.l.b16 %v321
        %v2013 = vunpack.c.h.b16 %v321
        %v2014 = vunpack.c.l.b16 %v322
        %v2015 = vunpack.c.h.b16 %v322
        %v2016 = vunpack.c.l.b16 %v323
        %v2017 = vunpack.c.h.b16 %v323
        %v2018 = vunpack.c.l.b16 %v324
        %v2019 = vunpack.c.h.b16 %v324
        %v2020 = vunpack.c.l.b16 %v325
        %v2021 = vunpack.c.h.b16 %v325
        %v2022 = vunpack.c.l.b16 %v326
        %v2023 = vunpack.c.h.b16 %v326
        %v2024 = vunpack.c.l.b16 %v327
        %v2025 = vunpack.c.h.b16 %v327
        %v2026 = vunpack.c.l.b16 %v328
        %v2027 = vunpack.c.h.b16 %v328
        %v2028 = vunpack.c.l.b16 %v329
        %v2029 = vunpack.c.h.b16 %v329
        %v2030 = vunpack.c.l.b16 %v330
        %v2031 = vunpack.c.h.b16 %v330
        %v2032 = vunpack.c.l.b16 %v331
        %v2033 = vunpack.c.h.b16 %v331
        %v2034 = vunpack.c.l.b16 %v332
        %v2035 = vunpack.c.h.b16 %v332
        %v2036 = vunpack.c.l.b16 %v333
        %v2037 = vunpack.c.h.b16 %v333
        %v2038 = vunpack.c.l.b16 %v334
        %v2039 = vunpack.c.h.b16 %v334
        %v2040 = vunpack.c.l.b16 %v335
        %v2041 = vunpack.c.h.b16 %v335
        %v2042 = vunpack.c.l.b16 %v336
        %v2043 = vunpack.c.h.b16 %v336
        %v2044 = vunpack.c.l.b16 %v337
        %v2045 = vunpack.c.h.b16 %v337
        %v2046 = vunpack.c.l.b16 %v338
        %v2047 = vunpack.c.h.b16 %v338
        %v2048 = vunpack.c.l.b16 %v339
        %v2049 = vunpack.c.h.b16 %v339
        %v2050 = vunpack.c.l.b16 %v340
        %v2051 = vunpack.c.h.b16 %v340
        %v2052 = vunpack.c.l.b16 %v341
        %v2053 = vunpack.c.h.b16 %v341
        %v2054 = vunpack.c.l.b16 %v342
        %v2055 = vunpack.c.h.b16 %v342
        %v2056 = vunpack.c.l.b16 %v343
        %v2057 = vunpack.c.h.b16 %v343
        %v2058 = vunpack.c.l.b16 %v344
        %v2059 = vunpack.c.h.b16 %v344
        %v2060 = vunpack.c.l.b16 %v345
        %v2061 = vunpack.c.h.b16 %v345
        %v2062 = vunpack.c.l.b16 %v346
        %v2063 = vunpack.c.h.b16 %v346
        %v2064 = vunpack.c.l.b16 %v347
        %v2065 = vunpack.c.h.b16 %v347
        %v2066 = vunpack.c.l.b16 %v348
        %v2067 = vunpack.c.h.b16 %v348
        %v2068 = vunpack.c.l.b16 %v349
        %v2069 = vunpack.c.h.b16 %v349
        %v2070 = vunpack.c.l.b16 %v350
        %v2071 = vunpack.c.h.b16 %v350
        %v2072 = vunpack.c.l.b16 %v351
        %v2073 = vunpack.c.h.b16 %v351
        %v2074 = vunpack.c.l.b16 %v352
        %v2075 = vunpack.c.h.b16 %v352
        %v2076 = vunpack.c.l.b16 %v353
        %v2077 = vunpack.c.h.b16 %v353
        %v2078 = vunpack.c.l.b16 %v354
        %v2079 = vunpack.c.h.b16 %v354
        %v2080 = vunpack.c.l.b16 %v355
        %v2081 = vunpack.c.h.b16 %v355
        %v2082 = vunpack.c.l.b16 %v356
        %v2083 = vunpack.c.h.b16 %v356
        %v2084 = vunpack.c.l.b16 %v357
        %v2085 = vunpack.c.h.b16 %v357
        %v2086 = vunpack.c.l.b16 %v358
        %v2087 = vunpack.c.h.b16 %v358
        %v2088 = vunpack.c.l.b16 %v359
        %v2089 = vunpack.c.h.b16 %v359
        %v2090 = vunpack.c.l.b16 %v360
        %v2091 = vunpack.c.h.b16 %v360
        %v2092 = vunpack.c.l.b16 %v361
        %v2093 = vunpack.c.h.b16 %v361
        %v2094 = vunpack.c.l.b16 %v362
        %v2095 = vunpack.c.h.b16 %v362
        %v2096 = vunpack.c.l.b16 %v363
        %v2097 = vunpack.c.h.b16 %v363
        %v2098 = vunpack.c.l.b16 %v364
        %v2099 = vunpack.c.h.b16 %v364
        %v2100 = vunpack.c.l.b16 %v365
        %v2101 = vunpack.c.h.b16 %v365
        %v2102 = vunpack.c.l.b16 %v366
        %v2103 = vunpack.c.h.b16 %v366
        %v2104 = vunpack.c.l.b16 %v367
        %v2105 = vunpack.c.h.b16 %v367
        %v2106 = vunpack.c.l.b16 %v368
        %v2107 = vunpack.c.h.b16 %v368
        %v2108 = vunpack.c.l.b16 %v369
        %v2109 = vunpack.c.h.b16 %v369
        %v2110 = vunpack.c.l.b16 %v370
        %v2111 = vunpack.c.h.b16 %v370
        %v2112 = vunpack.c.l.b16 %v371
        %v2113 = vunpack.c.h.b16 %v371
        %v2114 = vunpack.c.l.b16 %v372
        %v2115 = vunpack.c.h.b16 %v372
        %v2116 = vunpack.c.l.b16 %v373
        %v2117 = vunpack.c.h.b16 %v373
        %v2118 = vunpack.c.l.b16 %v374
        %v2119 = vunpack.c.h.b16 %v374
        %v2120 = vunpack.c.l.b16 %v375
        %v2121 = vunpack.c.h.b16 %v375
        %v2122 = vunpack.c.l.b16 %v376
        %v2123 = vunpack.c.h.b16 %v376
        %v2124 = vunpack.c.l.b16 %v377
        %v2125 = vunpack.c.h.b16 %v377
        %v2126 = vunpack.c.l.b16 %v378
        %v2127 = vunpack.c.h.b16 %v378
        %v2128 = vunpack.c.l.b16 %v379
        %v2129 = vunpack.c.h.b16 %v379
        %v2130 = vunpack.c.l.b16 %v380
        %v2131 = vunpack.c.h.b16 %v380
        %v2132 = vunpack.c.l.b16 %v381
        %v2133 = vunpack.c.h.b16 %v381
        %v2134 = vunpack.c.l.b16 %v382
        %v2135 = vunpack.c.h.b16 %v382
        %v2136 = vunpack.c.l.b16 %v383
        %v2137 = vunpack.c.h.b16 %v383
        %v2138 = vunpack.c.l.b16 %v384
        %v2139 = vunpack.c.h.b16 %v384
        %v2140 = vunpack.c.l.b16 %v385
        %v2141 = vunpack.c.h.b16 %v385
        %v2142 = vunpack.c.l.b16 %v386
        %v2143 = vunpack.c.h.b16 %v386
        %v2144 = vunpack.c.l.b16 %v387
        %v2145 = vunpack.c.h.b16 %v387
        %v2146 = vunpack.c.l.b16 %v388
        %v2147 = vunpack.c.h.b16 %v388
        %v2148 = vunpack.c.l.b16 %v389
        %v2149 = vunpack.c.h.b16 %v389
        %v2150 = vunpack.c.l.b16 %v390
        %v2151 = vunpack.c.h.b16 %v390
        %v2152 = vunpack.c.l.b16 %v391
        %v2153 = vunpack.c.h.b16 %v391
        %v2154 = vunpack.c.l.b16 %v392
        %v2155 = vunpack.c.h.b16 %v392
        %v2156 = vunpack.c.l.b16 %v393
        %v2157 = vunpack.c.h.b16 %v393
        %v2158 = vunpack.c.l.b16 %v394
        %v2159 = vunpack.c.h.b16 %v394
        %v2160 = vunpack.c.l.b16 %v395
        %v2161 = vunpack.c.h.b16 %v395
        %v2162 = vunpack.c.l.b16 %v396
        %v2163 = vunpack.c.h.b16 %v396
        %v2164 = vunpack.c.l.b16 %v397
        %v2165 = vunpack.c.h.b16 %v397
        %v2166 = vunpack.c.l.b16 %v398
        %v2167 = vunpack.c.h.b16 %v398
        %v2168 = vunpack.c.l.b16 %v399
        %v2169 = vunpack.c.h.b16 %v399
        %v2170 = vunpack.c.l.b16 %v400
        %v2171 = vunpack.c.h.b16 %v400
        %v2172 = vunpack.c.l.b16 %v401
        %v2173 = vunpack.c.h.b16 %v401
        %v2174 = vunpack.c.l.b16 %v402
        %v2175 = vunpack.c.h.b16 %v402
        %v2176 = vunpack.c.l.b16 %v403
        %v2177 = vunpack.c.h.b16 %v403
        %v2178 = vunpack.c.l.b16 %v404
        %v2179 = vunpack.c.h.b16 %v404
        %v2180 = vunpack.c.l.b16 %v405
        %v2181 = vunpack.c.h.b16 %v405
        %v2182 = vunpack.c.l.b16 %v406
        %v2183 = vunpack.c.h.b16 %v406
        %v2184 = vunpack.c.l.b16 %v407
        %v2185 = vunpack.c.h.b16 %v407
        %v2186 = vunpack.c.l.b16 %v408
        %v2187 = vunpack.c.h.b16 %v408
        %v2188 = vunpack.c.l.b16 %v409
        %v2189 = vunpack.c.h.b16 %v409
        %v2190 = vunpack.c.l.b16 %v410
        %v2191 = vunpack.c.h.b16 %v410
        %v2192 = vunpack.c.l.b16 %v411
        %v2193 = vunpack.c.h.b16 %v411
        %v2194 = vunpack.c.l.b16 %v412
        %v2195 = vunpack.c.h.b16 %v412
        %v2196 = vunpack.c.l.b16 %v413
        %v2197 = vunpack.c.h.b16 %v413
        %v2198 = vunpack.c.l.b16 %v414
        %v2199 = vunpack.c.h.b16 %v414
        %v2200 = vunpack.c.l.b16 %v415
        %v2201 = vunpack.c.h.b16 %v415
        %v2202 = vunpack.c.l.b16 %v416
        %v2203 = vunpack.c.h.b16 %v416
        %v2204 = vunpack.c.l.b16 %v417
        %v2205 = vunpack.c.h.b16 %v417
        %v2206 = vunpack.c.l.b16 %v418
        %v2207 = vunpack.c.h.b16 %v418
        %v2208 = vunpack.c.l.b16 %v419
        %v2209 = vunpack.c.h.b16 %v419
        %v2210 = vunpack.c.l.b16 %v420
        %v2211 = vunpack.c.h.b16 %v420
        %v2212 = vunpack.c.l.b16 %v421
        %v2213 = vunpack.c.h.b16 %v421
        %v2214 = vunpack.c.l.b16 %v422
        %v2215 = vunpack.c.h.b16 %v422
        %v2216 = vunpack.c.l.b16 %v423
        %v2217 = vunpack.c.h.b16 %v423
        %v2218 = vunpack.c.l.b16 %v424
        %v2219 = vunpack.c.h.b16 %v424
        %v2220 = vunpack.c.l.b16 %v425
        %v2221 = vunpack.c.h.b16 %v425
        %v2222 = vunpack.c.l.b16 %v426
        %v2223 = vunpack.c.h.b16 %v426
        %v2224 = vunpack.c.l.b16 %v427
        %v2225 = vunpack.c.h.b16 %v427
        %v2226 = vunpack.c.l.b16 %v428
        %v2227 = vunpack.c.h.b16 %v428
        %v2228 = vunpack.c.l.b16 %v429
        %v2229 = vunpack.c.h.b16 %v429
        %v2230 = vunpack.c.l.b16 %v430
        %v2231 = vunpack.c.h.b16 %v430
        %v2232 = vunpack.c.l.b16 %v431
        %v2233 = vunpack.c.h.b16 %v431
        %v2234 = vunpack.c.l.b16 %v432
        %v2235 = vunpack.c.h.b16 %v432
        %v2236 = vunpack.c.l.b16 %v433
        %v2237 = vunpack.c.h.b16 %v433
        %v2238 = vunpack.c.l.b16 %v434
        %v2239 = vunpack.c.h.b16 %v434
        %v2240 = vunpack.c.l.b16 %v435
        %v2241 = vunpack.c.h.b16 %v435
        %v2242 = vunpack.c.l.b16 %v436
        %v2243 = vunpack.c.h.b16 %v436
        %v2244 = vunpack.c.l.b16 %v437
        %v2245 = vunpack.c.h.b16 %v437
        %v2246 = vunpack.c.l.b16 %v438
        %v2247 = vunpack.c.h.b16 %v438
        %v2248 = vunpack.c.l.b16 %v439
        %v2249 = vunpack.c.h.b16 %v439
        %v2250 = vunpack.c.l.b16 %v440
        %v2251 = vunpack.c.h.b16 %v440
        %v2252 = vunpack.c.l.b16 %v441
        %v2253 = vunpack.c.h.b16 %v441
        %v2254 = vunpack.c.l.b16 %v442
        %v2255 = vunpack.c.h.b16 %v442
        %v2256 = vunpack.c.l.b16 %v443
        %v2257 = vunpack.c.h.b16 %v443
        %v2258 = vunpack.c.l.b16 %v444
        %v2259 = vunpack.c.h.b16 %v444
        %v2260 = vunpack.c.l.b16 %v445
        %v2261 = vunpack.c.h.b16 %v445
        %v2262 = vunpack.c.l.b16 %v446
        %v2263 = vunpack.c.h.b16 %v446
        %v2264 = vunpack.c.l.b16 %v447
        %v2265 = vunpack.c.h.b16 %v447
        %v2266 = vunpack.c.l.b16 %v448
        %v2267 = vunpack.c.h.b16 %v448
        %v2268 = vunpack.c.l.b16 %v449
        %v2269 = vunpack.c.h.b16 %v449
        %v2270 = vunpack.c.l.b16 %v450
        %v2271 = vunpack.c.h.b16 %v450
        %v2272 = vunpack.c.l.b16 %v451
        %v2273 = vunpack.c.h.b16 %v451
        %v2274 = vunpack.c.l.b16 %v452
        %v2275 = vunpack.c.h.b16 %v452
        %v2276 = vunpack.c.l.b16 %v453
        %v2277 = vunpack.c.h.b16 %v453
        %v2278 = vunpack.c.l.b16 %v454
        %v2279 = vunpack.c.h.b16 %v454
        %v2280 = vunpack.c.l.b16 %v455
        %v2281 = vunpack.c.h.b16 %v455
        %v2282 = vunpack.c.l.b16 %v456
        %v2283 = vunpack.c.h.b16 %v456
        %v2284 = vunpack.c.l.b16 %v457
        %v2285 = vunpack.c.h.b16 %v457
        %v2286 = vunpack.c.l.b16 %v458
        %v2287 = vunpack.c.h.b16 %v458
        %v2288 = vunpack.c.l.b16 %v459
        %v2289 = vunpack.c.h.b16 %v459
        %v2290 = vunpack.c.l.b16 %v460
        %v2291 = vunpack.c.h.b16 %v460
        %v2292 = vunpack.c.l.b16 %v461
        %v2293 = vunpack.c.h.b16 %v461
        %v2294 = vunpack.c.l.b16 %v462
        %v2295 = vunpack.c.h.b16 %v462
        %v2296 = vunpack.c.l.b16 %v463
        %v2297 = vunpack.c.h.b16 %v463
        %v2298 = vunpack.c.l.b16 %v464
        %v2299 = vunpack.c.h.b16 %v464
        %v2300 = vunpack.c.l.b16 %v465
        %v2301 = vunpack.c.h.b16 %v465
        %v2302 = vunpack.c.l.b16 %v466
        %v2303 = vunpack.c.h.b16 %v466
        %v2304 = vunpack.c.l.b16 %v467
        %v2305 = vunpack.c.h.b16 %v467
        %v2306 = vunpack.c.l.b16 %v468
        %v2307 = vunpack.c.h.b16 %v468
        %v2308 = vunpack.c.l.b16 %v469
        %v2309 = vunpack.c.h.b16 %v469
        %v2310 = vunpack.c.l.b16 %v470
        %v2311 = vunpack.c.h.b16 %v470
        %v2312 = vunpack.c.l.b16 %v471
        %v2313 = vunpack.c.h.b16 %v471
        %v2314 = vunpack.c.l.b16 %v472
        %v2315 = vunpack.c.h.b16 %v472
        %v2316 = vunpack.c.l.b16 %v473
        %v2317 = vunpack.c.h.b16 %v473
        %v2318 = vunpack.c.l.b16 %v474
        %v2319 = vunpack.c.h.b16 %v474
        %v2320 = vunpack.c.l.b16 %v475
        %v2321 = vunpack.c.h.b16 %v475
        %v2322 = vunpack.c.l.b16 %v476
        %v2323 = vunpack.c.h.b16 %v476
        %v2324 = vunpack.c.l.b16 %v477
        %v2325 = vunpack.c.h.b16 %v477
        %v2326 = vunpack.c.l.b16 %v478
        %v2327 = vunpack.c.h.b16 %v478
        %v2328 = vunpack.c.l.b16 %v479
        %v2329 = vunpack.c.h.b16 %v479
        %v2330 = vunpack.c.l.b16 %v480
        %v2331 = vunpack.c.h.b16 %v480
        %v2332 = vunpack.c.l.b16 %v481
        %v2333 = vunpack.c.h.b16 %v481
        %v2334 = vunpack.c.l.b16 %v482
        %v2335 = vunpack.c.h.b16 %v482
        %v2336 = vunpack.c.l.b16 %v483
        %v2337 = vunpack.c.h.b16 %v483
        %v2338 = vunpack.c.l.b16 %v484
        %v2339 = vunpack.c.h.b16 %v484
        %v2340 = vunpack.c.l.b16 %v485
        %v2341 = vunpack.c.h.b16 %v485
        %v2342 = vunpack.c.l.b16 %v486
        %v2343 = vunpack.c.h.b16 %v486
        %v2344 = vunpack.c.l.b16 %v487
        %v2345 = vunpack.c.h.b16 %v487
        %v2346 = vunpack.c.l.b16 %v488
        %v2347 = vunpack.c.h.b16 %v488
        %v2348 = vunpack.c.l.b16 %v489
        %v2349 = vunpack.c.h.b16 %v489
        %v2350 = vunpack.c.l.b16 %v490
        %v2351 = vunpack.c.h.b16 %v490
        %v2352 = vunpack.c.l.b16 %v491
        %v2353 = vunpack.c.h.b16 %v491
        %v2354 = vunpack.c.l.b16 %v492
        %v2355 = vunpack.c.h.b16 %v492
        %v2356 = vunpack.c.l.b16 %v493
        %v2357 = vunpack.c.h.b16 %v493
        %v2358 = vunpack.c.l.b16 %v494
        %v2359 = vunpack.c.h.b16 %v494
        %v2360 = vunpack.c.l.b16 %v495
        %v2361 = vunpack.c.h.b16 %v495
        %v2362 = vunpack.c.l.b16 %v496
        %v2363 = vunpack.c.h.b16 %v496
        %v2364 = vunpack.c.l.b16 %v497
        %v2365 = vunpack.c.h.b16 %v497
        %v2366 = vunpack.c.l.b16 %v498
        %v2367 = vunpack.c.h.b16 %v498
        %v2368 = vunpack.c.l.b16 %v499
        %v2369 = vunpack.c.h.b16 %v499
        %v2370 = vunpack.c.l.b16 %v500
        %v2371 = vunpack.c.h.b16 %v500
        %v2372 = vunpack.c.l.b16 %v501
        %v2373 = vunpack.c.h.b16 %v501
        %v2374 = vunpack.c.l.b16 %v502
        %v2375 = vunpack.c.h.b16 %v502
        %v2376 = vunpack.c.l.b16 %v503
        %v2377 = vunpack.c.h.b16 %v503
        %v2378 = vunpack.c.l.b16 %v504
        %v2379 = vunpack.c.h.b16 %v504
        %v2380 = vunpack.c.l.b16 %v505
        %v2381 = vunpack.c.h.b16 %v505
        %v2382 = vunpack.c.l.b16 %v506
        %v2383 = vunpack.c.h.b16 %v506
        %v2384 = vunpack.c.l.b16 %v507
        %v2385 = vunpack.c.h.b16 %v507
        %v2386 = vunpack.c.l.b16 %v508
        %v2387 = vunpack.c.h.b16 %v508
        %v2388 = vunpack.c.l.b16 %v509
        %v2389 = vunpack.c.h.b16 %v509
        %v2390 = vunpack.c.l.b16 %v510
        %v2391 = vunpack.c.h.b16 %v510
        %v2392 = vunpack.c.l.b16 %v511
        %v2393 = vunpack.c.h.b16 %v511
        %v2394 = vunpack.c.l.b16 %v512
        %v2395 = vunpack.c.h.b16 %v512
        %v2396 = vunpack.c.l.b16 %v513
        %v2397 = vunpack.c.h.b16 %v513
        %v2398 = vunpack.c.l.b16 %v514
        %v2399 = vunpack.c.h.b16 %v514
        %v2400 = vunpack.c.l.b16 %v515
        %v2401 = vunpack.c.h.b16 %v515
        %v2402 = vunpack.c.l.b16 %v516
        %v2403 = vunpack.c.h.b16 %v516
        %v2404 = vunpack.c.l.b16 %v517
        %v2405 = vunpack.c.h.b16 %v517
        %v2406 = vunpack.c.l.b16 %v518
        %v2407 = vunpack.c.h.b16 %v518
        %v2408 = vunpack.c.l.b16 %v519
        %v2409 = vunpack.c.h.b16 %v519
        %v2410 = vunpack.c.l.b16 %v520
        %v2411 = vunpack.c.h.b16 %v520
        %v2412 = vunpack.c.l.b16 %v521
        %v2413 = vunpack.c.h.b16 %v521
        %v2414 = vunpack.c.l.b16 %v522
        %v2415 = vunpack.c.h.b16 %v522
        %v2416 = vunpack.c.l.b16 %v523
        %v2417 = vunpack.c.h.b16 %v523
        %v2418 = vunpack.c.l.b16 %v524
        %v2419 = vunpack.c.h.b16 %v524
        %v2420 = vunpack.c.l.b16 %v525
        %v2421 = vunpack.c.h.b16 %v525
        %v2422 = vunpack.c.l.b16 %v526
        %v2423 = vunpack.c.h.b16 %v526
        %v2424 = vunpack.c.l.b16 %v527
        %v2425 = vunpack.c.h.b16 %v527
        %v2426 = vunpack.c.l.b16 %v528
        %v2427 = vunpack.c.h.b16 %v528
        %v2428 = vunpack.c.l.b16 %v529
        %v2429 = vunpack.c.h.b16 %v529
        %v2430 = vunpack.c.l.b16 %v530
        %v2431 = vunpack.c.h.b16 %v530
        %v2432 = vunpack.c.l.b16 %v531
        %v2433 = vunpack.c.h.b16 %v531
        %v2434 = vunpack.c.l.b16 %v532
        %v2435 = vunpack.c.h.b16 %v532
        %v2436 = vunpack.c.l.b16 %v533
        %v2437 = vunpack.c.h.b16 %v533
        %v2438 = vunpack.c.l.b16 %v534
        %v2439 = vunpack.c.h.b16 %v534
        %v2440 = vunpack.c.l.b16 %v535
        %v2441 = vunpack.c.h.b16 %v535
        %v2442 = vunpack.c.l.b16 %v536
        %v2443 = vunpack.c.h.b16 %v536
        %v2444 = vunpack.c.l.b16 %v537
        %v2445 = vunpack.c.h.b16 %v537
        %v2446 = vunpack.c.l.b16 %v538
        %v2447 = vunpack.c.h.b16 %v538
        %v2448 = vunpack.c.l.b16 %v539
        %v2449 = vunpack.c.h.b16 %v539
        %v2450 = vunpack.c.l.b16 %v540
        %v2451 = vunpack.c.h.b16 %v540
        %v2452 = vunpack.c.l.b16 %v541
        %v2453 = vunpack.c.h.b16 %v541
        %v2454 = vunpack.c.l.b16 %v542
        %v2455 = vunpack.c.h.b16 %v542
        %v2456 = vunpack.c.l.b16 %v543
        %v2457 = vunpack.c.h.b16 %v543
        %v2458 = vunpack.c.l.b16 %v544
        %v2459 = vunpack.c.h.b16 %v544
        %v2460 = vunpack.c.l.b16 %v545
        %v2461 = vunpack.c.h.b16 %v545
        %v2462 = vunpack.c.l.b16 %v546
        %v2463 = vunpack.c.h.b16 %v546
        %v2464 = vunpack.c.l.b16 %v547
        %v2465 = vunpack.c.h.b16 %v547
        %v2466 = vunpack.c.l.b16 %v548
        %v2467 = vunpack.c.h.b16 %v548
        %v2468 = vunpack.c.l.b16 %v549
        %v2469 = vunpack.c.h.b16 %v549
        %v2470 = vunpack.c.l.b16 %v550
        %v2471 = vunpack.c.h.b16 %v550
        %v2472 = vunpack.c.l.b16 %v551
        %v2473 = vunpack.c.h.b16 %v551
        %v2474 = vunpack.c.l.b16 %v552
        %v2475 = vunpack.c.h.b16 %v552
        %v2476 = vunpack.c.l.b16 %v553
        %v2477 = vunpack.c.h.b16 %v553
        %v2478 = vunpack.c.l.b16 %v554
        %v2479 = vunpack.c.h.b16 %v554
        %v2480 = vunpack.c.l.b16 %v555
        %v2481 = vunpack.c.h.b16 %v555
        %v2482 = vunpack.c.l.b16 %v556
        %v2483 = vunpack.c.h.b16 %v556
        %v2484 = vunpack.c.l.b16 %v557
        %v2485 = vunpack.c.h.b16 %v557
        %v2486 = vunpack.c.l.b16 %v558
        %v2487 = vunpack.c.h.b16 %v558
        %v2488 = vunpack.c.l.b16 %v559
        %v2489 = vunpack.c.h.b16 %v559
        %v2490 = vunpack.c.l.b16 %v560
        %v2491 = vunpack.c.h.b16 %v560
        %v2492 = vunpack.c.l.b16 %v561
        %v2493 = vunpack.c.h.b16 %v561
        %v2494 = vunpack.c.l.b16 %v562
        %v2495 = vunpack.c.h.b16 %v562
        %v2496 = vunpack.c.l.b16 %v563
        %v2497 = vunpack.c.h.b16 %v563
        %v2498 = vunpack.c.l.b16 %v564
        %v2499 = vunpack.c.h.b16 %v564
        %v2500 = vunpack.c.l.b16 %v565
        %v2501 = vunpack.c.h.b16 %v565
        %v2502 = vunpack.c.l.b16 %v566
        %v2503 = vunpack.c.h.b16 %v566
        %v2504 = vunpack.c.l.b16 %v567
        %v2505 = vunpack.c.h.b16 %v567
        %v2506 = vunpack.c.l.b16 %v568
        %v2507 = vunpack.c.h.b16 %v568
        %v2508 = vunpack.c.l.b16 %v569
        %v2509 = vunpack.c.h.b16 %v569
        %v2510 = vunpack.c.l.b16 %v570
        %v2511 = vunpack.c.h.b16 %v570
        %v2512 = vunpack.c.l.b16 %v571
        %v2513 = vunpack.c.h.b16 %v571
        %v2514 = vunpack.c.l.b16 %v572
        %v2515 = vunpack.c.h.b16 %v572
        %v2516 = vunpack.c.l.b16 %v573
        %v2517 = vunpack.c.h.b16 %v573
        %v2518 = vunpack.c.l.b16 %v574
        %v2519 = vunpack.c.h.b16 %v574
        %v2520 = vunpack.c.l.b16 %v575
        %v2521 = vunpack.c.h.b16 %v575
        %v2522 = vunpack.c.l.b16 %v576
        %v2523 = vunpack.c.h.b16 %v576
        %v2524 = vunpack.c.l.b16 %v577
        %v2525 = vunpack.c.h.b16 %v577
        %v2526 = vunpack.c.l.b16 %v578
        %v2527 = vunpack.c.h.b16 %v578
        %v2528 = vunpack.c.l.b16 %v579
        %v2529 = vunpack.c.h.b16 %v579
        %v2530 = vunpack.c.l.b16 %v580
        %v2531 = vunpack.c.h.b16 %v580
        %v2532 = vunpack.c.l.b16 %v581
        %v2533 = vunpack.c.h.b16 %v581
        %v2534 = vunpack.c.l.b16 %v582
        %v2535 = vunpack.c.h.b16 %v582
        %v2536 = vunpack.c.l.b16 %v583
        %v2537 = vunpack.c.h.b16 %v583
        %v2538 = vunpack.c.l.b16 %v584
        %v2539 = vunpack.c.h.b16 %v584
        %v2540 = vunpack.c.l.b16 %v585
        %v2541 = vunpack.c.h.b16 %v585
        %v2542 = vunpack.c.l.b16 %v586
        %v2543 = vunpack.c.h.b16 %v586
        %v2544 = vunpack.c.l.b16 %v587
        %v2545 = vunpack.c.h.b16 %v587
        %v2546 = vunpack.c.l.b16 %v588
        %v2547 = vunpack.c.h.b16 %v588
        %v2548 = vunpack.c.l.b16 %v589
        %v2549 = vunpack.c.h.b16 %v589
        %v2550 = vunpack.c.l.b16 %v590
        %v2551 = vunpack.c.h.b16 %v590
        %v2552 = vunpack.c.l.b16 %v591
        %v2553 = vunpack.c.h.b16 %v591
        %v2554 = vunpack.c.l.b16 %v592
        %v2555 = vunpack.c.h.b16 %v592
        %v2556 = vunpack.c.l.b16 %v593
        %v2557 = vunpack.c.h.b16 %v593
        %v2558 = vunpack.c.l.b16 %v594
        %v2559 = vunpack.c.h.b16 %v594
        %v2560 = vunpack.c.l.b16 %v595
        %v2561 = vunpack.c.h.b16 %v595
        %v2562 = vunpack.c.l.b16 %v596
        %v2563 = vunpack.c.h.b16 %v596
        %v2564 = vunpack.c.l.b16 %v597
        %v2565 = vunpack.c.h.b16 %v597
        %v2566 = vunpack.c.l.b16 %v598
        %v2567 = vunpack.c.h.b16 %v598
        %v2568 = vunpack.c.l.b16 %v599
        %v2569 = vunpack.c.h.b16 %v599
        %v2570 = vunpack.c.l.b16 %v600
        %v2571 = vunpack.c.h.b16 %v600
        %v2572 = vunpack.c.l.b16 %v601
        %v2573 = vunpack.c.h.b16 %v601
        %v2574 = vunpack.c.l.b16 %v602
        %v2575 = vunpack.c.h.b16 %v602
        %v2576 = vunpack.c.l.b16 %v603
        %v2577 = vunpack.c.h.b16 %v603
        %v2578 = vunpack.c.l.b16 %v604
        %v2579 = vunpack.c.h.b16 %v604
        %v2580 = vunpack.c.l.b16 %v605
        %v2581 = vunpack.c.h.b16 %v605
        %v2582 = vunpack.c.l.b16 %v606
        %v2583 = vunpack.c.h.b16 %v606
        %v2584 = vunpack.c.l.b16 %v607
        %v2585 = vunpack.c.h.b16 %v607
        %v2586 = vunpack.c.l.b16 %v608
        %v2587 = vunpack.c.h.b16 %v608
        %v2588 = vunpack.c.l.b16 %v609
        %v2589 = vunpack.c.h.b16 %v609
        %v2590 = vunpack.c.l.b16 %v610
        %v2591 = vunpack.c.h.b16 %v610
        %v2592 = vunpack.c.l.b16 %v611
        %v2593 = vunpack.c.h.b16 %v611
        %v2594 = vunpack.c.l.b16 %v612
        %v2595 = vunpack.c.h.b16 %v612
        %v2596 = vunpack.c.l.b16 %v613
        %v2597 = vunpack.c.h.b16 %v613
        %v2598 = vunpack.c.l.b16 %v614
        %v2599 = vunpack.c.h.b16 %v614
        %v2600 = vunpack.c.l.b16 %v615
        %v2601 = vunpack.c.h.b16 %v615
        %v2602 = vunpack.c.l.b16 %v616
        %v2603 = vunpack.c.h.b16 %v616
        %v2604 = vunpack.c.l.b16 %v617
        %v2605 = vunpack.c.h.b16 %v617
        %v2606 = vunpack.c.l.b16 %v618
        %v2607 = vunpack.c.h.b16 %v618
        %v2608 = vunpack.c.l.b16 %v619
        %v2609 = vunpack.c.h.b16 %v619
        %v2610 = vunpack.c.l.b16 %v620
        %v2611 = vunpack.c.h.b16 %v620
        %v2612 = vunpack.c.l.b16 %v621
        %v2613 = vunpack.c.h.b16 %v621
        %v2614 = vunpack.c.l.b16 %v622
        %v2615 = vunpack.c.h.b16 %v622
        %v2616 = vunpack.c.l.b16 %v623
        %v2617 = vunpack.c.h.b16 %v623
        %v2618 = vunpack.c.l.b16 %v624
        %v2619 = vunpack.c.h.b16 %v624
        %v2620 = vunpack.c.l.b16 %v625
        %v2621 = vunpack.c.h.b16 %v625
        %v2622 = vunpack.c.l.b16 %v626
        %v2623 = vunpack.c.h.b16 %v626
        %v2624 = vunpack.c.l.b16 %v627
        %v2625 = vunpack.c.h.b16 %v627
        %v2626 = vunpack.c.l.b16 %v628
        %v2627 = vunpack.c.h.b16 %v628
        %v2628 = vunpack.c.l.b16 %v629
        %v2629 = vunpack.c.h.b16 %v629
        %v2630 = vunpack.c.l.b16 %v630
        %v2631 = vunpack.c.h.b16 %v630
        %v2632 = vunpack.c.l.b16 %v631
        %v2633 = vunpack.c.h.b16 %v631
        %v2634 = vunpack.c.l.b16 %v632
        %v2635 = vunpack.c.h.b16 %v632
        %v2636 = vunpack.c.l.b16 %v633
        %v2637 = vunpack.c.h.b16 %v633
        %v2638 = vunpack.c.l.b16 %v634
        %v2639 = vunpack.c.h.b16 %v634
        %v2640 = vunpack.c.l.b16 %v635
        %v2641 = vunpack.c.h.b16 %v635
        %v2642 = vunpack.c.l.b16 %v636
        %v2643 = vunpack.c.h.b16 %v636
        %v2644 = vunpack.c.l.b16 %v637
        %v2645 = vunpack.c.h.b16 %v637
        %v2646 = vunpack.c.l.b16 %v638
        %v2647 = vunpack.c.h.b16 %v638
        %v2648 = vunpack.c.l.b16 %v639
        %v2649 = vunpack.c.h.b16 %v639
        %v2650 = vunpack.c.l.b16 %v640
        %v2651 = vunpack.c.h.b16 %v640
        %v2652 = vunpack.c.l.b16 %v641
        %v2653 = vunpack.c.h.b16 %v641
        %v2654 = vunpack.c.l.b16 %v642
        %v2655 = vunpack.c.h.b16 %v642
        %v2656 = vunpack.c.l.b16 %v643
        %v2657 = vunpack.c.h.b16 %v643
        %v2658 = vunpack.c.l.b16 %v644
        %v2659 = vunpack.c.h.b16 %v644
        %v2660 = vunpack.c.l.b16 %v645
        %v2661 = vunpack.c.h.b16 %v645
        %v2662 = vunpack.c.l.b16 %v646
        %v2663 = vunpack.c.h.b16 %v646
        %v2664 = vunpack.c.l.b16 %v647
        %v2665 = vunpack.c.h.b16 %v647
        %v2666 = vunpack.c.l.b16 %v648
        %v2667 = vunpack.c.h.b16 %v648
        %v2668 = vunpack.c.l.b16 %v649
        %v2669 = vunpack.c.h.b16 %v649
        %v2670 = vunpack.c.l.b16 %v650
        %v2671 = vunpack.c.h.b16 %v650
        %v2672 = vunpack.c.l.b16 %v651
        %v2673 = vunpack.c.h.b16 %v651
        %v2674 = vunpack.c.l.b16 %v652
        %v2675 = vunpack.c.h.b16 %v652
        %v2676 = vunpack.c.l.b16 %v653
        %v2677 = vunpack.c.h.b16 %v653
        %v2678 = vunpack.c.l.b16 %v654
        %v2679 = vunpack.c.h.b16 %v654
        %v2680 = vunpack.c.l.b16 %v655
        %v2681 = vunpack.c.h.b16 %v655
        %v2682 = vunpack.c.l.b16 %v656
        %v2683 = vunpack.c.h.b16 %v656
        %v2684 = vunpack.c.l.b16 %v657
        %v2685 = vunpack.c.h.b16 %v657
        %v2686 = vunpack.c.l.b16 %v658
        %v2687 = vunpack.c.h.b16 %v658
        %v2688 = vunpack.c.l.b16 %v659
        %v2689 = vunpack.c.h.b16 %v659
        %v2690 = vunpack.c.l.b16 %v660
        %v2691 = vunpack.c.h.b16 %v660
        %v2692 = vunpack.c.l.b16 %v661
        %v2693 = vunpack.c.h.b16 %v661
        %v2694 = vunpack.c.l.b16 %v662
        %v2695 = vunpack.c.h.b16 %v662
        %v2696 = vunpack.c.l.b16 %v663
        %v2697 = vunpack.c.h.b16 %v663
        %v2698 = vunpack.c.l.b16 %v664
        %v2699 = vunpack.c.h.b16 %v664
        %v2700 = vunpack.c.l.b16 %v665
        %v2701 = vunpack.c.h.b16 %v665
        %v2702 = vunpack.c.l.b16 %v666
        %v2703 = vunpack.c.h.b16 %v666
        %v2704 = vunpack.c.l.b16 %v667
        %v2705 = vunpack.c.h.b16 %v667
        %v2706 = vunpack.c.l.b16 %v668
        %v2707 = vunpack.c.h.b16 %v668
        %v2708 = vunpack.c.l.b16 %v669
        %v2709 = vunpack.c.h.b16 %v669
        %v2710 = vunpack.c.l.b16 %v670
        %v2711 = vunpack.c.h.b16 %v670
        %v2712 = vunpack.c.l.b16 %v671
        %v2713 = vunpack.c.h.b16 %v671
        %v2714 = vunpack.c.l.b16 %v672
        %v2715 = vunpack.c.h.b16 %v672
        %v2716 = vunpack.c.l.b16 %v673
        %v2717 = vunpack.c.h.b16 %v673
        %v2718 = vunpack.c.l.b16 %v674
        %v2719 = vunpack.c.h.b16 %v674
        %v2720 = vunpack.c.l.b16 %v675
        %v2721 = vunpack.c.h.b16 %v675
        %v2722 = vunpack.c.l.b16 %v676
        %v2723 = vunpack.c.h.b16 %v676
        %v2724 = vunpack.c.l.b16 %v677
        %v2725 = vunpack.c.h.b16 %v677
        %v2726 = vunpack.c.l.b16 %v678
        %v2727 = vunpack.c.h.b16 %v678
        %v2728 = vunpack.c.l.b16 %v679
        %v2729 = vunpack.c.h.b16 %v679
        %v2730 = vunpack.c.l.b16 %v680
        %v2731 = vunpack.c.h.b16 %v680
        %v2732 = vunpack.c.l.b16 %v681
        %v2733 = vunpack.c.h.b16 %v681
        %v2734 = vunpack.c.l.b16 %v682
        %v2735 = vunpack.c.h.b16 %v682
        %v2736 = vunpack.c.l.b16 %v683
        %v2737 = vunpack.c.h.b16 %v683
        %v2738 = vunpack.c.l.b16 %v684
        %v2739 = vunpack.c.h.b16 %v684
        %v2740 = vunpack.c.l.b16 %v685
        %v2741 = vunpack.c.h.b16 %v685
        %v2742 = vunpack.c.l.b16 %v686
        %v2743 = vunpack.c.h.b16 %v686
        %v2744 = vunpack.c.l.b16 %v687
        %v2745 = vunpack.c.h.b16 %v687
        %v2746 = vunpack.c.l.b16 %v688
        %v2747 = vunpack.c.h.b16 %v688
        %v2748 = vunpack.c.l.b16 %v689
        %v2749 = vunpack.c.h.b16 %v689
        %v2750 = vunpack.c.l.b16 %v690
        %v2751 = vunpack.c.h.b16 %v690
        %v2752 = vunpack.c.l.b16 %v691
        %v2753 = vunpack.c.h.b16 %v691
        %v2754 = vunpack.c.l.b16 %v692
        %v2755 = vunpack.c.h.b16 %v692
        %v2756 = vunpack.c.l.b16 %v693
        %v2757 = vunpack.c.h.b16 %v693
        %v2758 = vunpack.c.l.b16 %v694
        %v2759 = vunpack.c.h.b16 %v694
        %v2760 = vunpack.c.l.b16 %v695
        %v2761 = vunpack.c.h.b16 %v695
        %v2762 = vunpack.c.l.b16 %v696
        %v2763 = vunpack.c.h.b16 %v696
        %v2764 = vunpack.c.l.b16 %v697
        %v2765 = vunpack.c.h.b16 %v697
        %v2766 = vunpack.c.l.b16 %v698
        %v2767 = vunpack.c.h.b16 %v698
        %v2768 = vunpack.c.l.b16 %v699
        %v2769 = vunpack.c.h.b16 %v699
        %v2770 = vunpack.c.l.b16 %v700
        %v2771 = vunpack.c.h.b16 %v700
        %v2772 = vunpack.c.l.b16 %v701
        %v2773 = vunpack.c.h.b16 %v701
        %v2774 = vunpack.c.l.b16 %v702
        %v2775 = vunpack.c.h.b16 %v702
        %v2776 = vunpack.c.l.b16 %v703
        %v2777 = vunpack.c.h.b16 %v703
        %v2778 = vunpack.c.l.b16 %v704
        %v2779 = vunpack.c.h.b16 %v704
        %v2780 = vunpack.c.l.b16 %v705
        %v2781 = vunpack.c.h.b16 %v705
        %v2782 = vunpack.c.l.b16 %v706
        %v2783 = vunpack.c.h.b16 %v706
        %v2784 = vunpack.c.l.b16 %v707
        %v2785 = vunpack.c.h.b16 %v707
        %v2786 = vunpack.c.l.b16 %v708
        %v2787 = vunpack.c.h.b16 %v708
        %v2788 = vunpack.c.l.b16 %v709
        %v2789 = vunpack.c.h.b16 %v709
        %v2790 = vunpack.c.l.b16 %v710
        %v2791 = vunpack.c.h.b16 %v710
        %v2792 = vunpack.c.l.b16 %v711
        %v2793 = vunpack.c.h.b16 %v711
        %v2794 = vunpack.c.l.b16 %v712
        %v2795 = vunpack.c.h.b16 %v712
        %v2796 = vunpack.c.l.b16 %v713
        %v2797 = vunpack.c.h.b16 %v713
        %v2798 = vunpack.c.l.b16 %v714
        %v2799 = vunpack.c.h.b16 %v714
        %v2800 = vunpack.c.l.b16 %v715
        %v2801 = vunpack.c.h.b16 %v715
        %v2802 = vunpack.c.l.b16 %v716
        %v2803 = vunpack.c.h.b16 %v716
        %v2804 = vunpack.c.l.b16 %v717
        %v2805 = vunpack.c.h.b16 %v717
        %v2806 = vunpack.c.l.b16 %v718
        %v2807 = vunpack.c.h.b16 %v718
        %v2808 = vunpack.c.l.b16 %v719
        %v2809 = vunpack.c.h.b16 %v719
        %v2810 = vunpack.c.l.b16 %v720
        %v2811 = vunpack.c.h.b16 %v720
        %v2812 = vunpack.c.l.b16 %v721
        %v2813 = vunpack.c.h.b16 %v721
        %v2814 = vunpack.c.l.b16 %v722
        %v2815 = vunpack.c.h.b16 %v722
        %v2816 = vunpack.c.l.b16 %v723
        %v2817 = vunpack.c.h.b16 %v723
        %v2818 = vunpack.c.l.b16 %v724
        %v2819 = vunpack.c.h.b16 %v724
        %v2820 = vunpack.c.l.b16 %v725
        %v2821 = vunpack.c.h.b16 %v725
        %v2822 = vunpack.c.l.b16 %v726
        %v2823 = vunpack.c.h.b16 %v726
        %v2824 = vunpack.c.l.b16 %v727
        %v2825 = vunpack.c.h.b16 %v727
        %v2826 = vunpack.c.l.b16 %v728
        %v2827 = vunpack.c.h.b16 %v728
        %v2828 = vunpack.c.l.b16 %v729
        %v2829 = vunpack.c.h.b16 %v729
        %v2830 = vunpack.c.l.b16 %v730
        %v2831 = vunpack.c.h.b16 %v730
        %v2832 = vunpack.c.l.b16 %v731
        %v2833 = vunpack.c.h.b16 %v731
        %v2834 = vunpack.c.l.b16 %v732
        %v2835 = vunpack.c.h.b16 %v732
        %v2836 = vunpack.c.l.b16 %v733
        %v2837 = vunpack.c.h.b16 %v733
        %v2838 = vunpack.c.l.b16 %v734
        %v2839 = vunpack.c.h.b16 %v734
        %v2840 = vunpack.c.l.b16 %v735
        %v2841 = vunpack.c.h.b16 %v735
        %v2842 = vunpack.c.l.b16 %v736
        %v2843 = vunpack.c.h.b16 %v736
        %v2844 = vunpack.c.l.b16 %v737
        %v2845 = vunpack.c.h.b16 %v737
        %v2846 = vunpack.c.l.b16 %v738
        %v2847 = vunpack.c.h.b16 %v738
        %v2848 = vunpack.c.l.b16 %v739
        %v2849 = vunpack.c.h.b16 %v739
        %v2850 = vunpack.c.l.b16 %v740
        %v2851 = vunpack.c.h.b16 %v740
        %v2852 = vunpack.c.l.b16 %v741
        %v2853 = vunpack.c.h.b16 %v741
        %v2854 = vunpack.c.l.b16 %v742
        %v2855 = vunpack.c.h.b16 %v742
        %v2856 = vunpack.c.l.b16 %v743
        %v2857 = vunpack.c.h.b16 %v743
        %v2858 = vunpack.c.l.b16 %v744
        %v2859 = vunpack.c.h.b16 %v744
        %v2860 = vunpack.c.l.b16 %v745
        %v2861 = vunpack.c.h.b16 %v745
        %v2862 = vunpack.c.l.b16 %v746
        %v2863 = vunpack.c.h.b16 %v746
        %v2864 = vunpack.c.l.b16 %v747
        %v2865 = vunpack.c.h.b16 %v747
        %v2866 = vunpack.c.l.b16 %v748
        %v2867 = vunpack.c.h.b16 %v748
        %v2868 = vunpack.c.l.b16 %v749
        %v2869 = vunpack.c.h.b16 %v749
        %v2870 = vunpack.c.l.b16 %v750
        %v2871 = vunpack.c.h.b16 %v750
        %v2872 = vunpack.c.l.b16 %v751
        %v2873 = vunpack.c.h.b16 %v751
        %v2874 = vunpack.c.l.b16 %v752
        %v2875 = vunpack.c.h.b16 %v752
        %v2876 = vunpack.c.l.b16 %v753
        %v2877 = vunpack.c.h.b16 %v753
        %v2878 = vunpack.c.l.b16 %v754
        %v2879 = vunpack.c.h.b16 %v754
        %v2880 = vunpack.c.l.b16 %v755
        %v2881 = vunpack.c.h.b16 %v755
        %v2882 = vunpack.c.l.b16 %v756
        %v2883 = vunpack.c.h.b16 %v756
        %v2884 = vunpack.c.l.b16 %v757
        %v2885 = vunpack.c.h.b16 %v757
        %v2886 = vunpack.c.l.b16 %v758
        %v2887 = vunpack.c.h.b16 %v758
        %v2888 = vunpack.c.l.b16 %v759
        %v2889 = vunpack.c.h.b16 %v759
        %v2890 = vunpack.c.l.b16 %v760
        %v2891 = vunpack.c.h.b16 %v760
        %v2892 = vunpack.c.l.b16 %v761
        %v2893 = vunpack.c.h.b16 %v761
        %v2894 = vunpack.c.l.b16 %v762
        %v2895 = vunpack.c.h.b16 %v762
        %v2896 = vunpack.c.l.b16 %v763
        %v2897 = vunpack.c.h.b16 %v763
        %v2898 = vunpack.c.l.b16 %v764
        %v2899 = vunpack.c.h.b16 %v764
        %v2900 = vunpack.c.l.b16 %v765
        %v2901 = vunpack.c.h.b16 %v765
        %v2902 = vunpack.c.l.b16 %v766
        %v2903 = vunpack.c.h.b16 %v766
        %v2904 = vunpack.c.l.b16 %v767
        %v2905 = vunpack.c.h.b16 %v767
        %v2906 = vunpack.c.l.b16 %v768
        %v2907 = vunpack.c.h.b16 %v768
        %v2908 = vunpack.c.l.b16 %v769
        %v2909 = vunpack.c.h.b16 %v769
        %v2910 = vunpack.c.l.b16 %v770
        %v2911 = vunpack.c.h.b16 %v770
        %v2912 = vunpack.c.l.b16 %v771
        %v2913 = vunpack.c.h.b16 %v771
        %v2914 = vunpack.c.l.b16 %v772
        %v2915 = vunpack.c.h.b16 %v772
        %v2916 = vunpack.c.l.b16 %v773
        %v2917 = vunpack.c.h.b16 %v773
        %v2918 = vunpack.c.l.b16 %v774
        %v2919 = vunpack.c.h.b16 %v774
        %v2920 = vunpack.c.l.b16 %v775
        %v2921 = vunpack.c.h.b16 %v775
        %v2922 = vunpack.c.l.b16 %v776
        %v2923 = vunpack.c.h.b16 %v776
        %v2924 = vunpack.c.l.b16 %v777
        %v2925 = vunpack.c.h.b16 %v777
        %v2926 = vunpack.c.l.b16 %v778
        %v2927 = vunpack.c.h.b16 %v778
        %v2928 = vunpack.c.l.b16 %v779
        %v2929 = vunpack.c.h.b16 %v779
        %v2930 = vunpack.c.l.b16 %v780
        %v2931 = vunpack.c.h.b16 %v780
        %v2932 = vunpack.c.l.b16 %v781
        %v2933 = vunpack.c.h.b16 %v781
        %v2934 = vunpack.c.l.b16 %v782
        %v2935 = vunpack.c.h.b16 %v782
        %v2936 = vunpack.c.l.b16 %v783
        %v2937 = vunpack.c.h.b16 %v783
        %v2938 = vunpack.c.l.b16 %v784
        %v2939 = vunpack.c.h.b16 %v784
        %v2940 = vunpack.c.l.b16 %v785
        %v2941 = vunpack.c.h.b16 %v785
        %v2942 = vunpack.c.l.b16 %v786
        %v2943 = vunpack.c.h.b16 %v786
        %v2944 = vunpack.c.l.b16 %v787
        %v2945 = vunpack.c.h.b16 %v787
        %v2946 = vunpack.c.l.b16 %v788
        %v2947 = vunpack.c.h.b16 %v788
        %v2948 = vunpack.c.l.b16 %v789
        %v2949 = vunpack.c.h.b16 %v789
        %v2950 = vunpack.c.l.b16 %v790
        %v2951 = vunpack.c.h.b16 %v790
        %v2952 = vunpack.c.l.b16 %v791
        %v2953 = vunpack.c.h.b16 %v791
        %v2954 = vunpack.c.l.b16 %v792
        %v2955 = vunpack.c.h.b16 %v792
        %v2956 = vunpack.c.l.b16 %v793
        %v2957 = vunpack.c.h.b16 %v793
        %v2958 = vunpack.c.l.b16 %v794
        %v2959 = vunpack.c.h.b16 %v794
        %v2960 = vunpack.c.l.b16 %v795
        %v2961 = vunpack.c.h.b16 %v795
        %v2962 = vunpack.c.l.b16 %v796
        %v2963 = vunpack.c.h.b16 %v796
        %v2964 = vunpack.c.l.b16 %v797
        %v2965 = vunpack.c.h.b16 %v797
        %v2966 = vunpack.c.l.b16 %v798
        %v2967 = vunpack.c.h.b16 %v798
        %v2968 = vunpack.c.l.b16 %v799
        %v2969 = vunpack.c.h.b16 %v799
        %v2970 = vunpack.c.l.b16 %v800
        %v2971 = vunpack.c.h.b16 %v800
        %v2972 = vunpack.c.l.b16 %v801
        %v2973 = vunpack.c.h.b16 %v801
        %v2974 = vunpack.c.l.b16 %v802
        %v2975 = vunpack.c.h.b16 %v802
        %v2976 = vunpack.c.l.b16 %v803
        %v2977 = vunpack.c.h.b16 %v803
        %v2978 = vunpack.c.l.b16 %v804
        %v2979 = vunpack.c.h.b16 %v804
        %v2980 = vunpack.c.l.b16 %v805
        %v2981 = vunpack.c.h.b16 %v805
        %v2982 = vunpack.c.l.b16 %v806
        %v2983 = vunpack.c.h.b16 %v806
        %v2984 = vunpack.c.l.b16 %v807
        %v2985 = vunpack.c.h.b16 %v807
        %v2986 = vunpack.c.l.b16 %v808
        %v2987 = vunpack.c.h.b16 %v808
        %v2988 = vunpack.c.l.b16 %v809
        %v2989 = vunpack.c.h.b16 %v809
        %v2990 = vunpack.c.l.b16 %v810
        %v2991 = vunpack.c.h.b16 %v810
        %v2992 = vunpack.c.l.b16 %v811
        %v2993 = vunpack.c.h.b16 %v811
        %v2994 = vunpack.c.l.b16 %v812
        %v2995 = vunpack.c.h.b16 %v812
        %v2996 = vunpack.c.l.b16 %v813
        %v2997 = vunpack.c.h.b16 %v813
        %v2998 = vunpack.c.l.b16 %v814
        %v2999 = vunpack.c.h.b16 %v814
        %v3000 = vunpack.c.l.b16 %v815
        %v3001 = vunpack.c.h.b16 %v815
        %v3002 = vunpack.c.l.b16 %v816
        %v3003 = vunpack.c.h.b16 %v816
        %v3004 = vunpack.c.l.b16 %v817
        %v3005 = vunpack.c.h.b16 %v817
        %v3006 = vunpack.c.l.b16 %v818
        %v3007 = vunpack.c.h.b16 %v818
        %v3008 = vunpack.c.l.b16 %v819
        %v3009 = vunpack.c.h.b16 %v819
        %v3010 = vunpack.c.l.b16 %v820
        %v3011 = vunpack.c.h.b16 %v820
        %v3012 = vunpack.c.l.b16 %v821
        %v3013 = vunpack.c.h.b16 %v821
        %v3014 = vunpack.c.l.b16 %v822
        %v3015 = vunpack.c.h.b16 %v822
        %v3016 = vunpack.c.l.b16 %v823
        %v3017 = vunpack.c.h.b16 %v823
        %v3018 = vunpack.c.l.b16 %v824
        %v3019 = vunpack.c.h.b16 %v824
        %v3020 = vunpack.c.l.b16 %v825
        %v3021 = vunpack.c.h.b16 %v825
        %v3022 = vunpack.c.l.b16 %v826
        %v3023 = vunpack.c.h.b16 %v826
        %v3024 = vunpack.c.l.b16 %v827
        %v3025 = vunpack.c.h.b16 %v827
        %v3026 = vunpack.c.l.b16 %v828
        %v3027 = vunpack.c.h.b16 %v828
        %v3028 = vunpack.c.l.b16 %v829
        %v3029 = vunpack.c.h.b16 %v829
        %v3030 = vunpack.c.l.b16 %v830
        %v3031 = vunpack.c.h.b16 %v830
        %v3032 = vunpack.c.l.b16 %v831
        %v3033 = vunpack.c.h.b16 %v831
        %v3034 = vunpack.c.l.b16 %v832
        %v3035 = vunpack.c.h.b16 %v832
        %v3036 = vunpack.c.l.b16 %v833
        %v3037 = vunpack.c.h.b16 %v833
        %v3038 = vunpack.c.l.b16 %v834
        %v3039 = vunpack.c.h.b16 %v834
        %v3040 = vunpack.c.l.b16 %v835
        %v3041 = vunpack.c.h.b16 %v835
        %v3042 = vunpack.c.l.b16 %v836
        %v3043 = vunpack.c.h.b16 %v836
        %v3044 = vunpack.c.l.b16 %v837
        %v3045 = vunpack.c.h.b16 %v837
        %v3046 = vunpack.c.l.b16 %v838
        %v3047 = vunpack.c.h.b16 %v838
        %v3048 = vunpack.c.l.b16 %v839
        %v3049 = vunpack.c.h.b16 %v839
        %v3050 = vunpack.c.l.b16 %v840
        %v3051 = vunpack.c.h.b16 %v840
        %v3052 = vunpack.c.l.b16 %v841
        %v3053 = vunpack.c.h.b16 %v841
        %v3054 = vunpack.c.l.b16 %v842
        %v3055 = vunpack.c.h.b16 %v842
        %v3056 = vunpack.c.l.b16 %v843
        %v3057 = vunpack.c.h.b16 %v843
        %v3058 = vunpack.c.l.b16 %v844
        %v3059 = vunpack.c.h.b16 %v844
        %v3060 = vunpack.c.l.b16 %v845
        %v3061 = vunpack.c.h.b16 %v845
        %v3062 = vunpack.c.l.b16 %v846
        %v3063 = vunpack.c.h.b16 %v846
        %v3064 = vunpack.c.l.b16 %v847
        %v3065 = vunpack.c.h.b16 %v847
        %v3066 = vunpack.c.l.b16 %v848
        %v3067 = vunpack.c.h.b16 %v848
        %v3068 = vunpack.c.l.b16 %v849
        %v3069 = vunpack.c.h.b16 %v849
        %v3070 = vunpack.c.l.b16 %v850
        %v3071 = vunpack.c.h.b16 %v850
        %v3072 = vunpack.c.l.b16 %v851
        %v3073 = vunpack.c.h.b16 %v851
        %v3074 = vunpack.c.l.b16 %v852
        %v3075 = vunpack.c.h.b16 %v852
        %v3076 = vunpack.c.l.b16 %v853
        %v3077 = vunpack.c.h.b16 %v853
        %v3078 = vunpack.c.l.b16 %v854
        %v3079 = vunpack.c.h.b16 %v854
        %v3080 = vunpack.c.l.b16 %v855
        %v3081 = vunpack.c.h.b16 %v855
        %v3082 = vunpack.c.l.b16 %v856
        %v3083 = vunpack.c.h.b16 %v856
        %v3084 = vunpack.c.l.b16 %v857
        %v3085 = vunpack.c.h.b16 %v857
        %v3086 = vunpack.c.l.b16 %v858
        %v3087 = vunpack.c.h.b16 %v858
        %v3088 = vunpack.c.l.b16 %v859
        %v3089 = vunpack.c.h.b16 %v859
        %v3090 = vunpack.c.l.b16 %v860
        %v3091 = vunpack.c.h.b16 %v860
        %v3092 = vunpack.c.l.b16 %v861
        %v3093 = vunpack.c.h.b16 %v861
        %v3094 = vunpack.c.l.b16 %v862
        %v3095 = vunpack.c.h.b16 %v862
        %v3096 = vunpack.c.l.b16 %v863
        %v3097 = vunpack.c.h.b16 %v863
        %v3098 = vunpack.c.l.b16 %v864
        %v3099 = vunpack.c.h.b16 %v864
        %v3100 = vunpack.c.l.b16 %v865
        %v3101 = vunpack.c.h.b16 %v865
        %v3102 = vunpack.c.l.b16 %v866
        %v3103 = vunpack.c.h.b16 %v866
        %v3104 = vunpack.c.l.b16 %v867
        %v3105 = vunpack.c.h.b16 %v867
        %v3106 = vunpack.c.l.b16 %v868
        %v3107 = vunpack.c.h.b16 %v868
        %v3108 = vunpack.c.l.b16 %v869
        %v3109 = vunpack.c.h.b16 %v869
        %v3110 = vunpack.c.l.b16 %v870
        %v3111 = vunpack.c.h.b16 %v870
        %v3112 = vunpack.c.l.b16 %v871
        %v3113 = vunpack.c.h.b16 %v871
        %v3114 = vunpack.c.l.b16 %v872
        %v3115 = vunpack.c.h.b16 %v872
        %v3116 = vunpack.c.l.b16 %v873
        %v3117 = vunpack.c.h.b16 %v873
        %v3118 = vunpack.c.l.b16 %v874
        %v3119 = vunpack.c.h.b16 %v874
        %v3120 = vunpack.c.l.b16 %v875
        %v3121 = vunpack.c.h.b16 %v875
        %v3122 = vunpack.c.l.b16 %v876
        %v3123 = vunpack.c.h.b16 %v876
        %v3124 = vunpack.c.l.b16 %v877
        %v3125 = vunpack.c.h.b16 %v877
        %v3126 = vunpack.c.l.b16 %v878
        %v3127 = vunpack.c.h.b16 %v878
        %v3128 = vunpack.c.l.b16 %v879
        %v3129 = vunpack.c.h.b16 %v879
        %v3130 = vunpack.c.l.b16 %v880
        %v3131 = vunpack.c.h.b16 %v880
        %v3132 = vunpack.c.l.b16 %v881
        %v3133 = vunpack.c.h.b16 %v881
        %v3134 = vunpack.c.l.b16 %v882
        %v3135 = vunpack.c.h.b16 %v882
        %v3136 = vunpack.c.l.b16 %v883
        %v3137 = vunpack.c.h.b16 %v883
        %v3138 = vunpack.c.l.b16 %v884
        %v3139 = vunpack.c.h.b16 %v884
        %v3140 = vunpack.c.l.b16 %v885
        %v3141 = vunpack.c.h.b16 %v885
        %v3142 = vunpack.c.l.b16 %v886
        %v3143 = vunpack.c.h.b16 %v886
        %v3144 = vunpack.c.l.b16 %v887
        %v3145 = vunpack.c.h.b16 %v887
        %v3146 = vunpack.c.l.b16 %v888
        %v3147 = vunpack.c.h.b16 %v888
        %v3148 = vunpack.c.l.b16 %v889
        %v3149 = vunpack.c.h.b16 %v889
        %v3150 = vunpack.c.l.b16 %v890
        %v3151 = vunpack.c.h.b16 %v890
        %v3152 = vunpack.c.l.b16 %v891
        %v3153 = vunpack.c.h.b16 %v891
        %v3154 = vunpack.c.l.b16 %v892
        %v3155 = vunpack.c.h.b16 %v892
        %v3156 = vunpack.c.l.b16 %v893
        %v3157 = vunpack.c.h.b16 %v893
        %v3158 = vunpack.c.l.b16 %v894
        %v3159 = vunpack.c.h.b16 %v894
        %v3160 = vunpack.c.l.b16 %v895
        %v3161 = vunpack.c.h.b16 %v895
        %v3162 = vunpack.c.l.b16 %v896
        %v3163 = vunpack.c.h.b16 %v896
        %v3164 = vunpack.c.l.b16 %v897
        %v3165 = vunpack.c.h.b16 %v897
        %v3166 = vunpack.c.l.b16 %v898
        %v3167 = vunpack.c.h.b16 %v898
        %v3168 = vunpack.c.l.b16 %v899
        %v3169 = vunpack.c.h.b16 %v899
        %v3170 = vunpack.c.l.b16 %v900
        %v3171 = vunpack.c.h.b16 %v900
        %v3172 = vunpack.c.l.b16 %v901
        %v3173 = vunpack.c.h.b16 %v901
        %v3174 = vunpack.c.l.b16 %v902
        %v3175 = vunpack.c.h.b16 %v902
        %v3176 = vunpack.c.l.b16 %v903
        %v3177 = vunpack.c.h.b16 %v903
        %v3178 = vunpack.c.l.b16 %v904
        %v3179 = vunpack.c.h.b16 %v904
        %v3180 = vunpack.c.l.b16 %v905
        %v3181 = vunpack.c.h.b16 %v905
        %v3182 = vunpack.c.l.b16 %v906
        %v3183 = vunpack.c.h.b16 %v906
        %v3184 = vunpack.c.l.b16 %v907
        %v3185 = vunpack.c.h.b16 %v907
        %v3186 = vunpack.c.l.b16 %v908
        %v3187 = vunpack.c.h.b16 %v908
        %v3188 = vunpack.c.l.b16 %v909
        %v3189 = vunpack.c.h.b16 %v909
        %v3190 = vunpack.c.l.b16 %v910
        %v3191 = vunpack.c.h.b16 %v910
        %v3192 = vunpack.c.l.b16 %v911
        %v3193 = vunpack.c.h.b16 %v911
        %v3194 = vunpack.c.l.b16 %v912
        %v3195 = vunpack.c.h.b16 %v912
        %v3196 = vunpack.c.l.b16 %v913
        %v3197 = vunpack.c.h.b16 %v913
        %v3198 = vunpack.c.l.b16 %v914
        %v3199 = vunpack.c.h.b16 %v914
        %v3200 = vunpack.c.l.b16 %v915
        %v3201 = vunpack.c.h.b16 %v915
        %v3202 = vunpack.c.l.b16 %v916
        %v3203 = vunpack.c.h.b16 %v916
        %v3204 = vunpack.c.l.b16 %v917
        %v3205 = vunpack.c.h.b16 %v917
        %v3206 = vunpack.c.l.b16 %v918
        %v3207 = vunpack.c.h.b16 %v918
        %v3208 = vunpack.c.l.b16 %v919
        %v3209 = vunpack.c.h.b16 %v919
        %v3210 = vunpack.c.l.b16 %v920
        %v3211 = vunpack.c.h.b16 %v920
        %v3212 = vunpack.c.l.b16 %v921
        %v3213 = vunpack.c.h.b16 %v921
        %v3214 = vunpack.c.l.b16 %v922
        %v3215 = vunpack.c.h.b16 %v922
        %v3216 = vunpack.c.l.b16 %v923
        %v3217 = vunpack.c.h.b16 %v923
        %v3218 = vunpack.c.l.b16 %v924
        %v3219 = vunpack.c.h.b16 %v924
        %v3220 = vunpack.c.l.b16 %v925
        %v3221 = vunpack.c.h.b16 %v925
        %v3222 = vunpack.c.l.b16 %v926
        %v3223 = vunpack.c.h.b16 %v926
        %v3224 = vunpack.c.l.b16 %v927
        %v3225 = vunpack.c.h.b16 %v927
        %v3226 = vunpack.c.l.b16 %v928
        %v3227 = vunpack.c.h.b16 %v928
        %v3228 = vunpack.c.l.b16 %v929
        %v3229 = vunpack.c.h.b16 %v929
        %v3230 = vunpack.c.l.b16 %v930
        %v3231 = vunpack.c.h.b16 %v930
        %v3232 = vunpack.c.l.b16 %v931
        %v3233 = vunpack.c.h.b16 %v931
        %v3234 = vunpack.c.l.b16 %v932
        %v3235 = vunpack.c.h.b16 %v932
        %v3236 = vunpack.c.l.b16 %v933
        %v3237 = vunpack.c.h.b16 %v933
        %v3238 = vunpack.c.l.b16 %v934
        %v3239 = vunpack.c.h.b16 %v934
        %v3240 = vunpack.c.l.b16 %v935
        %v3241 = vunpack.c.h.b16 %v935
        %v3242 = vunpack.c.l.b16 %v936
        %v3243 = vunpack.c.h.b16 %v936
        %v3244 = vunpack.c.l.b16 %v937
        %v3245 = vunpack.c.h.b16 %v937
        %v3246 = vunpack.c.l.b16 %v938
        %v3247 = vunpack.c.h.b16 %v938
        %v3248 = vunpack.c.l.b16 %v939
        %v3249 = vunpack.c.h.b16 %v939
        %v3250 = vunpack.c.l.b16 %v940
        %v3251 = vunpack.c.h.b16 %v940
        %v3252 = vunpack.c.l.b16 %v941
        %v3253 = vunpack.c.h.b16 %v941
        %v3254 = vunpack.c.l.b16 %v942
        %v3255 = vunpack.c.h.b16 %v942
        %v3256 = vunpack.c.l.b16 %v943
        %v3257 = vunpack.c.h.b16 %v943
        %v3258 = vunpack.c.l.b16 %v944
        %v3259 = vunpack.c.h.b16 %v944
        %v3260 = vunpack.c.l.b16 %v945
        %v3261 = vunpack.c.h.b16 %v945
        %v3262 = vunpack.c.l.b16 %v946
        %v3263 = vunpack.c.h.b16 %v946
        %v3264 = vunpack.c.l.b16 %v947
        %v3265 = vunpack.c.h.b16 %v947
        %v3266 = vunpack.c.l.b16 %v948
        %v3267 = vunpack.c.h.b16 %v948
        %v3268 = vunpack.c.l.b16 %v949
        %v3269 = vunpack.c.h.b16 %v949
        %v3270 = vunpack.c.l.b16 %v950
        %v3271 = vunpack.c.h.b16 %v950
        %v3272 = vunpack.c.l.b16 %v951
        %v3273 = vunpack.c.h.b16 %v951
        %v3274 = vunpack.c.l.b16 %v952
        %v3275 = vunpack.c.h.b16 %v952
        %v3276 = vunpack.c.l.b16 %v953
        %v3277 = vunpack.c.h.b16 %v953
        %v3278 = vunpack.c.l.b16 %v954
        %v3279 = vunpack.c.h.b16 %v954
        %v3280 = vunpack.c.l.b16 %v955
        %v3281 = vunpack.c.h.b16 %v955
        %v3282 = vunpack.c.l.b16 %v956
        %v3283 = vunpack.c.h.b16 %v956
        %v3284 = vunpack.c.l.b16 %v957
        %v3285 = vunpack.c.h.b16 %v957
        %v3286 = vunpack.c.l.b16 %v958
        %v3287 = vunpack.c.h.b16 %v958
        %v3288 = vunpack.c.l.b16 %v959
        %v3289 = vunpack.c.h.b16 %v959
        %v3290 = vunpack.c.l.b16 %v960
        %v3291 = vunpack.c.h.b16 %v960
        %v3292 = vunpack.c.l.b16 %v961
        %v3293 = vunpack.c.h.b16 %v961
        %v3294 = vunpack.c.l.b16 %v962
        %v3295 = vunpack.c.h.b16 %v962
        %v3296 = vunpack.c.l.b16 %v963
        %v3297 = vunpack.c.h.b16 %v963
        %v3298 = vunpack.c.l.b16 %v964
        %v3299 = vunpack.c.h.b16 %v964
        %v3300 = vunpack.c.l.b16 %v965
        %v3301 = vunpack.c.h.b16 %v965
        %v3302 = vunpack.c.l.b16 %v966
        %v3303 = vunpack.c.h.b16 %v966
        %v3304 = vunpack.c.l.b16 %v967
        %v3305 = vunpack.c.h.b16 %v967
        %v3306 = vunpack.c.l.b16 %v968
        %v3307 = vunpack.c.h.b16 %v968
        %v3308 = vunpack.c.l.b16 %v969
        %v3309 = vunpack.c.h.b16 %v969
        %v3310 = vunpack.c.l.b16 %v970
        %v3311 = vunpack.c.h.b16 %v970
        %v3312 = vunpack.c.l.b16 %v971
        %v3313 = vunpack.c.h.b16 %v971
        %v3314 = vunpack.c.l.b16 %v972
        %v3315 = vunpack.c.h.b16 %v972
        %v3316 = vunpack.c.l.b16 %v973
        %v3317 = vunpack.c.h.b16 %v973
        %v3318 = vunpack.c.l.b16 %v974
        %v3319 = vunpack.c.h.b16 %v974
        %v3320 = vunpack.c.l.b16 %v975
        %v3321 = vunpack.c.h.b16 %v975
        %v3322 = vunpack.c.l.b16 %v976
        %v3323 = vunpack.c.h.b16 %v976
        %v3324 = vunpack.c.l.b16 %v977
        %v3325 = vunpack.c.h.b16 %v977
        %v3326 = vunpack.c.l.b16 %v978
        %v3327 = vunpack.c.h.b16 %v978
        %v3328 = vunpack.c.l.b16 %v979
        %v3329 = vunpack.c.h.b16 %v979
        %v3330 = vunpack.c.l.b16 %v980
        %v3331 = vunpack.c.h.b16 %v980
        %v3332 = vunpack.c.l.b16 %v981
        %v3333 = vunpack.c.h.b16 %v981
        %v3334 = vunpack.c.l.b16 %v982
        %v3335 = vunpack.c.h.b16 %v982
        %v3336 = vunpack.c.l.b16 %v983
        %v3337 = vunpack.c.h.b16 %v983
        %v3338 = vunpack.c.l.b16 %v984
        %v3339 = vunpack.c.h.b16 %v984
        %v3340 = vunpack.c.l.b16 %v985
        %v3341 = vunpack.c.h.b16 %v985
        %v3342 = vunpack.c.l.b16 %v986
        %v3343 = vunpack.c.h.b16 %v986
        %v3344 = vunpack.c.l.b16 %v987
        %v3345 = vunpack.c.h.b16 %v987
        %v3346 = vunpack.c.l.b16 %v988
        %v3347 = vunpack.c.h.b16 %v988
        %v3348 = vunpack.c.l.b16 %v989
        %v3349 = vunpack.c.h.b16 %v989
        %v3350 = vunpack.c.l.b16 %v990
        %v3351 = vunpack.c.h.b16 %v990
        %v3352 = vunpack.c.l.b16 %v991
        %v3353 = vunpack.c.h.b16 %v991
        %v3354 = vunpack.c.l.b16 %v992
        %v3355 = vunpack.c.h.b16 %v992
        %v3356 = vunpack.c.l.b16 %v993
        %v3357 = vunpack.c.h.b16 %v993
        %v3358 = vunpack.c.l.b16 %v994
        %v3359 = vunpack.c.h.b16 %v994
        %v3360 = vunpack.c.l.b16 %v995
        %v3361 = vunpack.c.h.b16 %v995
        %v3362 = vunpack.c.l.b16 %v996
        %v3363 = vunpack.c.h.b16 %v996
        %v3364 = vunpack.c.l.b16 %v997
        %v3365 = vunpack.c.h.b16 %v997
        %v3366 = vunpack.c.l.b16 %v998
        %v3367 = vunpack.c.h.b16 %v998
        %v3368 = vunpack.c.l.b16 %v999
        %v3369 = vunpack.c.h.b16 %v999
        %v3370 = vunpack.c.l.b16 %v1000
        %v3371 = vunpack.c.h.b16 %v1000
        %v3372 = vunpack.c.l.b16 %v1001
        %v3373 = vunpack.c.h.b16 %v1001
        %v3374 = vunpack.c.l.b16 %v1002
        %v3375 = vunpack.c.h.b16 %v1002
        %v3376 = vunpack.c.l.b16 %v1003
        %v3377 = vunpack.c.h.b16 %v1003
        %v3378 = vunpack.c.l.b16 %v1004
        %v3379 = vunpack.c.h.b16 %v1004
        %v3380 = vunpack.c.l.b16 %v1005
        %v3381 = vunpack.c.h.b16 %v1005
        %v3382 = vunpack.c.l.b16 %v1006
        %v3383 = vunpack.c.h.b16 %v1006
        %v3384 = vunpack.c.l.b16 %v1007
        %v3385 = vunpack.c.h.b16 %v1007
        %v3386 = vunpack.c.l.b16 %v1008
        %v3387 = vunpack.c.h.b16 %v1008
        %v3388 = vunpack.c.l.b16 %v1009
        %v3389 = vunpack.c.h.b16 %v1009
        %v3390 = vunpack.c.l.b16 %v1010
        %v3391 = vunpack.c.h.b16 %v1010
        %v3392 = vunpack.c.l.b16 %v1011
        %v3393 = vunpack.c.h.b16 %v1011
        %v3394 = vunpack.c.l.b16 %v1012
        %v3395 = vunpack.c.h.b16 %v1012
        %v3396 = vunpack.c.l.b16 %v1013
        %v3397 = vunpack.c.h.b16 %v1013
        %v3398 = vunpack.c.l.b16 %v1014
        %v3399 = vunpack.c.h.b16 %v1014
        %v3400 = vunpack.c.l.b16 %v1015
        %v3401 = vunpack.c.h.b16 %v1015
        %v3402 = vunpack.c.l.b16 %v1016
        %v3403 = vunpack.c.h.b16 %v1016
        %v3404 = vunpack.c.l.b16 %v1017
        %v3405 = vunpack.c.h.b16 %v1017
        %v3406 = vunpack.c.l.b16 %v1018
        %v3407 = vunpack.c.h.b16 %v1018
        %v3408 = vunpack.c.l.b16 %v1019
        %v3409 = vunpack.c.h.b16 %v1019
        %v3410 = vunpack.c.l.b16 %v1020
        %v3411 = vunpack.c.h.b16 %v1020
        %v3412 = vunpack.c.l.b16 %v1021
        %v3413 = vunpack.c.h.b16 %v1021
        %v3414 = vunpack.c.l.b16 %v1022
        %v3415 = vunpack.c.h.b16 %v1022
        %v3416 = vunpack.c.l.b16 %v1023
        %v3417 = vunpack.c.h.b16 %v1023
        %v3418 = vunpack.c.l.b16 %v1024
        %v3419 = vunpack.c.h.b16 %v1024
        %v3420 = vunpack.c.l.b16 %v1025
        %v3421 = vunpack.c.h.b16 %v1025
        %v3422 = vunpack.c.l.b16 %v1026
        %v3423 = vunpack.c.h.b16 %v1026
        %v3424 = vunpack.c.l.b16 %v1027
        %v3425 = vunpack.c.h.b16 %v1027
        %v3426 = vunpack.c.l.b16 %v1028
        %v3427 = vunpack.c.h.b16 %v1028
        %v3428 = vunpack.c.l.b16 %v1029
        %v3429 = vunpack.c.h.b16 %v1029
        %v3430 = vunpack.c.l.b16 %v1030
        %v3431 = vunpack.c.h.b16 %v1030
        %v3432 = vunpack.c.l.b16 %v1031
        %v3433 = vunpack.c.h.b16 %v1031
        %v3434 = vunpack.c.l.b16 %v1032
        %v3435 = vunpack.c.h.b16 %v1032
        %v3436 = vunpack.c.l.b16 %v1033
        %v3437 = vunpack.c.h.b16 %v1033
        %v3438 = vunpack.c.l.b16 %v1034
        %v3439 = vunpack.c.h.b16 %v1034
        %v3440 = vunpack.c.l.b16 %v1035
        %v3441 = vunpack.c.h.b16 %v1035
        %v3442 = vunpack.c.l.b16 %v1036
        %v3443 = vunpack.c.h.b16 %v1036
        %v3444 = vunpack.c.l.b16 %v1037
        %v3445 = vunpack.c.h.b16 %v1037
        %v3446 = vunpack.c.l.b16 %v1038
        %v3447 = vunpack.c.h.b16 %v1038
        %v3448 = vunpack.c.l.b16 %v1039
        %v3449 = vunpack.c.h.b16 %v1039
        %v3450 = vunpack.c.l.b16 %v1040
        %v3451 = vunpack.c.h.b16 %v1040
        %v3452 = vunpack.c.l.b16 %v1041
        %v3453 = vunpack.c.h.b16 %v1041
        %v3454 = vunpack.c.l.b16 %v1042
        %v3455 = vunpack.c.h.b16 %v1042
        %v3456 = vunpack.c.l.b16 %v1043
        %v3457 = vunpack.c.h.b16 %v1043
        %v3458 = vunpack.c.l.b16 %v1044
        %v3459 = vunpack.c.h.b16 %v1044
        %v3460 = vunpack.c.l.b16 %v1045
        %v3461 = vunpack.c.h.b16 %v1045
        %v3462 = vunpack.c.l.b16 %v1046
        %v3463 = vunpack.c.h.b16 %v1046
        %v3464 = vunpack.c.l.b16 %v1047
        %v3465 = vunpack.c.h.b16 %v1047
        %v3466 = vpack.c.b16 %v1946, %v1930
        %v3467 = vpack.c.b16 %v1947, %v1931
        %v3468 = vpack.c.b16 %v1948, %v1932
        %v3469 = vpack.c.b16 %v1949, %v1933
        %v3470 = vpack.c.b16 %v1950, %v1934
        %v3471 = vpack.c.b16 %v1951, %v1935
        %v3472 = vpack.c.b16 %v1952, %v1936
        %v3473 = vpack.c.b16 %v1953, %v1937
        %v3474 = vpack.c.b16 %v1954, %v1938
        %v3475 = vpack.c.b16 %v1955, %v1939
        %v3476 = vpack.c.b16 %v1956, %v1940
        %v3477 = vpack.c.b16 %v1957, %v1941
        %v3478 = vpack.c.b16 %v1958, %v1942
        %v3479 = vpack.c.b16 %v1959, %v1943
        %v3480 = vpack.c.b16 %v1960, %v1944
        %v3481 = vpack.c.b16 %v1961, %v1945
        %v3482 = vpack.c.b16 %v1978, %v1962
        %v3483 = vpack.c.b16 %v1979, %v1963
        %v3484 = vpack.c.b16 %v1980, %v1964
        %v3485 = vpack.c.b16 %v1981, %v1965
        %v3486 = vpack.c.b16 %v1982, %v1966
        %v3487 = vpack.c.b16 %v1983, %v1967
        %v3488 = vpack.c.b16 %v1984, %v1968
        %v3489 = vpack.c.b16 %v1985, %v1969
        %v3490 = vpack.c.b16 %v1986, %v1970
        %v3491 = vpack.c.b16 %v1987, %v1971
        %v3492 = vpack.c.b16 %v1988, %v1972
        %v3493 = vpack.c.b16 %v1989, %v1973
        %v3494 = vpack.c.b16 %v1990, %v1974
        %v3495 = vpack.c.b16 %v1991, %v1975
        %v3496 = vpack.c.b16 %v1992, %v1976
        %v3497 = vpack.c.b16 %v1993, %v1977
        %v3498 = vpack.c.b16 %v2010, %v1994
        %v3499 = vpack.c.b16 %v2011, %v1995
        %v3500 = vpack.c.b16 %v2012, %v1996
        %v3501 = vpack.c.b16 %v2013, %v1997
        %v3502 = vpack.c.b16 %v2014, %v1998
        %v3503 = vpack.c.b16 %v2015, %v1999
        %v3504 = vpack.c.b16 %v2016, %v2000
        %v3505 = vpack.c.b16 %v2017, %v2001
        %v3506 = vpack.c.b16 %v2018, %v2002
        %v3507 = vpack.c.b16 %v2019, %v2003
        %v3508 = vpack.c.b16 %v2020, %v2004
        %v3509 = vpack.c.b16 %v2021, %v2005
        %v3510 = vpack.c.b16 %v2022, %v2006
        %v3511 = vpack.c.b16 %v2023, %v2007
        %v3512 = vpack.c.b16 %v2024, %v2008
        %v3513 = vpack.c.b16 %v2025, %v2009
        %v3514 = vpack.c.b16 %v2042, %v2026
        %v3515 = vpack.c.b16 %v2043, %v2027
        %v3516 = vpack.c.b16 %v2044, %v2028
        %v3517 = vpack.c.b16 %v2045, %v2029
        %v3518 = vpack.c.b16 %v2046, %v2030
        %v3519 = vpack.c.b16 %v2047, %v2031
        %v3520 = vpack.c.b16 %v2048, %v2032
        %v3521 = vpack.c.b16 %v2049, %v2033
        %v3522 = vpack.c.b16 %v2050, %v2034
        %v3523 = vpack.c.b16 %v2051, %v2035
        %v3524 = vpack.c.b16 %v2052, %v2036
        %v3525 = vpack.c.b16 %v2053, %v2037
        %v3526 = vpack.c.b16 %v2054, %v2038
        %v3527 = vpack.c.b16 %v2055, %v2039
        %v3528 = vpack.c.b16 %v2056, %v2040
        %v3529 = vpack.c.b16 %v2057, %v2041
        %v3530 = vpack.c.b16 %v2074, %v2058
        %v3531 = vpack.c.b16 %v2075, %v2059
        %v3532 = vpack.c.b16 %v2076, %v2060
        %v3533 = vpack.c.b16 %v2077, %v2061
        %v3534 = vpack.c.b16 %v2078, %v2062
        %v3535 = vpack.c.b16 %v2079, %v2063
        %v3536 = vpack.c.b16 %v2080, %v2064
        %v3537 = vpack.c.b16 %v2081, %v2065
        %v3538 = vpack.c.b16 %v2082, %v2066
        %v3539 = vpack.c.b16 %v2083, %v2067
        %v3540 = vpack.c.b16 %v2084, %v2068
        %v3541 = vpack.c.b16 %v2085, %v2069
        %v3542 = vpack.c.b16 %v2086, %v2070
        %v3543 = vpack.c.b16 %v2087, %v2071
        %v3544 = vpack.c.b16 %v2088, %v2072
        %v3545 = vpack.c.b16 %v2089, %v2073
        %v3546 = vpack.c.b16 %v2106, %v2090
        %v3547 = vpack.c.b16 %v2107, %v2091
        %v3548 = vpack.c.b16 %v2108, %v2092
        %v3549 = vpack.c.b16 %v2109, %v2093
        %v3550 = vpack.c.b16 %v2110, %v2094
        %v3551 = vpack.c.b16 %v2111, %v2095
        %v3552 = vpack.c.b16 %v2112, %v2096
        %v3553 = vpack.c.b16 %v2113, %v2097
        %v3554 = vpack.c.b16 %v2114, %v2098
        %v3555 = vpack.c.b16 %v2115, %v2099
        %v3556 = vpack.c.b16 %v2116, %v2100
        %v3557 = vpack.c.b16 %v2117, %v2101
        %v3558 = vpack.c.b16 %v2118, %v2102
        %v3559 = vpack.c.b16 %v2119, %v2103
        %v3560 = vpack.c.b16 %v2120, %v2104
        %v3561 = vpack.c.b16 %v2121, %v2105
        %v3562 = vpack.c.b16 %v2138, %v2122
        %v3563 = vpack.c.b16 %v2139, %v2123
        %v3564 = vpack.c.b16 %v2140, %v2124
        %v3565 = vpack.c.b16 %v2141, %v2125
        %v3566 = vpack.c.b16 %v2142, %v2126
        %v3567 = vpack.c.b16 %v2143, %v2127
        %v3568 = vpack.c.b16 %v2144, %v2128
        %v3569 = vpack.c.b16 %v2145, %v2129
        %v3570 = vpack.c.b16 %v2146, %v2130
        %v3571 = vpack.c.b16 %v2147, %v2131
        %v3572 = vpack.c.b16 %v2148, %v2132
        %v3573 = vpack.c.b16 %v2149, %v2133
        %v3574 = vpack.c.b16 %v2150, %v2134
        %v3575 = vpack.c.b16 %v2151, %v2135
        %v3576 = vpack.c.b16 %v2152, %v2136
        %v3577 = vpack.c.b16 %v2153, %v2137
        %v3578 = vpack.c.b16 %v2170, %v2154
        %v3579 = vpack.c.b16 %v2171, %v2155
        %v3580 = vpack.c.b16 %v2172, %v2156
        %v3581 = vpack.c.b16 %v2173, %v2157
        %v3582 = vpack.c.b16 %v2174, %v2158
        %v3583 = vpack.c.b16 %v2175, %v2159
        %v3584 = vpack.c.b16 %v2176, %v2160
        %v3585 = vpack.c.b16 %v2177, %v2161
        %v3586 = vpack.c.b16 %v2178, %v2162
        %v3587 = vpack.c.b16 %v2179, %v2163
        %v3588 = vpack.c.b16 %v2180, %v2164
        %v3589 = vpack.c.b16 %v2181, %v2165
        %v3590 = vpack.c.b16 %v2182, %v2166
        %v3591 = vpack.c.b16 %v2183, %v2167
        %v3592 = vpack.c.b16 %v2184, %v2168
        %v3593 = vpack.c.b16 %v2185, %v2169
        %v3594 = vpack.c.b16 %v2202, %v2186
        %v3595 = vpack.c.b16 %v2203, %v2187
        %v3596 = vpack.c.b16 %v2204, %v2188
        %v3597 = vpack.c.b16 %v2205, %v2189
        %v3598 = vpack.c.b16 %v2206, %v2190
        %v3599 = vpack.c.b16 %v2207, %v2191
        %v3600 = vpack.c.b16 %v2208, %v2192
        %v3601 = vpack.c.b16 %v2209, %v2193
        %v3602 = vpack.c.b16 %v2210, %v2194
        %v3603 = vpack.c.b16 %v2211, %v2195
        %v3604 = vpack.c.b16 %v2212, %v2196
        %v3605 = vpack.c.b16 %v2213, %v2197
        %v3606 = vpack.c.b16 %v2214, %v2198
        %v3607 = vpack.c.b16 %v2215, %v2199
        %v3608 = vpack.c.b16 %v2216, %v2200
        %v3609 = vpack.c.b16 %v2217, %v2201
        %v3610 = vpack.c.b16 %v2234, %v2218
        %v3611 = vpack.c.b16 %v2235, %v2219
        %v3612 = vpack.c.b16 %v2236, %v2220
        %v3613 = vpack.c.b16 %v2237, %v2221
        %v3614 = vpack.c.b16 %v2238, %v2222
        %v3615 = vpack.c.b16 %v2239, %v2223
        %v3616 = vpack.c.b16 %v2240, %v2224
        %v3617 = vpack.c.b16 %v2241, %v2225
        %v3618 = vpack.c.b16 %v2242, %v2226
        %v3619 = vpack.c.b16 %v2243, %v2227
        %v3620 = vpack.c.b16 %v2244, %v2228
        %v3621 = vpack.c.b16 %v2245, %v2229
        %v3622 = vpack.c.b16 %v2246, %v2230
        %v3623 = vpack.c.b16 %v2247, %v2231
        %v3624 = vpack.c.b16 %v2248, %v2232
        %v3625 = vpack.c.b16 %v2249, %v2233
        %v3626 = vpack.c.b16 %v2266, %v2250
        %v3627 = vpack.c.b16 %v2267, %v2251
        %v3628 = vpack.c.b16 %v2268, %v2252
        %v3629 = vpack.c.b16 %v2269, %v2253
        %v3630 = vpack.c.b16 %v2270, %v2254
        %v3631 = vpack.c.b16 %v2271, %v2255
        %v3632 = vpack.c.b16 %v2272, %v2256
        %v3633 = vpack.c.b16 %v2273, %v2257
        %v3634 = vpack.c.b16 %v2274, %v2258
        %v3635 = vpack.c.b16 %v2275, %v2259
        %v3636 = vpack.c.b16 %v2276, %v2260
        %v3637 = vpack.c.b16 %v2277, %v2261
        %v3638 = vpack.c.b16 %v2278, %v2262
        %v3639 = vpack.c.b16 %v2279, %v2263
        %v3640 = vpack.c.b16 %v2280, %v2264
        %v3641 = vpack.c.b16 %v2281, %v2265
        %v3642 = vpack.c.b16 %v2298, %v2282
        %v3643 = vpack.c.b16 %v2299, %v2283
        %v3644 = vpack.c.b16 %v2300, %v2284
        %v3645 = vpack.c.b16 %v2301, %v2285
        %v3646 = vpack.c.b16 %v2302, %v2286
        %v3647 = vpack.c.b16 %v2303, %v2287
        %v3648 = vpack.c.b16 %v2304, %v2288
        %v3649 = vpack.c.b16 %v2305, %v2289
        %v3650 = vpack.c.b16 %v2306, %v2290
        %v3651 = vpack.c.b16 %v2307, %v2291
        %v3652 = vpack.c.b16 %v2308, %v2292
        %v3653 = vpack.c.b16 %v2309, %v2293
        %v3654 = vpack.c.b16 %v2310, %v2294
        %v3655 = vpack.c.b16 %v2311, %v2295
        %v3656 = vpack.c.b16 %v2312, %v2296
        %v3657 = vpack.c.b16 %v2313, %v2297
        %v3658 = vpack.c.b16 %v2330, %v2314
        %v3659 = vpack.c.b16 %v2331, %v2315
        %v3660 = vpack.c.b16 %v2332, %v2316
        %v3661 = vpack.c.b16 %v2333, %v2317
        %v3662 = vpack.c.b16 %v2334, %v2318
        %v3663 = vpack.c.b16 %v2335, %v2319
        %v3664 = vpack.c.b16 %v2336, %v2320
        %v3665 = vpack.c.b16 %v2337, %v2321
        %v3666 = vpack.c.b16 %v2338, %v2322
        %v3667 = vpack.c.b16 %v2339, %v2323
        %v3668 = vpack.c.b16 %v2340, %v2324
        %v3669 = vpack.c.b16 %v2341, %v2325
        %v3670 = vpack.c.b16 %v2342, %v2326
        %v3671 = vpack.c.b16 %v2343, %v2327
        %v3672 = vpack.c.b16 %v2344, %v2328
        %v3673 = vpack.c.b16 %v2345, %v2329
        %v3674 = vpack.c.b16 %v2362, %v2346
        %v3675 = vpack.c.b16 %v2363, %v2347
        %v3676 = vpack.c.b16 %v2364, %v2348
        %v3677 = vpack.c.b16 %v2365, %v2349
        %v3678 = vpack.c.b16 %v2366, %v2350
        %v3679 = vpack.c.b16 %v2367, %v2351
        %v3680 = vpack.c.b16 %v2368, %v2352
        %v3681 = vpack.c.b16 %v2369, %v2353
        %v3682 = vpack.c.b16 %v2370, %v2354
        %v3683 = vpack.c.b16 %v2371, %v2355
        %v3684 = vpack.c.b16 %v2372, %v2356
        %v3685 = vpack.c.b16 %v2373, %v2357
        %v3686 = vpack.c.b16 %v2374, %v2358
        %v3687 = vpack.c.b16 %v2375, %v2359
        %v3688 = vpack.c.b16 %v2376, %v2360
        %v3689 = vpack.c.b16 %v2377, %v2361
        %v3690 = vpack.c.b16 %v2394, %v2378
        %v3691 = vpack.c.b16 %v2395, %v2379
        %v3692 = vpack.c.b16 %v2396, %v2380
        %v3693 = vpack.c.b16 %v2397, %v2381
        %v3694 = vpack.c.b16 %v2398, %v2382
        %v3695 = vpack.c.b16 %v2399, %v2383
        %v3696 = vpack.c.b16 %v2400, %v2384
        %v3697 = vpack.c.b16 %v2401, %v2385
        %v3698 = vpack.c.b16 %v2402, %v2386
        %v3699 = vpack.c.b16 %v2403, %v2387
        %v3700 = vpack.c.b16 %v2404, %v2388
        %v3701 = vpack.c.b16 %v2405, %v2389
        %v3702 = vpack.c.b16 %v2406, %v2390
        %v3703 = vpack.c.b16 %v2407, %v2391
        %v3704 = vpack.c.b16 %v2408, %v2392
        %v3705 = vpack.c.b16 %v2409, %v2393
        %v3706 = vpack.c.b16 %v2426, %v2410
        %v3707 = vpack.c.b16 %v2427, %v2411
        %v3708 = vpack.c.b16 %v2428, %v2412
        %v3709 = vpack.c.b16 %v2429, %v2413
        %v3710 = vpack.c.b16 %v2430, %v2414
        %v3711 = vpack.c.b16 %v2431, %v2415
        %v3712 = vpack.c.b16 %v2432, %v2416
        %v3713 = vpack.c.b16 %v2433, %v2417
        %v3714 = vpack.c.b16 %v2434, %v2418
        %v3715 = vpack.c.b16 %v2435, %v2419
        %v3716 = vpack.c.b16 %v2436, %v2420
        %v3717 = vpack.c.b16 %v2437, %v2421
        %v3718 = vpack.c.b16 %v2438, %v2422
        %v3719 = vpack.c.b16 %v2439, %v2423
        %v3720 = vpack.c.b16 %v2440, %v2424
        %v3721 = vpack.c.b16 %v2441, %v2425
        %v3722 = vpack.c.b16 %v2458, %v2442
        %v3723 = vpack.c.b16 %v2459, %v2443
        %v3724 = vpack.c.b16 %v2460, %v2444
        %v3725 = vpack.c.b16 %v2461, %v2445
        %v3726 = vpack.c.b16 %v2462, %v2446
        %v3727 = vpack.c.b16 %v2463, %v2447
        %v3728 = vpack.c.b16 %v2464, %v2448
        %v3729 = vpack.c.b16 %v2465, %v2449
        %v3730 = vpack.c.b16 %v2466, %v2450
        %v3731 = vpack.c.b16 %v2467, %v2451
        %v3732 = vpack.c.b16 %v2468, %v2452
        %v3733 = vpack.c.b16 %v2469, %v2453
        %v3734 = vpack.c.b16 %v2470, %v2454
        %v3735 = vpack.c.b16 %v2471, %v2455
        %v3736 = vpack.c.b16 %v2472, %v2456
        %v3737 = vpack.c.b16 %v2473, %v2457
        %v3738 = vpack.c.b16 %v2490, %v2474
        %v3739 = vpack.c.b16 %v2491, %v2475
        %v3740 = vpack.c.b16 %v2492, %v2476
        %v3741 = vpack.c.b16 %v2493, %v2477
        %v3742 = vpack.c.b16 %v2494, %v2478
        %v3743 = vpack.c.b16 %v2495, %v2479
        %v3744 = vpack.c.b16 %v2496, %v2480
        %v3745 = vpack.c.b16 %v2497, %v2481
        %v3746 = vpack.c.b16 %v2498, %v2482
        %v3747 = vpack.c.b16 %v2499, %v2483
        %v3748 = vpack.c.b16 %v2500, %v2484
        %v3749 = vpack.c.b16 %v2501, %v2485
        %v3750 = vpack.c.b16 %v2502, %v2486
        %v3751 = vpack.c.b16 %v2503, %v2487
        %v3752 = vpack.c.b16 %v2504, %v2488
        %v3753 = vpack.c.b16 %v2505, %v2489
        %v3754 = vpack.c.b16 %v2522, %v2506
        %v3755 = vpack.c.b16 %v2523, %v2507
        %v3756 = vpack.c.b16 %v2524, %v2508
        %v3757 = vpack.c.b16 %v2525, %v2509
        %v3758 = vpack.c.b16 %v2526, %v2510
        %v3759 = vpack.c.b16 %v2527, %v2511
        %v3760 = vpack.c.b16 %v2528, %v2512
        %v3761 = vpack.c.b16 %v2529, %v2513
        %v3762 = vpack.c.b16 %v2530, %v2514
        %v3763 = vpack.c.b16 %v2531, %v2515
        %v3764 = vpack.c.b16 %v2532, %v2516
        %v3765 = vpack.c.b16 %v2533, %v2517
        %v3766 = vpack.c.b16 %v2534, %v2518
        %v3767 = vpack.c.b16 %v2535, %v2519
        %v3768 = vpack.c.b16 %v2536, %v2520
        %v3769 = vpack.c.b16 %v2537, %v2521
        %v3770 = vpack.c.b16 %v2554, %v2538
        %v3771 = vpack.c.b16 %v2555, %v2539
        %v3772 = vpack.c.b16 %v2556, %v2540
        %v3773 = vpack.c.b16 %v2557, %v2541
        %v3774 = vpack.c.b16 %v2558, %v2542
        %v3775 = vpack.c.b16 %v2559, %v2543
        %v3776 = vpack.c.b16 %v2560, %v2544
        %v3777 = vpack.c.b16 %v2561, %v2545
        %v3778 = vpack.c.b16 %v2562, %v2546
        %v3779 = vpack.c.b16 %v2563, %v2547
        %v3780 = vpack.c.b16 %v2564, %v2548
        %v3781 = vpack.c.b16 %v2565, %v2549
        %v3782 = vpack.c.b16 %v2566, %v2550
        %v3783 = vpack.c.b16 %v2567, %v2551
        %v3784 = vpack.c.b16 %v2568, %v2552
        %v3785 = vpack.c.b16 %v2569, %v2553
        %v3786 = vpack.c.b16 %v2586, %v2570
        %v3787 = vpack.c.b16 %v2587, %v2571
        %v3788 = vpack.c.b16 %v2588, %v2572
        %v3789 = vpack.c.b16 %v2589, %v2573
        %v3790 = vpack.c.b16 %v2590, %v2574
        %v3791 = vpack.c.b16 %v2591, %v2575
        %v3792 = vpack.c.b16 %v2592, %v2576
        %v3793 = vpack.c.b16 %v2593, %v2577
        %v3794 = vpack.c.b16 %v2594, %v2578
        %v3795 = vpack.c.b16 %v2595, %v2579
        %v3796 = vpack.c.b16 %v2596, %v2580
        %v3797 = vpack.c.b16 %v2597, %v2581
        %v3798 = vpack.c.b16 %v2598, %v2582
        %v3799 = vpack.c.b16 %v2599, %v2583
        %v3800 = vpack.c.b16 %v2600, %v2584
        %v3801 = vpack.c.b16 %v2601, %v2585
        %v3802 = vpack.c.b16 %v2618, %v2602
        %v3803 = vpack.c.b16 %v2619, %v2603
        %v3804 = vpack.c.b16 %v2620, %v2604
        %v3805 = vpack.c.b16 %v2621, %v2605
        %v3806 = vpack.c.b16 %v2622, %v2606
        %v3807 = vpack.c.b16 %v2623, %v2607
        %v3808 = vpack.c.b16 %v2624, %v2608
        %v3809 = vpack.c.b16 %v2625, %v2609
        %v3810 = vpack.c.b16 %v2626, %v2610
        %v3811 = vpack.c.b16 %v2627, %v2611
        %v3812 = vpack.c.b16 %v2628, %v2612
        %v3813 = vpack.c.b16 %v2629, %v2613
        %v3814 = vpack.c.b16 %v2630, %v2614
        %v3815 = vpack.c.b16 %v2631, %v2615
        %v3816 = vpack.c.b16 %v2632, %v2616
        %v3817 = vpack.c.b16 %v2633, %v2617
        %v3818 = vpack.c.b16 %v2650, %v2634
        %v3819 = vpack.c.b16 %v2651, %v2635
        %v3820 = vpack.c.b16 %v2652, %v2636
        %v3821 = vpack.c.b16 %v2653, %v2637
        %v3822 = vpack.c.b16 %v2654, %v2638
        %v3823 = vpack.c.b16 %v2655, %v2639
        %v3824 = vpack.c.b16 %v2656, %v2640
        %v3825 = vpack.c.b16 %v2657, %v2641
        %v3826 = vpack.c.b16 %v2658, %v2642
        %v3827 = vpack.c.b16 %v2659, %v2643
        %v3828 = vpack.c.b16 %v2660, %v2644
        %v3829 = vpack.c.b16 %v2661, %v2645
        %v3830 = vpack.c.b16 %v2662, %v2646
        %v3831 = vpack.c.b16 %v2663, %v2647
        %v3832 = vpack.c.b16 %v2664, %v2648
        %v3833 = vpack.c.b16 %v2665, %v2649
        %v3834 = vpack.c.b16 %v2682, %v2666
        %v3835 = vpack.c.b16 %v2683, %v2667
        %v3836 = vpack.c.b16 %v2684, %v2668
        %v3837 = vpack.c.b16 %v2685, %v2669
        %v3838 = vpack.c.b16 %v2686, %v2670
        %v3839 = vpack.c.b16 %v2687, %v2671
        %v3840 = vpack.c.b16 %v2688, %v2672
        %v3841 = vpack.c.b16 %v2689, %v2673
        %v3842 = vpack.c.b16 %v2690, %v2674
        %v3843 = vpack.c.b16 %v2691, %v2675
        %v3844 = vpack.c.b16 %v2692, %v2676
        %v3845 = vpack.c.b16 %v2693, %v2677
        %v3846 = vpack.c.b16 %v2694, %v2678
        %v3847 = vpack.c.b16 %v2695, %v2679
        %v3848 = vpack.c.b16 %v2696, %v2680
        %v3849 = vpack.c.b16 %v2697, %v2681
        %v3850 = vpack.c.b16 %v2714, %v2698
        %v3851 = vpack.c.b16 %v2715, %v2699
        %v3852 = vpack.c.b16 %v2716, %v2700
        %v3853 = vpack.c.b16 %v2717, %v2701
        %v3854 = vpack.c.b16 %v2718, %v2702
        %v3855 = vpack.c.b16 %v2719, %v2703
        %v3856 = vpack.c.b16 %v2720, %v2704
        %v3857 = vpack.c.b16 %v2721, %v2705
        %v3858 = vpack.c.b16 %v2722, %v2706
        %v3859 = vpack.c.b16 %v2723, %v2707
        %v3860 = vpack.c.b16 %v2724, %v2708
        %v3861 = vpack.c.b16 %v2725, %v2709
        %v3862 = vpack.c.b16 %v2726, %v2710
        %v3863 = vpack.c.b16 %v2727, %v2711
        %v3864 = vpack.c.b16 %v2728, %v2712
        %v3865 = vpack.c.b16 %v2729, %v2713
        %v3866 = vpack.c.b16 %v2746, %v2730
        %v3867 = vpack.c.b16 %v2747, %v2731
        %v3868 = vpack.c.b16 %v2748, %v2732
        %v3869 = vpack.c.b16 %v2749, %v2733
        %v3870 = vpack.c.b16 %v2750, %v2734
        %v3871 = vpack.c.b16 %v2751, %v2735
        %v3872 = vpack.c.b16 %v2752, %v2736
        %v3873 = vpack.c.b16 %v2753, %v2737
        %v3874 = vpack.c.b16 %v2754, %v2738
        %v3875 = vpack.c.b16 %v2755, %v2739
        %v3876 = vpack.c.b16 %v2756, %v2740
        %v3877 = vpack.c.b16 %v2757, %v2741
        %v3878 = vpack.c.b16 %v2758, %v2742
        %v3879 = vpack.c.b16 %v2759, %v2743
        %v3880 = vpack.c.b16 %v2760, %v2744
        %v3881 = vpack.c.b16 %v2761, %v2745
        %v3882 = vpack.c.b16 %v2778, %v2762
        %v3883 = vpack.c.b16 %v2779, %v2763
        %v3884 = vpack.c.b16 %v2780, %v2764
        %v3885 = vpack.c.b16 %v2781, %v2765
        %v3886 = vpack.c.b16 %v2782, %v2766
        %v3887 = vpack.c.b16 %v2783, %v2767
        %v3888 = vpack.c.b16 %v2784, %v2768
        %v3889 = vpack.c.b16 %v2785, %v2769
        %v3890 = vpack.c.b16 %v2786, %v2770
        %v3891 = vpack.c.b16 %v2787, %v2771
        %v3892 = vpack.c.b16 %v2788, %v2772
        %v3893 = vpack.c.b16 %v2789, %v2773
        %v3894 = vpack.c.b16 %v2790, %v2774
        %v3895 = vpack.c.b16 %v2791, %v2775
        %v3896 = vpack.c.b16 %v2792, %v2776
        %v3897 = vpack.c.b16 %v2793, %v2777
        %v3898 = vpack.c.b16 %v2810, %v2794
        %v3899 = vpack.c.b16 %v2811, %v2795
        %v3900 = vpack.c.b16 %v2812, %v2796
        %v3901 = vpack.c.b16 %v2813, %v2797
        %v3902 = vpack.c.b16 %v2814, %v2798
        %v3903 = vpack.c.b16 %v2815, %v2799
        %v3904 = vpack.c.b16 %v2816, %v2800
        %v3905 = vpack.c.b16 %v2817, %v2801
        %v3906 = vpack.c.b16 %v2818, %v2802
        %v3907 = vpack.c.b16 %v2819, %v2803
        %v3908 = vpack.c.b16 %v2820, %v2804
        %v3909 = vpack.c.b16 %v2821, %v2805
        %v3910 = vpack.c.b16 %v2822, %v2806
        %v3911 = vpack.c.b16 %v2823, %v2807
        %v3912 = vpack.c.b16 %v2824, %v2808
        %v3913 = vpack.c.b16 %v2825, %v2809
        %v3914 = vpack.c.b16 %v2842, %v2826
        %v3915 = vpack.c.b16 %v2843, %v2827
        %v3916 = vpack.c.b16 %v2844, %v2828
        %v3917 = vpack.c.b16 %v2845, %v2829
        %v3918 = vpack.c.b16 %v2846, %v2830
        %v3919 = vpack.c.b16 %v2847, %v2831
        %v3920 = vpack.c.b16 %v2848, %v2832
        %v3921 = vpack.c.b16 %v2849, %v2833
        %v3922 = vpack.c.b16 %v2850, %v2834
        %v3923 = vpack.c.b16 %v2851, %v2835
        %v3924 = vpack.c.b16 %v2852, %v2836
        %v3925 = vpack.c.b16 %v2853, %v2837
        %v3926 = vpack.c.b16 %v2854, %v2838
        %v3927 = vpack.c.b16 %v2855, %v2839
        %v3928 = vpack.c.b16 %v2856, %v2840
        %v3929 = vpack.c.b16 %v2857, %v2841
        %v3930 = vpack.c.b16 %v2874, %v2858
        %v3931 = vpack.c.b16 %v2875, %v2859
        %v3932 = vpack.c.b16 %v2876, %v2860
        %v3933 = vpack.c.b16 %v2877, %v2861
        %v3934 = vpack.c.b16 %v2878, %v2862
        %v3935 = vpack.c.b16 %v2879, %v2863
        %v3936 = vpack.c.b16 %v2880, %v2864
        %v3937 = vpack.c.b16 %v2881, %v2865
        %v3938 = vpack.c.b16 %v2882, %v2866
        %v3939 = vpack.c.b16 %v2883, %v2867
        %v3940 = vpack.c.b16 %v2884, %v2868
        %v3941 = vpack.c.b16 %v2885, %v2869
        %v3942 = vpack.c.b16 %v2886, %v2870
        %v3943 = vpack.c.b16 %v2887, %v2871
        %v3944 = vpack.c.b16 %v2888, %v2872
        %v3945 = vpack.c.b16 %v2889, %v2873
        %v3946 = vpack.c.b16 %v2906, %v2890
        %v3947 = vpack.c.b16 %v2907, %v2891
        %v3948 = vpack.c.b16 %v2908, %v2892
        %v3949 = vpack.c.b16 %v2909, %v2893
        %v3950 = vpack.c.b16 %v2910, %v2894
        %v3951 = vpack.c.b16 %v2911, %v2895
        %v3952 = vpack.c.b16 %v2912, %v2896
        %v3953 = vpack.c.b16 %v2913, %v2897
        %v3954 = vpack.c.b16 %v2914, %v2898
        %v3955 = vpack.c.b16 %v2915, %v2899
        %v3956 = vpack.c.b16 %v2916, %v2900
        %v3957 = vpack.c.b16 %v2917, %v2901
        %v3958 = vpack.c.b16 %v2918, %v2902
        %v3959 = vpack.c.b16 %v2919, %v2903
        %v3960 = vpack.c.b16 %v2920, %v2904
        %v3961 = vpack.c.b16 %v2921, %v2905
        %v3962 = vpack.c.b16 %v2938, %v2922
        %v3963 = vpack.c.b16 %v2939, %v2923
        %v3964 = vpack.c.b16 %v2940, %v2924
        %v3965 = vpack.c.b16 %v2941, %v2925
        %v3966 = vpack.c.b16 %v2942, %v2926
        %v3967 = vpack.c.b16 %v2943, %v2927
        %v3968 = vpack.c.b16 %v2944, %v2928
        %v3969 = vpack.c.b16 %v2945, %v2929
        %v3970 = vpack.c.b16 %v2946, %v2930
        %v3971 = vpack.c.b16 %v2947, %v2931
        %v3972 = vpack.c.b16 %v2948, %v2932
        %v3973 = vpack.c.b16 %v2949, %v2933
        %v3974 = vpack.c.b16 %v2950, %v2934
        %v3975 = vpack.c.b16 %v2951, %v2935
        %v3976 = vpack.c.b16 %v2952, %v2936
        %v3977 = vpack.c.b16 %v2953, %v2937
        %v3978 = vpack.c.b16 %v2970, %v2954
        %v3979 = vpack.c.b16 %v2971, %v2955
        %v3980 = vpack.c.b16 %v2972, %v2956
        %v3981 = vpack.c.b16 %v2973, %v2957
        %v3982 = vpack.c.b16 %v2974, %v2958
        %v3983 = vpack.c.b16 %v2975, %v2959
        %v3984 = vpack.c.b16 %v2976, %v2960
        %v3985 = vpack.c.b16 %v2977, %v2961
        %v3986 = vpack.c.b16 %v2978, %v2962
        %v3987 = vpack.c.b16 %v2979, %v2963
        %v3988 = vpack.c.b16 %v2980, %v2964
        %v3989 = vpack.c.b16 %v2981, %v2965
        %v3990 = vpack.c.b16 %v2982, %v2966
        %v3991 = vpack.c.b16 %v2983, %v2967
        %v3992 = vpack.c.b16 %v2984, %v2968
        %v3993 = vpack.c.b16 %v2985, %v2969
        %v3994 = vpack.c.b16 %v3002, %v2986
        %v3995 = vpack.c.b16 %v3003, %v2987
        %v3996 = vpack.c.b16 %v3004, %v2988
        %v3997 = vpack.c.b16 %v3005, %v2989
        %v3998 = vpack.c.b16 %v3006, %v2990
        %v3999 = vpack.c.b16 %v3007, %v2991
        %v4000 = vpack.c.b16 %v3008, %v2992
        %v4001 = vpack.c.b16 %v3009, %v2993
        %v4002 = vpack.c.b16 %v3010, %v2994
        %v4003 = vpack.c.b16 %v3011, %v2995
        %v4004 = vpack.c.b16 %v3012, %v2996
        %v4005 = vpack.c.b16 %v3013, %v2997
        %v4006 = vpack.c.b16 %v3014, %v2998
        %v4007 = vpack.c.b16 %v3015, %v2999
        %v4008 = vpack.c.b16 %v3016, %v3000
        %v4009 = vpack.c.b16 %v3017, %v3001
        %v4010 = vpack.c.b16 %v3034, %v3018
        %v4011 = vpack.c.b16 %v3035, %v3019
        %v4012 = vpack.c.b16 %v3036, %v3020
        %v4013 = vpack.c.b16 %v3037, %v3021
        %v4014 = vpack.c.b16 %v3038, %v3022
        %v4015 = vpack.c.b16 %v3039, %v3023
        %v4016 = vpack.c.b16 %v3040, %v3024
        %v4017 = vpack.c.b16 %v3041, %v3025
        %v4018 = vpack.c.b16 %v3042, %v3026
        %v4019 = vpack.c.b16 %v3043, %v3027
        %v4020 = vpack.c.b16 %v3044, %v3028
        %v4021 = vpack.c.b16 %v3045, %v3029
        %v4022 = vpack.c.b16 %v3046, %v3030
        %v4023 = vpack.c.b16 %v3047, %v3031
        %v4024 = vpack.c.b16 %v3048, %v3032
        %v4025 = vpack.c.b16 %v3049, %v3033
        %v4026 = vpack.c.b16 %v3066, %v3050
        %v4027 = vpack.c.b16 %v3067, %v3051
        %v4028 = vpack.c.b16 %v3068, %v3052
        %v4029 = vpack.c.b16 %v3069, %v3053
        %v4030 = vpack.c.b16 %v3070, %v3054
        %v4031 = vpack.c.b16 %v3071, %v3055
        %v4032 = vpack.c.b16 %v3072, %v3056
        %v4033 = vpack.c.b16 %v3073, %v3057
        %v4034 = vpack.c.b16 %v3074, %v3058
        %v4035 = vpack.c.b16 %v3075, %v3059
        %v4036 = vpack.c.b16 %v3076, %v3060
        %v4037 = vpack.c.b16 %v3077, %v3061
        %v4038 = vpack.c.b16 %v3078, %v3062
        %v4039 = vpack.c.b16 %v3079, %v3063
        %v4040 = vpack.c.b16 %v3080, %v3064
        %v4041 = vpack.c.b16 %v3081, %v3065
        %v4042 = vpack.c.b16 %v3098, %v3082
        %v4043 = vpack.c.b16 %v3099, %v3083
        %v4044 = vpack.c.b16 %v3100, %v3084
        %v4045 = vpack.c.b16 %v3101, %v3085
        %v4046 = vpack.c.b16 %v3102, %v3086
        %v4047 = vpack.c.b16 %v3103, %v3087
        %v4048 = vpack.c.b16 %v3104, %v3088
        %v4049 = vpack.c.b16 %v3105, %v3089
        %v4050 = vpack.c.b16 %v3106, %v3090
        %v4051 = vpack.c.b16 %v3107, %v3091
        %v4052 = vpack.c.b16 %v3108, %v3092
        %v4053 = vpack.c.b16 %v3109, %v3093
        %v4054 = vpack.c.b16 %v3110, %v3094
        %v4055 = vpack.c.b16 %v3111, %v3095
        %v4056 = vpack.c.b16 %v3112, %v3096
        %v4057 = vpack.c.b16 %v3113, %v3097
        %v4058 = vpack.c.b16 %v3130, %v3114
        %v4059 = vpack.c.b16 %v3131, %v3115
        %v4060 = vpack.c.b16 %v3132, %v3116
        %v4061 = vpack.c.b16 %v3133, %v3117
        %v4062 = vpack.c.b16 %v3134, %v3118
        %v4063 = vpack.c.b16 %v3135, %v3119
        %v4064 = vpack.c.b16 %v3136, %v3120
        %v4065 = vpack.c.b16 %v3137, %v3121
        %v4066 = vpack.c.b16 %v3138, %v3122
        %v4067 = vpack.c.b16 %v3139, %v3123
        %v4068 = vpack.c.b16 %v3140, %v3124
        %v4069 = vpack.c.b16 %v3141, %v3125
        %v4070 = vpack.c.b16 %v3142, %v3126
        %v4071 = vpack.c.b16 %v3143, %v3127
        %v4072 = vpack.c.b16 %v3144, %v3128
        %v4073 = vpack.c.b16 %v3145, %v3129
        %v4074 = vpack.c.b16 %v3162, %v3146
        %v4075 = vpack.c.b16 %v3163, %v3147
        %v4076 = vpack.c.b16 %v3164, %v3148
        %v4077 = vpack.c.b16 %v3165, %v3149
        %v4078 = vpack.c.b16 %v3166, %v3150
        %v4079 = vpack.c.b16 %v3167, %v3151
        %v4080 = vpack.c.b16 %v3168, %v3152
        %v4081 = vpack.c.b16 %v3169, %v3153
        %v4082 = vpack.c.b16 %v3170, %v3154
        %v4083 = vpack.c.b16 %v3171, %v3155
        %v4084 = vpack.c.b16 %v3172, %v3156
        %v4085 = vpack.c.b16 %v3173, %v3157
        %v4086 = vpack.c.b16 %v3174, %v3158
        %v4087 = vpack.c.b16 %v3175, %v3159
        %v4088 = vpack.c.b16 %v3176, %v3160
        %v4089 = vpack.c.b16 %v3177, %v3161
        %v4090 = vpack.c.b16 %v3194, %v3178
        %v4091 = vpack.c.b16 %v3195, %v3179
        %v4092 = vpack.c.b16 %v3196, %v3180
        %v4093 = vpack.c.b16 %v3197, %v3181
        %v4094 = vpack.c.b16 %v3198, %v3182
        %v4095 = vpack.c.b16 %v3199, %v3183
        %v4096 = vpack.c.b16 %v3200, %v3184
        %v4097 = vpack.c.b16 %v3201, %v3185
        %v4098 = vpack.c.b16 %v3202, %v3186
        %v4099 = vpack.c.b16 %v3203, %v3187
        %v4100 = vpack.c.b16 %v3204, %v3188
        %v4101 = vpack.c.b16 %v3205, %v3189
        %v4102 = vpack.c.b16 %v3206, %v3190
        %v4103 = vpack.c.b16 %v3207, %v3191
        %v4104 = vpack.c.b16 %v3208, %v3192
        %v4105 = vpack.c.b16 %v3209, %v3193
        %v4106 = vpack.c.b16 %v3226, %v3210
        %v4107 = vpack.c.b16 %v3227, %v3211
        %v4108 = vpack.c.b16 %v3228, %v3212
        %v4109 = vpack.c.b16 %v3229, %v3213
        %v4110 = vpack.c.b16 %v3230, %v3214
        %v4111 = vpack.c.b16 %v3231, %v3215
        %v4112 = vpack.c.b16 %v3232, %v3216
        %v4113 = vpack.c.b16 %v3233, %v3217
        %v4114 = vpack.c.b16 %v3234, %v3218
        %v4115 = vpack.c.b16 %v3235, %v3219
        %v4116 = vpack.c.b16 %v3236, %v3220
        %v4117 = vpack.c.b16 %v3237, %v3221
        %v4118 = vpack.c.b16 %v3238, %v3222
        %v4119 = vpack.c.b16 %v3239, %v3223
        %v4120 = vpack.c.b16 %v3240, %v3224
        %v4121 = vpack.c.b16 %v3241, %v3225
        %v4122 = vpack.c.b16 %v3258, %v3242
        %v4123 = vpack.c.b16 %v3259, %v3243
        %v4124 = vpack.c.b16 %v3260, %v3244
        %v4125 = vpack.c.b16 %v3261, %v3245
        %v4126 = vpack.c.b16 %v3262, %v3246
        %v4127 = vpack.c.b16 %v3263, %v3247
        %v4128 = vpack.c.b16 %v3264, %v3248
        %v4129 = vpack.c.b16 %v3265, %v3249
        %v4130 = vpack.c.b16 %v3266, %v3250
        %v4131 = vpack.c.b16 %v3267, %v3251
        %v4132 = vpack.c.b16 %v3268, %v3252
        %v4133 = vpack.c.b16 %v3269, %v3253
        %v4134 = vpack.c.b16 %v3270, %v3254
        %v4135 = vpack.c.b16 %v3271, %v3255
        %v4136 = vpack.c.b16 %v3272, %v3256
        %v4137 = vpack.c.b16 %v3273, %v3257
        %v4138 = vpack.c.b16 %v3290, %v3274
        %v4139 = vpack.c.b16 %v3291, %v3275
        %v4140 = vpack.c.b16 %v3292, %v3276
        %v4141 = vpack.c.b16 %v3293, %v3277
        %v4142 = vpack.c.b16 %v3294, %v3278
        %v4143 = vpack.c.b16 %v3295, %v3279
        %v4144 = vpack.c.b16 %v3296, %v3280
        %v4145 = vpack.c.b16 %v3297, %v3281
        %v4146 = vpack.c.b16 %v3298, %v3282
        %v4147 = vpack.c.b16 %v3299, %v3283
        %v4148 = vpack.c.b16 %v3300, %v3284
        %v4149 = vpack.c.b16 %v3301, %v3285
        %v4150 = vpack.c.b16 %v3302, %v3286
        %v4151 = vpack.c.b16 %v3303, %v3287
        %v4152 = vpack.c.b16 %v3304, %v3288
        %v4153 = vpack.c.b16 %v3305, %v3289
        %v4154 = vpack.c.b16 %v3322, %v3306
        %v4155 = vpack.c.b16 %v3323, %v3307
        %v4156 = vpack.c.b16 %v3324, %v3308
        %v4157 = vpack.c.b16 %v3325, %v3309
        %v4158 = vpack.c.b16 %v3326, %v3310
        %v4159 = vpack.c.b16 %v3327, %v3311
        %v4160 = vpack.c.b16 %v3328, %v3312
        %v4161 = vpack.c.b16 %v3329, %v3313
        %v4162 = vpack.c.b16 %v3330, %v3314
        %v4163 = vpack.c.b16 %v3331, %v3315
        %v4164 = vpack.c.b16 %v3332, %v3316
        %v4165 = vpack.c.b16 %v3333, %v3317
        %v4166 = vpack.c.b16 %v3334, %v3318
        %v4167 = vpack.c.b16 %v3335, %v3319
        %v4168 = vpack.c.b16 %v3336, %v3320
        %v4169 = vpack.c.b16 %v3337, %v3321
        %v4170 = vpack.c.b16 %v3354, %v3338
        %v4171 = vpack.c.b16 %v3355, %v3339
        %v4172 = vpack.c.b16 %v3356, %v3340
        %v4173 = vpack.c.b16 %v3357, %v3341
        %v4174 = vpack.c.b16 %v3358, %v3342
        %v4175 = vpack.c.b16 %v3359, %v3343
        %v4176 = vpack.c.b16 %v3360, %v3344
        %v4177 = vpack.c.b16 %v3361, %v3345
        %v4178 = vpack.c.b16 %v3362, %v3346
        %v4179 = vpack.c.b16 %v3363, %v3347
        %v4180 = vpack.c.b16 %v3364, %v3348
        %v4181 = vpack.c.b16 %v3365, %v3349
        %v4182 = vpack.c.b16 %v3366, %v3350
        %v4183 = vpack.c.b16 %v3367, %v3351
        %v4184 = vpack.c.b16 %v3368, %v3352
        %v4185 = vpack.c.b16 %v3369, %v3353
        %v4186 = vpack.c.b16 %v3386, %v3370
        %v4187 = vpack.c.b16 %v3387, %v3371
        %v4188 = vpack.c.b16 %v3388, %v3372
        %v4189 = vpack.c.b16 %v3389, %v3373
        %v4190 = vpack.c.b16 %v3390, %v3374
        %v4191 = vpack.c.b16 %v3391, %v3375
        %v4192 = vpack.c.b16 %v3392, %v3376
        %v4193 = vpack.c.b16 %v3393, %v3377
        %v4194 = vpack.c.b16 %v3394, %v3378
        %v4195 = vpack.c.b16 %v3395, %v3379
        %v4196 = vpack.c.b16 %v3396, %v3380
        %v4197 = vpack.c.b16 %v3397, %v3381
        %v4198 = vpack.c.b16 %v3398, %v3382
        %v4199 = vpack.c.b16 %v3399, %v3383
        %v4200 = vpack.c.b16 %v3400, %v3384
        %v4201 = vpack.c.b16 %v3401, %v3385
        %v4202 = vpack.c.b16 %v3418, %v3402
        %v4203 = vpack.c.b16 %v3419, %v3403
        %v4204 = vpack.c.b16 %v3420, %v3404
        %v4205 = vpack.c.b16 %v3421, %v3405
        %v4206 = vpack.c.b16 %v3422, %v3406
        %v4207 = vpack.c.b16 %v3423, %v3407
        %v4208 = vpack.c.b16 %v3424, %v3408
        %v4209 = vpack.c.b16 %v3425, %v3409
        %v4210 = vpack.c.b16 %v3426, %v3410
        %v4211 = vpack.c.b16 %v3427, %v3411
        %v4212 = vpack.c.b16 %v3428, %v3412
        %v4213 = vpack.c.b16 %v3429, %v3413
        %v4214 = vpack.c.b16 %v3430, %v3414
        %v4215 = vpack.c.b16 %v3431, %v3415
        %v4216 = vpack.c.b16 %v3432, %v3416
        %v4217 = vpack.c.b16 %v3433, %v3417
        %v4218 = vpack.c.b16 %v3450, %v3434
        %v4219 = vpack.c.b16 %v3451, %v3435
        %v4220 = vpack.c.b16 %v3452, %v3436
        %v4221 = vpack.c.b16 %v3453, %v3437
        %v4222 = vpack.c.b16 %v3454, %v3438
        %v4223 = vpack.c.b16 %v3455, %v3439
        %v4224 = vpack.c.b16 %v3456, %v3440
        %v4225 = vpack.c.b16 %v3457, %v3441
        %v4226 = vpack.c.b16 %v3458, %v3442
        %v4227 = vpack.c.b16 %v3459, %v3443
        %v4228 = vpack.c.b16 %v3460, %v3444
        %v4229 = vpack.c.b16 %v3461, %v3445
        %v4230 = vpack.c.b16 %v3462, %v3446
        %v4231 = vpack.c.b16 %v3463, %v3447
        %v4232 = vpack.c.b16 %v3464, %v3448
        %v4233 = vpack.c.b16 %v3465, %v3449
        %5002 = vmatprep.subr.bf16.mxu0 %v3579
        %5003 = vmatpush1.bf16.msra.mxu0 %v3578
        %5004 = vmatprep.subr.bf16.mxu0 %v3563
        %5005 = vmatpush1.bf16.msra.mxu0 %v3562
        %5006 = vmatprep.subr.bf16.mxu0 %v3547
        %5007 = vmatpush1.bf16.msra.mxu0 %v3546
        %5008 = vmatprep.subr.bf16.mxu0 %v3531
        %5009 = vmatpush1.bf16.msra.mxu0 %v3530
        %5010 = vmatprep.subr.bf16.mxu0 %v3515
        %5011 = vmatpush1.bf16.msra.mxu0 %v3514
        %5012 = vmatprep.subr.bf16.mxu0 %v3499
        %5013 = vmatpush1.bf16.msra.mxu0 %v3498
        %5014 = vmatprep.subr.bf16.mxu0 %v3483
        %5015 = vmatpush1.bf16.msra.mxu0 %v3482
        %5016 = vmatprep.subr.bf16.mxu0 %v3467
        %5017 = vmatpush1.bf16.msra.mxu0 %v3466
        %5018 = vmatprep.subr.bf16.mxu0 %v3707
        %5019 = vmatpush2.bf16.msra.mxu0 %v3706
        %5020 = vmatprep.subr.bf16.mxu0 %v3691
        %5021 = vmatpush2.bf16.msra.mxu0 %v3690
        %5022 = vmatprep.subr.bf16.mxu0 %v3675
        %5023 = vmatpush2.bf16.msra.mxu0 %v3674
        %5024 = vmatprep.subr.bf16.mxu0 %v3659
        %5025 = vmatpush2.bf16.msra.mxu0 %v3658
        %5026 = vmatprep.subr.bf16.mxu0 %v3643
        %5027 = vmatpush2.bf16.msra.mxu0 %v3642
        %5028 = vmatprep.subr.bf16.mxu0 %v3627
        %5029 = vmatpush2.bf16.msra.mxu0 %v3626
        %5030 = vmatprep.subr.bf16.mxu0 %v3611
        %5031 = vmatpush2.bf16.msra.mxu0 %v3610
        %5032 = vmatprep.subr.bf16.mxu0 %v3595
        %5033 = vmatpush2.bf16.msra.mxu0 %v3594
        %5034 = vmatprep.mubr.bf16.mxu0 %v1151
        %5035 = vmatmul.mubr.bf16.gmra.mxu0 %v1150
        %v5036 = vpop.f32.mrf.mxu0
        %v5037 = vadd.f32 %v1055, %v5036
        %v5038 = vpop.f32.mrf.mxu0
        %v5039 = vadd.f32 %v1059, %v5038
        %v5040 = vpop.f32.mrf.mxu0
        %v5041 = vadd.f32 %v1055, %v5040
        %v5042 = vpop.f32.mrf.mxu0
        %v5043 = vadd.f32 %v1059, %v5042
        %5044 = vdwg.mxu0
        %5045 = vmatprep.subr.bf16.mxu0 %v3835
        %5046 = vmatpush1.bf16.msra.mxu0 %v3834
        %5047 = vmatprep.subr.bf16.mxu0 %v3819
        %5048 = vmatpush1.bf16.msra.mxu0 %v3818
        %5049 = vmatprep.subr.bf16.mxu0 %v3803
        %5050 = vmatpush1.bf16.msra.mxu0 %v3802
        %5051 = vmatprep.subr.bf16.mxu0 %v3787
        %5052 = vmatpush1.bf16.msra.mxu0 %v3786
        %5053 = vmatprep.subr.bf16.mxu0 %v3771
        %5054 = vmatpush1.bf16.msra.mxu0 %v3770
        %5055 = vmatprep.subr.bf16.mxu0 %v3755
        %5056 = vmatpush1.bf16.msra.mxu0 %v3754
        %5057 = vmatprep.subr.bf16.mxu0 %v3739
        %5058 = vmatpush1.bf16.msra.mxu0 %v3738
        %5059 = vmatprep.subr.bf16.mxu0 %v3723
        %5060 = vmatpush1.bf16.msra.mxu0 %v3722
        %5061 = vmatprep.subr.bf16.mxu0 %v3963
        %5062 = vmatpush2.bf16.msra.mxu0 %v3962
        %5063 = vmatprep.subr.bf16.mxu0 %v3947
        %5064 = vmatpush2.bf16.msra.mxu0 %v3946
        %5065 = vmatprep.subr.bf16.mxu0 %v3931
        %5066 = vmatpush2.bf16.msra.mxu0 %v3930
        %5067 = vmatprep.subr.bf16.mxu0 %v3915
        %5068 = vmatpush2.bf16.msra.mxu0 %v3914
        %5069 = vmatprep.subr.bf16.mxu0 %v3899
        %5070 = vmatpush2.bf16.msra.mxu0 %v3898
        %5071 = vmatprep.subr.bf16.mxu0 %v3883
        %5072 = vmatpush2.bf16.msra.mxu0 %v3882
        %5073 = vmatprep.subr.bf16.mxu0 %v3867
        %5074 = vmatpush2.bf16.msra.mxu0 %v3866
        %5075 = vmatprep.subr.bf16.mxu0 %v3851
        %5076 = vmatpush2.bf16.msra.mxu0 %v3850
        %5077 = vmatprep.mubr.bf16.mxu0 %v1153
        %5078 = vmatmul.mubr.bf16.gmra.mxu0 %v1152
        %v5079 = vpop.f32.mrf.mxu0
        %v5080 = vadd.f32 %v5037, %v5079
        %v5081 = vpop.f32.mrf.mxu0
        %v5082 = vadd.f32 %v5039, %v5081
        %v5083 = vpop.f32.mrf.mxu0
        %v5084 = vadd.f32 %v5041, %v5083
        %v5085 = vpop.f32.mrf.mxu0
        %v5086 = vadd.f32 %v5043, %v5085
        %5087 = vdwg.mxu0
        %5088 = vmatprep.subr.bf16.mxu0 %v4091
        %5089 = vmatpush1.bf16.msra.mxu0 %v4090
        %5090 = vmatprep.subr.bf16.mxu0 %v4075
        %5091 = vmatpush1.bf16.msra.mxu0 %v4074
        %5092 = vmatprep.subr.bf16.mxu0 %v4059
        %5093 = vmatpush1.bf16.msra.mxu0 %v4058
        %5094 = vmatprep.subr.bf16.mxu0 %v4043
        %5095 = vmatpush1.bf16.msra.mxu0 %v4042
        %5096 = vmatprep.subr.bf16.mxu0 %v4027
        %5097 = vmatpush1.bf16.msra.mxu0 %v4026
        %5098 = vmatprep.subr.bf16.mxu0 %v4011
        %5099 = vmatpush1.bf16.msra.mxu0 %v4010
        %5100 = vmatprep.subr.bf16.mxu0 %v3995
        %5101 = vmatpush1.bf16.msra.mxu0 %v3994
        %5102 = vmatprep.subr.bf16.mxu0 %v3979
        %5103 = vmatpush1.bf16.msra.mxu0 %v3978
        %5104 = vmatprep.subr.bf16.mxu0 %v4219
        %5105 = vmatpush2.bf16.msra.mxu0 %v4218
        %5106 = vmatprep.subr.bf16.mxu0 %v4203
        %5107 = vmatpush2.bf16.msra.mxu0 %v4202
        %5108 = vmatprep.subr.bf16.mxu0 %v4187
        %5109 = vmatpush2.bf16.msra.mxu0 %v4186
        %5110 = vmatprep.subr.bf16.mxu0 %v4171
        %5111 = vmatpush2.bf16.msra.mxu0 %v4170
        %5112 = vmatprep.subr.bf16.mxu0 %v4155
        %5113 = vmatpush2.bf16.msra.mxu0 %v4154
        %5114 = vmatprep.subr.bf16.mxu0 %v4139
        %5115 = vmatpush2.bf16.msra.mxu0 %v4138
        %5116 = vmatprep.subr.bf16.mxu0 %v4123
        %5117 = vmatpush2.bf16.msra.mxu0 %v4122
        %5118 = vmatprep.subr.bf16.mxu0 %v4107
        %5119 = vmatpush2.bf16.msra.mxu0 %v4106
        %5120 = vmatprep.mubr.bf16.mxu0 %v1155
        %5121 = vmatmul.mubr.bf16.gmra.mxu0 %v1154
        %v5122 = vpop.f32.mrf.mxu0
        %v5123 = vadd.f32 %v5080, %v5122
        %v5124 = vpop.f32.mrf.mxu0
        %v5125 = vadd.f32 %v5082, %v5124
        %v5126 = vpop.f32.mrf.mxu0
        %v5127 = vadd.f32 %v5084, %v5126
        %v5128 = vpop.f32.mrf.mxu0
        %v5129 = vadd.f32 %v5086, %v5128
        %5130 = vdwg.mxu0
        %5131 = vmatprep.subr.bf16.mxu0 %v3581
        %5132 = vmatpush1.bf16.msra.mxu0 %v3580
        %5133 = vmatprep.subr.bf16.mxu0 %v3565
        %5134 = vmatpush1.bf16.msra.mxu0 %v3564
        %5135 = vmatprep.subr.bf16.mxu0 %v3549
        %5136 = vmatpush1.bf16.msra.mxu0 %v3548
        %5137 = vmatprep.subr.bf16.mxu0 %v3533
        %5138 = vmatpush1.bf16.msra.mxu0 %v3532
        %5139 = vmatprep.subr.bf16.mxu0 %v3517
        %5140 = vmatpush1.bf16.msra.mxu0 %v3516
        %5141 = vmatprep.subr.bf16.mxu0 %v3501
        %5142 = vmatpush1.bf16.msra.mxu0 %v3500
        %5143 = vmatprep.subr.bf16.mxu0 %v3485
        %5144 = vmatpush1.bf16.msra.mxu0 %v3484
        %5145 = vmatprep.subr.bf16.mxu0 %v3469
        %5146 = vmatpush1.bf16.msra.mxu0 %v3468
        %5147 = vmatprep.subr.bf16.mxu0 %v3709
        %5148 = vmatpush2.bf16.msra.mxu0 %v3708
        %5149 = vmatprep.subr.bf16.mxu0 %v3693
        %5150 = vmatpush2.bf16.msra.mxu0 %v3692
        %5151 = vmatprep.subr.bf16.mxu0 %v3677
        %5152 = vmatpush2.bf16.msra.mxu0 %v3676
        %5153 = vmatprep.subr.bf16.mxu0 %v3661
        %5154 = vmatpush2.bf16.msra.mxu0 %v3660
        %5155 = vmatprep.subr.bf16.mxu0 %v3645
        %5156 = vmatpush2.bf16.msra.mxu0 %v3644
        %5157 = vmatprep.subr.bf16.mxu0 %v3629
        %5158 = vmatpush2.bf16.msra.mxu0 %v3628
        %5159 = vmatprep.subr.bf16.mxu0 %v3613
        %5160 = vmatpush2.bf16.msra.mxu0 %v3612
        %5161 = vmatprep.subr.bf16.mxu0 %v3597
        %5162 = vmatpush2.bf16.msra.mxu0 %v3596
        %5163 = vmatprep.mubr.bf16.mxu0 %v1151
        %5164 = vmatmul.mubr.bf16.gmra.mxu0 %v1150
        %v5165 = vpop.f32.mrf.mxu0
        %v5166 = vadd.f32 %v1063, %v5165
        %v5167 = vpop.f32.mrf.mxu0
        %v5168 = vadd.f32 %v1067, %v5167
        %v5169 = vpop.f32.mrf.mxu0
        %v5170 = vadd.f32 %v1063, %v5169
        %v5171 = vpop.f32.mrf.mxu0
        %v5172 = vadd.f32 %v1067, %v5171
        %5173 = vdwg.mxu0
        %5174 = vmatprep.subr.bf16.mxu0 %v3837
        %5175 = vmatpush1.bf16.msra.mxu0 %v3836
        %5176 = vmatprep.subr.bf16.mxu0 %v3821
        %5177 = vmatpush1.bf16.msra.mxu0 %v3820
        %5178 = vmatprep.subr.bf16.mxu0 %v3805
        %5179 = vmatpush1.bf16.msra.mxu0 %v3804
        %5180 = vmatprep.subr.bf16.mxu0 %v3789
        %5181 = vmatpush1.bf16.msra.mxu0 %v3788
        %5182 = vmatprep.subr.bf16.mxu0 %v3773
        %5183 = vmatpush1.bf16.msra.mxu0 %v3772
        %5184 = vmatprep.subr.bf16.mxu0 %v3757
        %5185 = vmatpush1.bf16.msra.mxu0 %v3756
        %5186 = vmatprep.subr.bf16.mxu0 %v3741
        %5187 = vmatpush1.bf16.msra.mxu0 %v3740
        %5188 = vmatprep.subr.bf16.mxu0 %v3725
        %5189 = vmatpush1.bf16.msra.mxu0 %v3724
        %5190 = vmatprep.subr.bf16.mxu0 %v3965
        %5191 = vmatpush2.bf16.msra.mxu0 %v3964
        %5192 = vmatprep.subr.bf16.mxu0 %v3949
        %5193 = vmatpush2.bf16.msra.mxu0 %v3948
        %5194 = vmatprep.subr.bf16.mxu0 %v3933
        %5195 = vmatpush2.bf16.msra.mxu0 %v3932
        %5196 = vmatprep.subr.bf16.mxu0 %v3917
        %5197 = vmatpush2.bf16.msra.mxu0 %v3916
        %5198 = vmatprep.subr.bf16.mxu0 %v3901
        %5199 = vmatpush2.bf16.msra.mxu0 %v3900
        %5200 = vmatprep.subr.bf16.mxu0 %v3885
        %5201 = vmatpush2.bf16.msra.mxu0 %v3884
        %5202 = vmatprep.subr.bf16.mxu0 %v3869
        %5203 = vmatpush2.bf16.msra.mxu0 %v3868
        %5204 = vmatprep.subr.bf16.mxu0 %v3853
        %5205 = vmatpush2.bf16.msra.mxu0 %v3852
        %5206 = vmatprep.mubr.bf16.mxu0 %v1153
        %5207 = vmatmul.mubr.bf16.gmra.mxu0 %v1152
        %v5208 = vpop.f32.mrf.mxu0
        %v5209 = vadd.f32 %v5166, %v5208
        %v5210 = vpop.f32.mrf.mxu0
        %v5211 = vadd.f32 %v5168, %v5210
        %v5212 = vpop.f32.mrf.mxu0
        %v5213 = vadd.f32 %v5170, %v5212
        %v5214 = vpop.f32.mrf.mxu0
        %v5215 = vadd.f32 %v5172, %v5214
        %5216 = vdwg.mxu0
        %5217 = vmatprep.subr.bf16.mxu0 %v4093
        %5218 = vmatpush1.bf16.msra.mxu0 %v4092
        %5219 = vmatprep.subr.bf16.mxu0 %v4077
        %5220 = vmatpush1.bf16.msra.mxu0 %v4076
        %5221 = vmatprep.subr.bf16.mxu0 %v4061
        %5222 = vmatpush1.bf16.msra.mxu0 %v4060
        %5223 = vmatprep.subr.bf16.mxu0 %v4045
        %5224 = vmatpush1.bf16.msra.mxu0 %v4044
        %5225 = vmatprep.subr.bf16.mxu0 %v4029
        %5226 = vmatpush1.bf16.msra.mxu0 %v4028
        %5227 = vmatprep.subr.bf16.mxu0 %v4013
        %5228 = vmatpush1.bf16.msra.mxu0 %v4012
        %5229 = vmatprep.subr.bf16.mxu0 %v3997
        %5230 = vmatpush1.bf16.msra.mxu0 %v3996
        %5231 = vmatprep.subr.bf16.mxu0 %v3981
        %5232 = vmatpush1.bf16.msra.mxu0 %v3980
        %5233 = vmatprep.subr.bf16.mxu0 %v4221
        %5234 = vmatpush2.bf16.msra.mxu0 %v4220
        %5235 = vmatprep.subr.bf16.mxu0 %v4205
        %5236 = vmatpush2.bf16.msra.mxu0 %v4204
        %5237 = vmatprep.subr.bf16.mxu0 %v4189
        %5238 = vmatpush2.bf16.msra.mxu0 %v4188
        %5239 = vmatprep.subr.bf16.mxu0 %v4173
        %5240 = vmatpush2.bf16.msra.mxu0 %v4172
        %5241 = vmatprep.subr.bf16.mxu0 %v4157
        %5242 = vmatpush2.bf16.msra.mxu0 %v4156
        %5243 = vmatprep.subr.bf16.mxu0 %v4141
        %5244 = vmatpush2.bf16.msra.mxu0 %v4140
        %5245 = vmatprep.subr.bf16.mxu0 %v4125
        %5246 = vmatpush2.bf16.msra.mxu0 %v4124
        %5247 = vmatprep.subr.bf16.mxu0 %v4109
        %5248 = vmatpush2.bf16.msra.mxu0 %v4108
        %5249 = vmatprep.mubr.bf16.mxu0 %v1155
        %5250 = vmatmul.mubr.bf16.gmra.mxu0 %v1154
        %v5251 = vpop.f32.mrf.mxu0
        %v5252 = vadd.f32 %v5209, %v5251
        %v5253 = vpop.f32.mrf.mxu0
        %v5254 = vadd.f32 %v5211, %v5253
        %v5255 = vpop.f32.mrf.mxu0
        %v5256 = vadd.f32 %v5213, %v5255
        %v5257 = vpop.f32.mrf.mxu0
        %v5258 = vadd.f32 %v5215, %v5257
        %5259 = vdwg.mxu0
        %5260 = vmatprep.subr.bf16.mxu0 %v3583
        %5261 = vmatpush1.bf16.msra.mxu0 %v3582
        %5262 = vmatprep.subr.bf16.mxu0 %v3567
        %5263 = vmatpush1.bf16.msra.mxu0 %v3566
        %5264 = vmatprep.subr.bf16.mxu0 %v3551
        %5265 = vmatpush1.bf16.msra.mxu0 %v3550
        %5266 = vmatprep.subr.bf16.mxu0 %v3535
        %5267 = vmatpush1.bf16.msra.mxu0 %v3534
        %5268 = vmatprep.subr.bf16.mxu0 %v3519
        %5269 = vmatpush1.bf16.msra.mxu0 %v3518
        %5270 = vmatprep.subr.bf16.mxu0 %v3503
        %5271 = vmatpush1.bf16.msra.mxu0 %v3502
        %5272 = vmatprep.subr.bf16.mxu0 %v3487
        %5273 = vmatpush1.bf16.msra.mxu0 %v3486
        %5274 = vmatprep.subr.bf16.mxu0 %v3471
        %5275 = vmatpush1.bf16.msra.mxu0 %v3470
        %5276 = vmatprep.subr.bf16.mxu0 %v3711
        %5277 = vmatpush2.bf16.msra.mxu0 %v3710
        %5278 = vmatprep.subr.bf16.mxu0 %v3695
        %5279 = vmatpush2.bf16.msra.mxu0 %v3694
        %5280 = vmatprep.subr.bf16.mxu0 %v3679
        %5281 = vmatpush2.bf16.msra.mxu0 %v3678
        %5282 = vmatprep.subr.bf16.mxu0 %v3663
        %5283 = vmatpush2.bf16.msra.mxu0 %v3662
        %5284 = vmatprep.subr.bf16.mxu0 %v3647
        %5285 = vmatpush2.bf16.msra.mxu0 %v3646
        %5286 = vmatprep.subr.bf16.mxu0 %v3631
        %5287 = vmatpush2.bf16.msra.mxu0 %v3630
        %5288 = vmatprep.subr.bf16.mxu0 %v3615
        %5289 = vmatpush2.bf16.msra.mxu0 %v3614
        %5290 = vmatprep.subr.bf16.mxu0 %v3599
        %5291 = vmatpush2.bf16.msra.mxu0 %v3598
        %5292 = vmatprep.mubr.bf16.mxu0 %v1151
        %5293 = vmatmul.mubr.bf16.gmra.mxu0 %v1150
        %v5294 = vpop.f32.mrf.mxu0
        %v5295 = vadd.f32 %v1071, %v5294
        %v5296 = vpop.f32.mrf.mxu0
        %v5297 = vadd.f32 %v1075, %v5296
        %v5298 = vpop.f32.mrf.mxu0
        %v5299 = vadd.f32 %v1071, %v5298
        %v5300 = vpop.f32.mrf.mxu0
        %v5301 = vadd.f32 %v1075, %v5300
        %5302 = vdwg.mxu0
        %5303 = vmatprep.subr.bf16.mxu0 %v3839
        %5304 = vmatpush1.bf16.msra.mxu0 %v3838
        %5305 = vmatprep.subr.bf16.mxu0 %v3823
        %5306 = vmatpush1.bf16.msra.mxu0 %v3822
        %5307 = vmatprep.subr.bf16.mxu0 %v3807
        %5308 = vmatpush1.bf16.msra.mxu0 %v3806
        %5309 = vmatprep.subr.bf16.mxu0 %v3791
        %5310 = vmatpush1.bf16.msra.mxu0 %v3790
        %5311 = vmatprep.subr.bf16.mxu0 %v3775
        %5312 = vmatpush1.bf16.msra.mxu0 %v3774
        %5313 = vmatprep.subr.bf16.mxu0 %v3759
        %5314 = vmatpush1.bf16.msra.mxu0 %v3758
        %5315 = vmatprep.subr.bf16.mxu0 %v3743
        %5316 = vmatpush1.bf16.msra.mxu0 %v3742
        %5317 = vmatprep.subr.bf16.mxu0 %v3727
        %5318 = vmatpush1.bf16.msra.mxu0 %v3726
        %5319 = vmatprep.subr.bf16.mxu0 %v3967
        %5320 = vmatpush2.bf16.msra.mxu0 %v3966
        %5321 = vmatprep.subr.bf16.mxu0 %v3951
        %5322 = vmatpush2.bf16.msra.mxu0 %v3950
        %5323 = vmatprep.subr.bf16.mxu0 %v3935
        %5324 = vmatpush2.bf16.msra.mxu0 %v3934
        %5325 = vmatprep.subr.bf16.mxu0 %v3919
        %5326 = vmatpush2.bf16.msra.mxu0 %v3918
        %5327 = vmatprep.subr.bf16.mxu0 %v3903
        %5328 = vmatpush2.bf16.msra.mxu0 %v3902
        %5329 = vmatprep.subr.bf16.mxu0 %v3887
        %5330 = vmatpush2.bf16.msra.mxu0 %v3886
        %5331 = vmatprep.subr.bf16.mxu0 %v3871
        %5332 = vmatpush2.bf16.msra.mxu0 %v3870
        %5333 = vmatprep.subr.bf16.mxu0 %v3855
        %5334 = vmatpush2.bf16.msra.mxu0 %v3854
        %5335 = vmatprep.mubr.bf16.mxu0 %v1153
        %5336 = vmatmul.mubr.bf16.gmra.mxu0 %v1152
        %v5337 = vpop.f32.mrf.mxu0
        %v5338 = vadd.f32 %v5295, %v5337
        %v5339 = vpop.f32.mrf.mxu0
        %v5340 = vadd.f32 %v5297, %v5339
        %v5341 = vpop.f32.mrf.mxu0
        %v5342 = vadd.f32 %v5299, %v5341
        %v5343 = vpop.f32.mrf.mxu0
        %v5344 = vadd.f32 %v5301, %v5343
        %5345 = vdwg.mxu0
        %5346 = vmatprep.subr.bf16.mxu0 %v4095
        %5347 = vmatpush1.bf16.msra.mxu0 %v4094
        %5348 = vmatprep.subr.bf16.mxu0 %v4079
        %5349 = vmatpush1.bf16.msra.mxu0 %v4078
        %5350 = vmatprep.subr.bf16.mxu0 %v4063
        %5351 = vmatpush1.bf16.msra.mxu0 %v4062
        %5352 = vmatprep.subr.bf16.mxu0 %v4047
        %5353 = vmatpush1.bf16.msra.mxu0 %v4046
        %5354 = vmatprep.subr.bf16.mxu0 %v4031
        %5355 = vmatpush1.bf16.msra.mxu0 %v4030
        %5356 = vmatprep.subr.bf16.mxu0 %v4015
        %5357 = vmatpush1.bf16.msra.mxu0 %v4014
        %5358 = vmatprep.subr.bf16.mxu0 %v3999
        %5359 = vmatpush1.bf16.msra.mxu0 %v3998
        %5360 = vmatprep.subr.bf16.mxu0 %v3983
        %5361 = vmatpush1.bf16.msra.mxu0 %v3982
        %5362 = vmatprep.subr.bf16.mxu0 %v4223
        %5363 = vmatpush2.bf16.msra.mxu0 %v4222
        %5364 = vmatprep.subr.bf16.mxu0 %v4207
        %5365 = vmatpush2.bf16.msra.mxu0 %v4206
        %5366 = vmatprep.subr.bf16.mxu0 %v4191
        %5367 = vmatpush2.bf16.msra.mxu0 %v4190
        %5368 = vmatprep.subr.bf16.mxu0 %v4175
        %5369 = vmatpush2.bf16.msra.mxu0 %v4174
        %5370 = vmatprep.subr.bf16.mxu0 %v4159
        %5371 = vmatpush2.bf16.msra.mxu0 %v4158
        %5372 = vmatprep.subr.bf16.mxu0 %v4143
        %5373 = vmatpush2.bf16.msra.mxu0 %v4142
        %5374 = vmatprep.subr.bf16.mxu0 %v4127
        %5375 = vmatpush2.bf16.msra.mxu0 %v4126
        %5376 = vmatprep.subr.bf16.mxu0 %v4111
        %5377 = vmatpush2.bf16.msra.mxu0 %v4110
        %5378 = vmatprep.mubr.bf16.mxu0 %v1155
        %5379 = vmatmul.mubr.bf16.gmra.mxu0 %v1154
        %v5380 = vpop.f32.mrf.mxu0
        %v5381 = vadd.f32 %v5338, %v5380
        %v5382 = vpop.f32.mrf.mxu0
        %v5383 = vadd.f32 %v5340, %v5382
        %v5384 = vpop.f32.mrf.mxu0
        %v5385 = vadd.f32 %v5342, %v5384
        %v5386 = vpop.f32.mrf.mxu0
        %v5387 = vadd.f32 %v5344, %v5386
        %5388 = vdwg.mxu0
        %5389 = vmatprep.subr.bf16.mxu0 %v3585
        %5390 = vmatpush1.bf16.msra.mxu0 %v3584
        %5391 = vmatprep.subr.bf16.mxu0 %v3569
        %5392 = vmatpush1.bf16.msra.mxu0 %v3568
        %5393 = vmatprep.subr.bf16.mxu0 %v3553
        %5394 = vmatpush1.bf16.msra.mxu0 %v3552
        %5395 = vmatprep.subr.bf16.mxu0 %v3537
        %5396 = vmatpush1.bf16.msra.mxu0 %v3536
        %5397 = vmatprep.subr.bf16.mxu0 %v3521
        %5398 = vmatpush1.bf16.msra.mxu0 %v3520
        %5399 = vmatprep.subr.bf16.mxu0 %v3505
        %5400 = vmatpush1.bf16.msra.mxu0 %v3504
        %5401 = vmatprep.subr.bf16.mxu0 %v3489
        %5402 = vmatpush1.bf16.msra.mxu0 %v3488
        %5403 = vmatprep.subr.bf16.mxu0 %v3473
        %5404 = vmatpush1.bf16.msra.mxu0 %v3472
        %5405 = vmatprep.subr.bf16.mxu0 %v3713
        %5406 = vmatpush2.bf16.msra.mxu0 %v3712
        %5407 = vmatprep.subr.bf16.mxu0 %v3697
        %5408 = vmatpush2.bf16.msra.mxu0 %v3696
        %5409 = vmatprep.subr.bf16.mxu0 %v3681
        %5410 = vmatpush2.bf16.msra.mxu0 %v3680
        %5411 = vmatprep.subr.bf16.mxu0 %v3665
        %5412 = vmatpush2.bf16.msra.mxu0 %v3664
        %5413 = vmatprep.subr.bf16.mxu0 %v3649
        %5414 = vmatpush2.bf16.msra.mxu0 %v3648
        %5415 = vmatprep.subr.bf16.mxu0 %v3633
        %5416 = vmatpush2.bf16.msra.mxu0 %v3632
        %5417 = vmatprep.subr.bf16.mxu0 %v3617
        %5418 = vmatpush2.bf16.msra.mxu0 %v3616
        %5419 = vmatprep.subr.bf16.mxu0 %v3601
        %5420 = vmatpush2.bf16.msra.mxu0 %v3600
        %5421 = vmatprep.mubr.bf16.mxu0 %v1151
        %5422 = vmatmul.mubr.bf16.gmra.mxu0 %v1150
        %v5423 = vpop.f32.mrf.mxu0
        %v5424 = vadd.f32 %v1079, %v5423
        %v5425 = vpop.f32.mrf.mxu0
        %v5426 = vadd.f32 %v1083, %v5425
        %v5427 = vpop.f32.mrf.mxu0
        %v5428 = vadd.f32 %v1079, %v5427
        %v5429 = vpop.f32.mrf.mxu0
        %v5430 = vadd.f32 %v1083, %v5429
        %5431 = vdwg.mxu0
        %5432 = vmatprep.subr.bf16.mxu0 %v3841
        %5433 = vmatpush1.bf16.msra.mxu0 %v3840
        %5434 = vmatprep.subr.bf16.mxu0 %v3825
        %5435 = vmatpush1.bf16.msra.mxu0 %v3824
        %5436 = vmatprep.subr.bf16.mxu0 %v3809
        %5437 = vmatpush1.bf16.msra.mxu0 %v3808
        %5438 = vmatprep.subr.bf16.mxu0 %v3793
        %5439 = vmatpush1.bf16.msra.mxu0 %v3792
        %5440 = vmatprep.subr.bf16.mxu0 %v3777
        %5441 = vmatpush1.bf16.msra.mxu0 %v3776
        %5442 = vmatprep.subr.bf16.mxu0 %v3761
        %5443 = vmatpush1.bf16.msra.mxu0 %v3760
        %5444 = vmatprep.subr.bf16.mxu0 %v3745
        %5445 = vmatpush1.bf16.msra.mxu0 %v3744
        %5446 = vmatprep.subr.bf16.mxu0 %v3729
        %5447 = vmatpush1.bf16.msra.mxu0 %v3728
        %5448 = vmatprep.subr.bf16.mxu0 %v3969
        %5449 = vmatpush2.bf16.msra.mxu0 %v3968
        %5450 = vmatprep.subr.bf16.mxu0 %v3953
        %5451 = vmatpush2.bf16.msra.mxu0 %v3952
        %5452 = vmatprep.subr.bf16.mxu0 %v3937
        %5453 = vmatpush2.bf16.msra.mxu0 %v3936
        %5454 = vmatprep.subr.bf16.mxu0 %v3921
        %5455 = vmatpush2.bf16.msra.mxu0 %v3920
        %5456 = vmatprep.subr.bf16.mxu0 %v3905
        %5457 = vmatpush2.bf16.msra.mxu0 %v3904
        %5458 = vmatprep.subr.bf16.mxu0 %v3889
        %5459 = vmatpush2.bf16.msra.mxu0 %v3888
        %5460 = vmatprep.subr.bf16.mxu0 %v3873
        %5461 = vmatpush2.bf16.msra.mxu0 %v3872
        %5462 = vmatprep.subr.bf16.mxu0 %v3857
        %5463 = vmatpush2.bf16.msra.mxu0 %v3856
        %5464 = vmatprep.mubr.bf16.mxu0 %v1153
        %5465 = vmatmul.mubr.bf16.gmra.mxu0 %v1152
        %v5466 = vpop.f32.mrf.mxu0
        %v5467 = vadd.f32 %v5424, %v5466
        %v5468 = vpop.f32.mrf.mxu0
        %v5469 = vadd.f32 %v5426, %v5468
        %v5470 = vpop.f32.mrf.mxu0
        %v5471 = vadd.f32 %v5428, %v5470
        %v5472 = vpop.f32.mrf.mxu0
        %v5473 = vadd.f32 %v5430, %v5472
        %5474 = vdwg.mxu0
        %5475 = vmatprep.subr.bf16.mxu0 %v4097
        %5476 = vmatpush1.bf16.msra.mxu0 %v4096
        %5477 = vmatprep.subr.bf16.mxu0 %v4081
        %5478 = vmatpush1.bf16.msra.mxu0 %v4080
        %5479 = vmatprep.subr.bf16.mxu0 %v4065
        %5480 = vmatpush1.bf16.msra.mxu0 %v4064
        %5481 = vmatprep.subr.bf16.mxu0 %v4049
        %5482 = vmatpush1.bf16.msra.mxu0 %v4048
        %5483 = vmatprep.subr.bf16.mxu0 %v4033
        %5484 = vmatpush1.bf16.msra.mxu0 %v4032
        %5485 = vmatprep.subr.bf16.mxu0 %v4017
        %5486 = vmatpush1.bf16.msra.mxu0 %v4016
        %5487 = vmatprep.subr.bf16.mxu0 %v4001
        %5488 = vmatpush1.bf16.msra.mxu0 %v4000
        %5489 = vmatprep.subr.bf16.mxu0 %v3985
        %5490 = vmatpush1.bf16.msra.mxu0 %v3984
        %5491 = vmatprep.subr.bf16.mxu0 %v4225
        %5492 = vmatpush2.bf16.msra.mxu0 %v4224
        %5493 = vmatprep.subr.bf16.mxu0 %v4209
        %5494 = vmatpush2.bf16.msra.mxu0 %v4208
        %5495 = vmatprep.subr.bf16.mxu0 %v4193
        %5496 = vmatpush2.bf16.msra.mxu0 %v4192
        %5497 = vmatprep.subr.bf16.mxu0 %v4177
        %5498 = vmatpush2.bf16.msra.mxu0 %v4176
        %5499 = vmatprep.subr.bf16.mxu0 %v4161
        %5500 = vmatpush2.bf16.msra.mxu0 %v4160
        %5501 = vmatprep.subr.bf16.mxu0 %v4145
        %5502 = vmatpush2.bf16.msra.mxu0 %v4144
        %5503 = vmatprep.subr.bf16.mxu0 %v4129
        %5504 = vmatpush2.bf16.msra.mxu0 %v4128
        %5505 = vmatprep.subr.bf16.mxu0 %v4113
        %5506 = vmatpush2.bf16.msra.mxu0 %v4112
        %5507 = vmatprep.mubr.bf16.mxu0 %v1155
        %5508 = vmatmul.mubr.bf16.gmra.mxu0 %v1154
        %v5509 = vpop.f32.mrf.mxu0
        %v5510 = vadd.f32 %v5467, %v5509
        %v5511 = vpop.f32.mrf.mxu0
        %v5512 = vadd.f32 %v5469, %v5511
        %v5513 = vpop.f32.mrf.mxu0
        %v5514 = vadd.f32 %v5471, %v5513
        %v5515 = vpop.f32.mrf.mxu0
        %v5516 = vadd.f32 %v5473, %v5515
        %5517 = vdwg.mxu0
        %5518 = vmatprep.subr.bf16.mxu0 %v3587
        %5519 = vmatpush1.bf16.msra.mxu0 %v3586
        %5520 = vmatprep.subr.bf16.mxu0 %v3571
        %5521 = vmatpush1.bf16.msra.mxu0 %v3570
        %5522 = vmatprep.subr.bf16.mxu0 %v3555
        %5523 = vmatpush1.bf16.msra.mxu0 %v3554
        %5524 = vmatprep.subr.bf16.mxu0 %v3539
        %5525 = vmatpush1.bf16.msra.mxu0 %v3538
        %5526 = vmatprep.subr.bf16.mxu0 %v3523
        %5527 = vmatpush1.bf16.msra.mxu0 %v3522
        %5528 = vmatprep.subr.bf16.mxu0 %v3507
        %5529 = vmatpush1.bf16.msra.mxu0 %v3506
        %5530 = vmatprep.subr.bf16.mxu0 %v3491
        %5531 = vmatpush1.bf16.msra.mxu0 %v3490
        %5532 = vmatprep.subr.bf16.mxu0 %v3475
        %5533 = vmatpush1.bf16.msra.mxu0 %v3474
        %5534 = vmatprep.subr.bf16.mxu0 %v3715
        %5535 = vmatpush2.bf16.msra.mxu0 %v3714
        %5536 = vmatprep.subr.bf16.mxu0 %v3699
        %5537 = vmatpush2.bf16.msra.mxu0 %v3698
        %5538 = vmatprep.subr.bf16.mxu0 %v3683
        %5539 = vmatpush2.bf16.msra.mxu0 %v3682
        %5540 = vmatprep.subr.bf16.mxu0 %v3667
        %5541 = vmatpush2.bf16.msra.mxu0 %v3666
        %5542 = vmatprep.subr.bf16.mxu0 %v3651
        %5543 = vmatpush2.bf16.msra.mxu0 %v3650
        %5544 = vmatprep.subr.bf16.mxu0 %v3635
        %5545 = vmatpush2.bf16.msra.mxu0 %v3634
        %5546 = vmatprep.subr.bf16.mxu0 %v3619
        %5547 = vmatpush2.bf16.msra.mxu0 %v3618
        %5548 = vmatprep.subr.bf16.mxu0 %v3603
        %5549 = vmatpush2.bf16.msra.mxu0 %v3602
        %5550 = vmatprep.mubr.bf16.mxu0 %v1151
        %5551 = vmatmul.mubr.bf16.gmra.mxu0 %v1150
        %v5552 = vpop.f32.mrf.mxu0
        %v5553 = vadd.f32 %v1087, %v5552
        %v5554 = vpop.f32.mrf.mxu0
        %v5555 = vadd.f32 %v1091, %v5554
        %v5556 = vpop.f32.mrf.mxu0
        %v5557 = vadd.f32 %v1087, %v5556
        %v5558 = vpop.f32.mrf.mxu0
        %v5559 = vadd.f32 %v1091, %v5558
        %5560 = vdwg.mxu0
        %5561 = vmatprep.subr.bf16.mxu0 %v3843
        %5562 = vmatpush1.bf16.msra.mxu0 %v3842
        %5563 = vmatprep.subr.bf16.mxu0 %v3827
        %5564 = vmatpush1.bf16.msra.mxu0 %v3826
        %5565 = vmatprep.subr.bf16.mxu0 %v3811
        %5566 = vmatpush1.bf16.msra.mxu0 %v3810
        %5567 = vmatprep.subr.bf16.mxu0 %v3795
        %5568 = vmatpush1.bf16.msra.mxu0 %v3794
        %5569 = vmatprep.subr.bf16.mxu0 %v3779
        %5570 = vmatpush1.bf16.msra.mxu0 %v3778
        %5571 = vmatprep.subr.bf16.mxu0 %v3763
        %5572 = vmatpush1.bf16.msra.mxu0 %v3762
        %5573 = vmatprep.subr.bf16.mxu0 %v3747
        %5574 = vmatpush1.bf16.msra.mxu0 %v3746
        %5575 = vmatprep.subr.bf16.mxu0 %v3731
        %5576 = vmatpush1.bf16.msra.mxu0 %v3730
        %5577 = vmatprep.subr.bf16.mxu0 %v3971
        %5578 = vmatpush2.bf16.msra.mxu0 %v3970
        %5579 = vmatprep.subr.bf16.mxu0 %v3955
        %5580 = vmatpush2.bf16.msra.mxu0 %v3954
        %5581 = vmatprep.subr.bf16.mxu0 %v3939
        %5582 = vmatpush2.bf16.msra.mxu0 %v3938
        %5583 = vmatprep.subr.bf16.mxu0 %v3923
        %5584 = vmatpush2.bf16.msra.mxu0 %v3922
        %5585 = vmatprep.subr.bf16.mxu0 %v3907
        %5586 = vmatpush2.bf16.msra.mxu0 %v3906
        %5587 = vmatprep.subr.bf16.mxu0 %v3891
        %5588 = vmatpush2.bf16.msra.mxu0 %v3890
        %5589 = vmatprep.subr.bf16.mxu0 %v3875
        %5590 = vmatpush2.bf16.msra.mxu0 %v3874
        %5591 = vmatprep.subr.bf16.mxu0 %v3859
        %5592 = vmatpush2.bf16.msra.mxu0 %v3858
        %5593 = vmatprep.mubr.bf16.mxu0 %v1153
        %5594 = vmatmul.mubr.bf16.gmra.mxu0 %v1152
        %v5595 = vpop.f32.mrf.mxu0
        %v5596 = vadd.f32 %v5553, %v5595
        %v5597 = vpop.f32.mrf.mxu0
        %v5598 = vadd.f32 %v5555, %v5597
        %v5599 = vpop.f32.mrf.mxu0
        %v5600 = vadd.f32 %v5557, %v5599
        %v5601 = vpop.f32.mrf.mxu0
        %v5602 = vadd.f32 %v5559, %v5601
        %5603 = vdwg.mxu0
        %5604 = vmatprep.subr.bf16.mxu0 %v4099
        %5605 = vmatpush1.bf16.msra.mxu0 %v4098
        %5606 = vmatprep.subr.bf16.mxu0 %v4083
        %5607 = vmatpush1.bf16.msra.mxu0 %v4082
        %5608 = vmatprep.subr.bf16.mxu0 %v4067
        %5609 = vmatpush1.bf16.msra.mxu0 %v4066
        %5610 = vmatprep.subr.bf16.mxu0 %v4051
        %5611 = vmatpush1.bf16.msra.mxu0 %v4050
        %5612 = vmatprep.subr.bf16.mxu0 %v4035
        %5613 = vmatpush1.bf16.msra.mxu0 %v4034
        %5614 = vmatprep.subr.bf16.mxu0 %v4019
        %5615 = vmatpush1.bf16.msra.mxu0 %v4018
        %5616 = vmatprep.subr.bf16.mxu0 %v4003
        %5617 = vmatpush1.bf16.msra.mxu0 %v4002
        %5618 = vmatprep.subr.bf16.mxu0 %v3987
        %5619 = vmatpush1.bf16.msra.mxu0 %v3986
        %5620 = vmatprep.subr.bf16.mxu0 %v4227
        %5621 = vmatpush2.bf16.msra.mxu0 %v4226
        %5622 = vmatprep.subr.bf16.mxu0 %v4211
        %5623 = vmatpush2.bf16.msra.mxu0 %v4210
        %5624 = vmatprep.subr.bf16.mxu0 %v4195
        %5625 = vmatpush2.bf16.msra.mxu0 %v4194
        %5626 = vmatprep.subr.bf16.mxu0 %v4179
        %5627 = vmatpush2.bf16.msra.mxu0 %v4178
        %5628 = vmatprep.subr.bf16.mxu0 %v4163
        %5629 = vmatpush2.bf16.msra.mxu0 %v4162
        %5630 = vmatprep.subr.bf16.mxu0 %v4147
        %5631 = vmatpush2.bf16.msra.mxu0 %v4146
        %5632 = vmatprep.subr.bf16.mxu0 %v4131
        %5633 = vmatpush2.bf16.msra.mxu0 %v4130
        %5634 = vmatprep.subr.bf16.mxu0 %v4115
        %5635 = vmatpush2.bf16.msra.mxu0 %v4114
        %5636 = vmatprep.mubr.bf16.mxu0 %v1155
        %5637 = vmatmul.mubr.bf16.gmra.mxu0 %v1154
        %v5638 = vpop.f32.mrf.mxu0
        %v5639 = vadd.f32 %v5596, %v5638
        %v5640 = vpop.f32.mrf.mxu0
        %v5641 = vadd.f32 %v5598, %v5640
        %v5642 = vpop.f32.mrf.mxu0
        %v5643 = vadd.f32 %v5600, %v5642
        %v5644 = vpop.f32.mrf.mxu0
        %v5645 = vadd.f32 %v5602, %v5644
        %5646 = vdwg.mxu0
        %5647 = vmatprep.subr.bf16.mxu0 %v3589
        %5648 = vmatpush1.bf16.msra.mxu0 %v3588
        %5649 = vmatprep.subr.bf16.mxu0 %v3573
        %5650 = vmatpush1.bf16.msra.mxu0 %v3572
        %5651 = vmatprep.subr.bf16.mxu0 %v3557
        %5652 = vmatpush1.bf16.msra.mxu0 %v3556
        %5653 = vmatprep.subr.bf16.mxu0 %v3541
        %5654 = vmatpush1.bf16.msra.mxu0 %v3540
        %5655 = vmatprep.subr.bf16.mxu0 %v3525
        %5656 = vmatpush1.bf16.msra.mxu0 %v3524
        %5657 = vmatprep.subr.bf16.mxu0 %v3509
        %5658 = vmatpush1.bf16.msra.mxu0 %v3508
        %5659 = vmatprep.subr.bf16.mxu0 %v3493
        %5660 = vmatpush1.bf16.msra.mxu0 %v3492
        %5661 = vmatprep.subr.bf16.mxu0 %v3477
        %5662 = vmatpush1.bf16.msra.mxu0 %v3476
        %5663 = vmatprep.subr.bf16.mxu0 %v3717
        %5664 = vmatpush2.bf16.msra.mxu0 %v3716
        %5665 = vmatprep.subr.bf16.mxu0 %v3701
        %5666 = vmatpush2.bf16.msra.mxu0 %v3700
        %5667 = vmatprep.subr.bf16.mxu0 %v3685
        %5668 = vmatpush2.bf16.msra.mxu0 %v3684
        %5669 = vmatprep.subr.bf16.mxu0 %v3669
        %5670 = vmatpush2.bf16.msra.mxu0 %v3668
        %5671 = vmatprep.subr.bf16.mxu0 %v3653
        %5672 = vmatpush2.bf16.msra.mxu0 %v3652
        %5673 = vmatprep.subr.bf16.mxu0 %v3637
        %5674 = vmatpush2.bf16.msra.mxu0 %v3636
        %5675 = vmatprep.subr.bf16.mxu0 %v3621
        %5676 = vmatpush2.bf16.msra.mxu0 %v3620
        %5677 = vmatprep.subr.bf16.mxu0 %v3605
        %5678 = vmatpush2.bf16.msra.mxu0 %v3604
        %5679 = vmatprep.mubr.bf16.mxu0 %v1151
        %5680 = vmatmul.mubr.bf16.gmra.mxu0 %v1150
        %v5681 = vpop.f32.mrf.mxu0
        %v5682 = vadd.f32 %v1095, %v5681
        %v5683 = vpop.f32.mrf.mxu0
        %v5684 = vadd.f32 %v1099, %v5683
        %v5685 = vpop.f32.mrf.mxu0
        %v5686 = vadd.f32 %v1095, %v5685
        %v5687 = vpop.f32.mrf.mxu0
        %v5688 = vadd.f32 %v1099, %v5687
        %5689 = vdwg.mxu0
        %5690 = vmatprep.subr.bf16.mxu0 %v3845
        %5691 = vmatpush1.bf16.msra.mxu0 %v3844
        %5692 = vmatprep.subr.bf16.mxu0 %v3829
        %5693 = vmatpush1.bf16.msra.mxu0 %v3828
        %5694 = vmatprep.subr.bf16.mxu0 %v3813
        %5695 = vmatpush1.bf16.msra.mxu0 %v3812
        %5696 = vmatprep.subr.bf16.mxu0 %v3797
        %5697 = vmatpush1.bf16.msra.mxu0 %v3796
        %5698 = vmatprep.subr.bf16.mxu0 %v3781
        %5699 = vmatpush1.bf16.msra.mxu0 %v3780
        %5700 = vmatprep.subr.bf16.mxu0 %v3765
        %5701 = vmatpush1.bf16.msra.mxu0 %v3764
        %5702 = vmatprep.subr.bf16.mxu0 %v3749
        %5703 = vmatpush1.bf16.msra.mxu0 %v3748
        %5704 = vmatprep.subr.bf16.mxu0 %v3733
        %5705 = vmatpush1.bf16.msra.mxu0 %v3732
        %5706 = vmatprep.subr.bf16.mxu0 %v3973
        %5707 = vmatpush2.bf16.msra.mxu0 %v3972
        %5708 = vmatprep.subr.bf16.mxu0 %v3957
        %5709 = vmatpush2.bf16.msra.mxu0 %v3956
        %5710 = vmatprep.subr.bf16.mxu0 %v3941
        %5711 = vmatpush2.bf16.msra.mxu0 %v3940
        %5712 = vmatprep.subr.bf16.mxu0 %v3925
        %5713 = vmatpush2.bf16.msra.mxu0 %v3924
        %5714 = vmatprep.subr.bf16.mxu0 %v3909
        %5715 = vmatpush2.bf16.msra.mxu0 %v3908
        %5716 = vmatprep.subr.bf16.mxu0 %v3893
        %5717 = vmatpush2.bf16.msra.mxu0 %v3892
        %5718 = vmatprep.subr.bf16.mxu0 %v3877
        %5719 = vmatpush2.bf16.msra.mxu0 %v3876
        %5720 = vmatprep.subr.bf16.mxu0 %v3861
        %5721 = vmatpush2.bf16.msra.mxu0 %v3860
        %5722 = vmatprep.mubr.bf16.mxu0 %v1153
        %5723 = vmatmul.mubr.bf16.gmra.mxu0 %v1152
        %v5724 = vpop.f32.mrf.mxu0
        %v5725 = vadd.f32 %v5682, %v5724
        %v5726 = vpop.f32.mrf.mxu0
        %v5727 = vadd.f32 %v5684, %v5726
        %v5728 = vpop.f32.mrf.mxu0
        %v5729 = vadd.f32 %v5686, %v5728
        %v5730 = vpop.f32.mrf.mxu0
        %v5731 = vadd.f32 %v5688, %v5730
        %5732 = vdwg.mxu0
        %5733 = vmatprep.subr.bf16.mxu0 %v4101
        %5734 = vmatpush1.bf16.msra.mxu0 %v4100
        %5735 = vmatprep.subr.bf16.mxu0 %v4085
        %5736 = vmatpush1.bf16.msra.mxu0 %v4084
        %5737 = vmatprep.subr.bf16.mxu0 %v4069
        %5738 = vmatpush1.bf16.msra.mxu0 %v4068
        %5739 = vmatprep.subr.bf16.mxu0 %v4053
        %5740 = vmatpush1.bf16.msra.mxu0 %v4052
        %5741 = vmatprep.subr.bf16.mxu0 %v4037
        %5742 = vmatpush1.bf16.msra.mxu0 %v4036
        %5743 = vmatprep.subr.bf16.mxu0 %v4021
        %5744 = vmatpush1.bf16.msra.mxu0 %v4020
        %5745 = vmatprep.subr.bf16.mxu0 %v4005
        %5746 = vmatpush1.bf16.msra.mxu0 %v4004
        %5747 = vmatprep.subr.bf16.mxu0 %v3989
        %5748 = vmatpush1.bf16.msra.mxu0 %v3988
        %5749 = vmatprep.subr.bf16.mxu0 %v4229
        %5750 = vmatpush2.bf16.msra.mxu0 %v4228
        %5751 = vmatprep.subr.bf16.mxu0 %v4213
        %5752 = vmatpush2.bf16.msra.mxu0 %v4212
        %5753 = vmatprep.subr.bf16.mxu0 %v4197
        %5754 = vmatpush2.bf16.msra.mxu0 %v4196
        %5755 = vmatprep.subr.bf16.mxu0 %v4181
        %5756 = vmatpush2.bf16.msra.mxu0 %v4180
        %5757 = vmatprep.subr.bf16.mxu0 %v4165
        %5758 = vmatpush2.bf16.msra.mxu0 %v4164
        %5759 = vmatprep.subr.bf16.mxu0 %v4149
        %5760 = vmatpush2.bf16.msra.mxu0 %v4148
        %5761 = vmatprep.subr.bf16.mxu0 %v4133
        %5762 = vmatpush2.bf16.msra.mxu0 %v4132
        %5763 = vmatprep.subr.bf16.mxu0 %v4117
        %5764 = vmatpush2.bf16.msra.mxu0 %v4116
        %5765 = vmatprep.mubr.bf16.mxu0 %v1155
        %5766 = vmatmul.mubr.bf16.gmra.mxu0 %v1154
        %v5767 = vpop.f32.mrf.mxu0
        %v5768 = vadd.f32 %v5725, %v5767
        %v5769 = vpop.f32.mrf.mxu0
        %v5770 = vadd.f32 %v5727, %v5769
        %v5771 = vpop.f32.mrf.mxu0
        %v5772 = vadd.f32 %v5729, %v5771
        %v5773 = vpop.f32.mrf.mxu0
        %v5774 = vadd.f32 %v5731, %v5773
        %5775 = vdwg.mxu0
        %5776 = vmatprep.subr.bf16.mxu0 %v3591
        %5777 = vmatpush1.bf16.msra.mxu0 %v3590
        %5778 = vmatprep.subr.bf16.mxu0 %v3575
        %5779 = vmatpush1.bf16.msra.mxu0 %v3574
        %5780 = vmatprep.subr.bf16.mxu0 %v3559
        %5781 = vmatpush1.bf16.msra.mxu0 %v3558
        %5782 = vmatprep.subr.bf16.mxu0 %v3543
        %5783 = vmatpush1.bf16.msra.mxu0 %v3542
        %5784 = vmatprep.subr.bf16.mxu0 %v3527
        %5785 = vmatpush1.bf16.msra.mxu0 %v3526
        %5786 = vmatprep.subr.bf16.mxu0 %v3511
        %5787 = vmatpush1.bf16.msra.mxu0 %v3510
        %5788 = vmatprep.subr.bf16.mxu0 %v3495
        %5789 = vmatpush1.bf16.msra.mxu0 %v3494
        %5790 = vmatprep.subr.bf16.mxu0 %v3479
        %5791 = vmatpush1.bf16.msra.mxu0 %v3478
        %5792 = vmatprep.subr.bf16.mxu0 %v3719
        %5793 = vmatpush2.bf16.msra.mxu0 %v3718
        %5794 = vmatprep.subr.bf16.mxu0 %v3703
        %5795 = vmatpush2.bf16.msra.mxu0 %v3702
        %5796 = vmatprep.subr.bf16.mxu0 %v3687
        %5797 = vmatpush2.bf16.msra.mxu0 %v3686
        %5798 = vmatprep.subr.bf16.mxu0 %v3671
        %5799 = vmatpush2.bf16.msra.mxu0 %v3670
        %5800 = vmatprep.subr.bf16.mxu0 %v3655
        %5801 = vmatpush2.bf16.msra.mxu0 %v3654
        %5802 = vmatprep.subr.bf16.mxu0 %v3639
        %5803 = vmatpush2.bf16.msra.mxu0 %v3638
        %5804 = vmatprep.subr.bf16.mxu0 %v3623
        %5805 = vmatpush2.bf16.msra.mxu0 %v3622
        %5806 = vmatprep.subr.bf16.mxu0 %v3607
        %5807 = vmatpush2.bf16.msra.mxu0 %v3606
        %5808 = vmatprep.mubr.bf16.mxu0 %v1151
        %5809 = vmatmul.mubr.bf16.gmra.mxu0 %v1150
        %v5810 = vpop.f32.mrf.mxu0
        %v5811 = vadd.f32 %v1103, %v5810
        %v5812 = vpop.f32.mrf.mxu0
        %v5813 = vadd.f32 %v1107, %v5812
        %v5814 = vpop.f32.mrf.mxu0
        %v5815 = vadd.f32 %v1103, %v5814
        %v5816 = vpop.f32.mrf.mxu0
        %v5817 = vadd.f32 %v1107, %v5816
        %5818 = vdwg.mxu0
        %5819 = vmatprep.subr.bf16.mxu0 %v3847
        %5820 = vmatpush1.bf16.msra.mxu0 %v3846
        %5821 = vmatprep.subr.bf16.mxu0 %v3831
        %5822 = vmatpush1.bf16.msra.mxu0 %v3830
        %5823 = vmatprep.subr.bf16.mxu0 %v3815
        %5824 = vmatpush1.bf16.msra.mxu0 %v3814
        %5825 = vmatprep.subr.bf16.mxu0 %v3799
        %5826 = vmatpush1.bf16.msra.mxu0 %v3798
        %5827 = vmatprep.subr.bf16.mxu0 %v3783
        %5828 = vmatpush1.bf16.msra.mxu0 %v3782
        %5829 = vmatprep.subr.bf16.mxu0 %v3767
        %5830 = vmatpush1.bf16.msra.mxu0 %v3766
        %5831 = vmatprep.subr.bf16.mxu0 %v3751
        %5832 = vmatpush1.bf16.msra.mxu0 %v3750
        %5833 = vmatprep.subr.bf16.mxu0 %v3735
        %5834 = vmatpush1.bf16.msra.mxu0 %v3734
        %5835 = vmatprep.subr.bf16.mxu0 %v3975
        %5836 = vmatpush2.bf16.msra.mxu0 %v3974
        %5837 = vmatprep.subr.bf16.mxu0 %v3959
        %5838 = vmatpush2.bf16.msra.mxu0 %v3958
        %5839 = vmatprep.subr.bf16.mxu0 %v3943
        %5840 = vmatpush2.bf16.msra.mxu0 %v3942
        %5841 = vmatprep.subr.bf16.mxu0 %v3927
        %5842 = vmatpush2.bf16.msra.mxu0 %v3926
        %5843 = vmatprep.subr.bf16.mxu0 %v3911
        %5844 = vmatpush2.bf16.msra.mxu0 %v3910
        %5845 = vmatprep.subr.bf16.mxu0 %v3895
        %5846 = vmatpush2.bf16.msra.mxu0 %v3894
        %5847 = vmatprep.subr.bf16.mxu0 %v3879
        %5848 = vmatpush2.bf16.msra.mxu0 %v3878
        %5849 = vmatprep.subr.bf16.mxu0 %v3863
        %5850 = vmatpush2.bf16.msra.mxu0 %v3862
        %5851 = vmatprep.mubr.bf16.mxu0 %v1153
        %5852 = vmatmul.mubr.bf16.gmra.mxu0 %v1152
        %v5853 = vpop.f32.mrf.mxu0
        %v5854 = vadd.f32 %v5811, %v5853
        %v5855 = vpop.f32.mrf.mxu0
        %v5856 = vadd.f32 %v5813, %v5855
        %v5857 = vpop.f32.mrf.mxu0
        %v5858 = vadd.f32 %v5815, %v5857
        %v5859 = vpop.f32.mrf.mxu0
        %v5860 = vadd.f32 %v5817, %v5859
        %5861 = vdwg.mxu0
        %5862 = vmatprep.subr.bf16.mxu0 %v4103
        %5863 = vmatpush1.bf16.msra.mxu0 %v4102
        %5864 = vmatprep.subr.bf16.mxu0 %v4087
        %5865 = vmatpush1.bf16.msra.mxu0 %v4086
        %5866 = vmatprep.subr.bf16.mxu0 %v4071
        %5867 = vmatpush1.bf16.msra.mxu0 %v4070
        %5868 = vmatprep.subr.bf16.mxu0 %v4055
        %5869 = vmatpush1.bf16.msra.mxu0 %v4054
        %5870 = vmatprep.subr.bf16.mxu0 %v4039
        %5871 = vmatpush1.bf16.msra.mxu0 %v4038
        %5872 = vmatprep.subr.bf16.mxu0 %v4023
        %5873 = vmatpush1.bf16.msra.mxu0 %v4022
        %5874 = vmatprep.subr.bf16.mxu0 %v4007
        %5875 = vmatpush1.bf16.msra.mxu0 %v4006
        %5876 = vmatprep.subr.bf16.mxu0 %v3991
        %5877 = vmatpush1.bf16.msra.mxu0 %v3990
        %5878 = vmatprep.subr.bf16.mxu0 %v4231
        %5879 = vmatpush2.bf16.msra.mxu0 %v4230
        %5880 = vmatprep.subr.bf16.mxu0 %v4215
        %5881 = vmatpush2.bf16.msra.mxu0 %v4214
        %5882 = vmatprep.subr.bf16.mxu0 %v4199
        %5883 = vmatpush2.bf16.msra.mxu0 %v4198
        %5884 = vmatprep.subr.bf16.mxu0 %v4183
        %5885 = vmatpush2.bf16.msra.mxu0 %v4182
        %5886 = vmatprep.subr.bf16.mxu0 %v4167
        %5887 = vmatpush2.bf16.msra.mxu0 %v4166
        %5888 = vmatprep.subr.bf16.mxu0 %v4151
        %5889 = vmatpush2.bf16.msra.mxu0 %v4150
        %5890 = vmatprep.subr.bf16.mxu0 %v4135
        %5891 = vmatpush2.bf16.msra.mxu0 %v4134
        %5892 = vmatprep.subr.bf16.mxu0 %v4119
        %5893 = vmatpush2.bf16.msra.mxu0 %v4118
        %5894 = vmatprep.mubr.bf16.mxu0 %v1155
        %5895 = vmatmul.mubr.bf16.gmra.mxu0 %v1154
        %v5896 = vpop.f32.mrf.mxu0
        %v5897 = vadd.f32 %v5854, %v5896
        %v5898 = vpop.f32.mrf.mxu0
        %v5899 = vadd.f32 %v5856, %v5898
        %v5900 = vpop.f32.mrf.mxu0
        %v5901 = vadd.f32 %v5858, %v5900
        %v5902 = vpop.f32.mrf.mxu0
        %v5903 = vadd.f32 %v5860, %v5902
        %5904 = vdwg.mxu0
        %5905 = vmatprep.subr.bf16.mxu0 %v3593
        %5906 = vmatpush1.bf16.msra.mxu0 %v3592
        %5907 = vmatprep.subr.bf16.mxu0 %v3577
        %5908 = vmatpush1.bf16.msra.mxu0 %v3576
        %5909 = vmatprep.subr.bf16.mxu0 %v3561
        %5910 = vmatpush1.bf16.msra.mxu0 %v3560
        %5911 = vmatprep.subr.bf16.mxu0 %v3545
        %5912 = vmatpush1.bf16.msra.mxu0 %v3544
        %5913 = vmatprep.subr.bf16.mxu0 %v3529
        %5914 = vmatpush1.bf16.msra.mxu0 %v3528
        %5915 = vmatprep.subr.bf16.mxu0 %v3513
        %5916 = vmatpush1.bf16.msra.mxu0 %v3512
        %5917 = vmatprep.subr.bf16.mxu0 %v3497
        %5918 = vmatpush1.bf16.msra.mxu0 %v3496
        %5919 = vmatprep.subr.bf16.mxu0 %v3481
        %5920 = vmatpush1.bf16.msra.mxu0 %v3480
        %5921 = vmatprep.subr.bf16.mxu0 %v3721
        %5922 = vmatpush2.bf16.msra.mxu0 %v3720
        %5923 = vmatprep.subr.bf16.mxu0 %v3705
        %5924 = vmatpush2.bf16.msra.mxu0 %v3704
        %5925 = vmatprep.subr.bf16.mxu0 %v3689
        %5926 = vmatpush2.bf16.msra.mxu0 %v3688
        %5927 = vmatprep.subr.bf16.mxu0 %v3673
        %5928 = vmatpush2.bf16.msra.mxu0 %v3672
        %5929 = vmatprep.subr.bf16.mxu0 %v3657
        %5930 = vmatpush2.bf16.msra.mxu0 %v3656
        %5931 = vmatprep.subr.bf16.mxu0 %v3641
        %5932 = vmatpush2.bf16.msra.mxu0 %v3640
        %5933 = vmatprep.subr.bf16.mxu0 %v3625
        %5934 = vmatpush2.bf16.msra.mxu0 %v3624
        %5935 = vmatprep.subr.bf16.mxu0 %v3609
        %5936 = vmatpush2.bf16.msra.mxu0 %v3608
        %5937 = vmatprep.mubr.bf16.mxu0 %v1151
        %5938 = vmatmul.mubr.bf16.gmra.mxu0 %v1150
        %v5939 = vpop.f32.mrf.mxu0
        %v5940 = vadd.f32 %v1111, %v5939
        %v5941 = vpop.f32.mrf.mxu0
        %v5942 = vadd.f32 %v1115, %v5941
        %v5943 = vpop.f32.mrf.mxu0
        %v5944 = vadd.f32 %v1111, %v5943
        %v5945 = vpop.f32.mrf.mxu0
        %v5946 = vadd.f32 %v1115, %v5945
        %5947 = vdwg.mxu0
        %5948 = vmatprep.subr.bf16.mxu0 %v3849
        %5949 = vmatpush1.bf16.msra.mxu0 %v3848
        %5950 = vmatprep.subr.bf16.mxu0 %v3833
        %5951 = vmatpush1.bf16.msra.mxu0 %v3832
        %5952 = vmatprep.subr.bf16.mxu0 %v3817
        %5953 = vmatpush1.bf16.msra.mxu0 %v3816
        %5954 = vmatprep.subr.bf16.mxu0 %v3801
        %5955 = vmatpush1.bf16.msra.mxu0 %v3800
        %5956 = vmatprep.subr.bf16.mxu0 %v3785
        %5957 = vmatpush1.bf16.msra.mxu0 %v3784
        %5958 = vmatprep.subr.bf16.mxu0 %v3769
        %5959 = vmatpush1.bf16.msra.mxu0 %v3768
        %5960 = vmatprep.subr.bf16.mxu0 %v3753
        %5961 = vmatpush1.bf16.msra.mxu0 %v3752
        %5962 = vmatprep.subr.bf16.mxu0 %v3737
        %5963 = vmatpush1.bf16.msra.mxu0 %v3736
        %5964 = vmatprep.subr.bf16.mxu0 %v3977
        %5965 = vmatpush2.bf16.msra.mxu0 %v3976
        %5966 = vmatprep.subr.bf16.mxu0 %v3961
        %5967 = vmatpush2.bf16.msra.mxu0 %v3960
        %5968 = vmatprep.subr.bf16.mxu0 %v3945
        %5969 = vmatpush2.bf16.msra.mxu0 %v3944
        %5970 = vmatprep.subr.bf16.mxu0 %v3929
        %5971 = vmatpush2.bf16.msra.mxu0 %v3928
        %5972 = vmatprep.subr.bf16.mxu0 %v3913
        %5973 = vmatpush2.bf16.msra.mxu0 %v3912
        %5974 = vmatprep.subr.bf16.mxu0 %v3897
        %5975 = vmatpush2.bf16.msra.mxu0 %v3896
        %5976 = vmatprep.subr.bf16.mxu0 %v3881
        %5977 = vmatpush2.bf16.msra.mxu0 %v3880
        %5978 = vmatprep.subr.bf16.mxu0 %v3865
        %5979 = vmatpush2.bf16.msra.mxu0 %v3864
        %5980 = vmatprep.mubr.bf16.mxu0 %v1153
        %5981 = vmatmul.mubr.bf16.gmra.mxu0 %v1152
        %v5982 = vpop.f32.mrf.mxu0
        %v5983 = vadd.f32 %v5940, %v5982
        %v5984 = vpop.f32.mrf.mxu0
        %v5985 = vadd.f32 %v5942, %v5984
        %v5986 = vpop.f32.mrf.mxu0
        %v5987 = vadd.f32 %v5944, %v5986
        %v5988 = vpop.f32.mrf.mxu0
        %v5989 = vadd.f32 %v5946, %v5988
        %5990 = vdwg.mxu0
        %5991 = vmatprep.subr.bf16.mxu0 %v4105
        %5992 = vmatpush1.bf16.msra.mxu0 %v4104
        %5993 = vmatprep.subr.bf16.mxu0 %v4089
        %5994 = vmatpush1.bf16.msra.mxu0 %v4088
        %5995 = vmatprep.subr.bf16.mxu0 %v4073
        %5996 = vmatpush1.bf16.msra.mxu0 %v4072
        %5997 = vmatprep.subr.bf16.mxu0 %v4057
        %5998 = vmatpush1.bf16.msra.mxu0 %v4056
        %5999 = vmatprep.subr.bf16.mxu0 %v4041
        %6000 = vmatpush1.bf16.msra.mxu0 %v4040
        %6001 = vmatprep.subr.bf16.mxu0 %v4025
        %6002 = vmatpush1.bf16.msra.mxu0 %v4024
        %6003 = vmatprep.subr.bf16.mxu0 %v4009
        %6004 = vmatpush1.bf16.msra.mxu0 %v4008
        %6005 = vmatprep.subr.bf16.mxu0 %v3993
        %6006 = vmatpush1.bf16.msra.mxu0 %v3992
        %6007 = vmatprep.subr.bf16.mxu0 %v4233
        %6008 = vmatpush2.bf16.msra.mxu0 %v4232
        %6009 = vmatprep.subr.bf16.mxu0 %v4217
        %6010 = vmatpush2.bf16.msra.mxu0 %v4216
        %6011 = vmatprep.subr.bf16.mxu0 %v4201
        %6012 = vmatpush2.bf16.msra.mxu0 %v4200
        %6013 = vmatprep.subr.bf16.mxu0 %v4185
        %6014 = vmatpush2.bf16.msra.mxu0 %v4184
        %6015 = vmatprep.subr.bf16.mxu0 %v4169
        %6016 = vmatpush2.bf16.msra.mxu0 %v4168
        %6017 = vmatprep.subr.bf16.mxu0 %v4153
        %6018 = vmatpush2.bf16.msra.mxu0 %v4152
        %6019 = vmatprep.subr.bf16.mxu0 %v4137
        %6020 = vmatpush2.bf16.msra.mxu0 %v4136
        %6021 = vmatprep.subr.bf16.mxu0 %v4121
        %6022 = vmatpush2.bf16.msra.mxu0 %v4120
        %6023 = vmatprep.mubr.bf16.mxu0 %v1155
        %6024 = vmatmul.mubr.bf16.gmra.mxu0 %v1154
        %v6025 = vpop.f32.mrf.mxu0
        %v6026 = vadd.f32 %v5983, %v6025
        %v6027 = vpop.f32.mrf.mxu0
        %v6028 = vadd.f32 %v5985, %v6027
        %v6029 = vpop.f32.mrf.mxu0
        %v6030 = vadd.f32 %v5987, %v6029
        %v6031 = vpop.f32.mrf.mxu0
        %v6032 = vadd.f32 %v5989, %v6031
        %6033 = vdwg.mxu0
        %6034 = vst [vmem:[%s258] sm:$0xff] %v5123
        %6035 = vst [vmem:[%s258 + $0x8] sm:$0xff] %v5125
        %6036 = vst [vmem:[%s258 + $0x10] sm:$0xff] %v5252
        %6037 = vst [vmem:[%s258 + $0x18] sm:$0xff] %v5254
        %6038 = vst [vmem:[%s258 + $0x20] sm:$0xff] %v5381
        %6039 = vst [vmem:[%s258 + $0x28] sm:$0xff] %v5383
        %6040 = vst [vmem:[%s258 + $0x30] sm:$0xff] %v5510
        %6041 = vst [vmem:[%s258 + $0x38] sm:$0xff] %v5512
        %6042 = vst [vmem:[%s258 + $0x40] sm:$0xff] %v5639
        %6043 = vst [vmem:[%s258 + $0x48] sm:$0xff] %v5641
        %6044 = vst [vmem:[%s258 + $0x50] sm:$0xff] %v5768
        %6045 = vst [vmem:[%s258 + $0x58] sm:$0xff] %v5770
        %6046 = vst [vmem:[%s258 + $0x60] sm:$0xff] %v5897
        %6047 = vst [vmem:[%s258 + $0x68] sm:$0xff] %v5899
        %6048 = vst [vmem:[%s258 + $0x70] sm:$0xff] %v6026
        %6049 = vst [vmem:[%s258 + $0x78] sm:$0xff] %v6028
        %6050 = vst [vmem:[%s258 + $0x80] sm:$0xff] %v5127
        %6051 = vst [vmem:[%s258 + $0x88] sm:$0xff] %v5129
        %6052 = vst [vmem:[%s258 + $0x90] sm:$0xff] %v5256
        %6053 = vst [vmem:[%s258 + $0x98] sm:$0xff] %v5258
        %6054 = vst [vmem:[%s258 + $0xa0] sm:$0xff] %v5385
        %6055 = vst [vmem:[%s258 + $0xa8] sm:$0xff] %v5387
        %6056 = vst [vmem:[%s258 + $0xb0] sm:$0xff] %v5514
        %6057 = vst [vmem:[%s258 + $0xb8] sm:$0xff] %v5516
        %6058 = vst [vmem:[%s258 + $0xc0] sm:$0xff] %v5643
        %6059 = vst [vmem:[%s258 + $0xc8] sm:$0xff] %v5645
        %6060 = vst [vmem:[%s258 + $0xd0] sm:$0xff] %v5772
        %6061 = vst [vmem:[%s258 + $0xd8] sm:$0xff] %v5774
        %6062 = vst [vmem:[%s258 + $0xe0] sm:$0xff] %v5901
        %6063 = vst [vmem:[%s258 + $0xe8] sm:$0xff] %v5903
        %6064 = vst [vmem:[%s258 + $0xf0] sm:$0xff] %v6030
        %6065 = vst [vmem:[%s258 + $0xf8] sm:$0xff] %v6032
        %s6066 = sand.u32 %s123, 1
        %s6067 = scalar_lea.sflag [#allocation4], %s6066
        %s6068 = sand.u32 %s123, 1
        %s6069 = smul.addr %s6068, 256
        %s6070 = scalar_lea.vmem [#allocation7], %s6069
        // Predicated region
        $region41: #{mlm_head.3} parent=31 // pred_check
          %p6071 = pneg %p133
        $region42: #{mlm_head.3} parent=31 // pred_check_branch
          %6073 = sbr.rel (%p6071) target = $region44
        $region43: #{mlm_head.3} parent=31 // pred_region
          %s6074 = smul.u32 2, %s28
          %s6075 = smul.u32 16, %s27
          %s6076 = ssub.s32 387, %s6075
          %p6077 = scmp.lt.s32.totalorder %s6076, 16
          %s6078 = scalar_select %p6077, %s6076, 16
          %s6079 = smul.u32 256, %s6078
          %s6081 = ssub.s32 4096, %s6079
          %6082 = vsyncadd %s6067, %s6081
          %p6083 = scmp.ne.s32.totalorder 0, %s6079
          %s6084 = smul.addr %s6074, 387
          %s6085 = sadd.s32 %s6075, %s6084
          %s6086 = smul.addr %s6085, 128
          %s6087 = scalar_lea.hbm %s3, %s6086
          %s6088 = smul.u32 %s6078, 8
          %s6089 = smul.u32 %s6088, 2
          %s6090 = sshll.u32 %s6070, 4
          %s6091 = int_to_ptr.vmem [resolvable:$true] %s6090
          %s6092 = sshll.u32 %s6089, 4
          %6096 = dma.vmem_to_hbm [thread:$0]  (%p6083), %s6091, %s6092, %s6087, %s6067, 2048, 49536, %s6088
        $region44: #{mlm_head.3} parent=31 // pred_fallthru
          _
      $region32: #{mlm_head.3} parent=5 // pred_fallthru
        _
      %p6097 = scmp.le.s32.totalorder 2, %s18
      // Predicated region
      $region45: #{mlm_head.3} parent=5 // pred_check
        %p6098 = pneg %p6097
      $region46: #{mlm_head.3} parent=5 // pred_check_branch
        %6100 = sbr.rel (%p6098) target = $region48
      $region47: #{mlm_head.3} parent=5 // pred_region
        %s6101 = ssub.s32 %s18, 2
        // Predicated region
        $region49: #{mlm_head.3} parent=47 // pred_check
          %p6102 = pneg %p139
        $region50: #{mlm_head.3} parent=47 // pred_check_branch
          %6104 = sbr.rel (%p6102) target = $region52
        $region51: #{mlm_head.3} parent=47 // pred_region
          %s6105 = sand.u32 %s124, 1
          %s6106 = scalar_lea.sflag [#allocation4], %s6105
          %s6107 = sand.u32 %s124, 1
          %s6108 = smul.addr %s6107, 256
          %s6109 = scalar_lea.vmem [#allocation7], %s6108
          %6110 = dma.done %s6106, 4096
        $region52: #{mlm_head.3} parent=47 // pred_fallthru
          _
      $region48: #{mlm_head.3} parent=5 // pred_fallthru
        _
    $region6: #{mlm_head.3} parent=1 // loop_footer
      %s22 = sadd.s32 1, %s18
    $region7: #{mlm_head.3} parent=1 // loop_footer_branch
      %17 = sbr.rel target = $region3
    $region8: #{mlm_head.3} parent=1 // loop_exit
      _
    %6111 = vsyncpa [#allocation3], 1
    %s6112 = scalar_lea.sflag [#allocation3], 1
    %6113 = vsyncpa %s6112, 1
    %6114 = vsyncpa [#allocation6], 1
    %s6115 = scalar_lea.sflag [#allocation6], 1
    %6116 = vsyncpa %s6115, 1
    %6117 = vsyncpa [#allocation4], 1
    %s6118 = scalar_lea.sflag [#allocation4], 1
    %6119 = vsyncpa %s6118, 1

</llo_original>
